<compile_context>
chip_gen: v7x
topology: tpu7x:2x2x1
jax: 0.10.0
libtpu: 0.0.40
codegen_flags: <defaults>
</compile_context>

<pallas_src>
import functools

import jax
import jax.numpy as jnp
from jax.experimental import pallas as pl
from jax.experimental.pallas import tpu as pltpu

LANES = 128


def _round_up(n, m):
    return ((n + m - 1) // m) * m


# ---------------------------------------------------------------------------
# fused  conv3x3(+BN)+ReLU -> conv3x3(+BN)+ReLU      (activation=True path)
# ---------------------------------------------------------------------------
def _zero_halo_ring(ref, H, W, pad):
    """Zero only the halo ring the K*K taps actually read.

    The interior [pad:pad+H, pad:pad+W] is fully overwritten every grid step
    and columns >= W + 2*pad of the width-padded scratch are never read, so
    neither needs clearing (review: no redundant full-buffer clears).  Doing
    this every step keeps it correct under megacore 'parallel' scheduling.
    """
    Hp, Wpp, C = ref.shape
    zrow = jnp.zeros((pad, Wpp, C), ref.dtype)
    zcol = jnp.zeros((Hp, pad, C), ref.dtype)
    ref[0:pad, :, :] = zrow                          # top halo rows
    ref[pad + H:pad + H + pad, :, :] = zrow          # bottom halo rows
    ref[:, 0:pad, :] = zcol                          # left halo cols
    ref[:, pad + W:pad + W + pad, :] = zcol          # right halo cols


def _double_conv_kernel(x_ref, w1_ref, b1_ref, w2_ref, b2_ref, o_ref,
                        src1_ref, src2_ref, *, H, W, K):
    """One image per grid step; both conv layers fused, intermediate in VMEM.

    x_ref  : (H, W, Cin)        f32   raw input block (no HBM-side padding)
    w1_ref : (K*K, Cin, Cmid)   bf16  per-tap weights, BN scale folded in
    b1_ref : (1, Cmid)          f32   folded bias
    w2_ref : (K*K, Cmid, Cp)    bf16  (Cp = out_ch padded to 128 lanes)
    b2_ref : (1, Cp)            f32
    o_ref  : (H*W, Cp)          bf16  lane-dense output block
    src1/2 : (Hp, Wpp, C)       bf16  zero-halo scratches (layer-1 / layer-2 in)
    """
    pad = K // 2
    HW = H * W

    def conv_layer(src_ref, w_ref, b_ref):
        # K*K shifted matmuls accumulated in registers (no im2col slab):
        # each tap feeds the MXU directly, contraction = true channel count.
        Ck = w_ref.shape[1]
        Cn = w_ref.shape[2]
        acc = jnp.zeros((HW, Cn), jnp.float32)
        for t in range(K * K):
            dy, dx = divmod(t, K)
            tap = src_ref[dy:dy + H, dx:dx + W, :].reshape(HW, Ck)
            acc = acc + jnp.dot(tap, w_ref[t],
                                preferred_element_type=jnp.float32)
        return jnp.maximum(acc + b_ref[...], 0.0)

    # ---- stage raw input into the layer-1 zero-halo scratch ----------------
    _zero_halo_ring(src1_ref, H, W, pad)
    src1_ref[pad:pad + H, pad:pad + W, :] = x_ref[...].astype(src1_ref.dtype)

    # ---- layer 1: conv3x3 (+ folded BN) + ReLU ------------------------------
    y1 = conv_layer(src1_ref, w1_ref, b1_ref)        # (HW, Cmid) f32

    # ---- hand the activation to layer 2 without touching HBM ---------------
    _zero_halo_ring(src2_ref, H, W, pad)
    Cmid = w1_ref.shape[-1]
    src2_ref[pad:pad + H, pad:pad + W, :] = (
        y1.reshape(H, W, Cmid).astype(src2_ref.dtype))

    # ---- layer 2: conv3x3 (+ folded BN) + ReLU ------------------------------
    y2 = conv_layer(src2_ref, w2_ref, b2_ref)        # (HW, Cp) f32
    o_ref[...] = y2.astype(o_ref.dtype)              # lane-dense bf16 store


def double_conv3x3(x_nhwc, w1, b1, w2, b2, out_ch):
    """Fused (conv3x3+BN+ReLU) x2 for a batch of NHWC images."""
    N, H, W, Cin = x_nhwc.shape
    K = 3
    pad = K // 2
    Cmid = w1.shape[-1]          # true intermediate width (== out_ch)
    Cp = w2.shape[-1]            # 128-lane padded output width
    Hp = H + 2 * pad
    Wpp = _round_up(W + 2 * pad, 16)   # bf16 sublane-friendly scratch width

    kernel = functools.partial(_double_conv_kernel, H=H, W=W, K=K)
    out = pl.pallas_call(
        kernel,
        out_shape=jax.ShapeDtypeStruct((N, H * W, Cp), jnp.bfloat16),
        grid=(N,),
        in_specs=[
            # raw input block: last two dims (W, Cin) equal the full array dims
            pl.BlockSpec((None, H, W, Cin), lambda n: (n, 0, 0, 0)),
            pl.BlockSpec((K * K, Cin, Cmid), lambda n: (0, 0, 0)),
            pl.BlockSpec((1, Cmid), lambda n: (0, 0)),
            pl.BlockSpec((K * K, Cmid, Cp), lambda n: (0, 0, 0)),
            pl.BlockSpec((1, Cp), lambda n: (0, 0)),
        ],
        out_specs=pl.BlockSpec((None, H * W, Cp), lambda n: (n, 0, 0)),
        scratch_shapes=[
            pltpu.VMEM((Hp, Wpp, Cin), jnp.bfloat16),   # layer-1 halo input
            pltpu.VMEM((Hp, Wpp, Cmid), jnp.bfloat16),  # layer-1 out / layer-2 in
        ],
        compiler_params=pltpu.CompilerParams(
            dimension_semantics=("parallel",)),
    )(x_nhwc, w1, b1.reshape(1, -1), w2, b2.reshape(1, -1))

    # (N, H*W, Cp) -> (N, H, W, Cp) is a free reshape; drop the padded channels.
    return out.reshape(N, H, W, Cp)[..., :out_ch]


# ---------------------------------------------------------------------------
# pointwise conv (1x1)                               (activation=False path)
# ---------------------------------------------------------------------------
def _conv1x1_kernel(x_ref, w_ref, b_ref, o_ref):
    y = jnp.dot(x_ref[...].astype(jnp.bfloat16), w_ref[...],
                preferred_element_type=jnp.float32)
    o_ref[...] = (y + b_ref[...]).astype(o_ref.dtype)


def conv1x1(x_nhwc, w_mat, b_p, out_ch):
    N, H, W, Cin = x_nhwc.shape
    Cp = w_mat.shape[-1]
    M = N * H * W
    # fold every image into one flat GEMM; big row tiles (fewer grid steps,
    # larger DMA bursts), bf16 output halves the writeback.
    TM = 1024 if M > 1024 else _round_up(M, 8)
    Mp = _round_up(M, TM)
    x2d = x_nhwc.reshape(M, Cin)
    if Mp != M:
        x2d = jnp.pad(x2d, ((0, Mp - M), (0, 0)))
    out = pl.pallas_call(
        _conv1x1_kernel,
        out_shape=jax.ShapeDtypeStruct((Mp, Cp), jnp.bfloat16),
        grid=(Mp // TM,),
        in_specs=[
            pl.BlockSpec((TM, Cin), lambda i: (i, 0)),
            pl.BlockSpec((Cin, Cp), lambda i: (0, 0)),
            pl.BlockSpec((1, Cp), lambda i: (0, 0)),
        ],
        out_specs=pl.BlockSpec((TM, Cp), lambda i: (i, 0)),
        compiler_params=pltpu.CompilerParams(
            dimension_semantics=("parallel",)),
    )(x2d, w_mat, b_p.reshape(1, -1))
    return out[:M, :out_ch].reshape(N, H, W, out_ch)


# ---------------------------------------------------------------------------
# module wrapper with deterministic synthetic parameters
# ---------------------------------------------------------------------------
class ConvBlock:
    """Pallas port of the PyTorch `conv` module (eval-mode BatchNorm)."""

    def __init__(self, in_ch, out_ch, activation=True, *, key):
        self.activation = activation
        self.out_ch = out_ch
        eps = 1e-5
        cout_p = _round_up(out_ch, LANES)
        self.ref_layers = []   # (w_oihw, scale, bias, relu) for the JAX reference

        def conv_w(k_, o, i, ksz):
            bound = 1.0 / jnp.sqrt(jnp.float32(i * ksz * ksz))
            return jax.random.uniform(k_, (o, i, ksz, ksz), jnp.float32,
                                      -bound, bound)

        def pack_3x3(w_oihw, scale, bias, co_pad):
            # fold BN scale; OIHW -> (K*K, Cin, Cout_pad) per-tap matrices
            co, ci, ksz, _ = w_oihw.shape
            w = jnp.transpose(w_oihw * scale[:, None, None, None], (2, 3, 1, 0))
            w = w.reshape(ksz * ksz, ci, co)
            w = jnp.pad(w, ((0, 0), (0, 0),
                            (0, co_pad - co))).astype(jnp.bfloat16)
            b = jnp.pad(bias, (0, co_pad - co)).astype(jnp.float32)
            return w, b

        if activation:
            ks = jax.random.split(key, 12)
            self.params = []
            # layer 1 keeps its true (in_ch -> out_ch) width; only the final
            # output channels are padded to 128 for a lane-dense HBM store.
            widths = [(in_ch, out_ch), (out_ch, cout_p)]
            for li, (ci, co_pad) in enumerate(widths):
                kk = ks[6 * li: 6 * (li + 1)]
                w_oihw = conv_w(kk[0], out_ch, ci, 3)
                b_conv = 0.1 * jax.random.normal(kk[1], (out_ch,), jnp.float32)
                gamma = 1.0 + 0.1 * jax.random.normal(kk[2], (out_ch,), jnp.float32)
                beta = 0.1 * jax.random.normal(kk[3], (out_ch,), jnp.float32)
                r_mean = 0.1 * jax.random.normal(kk[4], (out_ch,), jnp.float32)
                r_var = jnp.abs(jax.random.normal(kk[5], (out_ch,), jnp.float32)) + 0.5
                scale = gamma / jnp.sqrt(r_var + eps)      # BN fold (eval mode)
                bias = beta + scale * (b_conv - r_mean)
                self.ref_layers.append((w_oihw, scale, bias, True))
                self.params.append(pack_3x3(w_oihw, scale, bias, co_pad))
        else:
            k0, k1 = jax.random.split(key)
            w_oihw = conv_w(k0, out_ch, in_ch, 1)
            b_conv = 0.1 * jax.random.normal(k1, (out_ch,), jnp.float32)
            self.ref_layers.append(
                (w_oihw, jnp.ones((out_ch,), jnp.float32), b_conv, False))
            w_mat = jnp.pad(w_oihw[:, :, 0, 0].T,
                            ((0, 0), (0, cout_p - out_ch))).astype(jnp.bfloat16)
            b_pad = jnp.pad(b_conv, (0, cout_p - out_ch)).astype(jnp.float32)
            self.params = [(w_mat, b_pad)]

    def __call__(self, x_nchw):
        # the only layout passes: one NCHW<->NHWC pair at the PyTorch boundary
        x = jnp.transpose(x_nchw, (0, 2, 3, 1))
        if self.activation:
            (w1, b1), (w2, b2) = self.params
            y = double_conv3x3(x, w1, b1, w2, b2, self.out_ch)
        else:
            (w, b), = self.params
            y = conv1x1(x, w, b, self.out_ch)
        return jnp.transpose(y, (0, 3, 1, 2)).astype(jnp.float32)


def reference_forward(block, x_nchw):
    """Pure-JAX f32 reference (lax.conv) with the same eval-mode BN params."""
    x = x_nchw
    for (w_oihw, scale, bias, relu) in block.ref_layers:
        K = w_oihw.shape[-1]
        pad = K // 2
        y = jax.lax.conv_general_dilated(
            x, w_oihw, window_strides=(1, 1),
            padding=((pad, pad), (pad, pad)),
            dimension_numbers=('NCHW', 'OIHW', 'NCHW'))
        y = y * scale[None, :, None, None] + bias[None, :, None, None]
        if relu:
            y = jnp.maximum(y, 0.0)
        x = y
    return x


def _check(y, y_ref, tag):
    # bf16 MXU operands + bf16 intermediate/output (f32 accumulation)
    err = float(jnp.max(jnp.abs(y - y_ref)))
    tol = 3e-2 * float(jnp.max(jnp.abs(y_ref))) + 1.5e-2
    assert err <= tol, f"{tag} mismatch: max_err={err:.5f} tol={tol:.5f}"


if __name__ == "__main__":
    key = jax.random.PRNGKey(0)
    kx, kp1, kp2 = jax.random.split(key, 3)

    N, Cin, H, W = 2, 4, 16, 16
    Cout = 8
    x = jax.random.normal(kx, (N, Cin, H, W), jnp.float32)

    # activation=True path: fused conv3x3+BN+ReLU x2 in one pallas_call
    block = ConvBlock(Cin, Cout, activation=True, key=kp1)
    y = jax.block_until_ready(block(x))
    assert y.shape == (N, Cout, H, W)
    _check(y, reference_forward(block, x), "3x3 path")

    # activation=False path: conv1x1 as one flat GEMM
    block1 = ConvBlock(Cin, Cout, activation=False, key=kp2)
    y1 = jax.block_until_ready(block1(x))
    assert y1.shape == (N, Cout, H, W)
    _check(y1, reference_forward(block1, x), "1x1 path")

    print("KERNEL_OK")
</pallas_src>

<mosaic_0001>
module attributes {stable_mosaic.version = 11 : i64} {
  func.func @_double_conv_kernel(%arg0: i32, %arg1: memref<1x16x16x4xf32, #tpu.memory_space<vmem>>, %arg2: memref<9x4x8xbf16, #tpu.memory_space<vmem>>, %arg3: memref<1x8xf32, #tpu.memory_space<vmem>>, %arg4: memref<9x8x128xbf16, #tpu.memory_space<vmem>>, %arg5: memref<1x128xf32, #tpu.memory_space<vmem>>, %arg6: memref<1x256x128xbf16, #tpu.memory_space<vmem>>, %arg7: memref<18x32x4xbf16, #tpu.memory_space<vmem>>, %arg8: memref<18x32x8xbf16, #tpu.memory_space<vmem>>) attributes {dimension_semantics = [#tpu.dimension_semantics<parallel>], iteration_bounds = array<i64: 2>, scalar_prefetch = 0 : i64, scratch_operands = 2 : i64, tpu.core_type = #tpu.core_type<tc>, window_params = [{transform_indices = @transform_0, window_bounds = array<i64: 1, 16, 16, 4>}, {pipeline_mode = #tpu.pipeline_mode<synchronous>, transform_indices = @transform_1, window_bounds = array<i64: 9, 4, 8>}, {pipeline_mode = #tpu.pipeline_mode<synchronous>, transform_indices = @transform_2, window_bounds = array<i64: 1, 8>}, {pipeline_mode = #tpu.pipeline_mode<synchronous>, transform_indices = @transform_3, window_bounds = array<i64: 9, 8, 128>}, {pipeline_mode = #tpu.pipeline_mode<synchronous>, transform_indices = @transform_4, window_bounds = array<i64: 1, 128>}, {transform_indices = @transform_5, window_bounds = array<i64: 1, 256, 128>}]} {
    %cst = arith.constant 0.000000e+00 : bf16
    %0 = vector.broadcast %cst : bf16 to vector<1x32x4xbf16>
    %cst_0 = arith.constant 0.000000e+00 : bf16
    %1 = vector.broadcast %cst_0 : bf16 to vector<18x1x4xbf16>
    %c0 = arith.constant 0 : index
    %c0_1 = arith.constant 0 : index
    %c0_2 = arith.constant 0 : index
    %2 = vector.load %arg7[%c0, %c0_1, %c0_2] : memref<18x32x4xbf16, #tpu.memory_space<vmem>>, vector<1x32x4xbf16>
    tpu.vector_store %arg7[%c0, %c0_1, %c0_2], %0 {strides = array<i32>} : memref<18x32x4xbf16, #tpu.memory_space<vmem>>, vector<1x32x4xbf16>,
    %c17 = arith.constant 17 : index
    %c0_3 = arith.constant 0 : index
    %c0_4 = arith.constant 0 : index
    %3 = vector.load %arg7[%c17, %c0_3, %c0_4] : memref<18x32x4xbf16, #tpu.memory_space<vmem>>, vector<1x32x4xbf16>
    tpu.vector_store %arg7[%c17, %c0_3, %c0_4], %0 {strides = array<i32>} : memref<18x32x4xbf16, #tpu.memory_space<vmem>>, vector<1x32x4xbf16>,
    %c0_5 = arith.constant 0 : index
    %c0_6 = arith.constant 0 : index
    %c0_7 = arith.constant 0 : index
    %4 = vector.load %arg7[%c0_5, %c0_6, %c0_7] : memref<18x32x4xbf16, #tpu.memory_space<vmem>>, vector<18x1x4xbf16>
    tpu.vector_store %arg7[%c0_5, %c0_6, %c0_7], %1 {strides = array<i32>} : memref<18x32x4xbf16, #tpu.memory_space<vmem>>, vector<18x1x4xbf16>,
    %c0_8 = arith.constant 0 : index
    %c17_9 = arith.constant 17 : index
    %c0_10 = arith.constant 0 : index
    %5 = vector.load %arg7[%c0_8, %c17_9, %c0_10] : memref<18x32x4xbf16, #tpu.memory_space<vmem>>, vector<18x1x4xbf16>
    tpu.vector_store %arg7[%c0_8, %c17_9, %c0_10], %1 {strides = array<i32>} : memref<18x32x4xbf16, #tpu.memory_space<vmem>>, vector<18x1x4xbf16>,
    %c0_11 = arith.constant 0 : index
    %c0_12 = arith.constant 0 : index
    %c0_13 = arith.constant 0 : index
    %c0_14 = arith.constant 0 : index
    %6 = vector.load %arg1[%c0_11, %c0_12, %c0_13, %c0_14] : memref<1x16x16x4xf32, #tpu.memory_space<vmem>>, vector<1x16x16x4xf32>
    %7 = vector.shape_cast %6 : vector<1x16x16x4xf32> to vector<16x16x4xf32>
    %8 = arith.truncf %7 : vector<16x16x4xf32> to vector<16x16x4xbf16>
    %c1 = arith.constant 1 : index
    %c1_15 = arith.constant 1 : index
    %c0_16 = arith.constant 0 : index
    %9 = vector.load %arg7[%c1, %c1_15, %c0_16] : memref<18x32x4xbf16, #tpu.memory_space<vmem>>, vector<16x16x4xbf16>
    tpu.vector_store %arg7[%c1, %c1_15, %c0_16], %8 {strides = array<i32>} : memref<18x32x4xbf16, #tpu.memory_space<vmem>>, vector<16x16x4xbf16>,
    %cst_17 = arith.constant 0.000000e+00 : f32
    %10 = vector.broadcast %cst_17 : f32 to vector<256x8xf32>
    %c0_18 = arith.constant 0 : index
    %c0_19 = arith.constant 0 : index
    %c0_20 = arith.constant 0 : index
    %11 = vector.load %arg7[%c0_18, %c0_19, %c0_20] : memref<18x32x4xbf16, #tpu.memory_space<vmem>>, vector<16x16x4xbf16>
    %12 = vector.shape_cast %11 : vector<16x16x4xbf16> to vector<256x4xbf16>
    %c0_21 = arith.constant 0 : index
    %c0_22 = arith.constant 0 : index
    %c0_23 = arith.constant 0 : index
    %13 = vector.load %arg2[%c0_21, %c0_22, %c0_23] : memref<9x4x8xbf16, #tpu.memory_space<vmem>>, vector<1x4x8xbf16>
    %14 = vector.shape_cast %13 : vector<1x4x8xbf16> to vector<4x8xbf16>
    %cst_24 = arith.constant dense<0.000000e+00> : vector<256x8xf32>
    %15 = tpu.matmul %12, %14, %cst_24 {dimension_numbers = #tpu.dot_dimension_numbers<[1], [0], [0], [1], [0, 0, 1, 1], [], []>} : vector<256x4xbf16>, vector<4x8xbf16>, vector<256x8xf32> -> vector<256x8xf32>
    %16 = arith.addf %10, %15 : vector<256x8xf32>
    %c0_25 = arith.constant 0 : index
    %c1_26 = arith.constant 1 : index
    %c0_27 = arith.constant 0 : index
    %17 = vector.load %arg7[%c0_25, %c1_26, %c0_27] : memref<18x32x4xbf16, #tpu.memory_space<vmem>>, vector<16x16x4xbf16>
    %18 = vector.shape_cast %17 : vector<16x16x4xbf16> to vector<256x4xbf16>
    %c1_28 = arith.constant 1 : index
    %c0_29 = arith.constant 0 : index
    %c0_30 = arith.constant 0 : index
    %19 = vector.load %arg2[%c1_28, %c0_29, %c0_30] : memref<9x4x8xbf16, #tpu.memory_space<vmem>>, vector<1x4x8xbf16>
    %20 = vector.shape_cast %19 : vector<1x4x8xbf16> to vector<4x8xbf16>
    %cst_31 = arith.constant dense<0.000000e+00> : vector<256x8xf32>
    %21 = tpu.matmul %18, %20, %cst_31 {dimension_numbers = #tpu.dot_dimension_numbers<[1], [0], [0], [1], [0, 0, 1, 1], [], []>} : vector<256x4xbf16>, vector<4x8xbf16>, vector<256x8xf32> -> vector<256x8xf32>
    %22 = arith.addf %16, %21 : vector<256x8xf32>
    %c0_32 = arith.constant 0 : index
    %c2 = arith.constant 2 : index
    %c0_33 = arith.constant 0 : index
    %23 = vector.load %arg7[%c0_32, %c2, %c0_33] : memref<18x32x4xbf16, #tpu.memory_space<vmem>>, vector<16x16x4xbf16>
    %24 = vector.shape_cast %23 : vector<16x16x4xbf16> to vector<256x4xbf16>
    %c2_34 = arith.constant 2 : index
    %c0_35 = arith.constant 0 : index
    %c0_36 = arith.constant 0 : index
    %25 = vector.load %arg2[%c2_34, %c0_35, %c0_36] : memref<9x4x8xbf16, #tpu.memory_space<vmem>>, vector<1x4x8xbf16>
    %26 = vector.shape_cast %25 : vector<1x4x8xbf16> to vector<4x8xbf16>
    %cst_37 = arith.constant dense<0.000000e+00> : vector<256x8xf32>
    %27 = tpu.matmul %24, %26, %cst_37 {dimension_numbers = #tpu.dot_dimension_numbers<[1], [0], [0], [1], [0, 0, 1, 1], [], []>} : vector<256x4xbf16>, vector<4x8xbf16>, vector<256x8xf32> -> vector<256x8xf32>
    %28 = arith.addf %22, %27 : vector<256x8xf32>
    %c1_38 = arith.constant 1 : index
    %c0_39 = arith.constant 0 : index
    %c0_40 = arith.constant 0 : index
    %29 = vector.load %arg7[%c1_38, %c0_39, %c0_40] : memref<18x32x4xbf16, #tpu.memory_space<vmem>>, vector<16x16x4xbf16>
    %30 = vector.shape_cast %29 : vector<16x16x4xbf16> to vector<256x4xbf16>
    %c3 = arith.constant 3 : index
    %c0_41 = arith.constant 0 : index
    %c0_42 = arith.constant 0 : index
    %31 = vector.load %arg2[%c3, %c0_41, %c0_42] : memref<9x4x8xbf16, #tpu.memory_space<vmem>>, vector<1x4x8xbf16>
    %32 = vector.shape_cast %31 : vector<1x4x8xbf16> to vector<4x8xbf16>
    %cst_43 = arith.constant dense<0.000000e+00> : vector<256x8xf32>
    %33 = tpu.matmul %30, %32, %cst_43 {dimension_numbers = #tpu.dot_dimension_numbers<[1], [0], [0], [1], [0, 0, 1, 1], [], []>} : vector<256x4xbf16>, vector<4x8xbf16>, vector<256x8xf32> -> vector<256x8xf32>
    %34 = arith.addf %28, %33 : vector<256x8xf32>
    %c1_44 = arith.constant 1 : index
    %c1_45 = arith.constant 1 : index
    %c0_46 = arith.constant 0 : index
    %35 = vector.load %arg7[%c1_44, %c1_45, %c0_46] : memref<18x32x4xbf16, #tpu.memory_space<vmem>>, vector<16x16x4xbf16>
    %36 = vector.shape_cast %35 : vector<16x16x4xbf16> to vector<256x4xbf16>
    %c4 = arith.constant 4 : index
    %c0_47 = arith.constant 0 : index
    %c0_48 = arith.constant 0 : index
    %37 = vector.load %arg2[%c4, %c0_47, %c0_48] : memref<9x4x8xbf16, #tpu.memory_space<vmem>>, vector<1x4x8xbf16>
    %38 = vector.shape_cast %37 : vector<1x4x8xbf16> to vector<4x8xbf16>
    %cst_49 = arith.constant dense<0.000000e+00> : vector<256x8xf32>
    %39 = tpu.matmul %36, %38, %cst_49 {dimension_numbers = #tpu.dot_dimension_numbers<[1], [0], [0], [1], [0, 0, 1, 1], [], []>} : vector<256x4xbf16>, vector<4x8xbf16>, vector<256x8xf32> -> vector<256x8xf32>
    %40 = arith.addf %34, %39 : vector<256x8xf32>
    %c1_50 = arith.constant 1 : index
    %c2_51 = arith.constant 2 : index
    %c0_52 = arith.constant 0 : index
    %41 = vector.load %arg7[%c1_50, %c2_51, %c0_52] : memref<18x32x4xbf16, #tpu.memory_space<vmem>>, vector<16x16x4xbf16>
    %42 = vector.shape_cast %41 : vector<16x16x4xbf16> to vector<256x4xbf16>
    %c5 = arith.constant 5 : index
    %c0_53 = arith.constant 0 : index
    %c0_54 = arith.constant 0 : index
    %43 = vector.load %arg2[%c5, %c0_53, %c0_54] : memref<9x4x8xbf16, #tpu.memory_space<vmem>>, vector<1x4x8xbf16>
    %44 = vector.shape_cast %43 : vector<1x4x8xbf16> to vector<4x8xbf16>
    %cst_55 = arith.constant dense<0.000000e+00> : vector<256x8xf32>
    %45 = tpu.matmul %42, %44, %cst_55 {dimension_numbers = #tpu.dot_dimension_numbers<[1], [0], [0], [1], [0, 0, 1, 1], [], []>} : vector<256x4xbf16>, vector<4x8xbf16>, vector<256x8xf32> -> vector<256x8xf32>
    %46 = arith.addf %40, %45 : vector<256x8xf32>
    %c2_56 = arith.constant 2 : index
    %c0_57 = arith.constant 0 : index
    %c0_58 = arith.constant 0 : index
    %47 = vector.load %arg7[%c2_56, %c0_57, %c0_58] : memref<18x32x4xbf16, #tpu.memory_space<vmem>>, vector<16x16x4xbf16>
    %48 = vector.shape_cast %47 : vector<16x16x4xbf16> to vector<256x4xbf16>
    %c6 = arith.constant 6 : index
    %c0_59 = arith.constant 0 : index
    %c0_60 = arith.constant 0 : index
    %49 = vector.load %arg2[%c6, %c0_59, %c0_60] : memref<9x4x8xbf16, #tpu.memory_space<vmem>>, vector<1x4x8xbf16>
    %50 = vector.shape_cast %49 : vector<1x4x8xbf16> to vector<4x8xbf16>
    %cst_61 = arith.constant dense<0.000000e+00> : vector<256x8xf32>
    %51 = tpu.matmul %48, %50, %cst_61 {dimension_numbers = #tpu.dot_dimension_numbers<[1], [0], [0], [1], [0, 0, 1, 1], [], []>} : vector<256x4xbf16>, vector<4x8xbf16>, vector<256x8xf32> -> vector<256x8xf32>
    %52 = arith.addf %46, %51 : vector<256x8xf32>
    %c2_62 = arith.constant 2 : index
    %c1_63 = arith.constant 1 : index
    %c0_64 = arith.constant 0 : index
    %53 = vector.load %arg7[%c2_62, %c1_63, %c0_64] : memref<18x32x4xbf16, #tpu.memory_space<vmem>>, vector<16x16x4xbf16>
    %54 = vector.shape_cast %53 : vector<16x16x4xbf16> to vector<256x4xbf16>
    %c7 = arith.constant 7 : index
    %c0_65 = arith.constant 0 : index
    %c0_66 = arith.constant 0 : index
    %55 = vector.load %arg2[%c7, %c0_65, %c0_66] : memref<9x4x8xbf16, #tpu.memory_space<vmem>>, vector<1x4x8xbf16>
    %56 = vector.shape_cast %55 : vector<1x4x8xbf16> to vector<4x8xbf16>
    %cst_67 = arith.constant dense<0.000000e+00> : vector<256x8xf32>
    %57 = tpu.matmul %54, %56, %cst_67 {dimension_numbers = #tpu.dot_dimension_numbers<[1], [0], [0], [1], [0, 0, 1, 1], [], []>} : vector<256x4xbf16>, vector<4x8xbf16>, vector<256x8xf32> -> vector<256x8xf32>
    %58 = arith.addf %52, %57 : vector<256x8xf32>
    %c2_68 = arith.constant 2 : index
    %c2_69 = arith.constant 2 : index
    %c0_70 = arith.constant 0 : index
    %59 = vector.load %arg7[%c2_68, %c2_69, %c0_70] : memref<18x32x4xbf16, #tpu.memory_space<vmem>>, vector<16x16x4xbf16>
    %60 = vector.shape_cast %59 : vector<16x16x4xbf16> to vector<256x4xbf16>
    %c8 = arith.constant 8 : index
    %c0_71 = arith.constant 0 : index
    %c0_72 = arith.constant 0 : index
    %61 = vector.load %arg2[%c8, %c0_71, %c0_72] : memref<9x4x8xbf16, #tpu.memory_space<vmem>>, vector<1x4x8xbf16>
    %62 = vector.shape_cast %61 : vector<1x4x8xbf16> to vector<4x8xbf16>
    %cst_73 = arith.constant dense<0.000000e+00> : vector<256x8xf32>
    %63 = tpu.matmul %60, %62, %cst_73 {dimension_numbers = #tpu.dot_dimension_numbers<[1], [0], [0], [1], [0, 0, 1, 1], [], []>} : vector<256x4xbf16>, vector<4x8xbf16>, vector<256x8xf32> -> vector<256x8xf32>
    %64 = arith.addf %58, %63 : vector<256x8xf32>
    %c0_74 = arith.constant 0 : index
    %c0_75 = arith.constant 0 : index
    %65 = vector.load %arg3[%c0_74, %c0_75] : memref<1x8xf32, #tpu.memory_space<vmem>>, vector<1x8xf32>
    %66 = vector.broadcast %65 : vector<1x8xf32> to vector<256x8xf32>
    %67 = arith.addf %64, %66 : vector<256x8xf32>
    %cst_76 = arith.constant 0.000000e+00 : f32
    %68 = vector.broadcast %cst_76 : f32 to vector<256x8xf32>
    %69 = arith.maximumf %67, %68 : vector<256x8xf32>
    %cst_77 = arith.constant 0.000000e+00 : bf16
    %70 = vector.broadcast %cst_77 : bf16 to vector<1x32x8xbf16>
    %cst_78 = arith.constant 0.000000e+00 : bf16
    %71 = vector.broadcast %cst_78 : bf16 to vector<18x1x8xbf16>
    %c0_79 = arith.constant 0 : index
    %c0_80 = arith.constant 0 : index
    %c0_81 = arith.constant 0 : index
    %72 = vector.load %arg8[%c0_79, %c0_80, %c0_81] : memref<18x32x8xbf16, #tpu.memory_space<vmem>>, vector<1x32x8xbf16>
    tpu.vector_store %arg8[%c0_79, %c0_80, %c0_81], %70 {strides = array<i32>} : memref<18x32x8xbf16, #tpu.memory_space<vmem>>, vector<1x32x8xbf16>,
    %c17_82 = arith.constant 17 : index
    %c0_83 = arith.constant 0 : index
    %c0_84 = arith.constant 0 : index
    %73 = vector.load %arg8[%c17_82, %c0_83, %c0_84] : memref<18x32x8xbf16, #tpu.memory_space<vmem>>, vector<1x32x8xbf16>
    tpu.vector_store %arg8[%c17_82, %c0_83, %c0_84], %70 {strides = array<i32>} : memref<18x32x8xbf16, #tpu.memory_space<vmem>>, vector<1x32x8xbf16>,
    %c0_85 = arith.constant 0 : index
    %c0_86 = arith.constant 0 : index
    %c0_87 = arith.constant 0 : index
    %74 = vector.load %arg8[%c0_85, %c0_86, %c0_87] : memref<18x32x8xbf16, #tpu.memory_space<vmem>>, vector<18x1x8xbf16>
    tpu.vector_store %arg8[%c0_85, %c0_86, %c0_87], %71 {strides = array<i32>} : memref<18x32x8xbf16, #tpu.memory_space<vmem>>, vector<18x1x8xbf16>,
    %c0_88 = arith.constant 0 : index
    %c17_89 = arith.constant 17 : index
    %c0_90 = arith.constant 0 : index
    %75 = vector.load %arg8[%c0_88, %c17_89, %c0_90] : memref<18x32x8xbf16, #tpu.memory_space<vmem>>, vector<18x1x8xbf16>
    tpu.vector_store %arg8[%c0_88, %c17_89, %c0_90], %71 {strides = array<i32>} : memref<18x32x8xbf16, #tpu.memory_space<vmem>>, vector<18x1x8xbf16>,
    %76 = vector.shape_cast %69 : vector<256x8xf32> to vector<16x16x8xf32>
    %77 = arith.truncf %76 : vector<16x16x8xf32> to vector<16x16x8xbf16>
    %c1_91 = arith.constant 1 : index
    %c1_92 = arith.constant 1 : index
    %c0_93 = arith.constant 0 : index
    %78 = vector.load %arg8[%c1_91, %c1_92, %c0_93] : memref<18x32x8xbf16, #tpu.memory_space<vmem>>, vector<16x16x8xbf16>
    tpu.vector_store %arg8[%c1_91, %c1_92, %c0_93], %77 {strides = array<i32>} : memref<18x32x8xbf16, #tpu.memory_space<vmem>>, vector<16x16x8xbf16>,
    %cst_94 = arith.constant 0.000000e+00 : f32
    %79 = vector.broadcast %cst_94 : f32 to vector<256x128xf32>
    %c0_95 = arith.constant 0 : index
    %c0_96 = arith.constant 0 : index
    %c0_97 = arith.constant 0 : index
    %80 = vector.load %arg8[%c0_95, %c0_96, %c0_97] : memref<18x32x8xbf16, #tpu.memory_space<vmem>>, vector<16x16x8xbf16>
    %81 = vector.shape_cast %80 : vector<16x16x8xbf16> to vector<256x8xbf16>
    %c0_98 = arith.constant 0 : index
    %c0_99 = arith.constant 0 : index
    %c0_100 = arith.constant 0 : index
    %82 = vector.load %arg4[%c0_98, %c0_99, %c0_100] : memref<9x8x128xbf16, #tpu.memory_space<vmem>>, vector<1x8x128xbf16>
    %83 = vector.shape_cast %82 : vector<1x8x128xbf16> to vector<8x128xbf16>
    %cst_101 = arith.constant dense<0.000000e+00> : vector<256x128xf32>
    %84 = tpu.matmul %81, %83, %cst_101 {dimension_numbers = #tpu.dot_dimension_numbers<[1], [0], [0], [1], [0, 0, 1, 1], [], []>} : vector<256x8xbf16>, vector<8x128xbf16>, vector<256x128xf32> -> vector<256x128xf32>
    %85 = arith.addf %79, %84 : vector<256x128xf32>
    %c0_102 = arith.constant 0 : index
    %c1_103 = arith.constant 1 : index
    %c0_104 = arith.constant 0 : index
    %86 = vector.load %arg8[%c0_102, %c1_103, %c0_104] : memref<18x32x8xbf16, #tpu.memory_space<vmem>>, vector<16x16x8xbf16>
    %87 = vector.shape_cast %86 : vector<16x16x8xbf16> to vector<256x8xbf16>
    %c1_105 = arith.constant 1 : index
    %c0_106 = arith.constant 0 : index
    %c0_107 = arith.constant 0 : index
    %88 = vector.load %arg4[%c1_105, %c0_106, %c0_107] : memref<9x8x128xbf16, #tpu.memory_space<vmem>>, vector<1x8x128xbf16>
    %89 = vector.shape_cast %88 : vector<1x8x128xbf16> to vector<8x128xbf16>
    %cst_108 = arith.constant dense<0.000000e+00> : vector<256x128xf32>
    %90 = tpu.matmul %87, %89, %cst_108 {dimension_numbers = #tpu.dot_dimension_numbers<[1], [0], [0], [1], [0, 0, 1, 1], [], []>} : vector<256x8xbf16>, vector<8x128xbf16>, vector<256x128xf32> -> vector<256x128xf32>
    %91 = arith.addf %85, %90 : vector<256x128xf32>
    %c0_109 = arith.constant 0 : index
    %c2_110 = arith.constant 2 : index
    %c0_111 = arith.constant 0 : index
    %92 = vector.load %arg8[%c0_109, %c2_110, %c0_111] : memref<18x32x8xbf16, #tpu.memory_space<vmem>>, vector<16x16x8xbf16>
    %93 = vector.shape_cast %92 : vector<16x16x8xbf16> to vector<256x8xbf16>
    %c2_112 = arith.constant 2 : index
    %c0_113 = arith.constant 0 : index
    %c0_114 = arith.constant 0 : index
    %94 = vector.load %arg4[%c2_112, %c0_113, %c0_114] : memref<9x8x128xbf16, #tpu.memory_space<vmem>>, vector<1x8x128xbf16>
    %95 = vector.shape_cast %94 : vector<1x8x128xbf16> to vector<8x128xbf16>
    %cst_115 = arith.constant dense<0.000000e+00> : vector<256x128xf32>
    %96 = tpu.matmul %93, %95, %cst_115 {dimension_numbers = #tpu.dot_dimension_numbers<[1], [0], [0], [1], [0, 0, 1, 1], [], []>} : vector<256x8xbf16>, vector<8x128xbf16>, vector<256x128xf32> -> vector<256x128xf32>
    %97 = arith.addf %91, %96 : vector<256x128xf32>
    %c1_116 = arith.constant 1 : index
    %c0_117 = arith.constant 0 : index
    %c0_118 = arith.constant 0 : index
    %98 = vector.load %arg8[%c1_116, %c0_117, %c0_118] : memref<18x32x8xbf16, #tpu.memory_space<vmem>>, vector<16x16x8xbf16>
    %99 = vector.shape_cast %98 : vector<16x16x8xbf16> to vector<256x8xbf16>
    %c3_119 = arith.constant 3 : index
    %c0_120 = arith.constant 0 : index
    %c0_121 = arith.constant 0 : index
    %100 = vector.load %arg4[%c3_119, %c0_120, %c0_121] : memref<9x8x128xbf16, #tpu.memory_space<vmem>>, vector<1x8x128xbf16>
    %101 = vector.shape_cast %100 : vector<1x8x128xbf16> to vector<8x128xbf16>
    %cst_122 = arith.constant dense<0.000000e+00> : vector<256x128xf32>
    %102 = tpu.matmul %99, %101, %cst_122 {dimension_numbers = #tpu.dot_dimension_numbers<[1], [0], [0], [1], [0, 0, 1, 1], [], []>} : vector<256x8xbf16>, vector<8x128xbf16>, vector<256x128xf32> -> vector<256x128xf32>
    %103 = arith.addf %97, %102 : vector<256x128xf32>
    %c1_123 = arith.constant 1 : index
    %c1_124 = arith.constant 1 : index
    %c0_125 = arith.constant 0 : index
    %104 = vector.load %arg8[%c1_123, %c1_124, %c0_125] : memref<18x32x8xbf16, #tpu.memory_space<vmem>>, vector<16x16x8xbf16>
    %105 = vector.shape_cast %104 : vector<16x16x8xbf16> to vector<256x8xbf16>
    %c4_126 = arith.constant 4 : index
    %c0_127 = arith.constant 0 : index
    %c0_128 = arith.constant 0 : index
    %106 = vector.load %arg4[%c4_126, %c0_127, %c0_128] : memref<9x8x128xbf16, #tpu.memory_space<vmem>>, vector<1x8x128xbf16>
    %107 = vector.shape_cast %106 : vector<1x8x128xbf16> to vector<8x128xbf16>
    %cst_129 = arith.constant dense<0.000000e+00> : vector<256x128xf32>
    %108 = tpu.matmul %105, %107, %cst_129 {dimension_numbers = #tpu.dot_dimension_numbers<[1], [0], [0], [1], [0, 0, 1, 1], [], []>} : vector<256x8xbf16>, vector<8x128xbf16>, vector<256x128xf32> -> vector<256x128xf32>
    %109 = arith.addf %103, %108 : vector<256x128xf32>
    %c1_130 = arith.constant 1 : index
    %c2_131 = arith.constant 2 : index
    %c0_132 = arith.constant 0 : index
    %110 = vector.load %arg8[%c1_130, %c2_131, %c0_132] : memref<18x32x8xbf16, #tpu.memory_space<vmem>>, vector<16x16x8xbf16>
    %111 = vector.shape_cast %110 : vector<16x16x8xbf16> to vector<256x8xbf16>
    %c5_133 = arith.constant 5 : index
    %c0_134 = arith.constant 0 : index
    %c0_135 = arith.constant 0 : index
    %112 = vector.load %arg4[%c5_133, %c0_134, %c0_135] : memref<9x8x128xbf16, #tpu.memory_space<vmem>>, vector<1x8x128xbf16>
    %113 = vector.shape_cast %112 : vector<1x8x128xbf16> to vector<8x128xbf16>
    %cst_136 = arith.constant dense<0.000000e+00> : vector<256x128xf32>
    %114 = tpu.matmul %111, %113, %cst_136 {dimension_numbers = #tpu.dot_dimension_numbers<[1], [0], [0], [1], [0, 0, 1, 1], [], []>} : vector<256x8xbf16>, vector<8x128xbf16>, vector<256x128xf32> -> vector<256x128xf32>
    %115 = arith.addf %109, %114 : vector<256x128xf32>
    %c2_137 = arith.constant 2 : index
    %c0_138 = arith.constant 0 : index
    %c0_139 = arith.constant 0 : index
    %116 = vector.load %arg8[%c2_137, %c0_138, %c0_139] : memref<18x32x8xbf16, #tpu.memory_space<vmem>>, vector<16x16x8xbf16>
    %117 = vector.shape_cast %116 : vector<16x16x8xbf16> to vector<256x8xbf16>
    %c6_140 = arith.constant 6 : index
    %c0_141 = arith.constant 0 : index
    %c0_142 = arith.constant 0 : index
    %118 = vector.load %arg4[%c6_140, %c0_141, %c0_142] : memref<9x8x128xbf16, #tpu.memory_space<vmem>>, vector<1x8x128xbf16>
    %119 = vector.shape_cast %118 : vector<1x8x128xbf16> to vector<8x128xbf16>
    %cst_143 = arith.constant dense<0.000000e+00> : vector<256x128xf32>
    %120 = tpu.matmul %117, %119, %cst_143 {dimension_numbers = #tpu.dot_dimension_numbers<[1], [0], [0], [1], [0, 0, 1, 1], [], []>} : vector<256x8xbf16>, vector<8x128xbf16>, vector<256x128xf32> -> vector<256x128xf32>
    %121 = arith.addf %115, %120 : vector<256x128xf32>
    %c2_144 = arith.constant 2 : index
    %c1_145 = arith.constant 1 : index
    %c0_146 = arith.constant 0 : index
    %122 = vector.load %arg8[%c2_144, %c1_145, %c0_146] : memref<18x32x8xbf16, #tpu.memory_space<vmem>>, vector<16x16x8xbf16>
    %123 = vector.shape_cast %122 : vector<16x16x8xbf16> to vector<256x8xbf16>
    %c7_147 = arith.constant 7 : index
    %c0_148 = arith.constant 0 : index
    %c0_149 = arith.constant 0 : index
    %124 = vector.load %arg4[%c7_147, %c0_148, %c0_149] : memref<9x8x128xbf16, #tpu.memory_space<vmem>>, vector<1x8x128xbf16>
    %125 = vector.shape_cast %124 : vector<1x8x128xbf16> to vector<8x128xbf16>
    %cst_150 = arith.constant dense<0.000000e+00> : vector<256x128xf32>
    %126 = tpu.matmul %123, %125, %cst_150 {dimension_numbers = #tpu.dot_dimension_numbers<[1], [0], [0], [1], [0, 0, 1, 1], [], []>} : vector<256x8xbf16>, vector<8x128xbf16>, vector<256x128xf32> -> vector<256x128xf32>
    %127 = arith.addf %121, %126 : vector<256x128xf32>
    %c2_151 = arith.constant 2 : index
    %c2_152 = arith.constant 2 : index
    %c0_153 = arith.constant 0 : index
    %128 = vector.load %arg8[%c2_151, %c2_152, %c0_153] : memref<18x32x8xbf16, #tpu.memory_space<vmem>>, vector<16x16x8xbf16>
    %129 = vector.shape_cast %128 : vector<16x16x8xbf16> to vector<256x8xbf16>
    %c8_154 = arith.constant 8 : index
    %c0_155 = arith.constant 0 : index
    %c0_156 = arith.constant 0 : index
    %130 = vector.load %arg4[%c8_154, %c0_155, %c0_156] : memref<9x8x128xbf16, #tpu.memory_space<vmem>>, vector<1x8x128xbf16>
    %131 = vector.shape_cast %130 : vector<1x8x128xbf16> to vector<8x128xbf16>
    %cst_157 = arith.constant dense<0.000000e+00> : vector<256x128xf32>
    %132 = tpu.matmul %129, %131, %cst_157 {dimension_numbers = #tpu.dot_dimension_numbers<[1], [0], [0], [1], [0, 0, 1, 1], [], []>} : vector<256x8xbf16>, vector<8x128xbf16>, vector<256x128xf32> -> vector<256x128xf32>
    %133 = arith.addf %127, %132 : vector<256x128xf32>
    %c0_158 = arith.constant 0 : index
    %c0_159 = arith.constant 0 : index
    %134 = vector.load %arg5[%c0_158, %c0_159] : memref<1x128xf32, #tpu.memory_space<vmem>>, vector<1x128xf32>
    %135 = vector.broadcast %134 : vector<1x128xf32> to vector<256x128xf32>
    %136 = arith.addf %133, %135 : vector<256x128xf32>
    %cst_160 = arith.constant 0.000000e+00 : f32
    %137 = vector.broadcast %cst_160 : f32 to vector<256x128xf32>
    %138 = arith.maximumf %136, %137 : vector<256x128xf32>
    %139 = arith.truncf %138 : vector<256x128xf32> to vector<256x128xbf16>
    %c0_161 = arith.constant 0 : index
    %c0_162 = arith.constant 0 : index
    %c0_163 = arith.constant 0 : index
    %140 = vector.load %arg6[%c0_161, %c0_162, %c0_163] : memref<1x256x128xbf16, #tpu.memory_space<vmem>>, vector<1x256x128xbf16>
    %141 = vector.shape_cast %140 : vector<1x256x128xbf16> to vector<256x128xbf16>
    %142 = vector.shape_cast %139 : vector<256x128xbf16> to vector<1x256x128xbf16>
    tpu.vector_store %arg6[%c0_161, %c0_162, %c0_163], %142 {strides = array<i32>} : memref<1x256x128xbf16, #tpu.memory_space<vmem>>, vector<1x256x128xbf16>,
    return
  }
  func.func @transform_0(%arg0: i32) -> (i32, i32, i32, i32) {
    %c0_i32 = arith.constant 0 : i32
    %c0_i32_0 = arith.constant 0 : i32
    %c0_i32_1 = arith.constant 0 : i32
    %c0_i32_2 = arith.constant 0 : i32
    return %arg0, %c0_i32, %c0_i32_0, %c0_i32_1 : i32, i32, i32, i32
  }
  func.func @transform_1(%arg0: i32) -> (i32, i32, i32) {
    %c0_i32 = arith.constant 0 : i32
    %c0_i32_0 = arith.constant 0 : i32
    %c0_i32_1 = arith.constant 0 : i32
    %c0_i32_2 = arith.constant 0 : i32
    return %c0_i32, %c0_i32_0, %c0_i32_1 : i32, i32, i32
  }
  func.func @transform_2(%arg0: i32) -> (i32, i32) {
    %c0_i32 = arith.constant 0 : i32
    %c0_i32_0 = arith.constant 0 : i32
    %c0_i32_1 = arith.constant 0 : i32
    return %c0_i32, %c0_i32_0 : i32, i32
  }
  func.func @transform_3(%arg0: i32) -> (i32, i32, i32) {
    %c0_i32 = arith.constant 0 : i32
    %c0_i32_0 = arith.constant 0 : i32
    %c0_i32_1 = arith.constant 0 : i32
    %c0_i32_2 = arith.constant 0 : i32
    return %c0_i32, %c0_i32_0, %c0_i32_1 : i32, i32, i32
  }
  func.func @transform_4(%arg0: i32) -> (i32, i32) {
    %c0_i32 = arith.constant 0 : i32
    %c0_i32_0 = arith.constant 0 : i32
    %c0_i32_1 = arith.constant 0 : i32
    return %c0_i32, %c0_i32_0 : i32, i32
  }
  func.func @transform_5(%arg0: i32) -> (i32, i32, i32) {
    %c0_i32 = arith.constant 0 : i32
    %c0_i32_0 = arith.constant 0 : i32
    %c0_i32_1 = arith.constant 0 : i32
    return %arg0, %c0_i32, %c0_i32_0 : i32, i32, i32
  }
}

</mosaic_0001>

<llo_original>
// kernel: tpu_custom_call.1
$region0: #{tpu_custom_call.1}
  #allocation0 [shape = 'u32[]', space=smem, size = 0x4, offset = 0x4, fixed_abs, tag = 'smem constant byte address 0x4 - core index']
  #allocation1 [shape = 'u32[144,128]{1,0:T(1,128)}', space=vmem, size = 0x12000, scoped, tag = 'internal scratch']
  #allocation2 [shape = 'bf16[18,32,4]{2,1,0:T(16,128)(2,1)}', space=vmem, size = 0x24000, scoped, tag = 'scratch operand']
  #allocation3 [shape = 'bf16[18,32,8]{2,1,0:T(16,128)(2,1)}', space=vmem, size = 0x24000, scoped, tag = 'scratch operand']
  %s0 = inlined_call_operand.vmem [shape: f32[2,16,16,4], index: 0, kind: input, shape index: {}]
  %s1 = inlined_call_operand.vmem [shape: bf16[9,4,8], index: 1, kind: input, shape index: {}]
  %s2 = inlined_call_operand.vmem [shape: f32[1,8], index: 2, kind: input, shape index: {}]
  %s3 = inlined_call_operand.vmem [shape: bf16[9,8,128], index: 3, kind: input, shape index: {}]
  %s4 = inlined_call_operand.vmem [shape: f32[1,128], index: 4, kind: input, shape index: {}]
  %s5 = inlined_call_operand.hbm [shape: bf16[2,256,128], index: 5, kind: output, shape index: {}]
  %s6 = sld [smem:[#allocation0]]
  $region53: #{tpu_custom_call.1} parent=0
    _
  %s8 = ssub.s32 1, %s6
  %s9 = scalar_select 0, %s8, %s6
  $region1: #{tpu_custom_call.1} parent=0
    #allocation4 [shape = 'u8[131072]{0}', space=vmem, size = 0x20000, scoped, tag = 'output window, operand 0']
    #allocation5 [shape = 's32[2]{0}', space=sflag, size = 0x8, scoped, tag = 'scoped memory for tpu_custom_call.1']
    %10 = vsyncpa [#allocation5], 0
    %s11 = scalar_lea.sflag [#allocation5], 1
    %12 = vsyncpa %s11, 0
    loop: start=0, step=1, limit=4
    $region2: #{tpu_custom_call.1} parent=1 // loop_pre_header
      _
    $region3: #{tpu_custom_call.1} parent=1 // loop_header
      %s14 = sphi 0, %s18
      %p15 = scmp.ge.s32.totalorder %s14, 4
      %s24 = sphi 0, %s26
      %s27 = sphi 0, %s24
      %s28 = sphi 0, %s27
      %s44 = sphi 0, %s28
      %s48 = sphi 0, %s48
      %s50 = sphi 0, %s48
      %s51 = sphi 0, %s50
      %s65 = sphi 0, %s51
      %s69 = sphi 0, %s69
      %s71 = sphi 0, %s69
      %s72 = sphi 0, %s71
      %s86 = sphi 0, %s72
      %s90 = sphi 0, %s90
      %s92 = sphi 0, %s90
      %s93 = sphi 0, %s92
      %s107 = sphi 0, %s93
      %s111 = sphi 0, %s111
      %s113 = sphi 0, %s111
      %s114 = sphi 0, %s113
      %s128 = sphi 0, %s114
      %s134 = sphi 0, %s136
      %s137 = sphi 0, %s134
      %s138 = sphi 0, %s137
      %s154 = sphi 0, %s138
    $region4: #{tpu_custom_call.1} parent=1 // loop_header_branch
      %17 = sbr.rel (%p15) target = $region8
    $region5: #{tpu_custom_call.1} parent=1 // loop_body
      %s19 = ssub.s32 %s14, 1
      %s20 = ssub.s32 %s14, 2
      %s21 = sadd.s32 %s14, 1
      %s22 = ssub.s32 %s14, %s21
      %p23 = scmp.eq.s32.totalorder %s22, 0
      %s25 = sadd.s32 %s24, 1
      %s26 = scalar_select %p23, %s24, %s25
      %p29 = pneg %p23
      %p30 = scmp.eq.s32.totalorder %s14, 1
      %p31 = por %p29, %p30
      %p32 = scmp.ne.s32.totalorder %s24, %s27
      %p33 = scmp.eq.s32.totalorder %s14, 0
      %p34 = por %p32, %p33
      %p35 = scmp.ne.s32.totalorder %s24, %s27
      %p36 = scmp.eq.s32.totalorder %s19, 1
      %p37 = por %p35, %p36
      %p38 = scmp.ne.s32.totalorder %s27, %s28
      %p39 = scmp.eq.s32.totalorder %s19, 0
      %p40 = por %p38, %p39
      %p41 = scmp.ne.s32.totalorder %s27, %s28
      %p42 = scmp.eq.s32.totalorder %s20, 1
      %p43 = por %p41, %p42
      %p45 = scmp.ne.s32.totalorder %s28, %s44
      %p46 = scmp.eq.s32.totalorder %s20, 0
      %p47 = por %p45, %p46
      %s49 = sadd.s32 %s48, 1
      %p52 = scmp.eq.s32.totalorder %s14, 1
      %p53 = scmp.ne.s32.totalorder %s48, %s50
      %p54 = scmp.eq.s32.totalorder %s14, 0
      %p55 = por %p53, %p54
      %p56 = scmp.ne.s32.totalorder %s48, %s50
      %p57 = scmp.eq.s32.totalorder %s19, 1
      %p58 = por %p56, %p57
      %p59 = scmp.ne.s32.totalorder %s50, %s51
      %p60 = scmp.eq.s32.totalorder %s19, 0
      %p61 = por %p59, %p60
      %p62 = scmp.ne.s32.totalorder %s50, %s51
      %p63 = scmp.eq.s32.totalorder %s20, 1
      %p64 = por %p62, %p63
      %p66 = scmp.ne.s32.totalorder %s51, %s65
      %p67 = scmp.eq.s32.totalorder %s20, 0
      %p68 = por %p66, %p67
      %s70 = sadd.s32 %s69, 1
      %p73 = scmp.eq.s32.totalorder %s14, 1
      %p74 = scmp.ne.s32.totalorder %s69, %s71
      %p75 = scmp.eq.s32.totalorder %s14, 0
      %p76 = por %p74, %p75
      %p77 = scmp.ne.s32.totalorder %s69, %s71
      %p78 = scmp.eq.s32.totalorder %s19, 1
      %p79 = por %p77, %p78
      %p80 = scmp.ne.s32.totalorder %s71, %s72
      %p81 = scmp.eq.s32.totalorder %s19, 0
      %p82 = por %p80, %p81
      %p83 = scmp.ne.s32.totalorder %s71, %s72
      %p84 = scmp.eq.s32.totalorder %s20, 1
      %p85 = por %p83, %p84
      %p87 = scmp.ne.s32.totalorder %s72, %s86
      %p88 = scmp.eq.s32.totalorder %s20, 0
      %p89 = por %p87, %p88
      %s91 = sadd.s32 %s90, 1
      %p94 = scmp.eq.s32.totalorder %s14, 1
      %p95 = scmp.ne.s32.totalorder %s90, %s92
      %p96 = scmp.eq.s32.totalorder %s14, 0
      %p97 = por %p95, %p96
      %p98 = scmp.ne.s32.totalorder %s90, %s92
      %p99 = scmp.eq.s32.totalorder %s19, 1
      %p100 = por %p98, %p99
      %p101 = scmp.ne.s32.totalorder %s92, %s93
      %p102 = scmp.eq.s32.totalorder %s19, 0
      %p103 = por %p101, %p102
      %p104 = scmp.ne.s32.totalorder %s92, %s93
      %p105 = scmp.eq.s32.totalorder %s20, 1
      %p106 = por %p104, %p105
      %p108 = scmp.ne.s32.totalorder %s93, %s107
      %p109 = scmp.eq.s32.totalorder %s20, 0
      %p110 = por %p108, %p109
      %s112 = sadd.s32 %s111, 1
      %p115 = scmp.eq.s32.totalorder %s14, 1
      %p116 = scmp.ne.s32.totalorder %s111, %s113
      %p117 = scmp.eq.s32.totalorder %s14, 0
      %p118 = por %p116, %p117
      %p119 = scmp.ne.s32.totalorder %s111, %s113
      %p120 = scmp.eq.s32.totalorder %s19, 1
      %p121 = por %p119, %p120
      %p122 = scmp.ne.s32.totalorder %s113, %s114
      %p123 = scmp.eq.s32.totalorder %s19, 0
      %p124 = por %p122, %p123
      %p125 = scmp.ne.s32.totalorder %s113, %s114
      %p126 = scmp.eq.s32.totalorder %s20, 1
      %p127 = por %p125, %p126
      %p129 = scmp.ne.s32.totalorder %s114, %s128
      %p130 = scmp.eq.s32.totalorder %s20, 0
      %p131 = por %p129, %p130
      %s132 = ssub.s32 %s14, %s21
      %p133 = scmp.eq.s32.totalorder %s132, 0
      %s135 = sadd.s32 %s134, 1
      %s136 = scalar_select %p133, %s134, %s135
      %p139 = pneg %p133
      %p140 = scmp.eq.s32.totalorder %s14, 1
      %p141 = por %p139, %p140
      %p142 = scmp.ne.s32.totalorder %s134, %s137
      %p143 = scmp.eq.s32.totalorder %s14, 0
      %p144 = por %p142, %p143
      %p145 = scmp.ne.s32.totalorder %s134, %s137
      %p146 = scmp.eq.s32.totalorder %s19, 1
      %p147 = por %p145, %p146
      %p148 = scmp.ne.s32.totalorder %s137, %s138
      %p149 = scmp.eq.s32.totalorder %s19, 0
      %p150 = por %p148, %p149
      %p151 = scmp.ne.s32.totalorder %s137, %s138
      %p152 = scmp.eq.s32.totalorder %s20, 1
      %p153 = por %p151, %p152
      %p155 = scmp.ne.s32.totalorder %s138, %s154
      %p156 = scmp.eq.s32.totalorder %s20, 0
      %p157 = por %p155, %p156
      %p158 = scmp.le.s32.totalorder 1, %s14
      %p159 = scmp.lt.s32.totalorder %s14, 3
      %p160 = pnand %p158, %p159
      %p161 = pneg %p160
      // Predicated region
      $region9: #{tpu_custom_call.1} parent=5 // pred_check
        _
      $region10: #{tpu_custom_call.1} parent=5 // pred_check_branch
        %163 = sbr.rel (%p160) target = $region12
      $region11: #{tpu_custom_call.1} parent=5 // pred_region
        %s164 = ssub.s32 %s14, 1
        // Predicated region
        $region13: #{tpu_custom_call.1} parent=11 // pred_check
          %p165 = pneg %p61
        $region14: #{tpu_custom_call.1} parent=11 // pred_check_branch
          %167 = sbr.rel (%p165) target = $region16
        $region15: #{tpu_custom_call.1} parent=11 // pred_region
          _
        $region16: #{tpu_custom_call.1} parent=11 // pred_fallthru
          _
        // Predicated region
        $region17: #{tpu_custom_call.1} parent=11 // pred_check
          %p168 = pneg %p82
        $region18: #{tpu_custom_call.1} parent=11 // pred_check_branch
          %170 = sbr.rel (%p168) target = $region20
        $region19: #{tpu_custom_call.1} parent=11 // pred_region
          _
        $region20: #{tpu_custom_call.1} parent=11 // pred_fallthru
          _
        // Predicated region
        $region21: #{tpu_custom_call.1} parent=11 // pred_check
          %p171 = pneg %p103
        $region22: #{tpu_custom_call.1} parent=11 // pred_check_branch
          %173 = sbr.rel (%p171) target = $region24
        $region23: #{tpu_custom_call.1} parent=11 // pred_region
          _
        $region24: #{tpu_custom_call.1} parent=11 // pred_fallthru
          _
        // Predicated region
        $region25: #{tpu_custom_call.1} parent=11 // pred_check
          %p174 = pneg %p124
        $region26: #{tpu_custom_call.1} parent=11 // pred_check_branch
          %176 = sbr.rel (%p174) target = $region28
        $region27: #{tpu_custom_call.1} parent=11 // pred_region
          _
        $region28: #{tpu_custom_call.1} parent=11 // pred_fallthru
          _
      $region12: #{tpu_custom_call.1} parent=5 // pred_fallthru
        _
      %p177 = scmp.lt.s32.totalorder %s14, 2
      // Predicated region
      $region29: #{tpu_custom_call.1} parent=5 // pred_check
        %p178 = pneg %p177
      $region30: #{tpu_custom_call.1} parent=5 // pred_check_branch
        %180 = sbr.rel (%p178) target = $region32
      $region31: #{tpu_custom_call.1} parent=5 // pred_region
        // Predicated region
        $region33: #{tpu_custom_call.1} parent=31 // pred_check
          %p181 = pneg %p34
        $region34: #{tpu_custom_call.1} parent=31 // pred_check_branch
          %183 = sbr.rel (%p181) target = $region36
        $region35: #{tpu_custom_call.1} parent=31 // pred_region
          %p184 = scmp.lt.s32.totalorder %s14, 1
          %s185 = scalar_select %p184, %s14, 1
          %s186 = smul.addr %s185, 32
          %s187 = smul.addr %s186, 8
          %s188 = scalar_lea.vmem %s0, %s187
        $region36: #{tpu_custom_call.1} parent=31 // pred_fallthru
          _
      $region32: #{tpu_custom_call.1} parent=5 // pred_fallthru
        _
      %p189 = scmp.le.s32.totalorder 1, %s14
      %p190 = scmp.lt.s32.totalorder %s14, 3
      %p191 = pnand %p189, %p190
      %p192 = pneg %p191
      // Predicated region
      $region37: #{tpu_custom_call.1} parent=5 // pred_check
        _
      $region38: #{tpu_custom_call.1} parent=5 // pred_check_branch
        %194 = sbr.rel (%p191) target = $region40
      $region39: #{tpu_custom_call.1} parent=5 // pred_region
        %s195 = ssub.s32 %s14, 1
        %p196 = scmp.lt.s32.totalorder %s19, 1
        %s197 = scalar_select %p196, %s19, 1
        %s198 = smul.addr %s197, 32
        %s199 = smul.addr %s198, 8
        %s200 = scalar_lea.vmem %s0, %s199
        %p201 = pneg %p40
        %p202 = pneg %p37
        %p203 = pneg %p61
        %p204 = pneg %p58
        %p205 = pneg %p82
        %p206 = pneg %p79
        %p207 = pneg %p103
        %p208 = pneg %p100
        %p209 = pneg %p124
        %p210 = pneg %p121
        %p211 = pneg %p150
        %p212 = pneg %p147
        %s213 = sand.u32 %s137, 1
        %s214 = scalar_lea.sflag [#allocation5], %s213
        %s215 = sand.u32 %s137, 1
        %s216 = smul.addr %s215, 128
        %s217 = scalar_lea.vmem [#allocation4], %s216
        %p218 = scmp.lt.s32.totalorder %s19, 1
        %s219 = scalar_select %p218, %s19, 1
        %s220 = smul.addr %s219, 32
        %s221 = smul.addr %s220, 8
        %s222 = scalar_lea.vmem %s0, %s221
        %vm224 = vcmask 31744
        %225 = vst.msk [vmem:[#allocation2] sm:$0xff] %vm224, 0
        %226 = vst.msk [vmem:[#allocation2 + $0x8] sm:$0xff] %vm224, 0
        %s227 = scalar_lea.vmem [#allocation2], 272
        %228 = vst.msk [vmem:[%s227] sm:$0xff] %vm224, 0
        %229 = vst.msk [vmem:[%s227 + $0x8] sm:$0xff] %vm224, 0
        %vm230 = vcmask 24576
        %vm231 = vsmask.f32 256
        %vm232 = vmand %vm230, %vm231
        %v233 = vld [vmem:[#allocation2] sm:$0x1]
        %v234 = vsel %vm232, 0, %v233
        %235 = vst [vmem:[#allocation2] sm:$0x1] %v234
        %v236 = vld [vmem:[#allocation2 + $0x10] sm:$0x1]
        %v237 = vsel %vm232, 0, %v236
        %238 = vst [vmem:[#allocation2 + $0x10] sm:$0x1] %v237
        %v239 = vld [vmem:[#allocation2 + $0x20] sm:$0x1]
        %v240 = vsel %vm232, 0, %v239
        %241 = vst [vmem:[#allocation2 + $0x20] sm:$0x1] %v240
        %v242 = vld [vmem:[#allocation2 + $0x30] sm:$0x1]
        %v243 = vsel %vm232, 0, %v242
        %244 = vst [vmem:[#allocation2 + $0x30] sm:$0x1] %v243
        %v245 = vld [vmem:[#allocation2 + $0x40] sm:$0x1]
        %v246 = vsel %vm232, 0, %v245
        %247 = vst [vmem:[#allocation2 + $0x40] sm:$0x1] %v246
        %v248 = vld [vmem:[#allocation2 + $0x50] sm:$0x1]
        %v249 = vsel %vm232, 0, %v248
        %250 = vst [vmem:[#allocation2 + $0x50] sm:$0x1] %v249
        %v251 = vld [vmem:[#allocation2 + $0x60] sm:$0x1]
        %v252 = vsel %vm232, 0, %v251
        %253 = vst [vmem:[#allocation2 + $0x60] sm:$0x1] %v252
        %v254 = vld [vmem:[#allocation2 + $0x70] sm:$0x1]
        %v255 = vsel %vm232, 0, %v254
        %256 = vst [vmem:[#allocation2 + $0x70] sm:$0x1] %v255
        %v257 = vld [vmem:[#allocation2 + $0x80] sm:$0x1]
        %v258 = vsel %vm232, 0, %v257
        %259 = vst [vmem:[#allocation2 + $0x80] sm:$0x1] %v258
        %v260 = vld [vmem:[#allocation2 + $0x90] sm:$0x1]
        %v261 = vsel %vm232, 0, %v260
        %262 = vst [vmem:[#allocation2 + $0x90] sm:$0x1] %v261
        %v263 = vld [vmem:[#allocation2 + $0xa0] sm:$0x1]
        %v264 = vsel %vm232, 0, %v263
        %265 = vst [vmem:[#allocation2 + $0xa0] sm:$0x1] %v264
        %v266 = vld [vmem:[#allocation2 + $0xb0] sm:$0x1]
        %v267 = vsel %vm232, 0, %v266
        %268 = vst [vmem:[#allocation2 + $0xb0] sm:$0x1] %v267
        %v269 = vld [vmem:[#allocation2 + $0xc0] sm:$0x1]
        %v270 = vsel %vm232, 0, %v269
        %271 = vst [vmem:[#allocation2 + $0xc0] sm:$0x1] %v270
        %v272 = vld [vmem:[#allocation2 + $0xd0] sm:$0x1]
        %v273 = vsel %vm232, 0, %v272
        %274 = vst [vmem:[#allocation2 + $0xd0] sm:$0x1] %v273
        %v275 = vld [vmem:[#allocation2 + $0xe0] sm:$0x1]
        %v276 = vsel %vm232, 0, %v275
        %277 = vst [vmem:[#allocation2 + $0xe0] sm:$0x1] %v276
        %v278 = vld [vmem:[#allocation2 + $0xf0] sm:$0x1]
        %v279 = vsel %vm232, 0, %v278
        %280 = vst [vmem:[#allocation2 + $0xf0] sm:$0x1] %v279
        %v281 = vld [vmem:[#allocation2 + $0x100] sm:$0x1]
        %v282 = vsel %vm232, 0, %v281
        %283 = vst [vmem:[#allocation2 + $0x100] sm:$0x1] %v282
        %v284 = vld [vmem:[#allocation2 + $0x110] sm:$0x1]
        %v285 = vsel %vm232, 0, %v284
        %286 = vst [vmem:[#allocation2 + $0x110] sm:$0x1] %v285
        %vm287 = vsmask.f32 7938
        %vm288 = vmand %vm230, %vm287
        %v289 = vld [vmem:[#allocation2 + $0x8] sm:$0x1]
        %v290 = vsel %vm288, 0, %v289
        %291 = vst [vmem:[#allocation2 + $0x8] sm:$0x1] %v290
        %v292 = vld [vmem:[#allocation2 + $0x18] sm:$0x1]
        %v293 = vsel %vm288, 0, %v292
        %294 = vst [vmem:[#allocation2 + $0x18] sm:$0x1] %v293
        %v295 = vld [vmem:[#allocation2 + $0x28] sm:$0x1]
        %v296 = vsel %vm288, 0, %v295
        %297 = vst [vmem:[#allocation2 + $0x28] sm:$0x1] %v296
        %v298 = vld [vmem:[#allocation2 + $0x38] sm:$0x1]
        %v299 = vsel %vm288, 0, %v298
        %300 = vst [vmem:[#allocation2 + $0x38] sm:$0x1] %v299
        %v301 = vld [vmem:[#allocation2 + $0x48] sm:$0x1]
        %v302 = vsel %vm288, 0, %v301
        %303 = vst [vmem:[#allocation2 + $0x48] sm:$0x1] %v302
        %v304 = vld [vmem:[#allocation2 + $0x58] sm:$0x1]
        %v305 = vsel %vm288, 0, %v304
        %306 = vst [vmem:[#allocation2 + $0x58] sm:$0x1] %v305
        %v307 = vld [vmem:[#allocation2 + $0x68] sm:$0x1]
        %v308 = vsel %vm288, 0, %v307
        %309 = vst [vmem:[#allocation2 + $0x68] sm:$0x1] %v308
        %v310 = vld [vmem:[#allocation2 + $0x78] sm:$0x1]
        %v311 = vsel %vm288, 0, %v310
        %312 = vst [vmem:[#allocation2 + $0x78] sm:$0x1] %v311
        %v313 = vld [vmem:[#allocation2 + $0x88] sm:$0x1]
        %v314 = vsel %vm288, 0, %v313
        %315 = vst [vmem:[#allocation2 + $0x88] sm:$0x1] %v314
        %v316 = vld [vmem:[#allocation2 + $0x98] sm:$0x1]
        %v317 = vsel %vm288, 0, %v316
        %318 = vst [vmem:[#allocation2 + $0x98] sm:$0x1] %v317
        %v319 = vld [vmem:[#allocation2 + $0xa8] sm:$0x1]
        %v320 = vsel %vm288, 0, %v319
        %321 = vst [vmem:[#allocation2 + $0xa8] sm:$0x1] %v320
        %v322 = vld [vmem:[#allocation2 + $0xb8] sm:$0x1]
        %v323 = vsel %vm288, 0, %v322
        %324 = vst [vmem:[#allocation2 + $0xb8] sm:$0x1] %v323
        %v325 = vld [vmem:[#allocation2 + $0xc8] sm:$0x1]
        %v326 = vsel %vm288, 0, %v325
        %327 = vst [vmem:[#allocation2 + $0xc8] sm:$0x1] %v326
        %v328 = vld [vmem:[#allocation2 + $0xd8] sm:$0x1]
        %v329 = vsel %vm288, 0, %v328
        %330 = vst [vmem:[#allocation2 + $0xd8] sm:$0x1] %v329
        %v331 = vld [vmem:[#allocation2 + $0xe8] sm:$0x1]
        %v332 = vsel %vm288, 0, %v331
        %333 = vst [vmem:[#allocation2 + $0xe8] sm:$0x1] %v332
        %v334 = vld [vmem:[#allocation2 + $0xf8] sm:$0x1]
        %v335 = vsel %vm288, 0, %v334
        %336 = vst [vmem:[#allocation2 + $0xf8] sm:$0x1] %v335
        %v337 = vld [vmem:[#allocation2 + $0x108] sm:$0x1]
        %v338 = vsel %vm288, 0, %v337
        %339 = vst [vmem:[#allocation2 + $0x108] sm:$0x1] %v338
        %v340 = vld [vmem:[#allocation2 + $0x118] sm:$0x1]
        %v341 = vsel %vm288, 0, %v340
        %342 = vst [vmem:[#allocation2 + $0x118] sm:$0x1] %v341
        %v343 = vld [vmem:[%s222] sm:$0xff]
        %v344 = vld [vmem:[%s222 + $0x8] sm:$0xff]
        %v345 = vld [vmem:[%s222 + $0x10] sm:$0xff]
        %v346 = vld [vmem:[%s222 + $0x18] sm:$0xff]
        %v347 = vld [vmem:[%s222 + $0x20] sm:$0xff]
        %v348 = vld [vmem:[%s222 + $0x28] sm:$0xff]
        %v349 = vld [vmem:[%s222 + $0x30] sm:$0xff]
        %v350 = vld [vmem:[%s222 + $0x38] sm:$0xff]
        %v351 = vld [vmem:[%s222 + $0x40] sm:$0xff]
        %v352 = vld [vmem:[%s222 + $0x48] sm:$0xff]
        %v353 = vld [vmem:[%s222 + $0x50] sm:$0xff]
        %v354 = vld [vmem:[%s222 + $0x58] sm:$0xff]
        %v355 = vld [vmem:[%s222 + $0x60] sm:$0xff]
        %v356 = vld [vmem:[%s222 + $0x68] sm:$0xff]
        %v357 = vld [vmem:[%s222 + $0x70] sm:$0xff]
        %v358 = vld [vmem:[%s222 + $0x78] sm:$0xff]
        %v359 = vld [vmem:[%s222 + $0x80] sm:$0xff]
        %v360 = vld [vmem:[%s222 + $0x88] sm:$0xff]
        %v361 = vld [vmem:[%s222 + $0x90] sm:$0xff]
        %v362 = vld [vmem:[%s222 + $0x98] sm:$0xff]
        %v363 = vld [vmem:[%s222 + $0xa0] sm:$0xff]
        %v364 = vld [vmem:[%s222 + $0xa8] sm:$0xff]
        %v365 = vld [vmem:[%s222 + $0xb0] sm:$0xff]
        %v366 = vld [vmem:[%s222 + $0xb8] sm:$0xff]
        %v367 = vld [vmem:[%s222 + $0xc0] sm:$0xff]
        %v368 = vld [vmem:[%s222 + $0xc8] sm:$0xff]
        %v369 = vld [vmem:[%s222 + $0xd0] sm:$0xff]
        %v370 = vld [vmem:[%s222 + $0xd8] sm:$0xff]
        %v371 = vld [vmem:[%s222 + $0xe0] sm:$0xff]
        %v372 = vld [vmem:[%s222 + $0xe8] sm:$0xff]
        %v373 = vld [vmem:[%s222 + $0xf0] sm:$0xff]
        %v374 = vld [vmem:[%s222 + $0xf8] sm:$0xff]
        %v375 = vpack.c.bf16 %v344, %v343
        %v376 = vpack.c.bf16 %v346, %v345
        %v377 = vpack.c.bf16 %v348, %v347
        %v378 = vpack.c.bf16 %v350, %v349
        %v379 = vpack.c.bf16 %v352, %v351
        %v380 = vpack.c.bf16 %v354, %v353
        %v381 = vpack.c.bf16 %v356, %v355
        %v382 = vpack.c.bf16 %v358, %v357
        %v383 = vpack.c.bf16 %v360, %v359
        %v384 = vpack.c.bf16 %v362, %v361
        %v385 = vpack.c.bf16 %v364, %v363
        %v386 = vpack.c.bf16 %v366, %v365
        %v387 = vpack.c.bf16 %v368, %v367
        %v388 = vpack.c.bf16 %v370, %v369
        %v389 = vpack.c.bf16 %v372, %v371
        %v390 = vpack.c.bf16 %v374, %v373
        %v392 = vshrl.u32 %v375, 16
        %v394 = vrot.slane %v392, 7
        %v395 = vshll.u32 %v375, 16
        %v397 = vor.u32 %v394, %v395
        %v399 = vshrl.u32 %v376, 16
        %v401 = vrot.slane %v399, 7
        %v402 = vshll.u32 %v376, 16
        %v404 = vor.u32 %v401, %v402
        %v406 = vshrl.u32 %v377, 16
        %v408 = vrot.slane %v406, 7
        %v409 = vshll.u32 %v377, 16
        %v411 = vor.u32 %v408, %v409
        %v413 = vshrl.u32 %v378, 16
        %v415 = vrot.slane %v413, 7
        %v416 = vshll.u32 %v378, 16
        %v418 = vor.u32 %v415, %v416
        %v420 = vshrl.u32 %v379, 16
        %v422 = vrot.slane %v420, 7
        %v423 = vshll.u32 %v379, 16
        %v425 = vor.u32 %v422, %v423
        %v427 = vshrl.u32 %v380, 16
        %v429 = vrot.slane %v427, 7
        %v430 = vshll.u32 %v380, 16
        %v432 = vor.u32 %v429, %v430
        %v434 = vshrl.u32 %v381, 16
        %v436 = vrot.slane %v434, 7
        %v437 = vshll.u32 %v381, 16
        %v439 = vor.u32 %v436, %v437
        %v441 = vshrl.u32 %v382, 16
        %v443 = vrot.slane %v441, 7
        %v444 = vshll.u32 %v382, 16
        %v446 = vor.u32 %v443, %v444
        %v448 = vshrl.u32 %v383, 16
        %v450 = vrot.slane %v448, 7
        %v451 = vshll.u32 %v383, 16
        %v453 = vor.u32 %v450, %v451
        %v455 = vshrl.u32 %v384, 16
        %v457 = vrot.slane %v455, 7
        %v458 = vshll.u32 %v384, 16
        %v460 = vor.u32 %v457, %v458
        %v462 = vshrl.u32 %v385, 16
        %v464 = vrot.slane %v462, 7
        %v465 = vshll.u32 %v385, 16
        %v467 = vor.u32 %v464, %v465
        %v469 = vshrl.u32 %v386, 16
        %v471 = vrot.slane %v469, 7
        %v472 = vshll.u32 %v386, 16
        %v474 = vor.u32 %v471, %v472
        %v476 = vshrl.u32 %v387, 16
        %v478 = vrot.slane %v476, 7
        %v479 = vshll.u32 %v387, 16
        %v481 = vor.u32 %v478, %v479
        %v483 = vshrl.u32 %v388, 16
        %v485 = vrot.slane %v483, 7
        %v486 = vshll.u32 %v388, 16
        %v488 = vor.u32 %v485, %v486
        %v490 = vshrl.u32 %v389, 16
        %v492 = vrot.slane %v490, 7
        %v493 = vshll.u32 %v389, 16
        %v495 = vor.u32 %v492, %v493
        %v497 = vshrl.u32 %v390, 16
        %v499 = vrot.slane %v497, 7
        %v500 = vshll.u32 %v390, 16
        %v502 = vor.u32 %v499, %v500
        %s535 = scalar_lea.vmem [#allocation2], 16
        %vm536 = vcmask 31744
        %vm537 = vmand %vm536, %vm287
        %v538 = vld [vmem:[%s535] sm:$0xff]
        %v539 = vsel %vm537, %v397, %v538
        %540 = vst [vmem:[%s535] sm:$0xff] %v539
        %v541 = vld [vmem:[%s535 + $0x8] sm:$0x1]
        %v542 = vsel %vm232, %v394, %v541
        %543 = vst [vmem:[%s535 + $0x8] sm:$0x1] %v542
        %v544 = vld [vmem:[%s535 + $0x10] sm:$0xff]
        %v545 = vsel %vm537, %v404, %v544
        %546 = vst [vmem:[%s535 + $0x10] sm:$0xff] %v545
        %v547 = vld [vmem:[%s535 + $0x18] sm:$0x1]
        %v548 = vsel %vm232, %v401, %v547
        %549 = vst [vmem:[%s535 + $0x18] sm:$0x1] %v548
        %v550 = vld [vmem:[%s535 + $0x20] sm:$0xff]
        %v551 = vsel %vm537, %v411, %v550
        %552 = vst [vmem:[%s535 + $0x20] sm:$0xff] %v551
        %v553 = vld [vmem:[%s535 + $0x28] sm:$0x1]
        %v554 = vsel %vm232, %v408, %v553
        %555 = vst [vmem:[%s535 + $0x28] sm:$0x1] %v554
        %v556 = vld [vmem:[%s535 + $0x30] sm:$0xff]
        %v557 = vsel %vm537, %v418, %v556
        %558 = vst [vmem:[%s535 + $0x30] sm:$0xff] %v557
        %v559 = vld [vmem:[%s535 + $0x38] sm:$0x1]
        %v560 = vsel %vm232, %v415, %v559
        %561 = vst [vmem:[%s535 + $0x38] sm:$0x1] %v560
        %v562 = vld [vmem:[%s535 + $0x40] sm:$0xff]
        %v563 = vsel %vm537, %v425, %v562
        %564 = vst [vmem:[%s535 + $0x40] sm:$0xff] %v563
        %v565 = vld [vmem:[%s535 + $0x48] sm:$0x1]
        %v566 = vsel %vm232, %v422, %v565
        %567 = vst [vmem:[%s535 + $0x48] sm:$0x1] %v566
        %v568 = vld [vmem:[%s535 + $0x50] sm:$0xff]
        %v569 = vsel %vm537, %v432, %v568
        %570 = vst [vmem:[%s535 + $0x50] sm:$0xff] %v569
        %v571 = vld [vmem:[%s535 + $0x58] sm:$0x1]
        %v572 = vsel %vm232, %v429, %v571
        %573 = vst [vmem:[%s535 + $0x58] sm:$0x1] %v572
        %v574 = vld [vmem:[%s535 + $0x60] sm:$0xff]
        %v575 = vsel %vm537, %v439, %v574
        %576 = vst [vmem:[%s535 + $0x60] sm:$0xff] %v575
        %v577 = vld [vmem:[%s535 + $0x68] sm:$0x1]
        %v578 = vsel %vm232, %v436, %v577
        %579 = vst [vmem:[%s535 + $0x68] sm:$0x1] %v578
        %v580 = vld [vmem:[%s535 + $0x70] sm:$0xff]
        %v581 = vsel %vm537, %v446, %v580
        %582 = vst [vmem:[%s535 + $0x70] sm:$0xff] %v581
        %v583 = vld [vmem:[%s535 + $0x78] sm:$0x1]
        %v584 = vsel %vm232, %v443, %v583
        %585 = vst [vmem:[%s535 + $0x78] sm:$0x1] %v584
        %v586 = vld [vmem:[%s535 + $0x80] sm:$0xff]
        %v587 = vsel %vm537, %v453, %v586
        %588 = vst [vmem:[%s535 + $0x80] sm:$0xff] %v587
        %v589 = vld [vmem:[%s535 + $0x88] sm:$0x1]
        %v590 = vsel %vm232, %v450, %v589
        %591 = vst [vmem:[%s535 + $0x88] sm:$0x1] %v590
        %v592 = vld [vmem:[%s535 + $0x90] sm:$0xff]
        %v593 = vsel %vm537, %v460, %v592
        %594 = vst [vmem:[%s535 + $0x90] sm:$0xff] %v593
        %v595 = vld [vmem:[%s535 + $0x98] sm:$0x1]
        %v596 = vsel %vm232, %v457, %v595
        %597 = vst [vmem:[%s535 + $0x98] sm:$0x1] %v596
        %v598 = vld [vmem:[%s535 + $0xa0] sm:$0xff]
        %v599 = vsel %vm537, %v467, %v598
        %600 = vst [vmem:[%s535 + $0xa0] sm:$0xff] %v599
        %v601 = vld [vmem:[%s535 + $0xa8] sm:$0x1]
        %v602 = vsel %vm232, %v464, %v601
        %603 = vst [vmem:[%s535 + $0xa8] sm:$0x1] %v602
        %v604 = vld [vmem:[%s535 + $0xb0] sm:$0xff]
        %v605 = vsel %vm537, %v474, %v604
        %606 = vst [vmem:[%s535 + $0xb0] sm:$0xff] %v605
        %v607 = vld [vmem:[%s535 + $0xb8] sm:$0x1]
        %v608 = vsel %vm232, %v471, %v607
        %609 = vst [vmem:[%s535 + $0xb8] sm:$0x1] %v608
        %v610 = vld [vmem:[%s535 + $0xc0] sm:$0xff]
        %v611 = vsel %vm537, %v481, %v610
        %612 = vst [vmem:[%s535 + $0xc0] sm:$0xff] %v611
        %v613 = vld [vmem:[%s535 + $0xc8] sm:$0x1]
        %v614 = vsel %vm232, %v478, %v613
        %615 = vst [vmem:[%s535 + $0xc8] sm:$0x1] %v614
        %v616 = vld [vmem:[%s535 + $0xd0] sm:$0xff]
        %v617 = vsel %vm537, %v488, %v616
        %618 = vst [vmem:[%s535 + $0xd0] sm:$0xff] %v617
        %v619 = vld [vmem:[%s535 + $0xd8] sm:$0x1]
        %v620 = vsel %vm232, %v485, %v619
        %621 = vst [vmem:[%s535 + $0xd8] sm:$0x1] %v620
        %v622 = vld [vmem:[%s535 + $0xe0] sm:$0xff]
        %v623 = vsel %vm537, %v495, %v622
        %624 = vst [vmem:[%s535 + $0xe0] sm:$0xff] %v623
        %v625 = vld [vmem:[%s535 + $0xe8] sm:$0x1]
        %v626 = vsel %vm232, %v492, %v625
        %627 = vst [vmem:[%s535 + $0xe8] sm:$0x1] %v626
        %v628 = vld [vmem:[%s535 + $0xf0] sm:$0xff]
        %v629 = vsel %vm537, %v502, %v628
        %630 = vst [vmem:[%s535 + $0xf0] sm:$0xff] %v629
        %v631 = vld [vmem:[%s535 + $0xf8] sm:$0x1]
        %v632 = vsel %vm232, %v499, %v631
        %633 = vst [vmem:[%s535 + $0xf8] sm:$0x1] %v632
        %v634 = vld [vmem:[#allocation2] sm:$0xff]
        %v635 = vld [vmem:[#allocation2 + $0x10] sm:$0xff]
        %v636 = vld [vmem:[#allocation2 + $0x20] sm:$0xff]
        %v637 = vld [vmem:[#allocation2 + $0x30] sm:$0xff]
        %v638 = vld [vmem:[#allocation2 + $0x40] sm:$0xff]
        %v639 = vld [vmem:[#allocation2 + $0x50] sm:$0xff]
        %v640 = vld [vmem:[#allocation2 + $0x60] sm:$0xff]
        %v641 = vld [vmem:[#allocation2 + $0x70] sm:$0xff]
        %v642 = vld [vmem:[#allocation2 + $0x80] sm:$0xff]
        %v643 = vld [vmem:[#allocation2 + $0x90] sm:$0xff]
        %v644 = vld [vmem:[#allocation2 + $0xa0] sm:$0xff]
        %v645 = vld [vmem:[#allocation2 + $0xb0] sm:$0xff]
        %v646 = vld [vmem:[#allocation2 + $0xc0] sm:$0xff]
        %v647 = vld [vmem:[#allocation2 + $0xd0] sm:$0xff]
        %v648 = vld [vmem:[#allocation2 + $0xe0] sm:$0xff]
        %v649 = vld [vmem:[#allocation2 + $0xf0] sm:$0xff]
        %v650 = vld [vmem:[%s1] sm:$0x3]
        %v651 = vld [vmem:[#allocation2 + $0x8] sm:$0x1]
        %v652 = vld [vmem:[#allocation2 + $0x18] sm:$0x1]
        %v653 = vld [vmem:[#allocation2 + $0x28] sm:$0x1]
        %v654 = vld [vmem:[#allocation2 + $0x38] sm:$0x1]
        %v655 = vld [vmem:[#allocation2 + $0x48] sm:$0x1]
        %v656 = vld [vmem:[#allocation2 + $0x58] sm:$0x1]
        %v657 = vld [vmem:[#allocation2 + $0x68] sm:$0x1]
        %v658 = vld [vmem:[#allocation2 + $0x78] sm:$0x1]
        %v659 = vld [vmem:[#allocation2 + $0x88] sm:$0x1]
        %v660 = vld [vmem:[#allocation2 + $0x98] sm:$0x1]
        %v661 = vld [vmem:[#allocation2 + $0xa8] sm:$0x1]
        %v662 = vld [vmem:[#allocation2 + $0xb8] sm:$0x1]
        %v663 = vld [vmem:[#allocation2 + $0xc8] sm:$0x1]
        %v664 = vld [vmem:[#allocation2 + $0xd8] sm:$0x1]
        %v665 = vld [vmem:[#allocation2 + $0xe8] sm:$0x1]
        %v666 = vld [vmem:[#allocation2 + $0xf8] sm:$0x1]
        %vm667 = vsmask.f32 7424
        %v669 = vshrl.u32 %v634, 16
        %v671 = vshll.u32 %v634, 16
        %v673 = vrot.slane %v671, 1
        %v674 = vor.u32 %v669, %v673
        %v676 = vshll.u32 %v651, 16
        %v678 = vrot.slane %v676, 1
        %v679 = vsel %vm667, %v674, %v678
        %v681 = vshrl.u32 %v635, 16
        %v683 = vshll.u32 %v635, 16
        %v685 = vrot.slane %v683, 1
        %v686 = vor.u32 %v681, %v685
        %v688 = vshll.u32 %v652, 16
        %v690 = vrot.slane %v688, 1
        %v691 = vsel %vm667, %v686, %v690
        %v693 = vshrl.u32 %v636, 16
        %v695 = vshll.u32 %v636, 16
        %v697 = vrot.slane %v695, 1
        %v698 = vor.u32 %v693, %v697
        %v700 = vshll.u32 %v653, 16
        %v702 = vrot.slane %v700, 1
        %v703 = vsel %vm667, %v698, %v702
        %v705 = vshrl.u32 %v637, 16
        %v707 = vshll.u32 %v637, 16
        %v709 = vrot.slane %v707, 1
        %v710 = vor.u32 %v705, %v709
        %v712 = vshll.u32 %v654, 16
        %v714 = vrot.slane %v712, 1
        %v715 = vsel %vm667, %v710, %v714
        %v717 = vshrl.u32 %v638, 16
        %v719 = vshll.u32 %v638, 16
        %v721 = vrot.slane %v719, 1
        %v722 = vor.u32 %v717, %v721
        %v724 = vshll.u32 %v655, 16
        %v726 = vrot.slane %v724, 1
        %v727 = vsel %vm667, %v722, %v726
        %v729 = vshrl.u32 %v639, 16
        %v731 = vshll.u32 %v639, 16
        %v733 = vrot.slane %v731, 1
        %v734 = vor.u32 %v729, %v733
        %v736 = vshll.u32 %v656, 16
        %v738 = vrot.slane %v736, 1
        %v739 = vsel %vm667, %v734, %v738
        %v741 = vshrl.u32 %v640, 16
        %v743 = vshll.u32 %v640, 16
        %v745 = vrot.slane %v743, 1
        %v746 = vor.u32 %v741, %v745
        %v748 = vshll.u32 %v657, 16
        %v750 = vrot.slane %v748, 1
        %v751 = vsel %vm667, %v746, %v750
        %v753 = vshrl.u32 %v641, 16
        %v755 = vshll.u32 %v641, 16
        %v757 = vrot.slane %v755, 1
        %v758 = vor.u32 %v753, %v757
        %v760 = vshll.u32 %v658, 16
        %v762 = vrot.slane %v760, 1
        %v763 = vsel %vm667, %v758, %v762
        %v765 = vshrl.u32 %v642, 16
        %v767 = vshll.u32 %v642, 16
        %v769 = vrot.slane %v767, 1
        %v770 = vor.u32 %v765, %v769
        %v772 = vshll.u32 %v659, 16
        %v774 = vrot.slane %v772, 1
        %v775 = vsel %vm667, %v770, %v774
        %v777 = vshrl.u32 %v643, 16
        %v779 = vshll.u32 %v643, 16
        %v781 = vrot.slane %v779, 1
        %v782 = vor.u32 %v777, %v781
        %v784 = vshll.u32 %v660, 16
        %v786 = vrot.slane %v784, 1
        %v787 = vsel %vm667, %v782, %v786
        %v789 = vshrl.u32 %v644, 16
        %v791 = vshll.u32 %v644, 16
        %v793 = vrot.slane %v791, 1
        %v794 = vor.u32 %v789, %v793
        %v796 = vshll.u32 %v661, 16
        %v798 = vrot.slane %v796, 1
        %v799 = vsel %vm667, %v794, %v798
        %v801 = vshrl.u32 %v645, 16
        %v803 = vshll.u32 %v645, 16
        %v805 = vrot.slane %v803, 1
        %v806 = vor.u32 %v801, %v805
        %v808 = vshll.u32 %v662, 16
        %v810 = vrot.slane %v808, 1
        %v811 = vsel %vm667, %v806, %v810
        %v813 = vshrl.u32 %v646, 16
        %v815 = vshll.u32 %v646, 16
        %v817 = vrot.slane %v815, 1
        %v818 = vor.u32 %v813, %v817
        %v820 = vshll.u32 %v663, 16
        %v822 = vrot.slane %v820, 1
        %v823 = vsel %vm667, %v818, %v822
        %v825 = vshrl.u32 %v647, 16
        %v827 = vshll.u32 %v647, 16
        %v829 = vrot.slane %v827, 1
        %v830 = vor.u32 %v825, %v829
        %v832 = vshll.u32 %v664, 16
        %v834 = vrot.slane %v832, 1
        %v835 = vsel %vm667, %v830, %v834
        %v837 = vshrl.u32 %v648, 16
        %v839 = vshll.u32 %v648, 16
        %v841 = vrot.slane %v839, 1
        %v842 = vor.u32 %v837, %v841
        %v844 = vshll.u32 %v665, 16
        %v846 = vrot.slane %v844, 1
        %v847 = vsel %vm667, %v842, %v846
        %v849 = vshrl.u32 %v649, 16
        %v851 = vshll.u32 %v649, 16
        %v853 = vrot.slane %v851, 1
        %v854 = vor.u32 %v849, %v853
        %v856 = vshll.u32 %v666, 16
        %v858 = vrot.slane %v856, 1
        %v859 = vsel %vm667, %v854, %v858
        %s860 = scalar_lea.vmem %s1, 2
        %v861 = vld [vmem:[%s860] sm:$0x3]
        %v863 = vsel %vm224, %v679, 0
        %v866 = vsel %vm224, %v691, 0
        %v869 = vsel %vm224, %v703, 0
        %v872 = vsel %vm224, %v715, 0
        %v875 = vsel %vm224, %v727, 0
        %v878 = vsel %vm224, %v739, 0
        %v881 = vsel %vm224, %v751, 0
        %v884 = vsel %vm224, %v763, 0
        %v887 = vsel %vm224, %v775, 0
        %v890 = vsel %vm224, %v787, 0
        %v893 = vsel %vm224, %v799, 0
        %v896 = vsel %vm224, %v811, 0
        %v899 = vsel %vm224, %v823, 0
        %v902 = vsel %vm224, %v835, 0
        %v905 = vsel %vm224, %v847, 0
        %v908 = vsel %vm224, %v859, 0
        %vm910 = vcmask 1041408
        %v912 = vsel %vm910, %v861, 0
        %914 = vmatprep.subr.bf16.mxu0 0
        %915 = vmatpush1.bf16.msra.mxu0 %v912
        %916 = vmatprep.subr.bf16.mxu0 0
        %917 = vmatpush1.bf16.msra.mxu0 0
        %918 = vmatprep.subr.bf16.mxu0 0
        %919 = vmatpush1.bf16.msra.mxu0 0
        %920 = vmatprep.subr.bf16.mxu0 0
        %921 = vmatpush1.bf16.msra.mxu0 0
        %922 = vmatprep.subr.bf16.mxu0 0
        %923 = vmatpush1.bf16.msra.mxu0 0
        %924 = vmatprep.subr.bf16.mxu0 0
        %925 = vmatpush1.bf16.msra.mxu0 0
        %926 = vmatprep.subr.bf16.mxu0 0
        %927 = vmatpush1.bf16.msra.mxu0 0
        %928 = vmatprep.subr.bf16.mxu0 0
        %929 = vmatpush1.bf16.msra.mxu0 0
        %930 = vmatprep.subr.bf16.mxu0 0
        %931 = vmatpush1.bf16.msra.mxu0 0
        %932 = vmatprep.subr.bf16.mxu0 0
        %933 = vmatpush1.bf16.msra.mxu0 0
        %934 = vmatprep.subr.bf16.mxu0 0
        %935 = vmatpush1.bf16.msra.mxu0 0
        %936 = vmatprep.subr.bf16.mxu0 0
        %937 = vmatpush1.bf16.msra.mxu0 0
        %938 = vmatprep.subr.bf16.mxu0 0
        %939 = vmatpush1.bf16.msra.mxu0 0
        %940 = vmatprep.subr.bf16.mxu0 0
        %941 = vmatpush1.bf16.msra.mxu0 0
        %942 = vmatprep.subr.bf16.mxu0 0
        %943 = vmatpush1.bf16.msra.mxu0 0
        %944 = vmatprep.subr.bf16.mxu0 0
        %945 = vmatpush1.bf16.msra.mxu0 0
        %946 = vmatprep.mubr.bf16.mxu0 0
        %947 = vmatmul.mubr.bf16.gmra.mrb[0].mxu0 %v863
        %v948 = vpop.f32.mrb[0].mxu0
        %v949 = vadd.f32 0.0, %v948
        %v950 = vpop.f32.mrb[0].mxu0
        %v951 = vpop.f32.mrb[0].mxu0
        %v952 = vadd.f32 0.0, %v951
        %v953 = vpop.f32.mrb[0].mxu0
        %954 = vmatprep.mubr.bf16.mxu0 0
        %955 = vmatmul.mubr.bf16.gmra.mrb[0].mxu0 %v866
        %v956 = vpop.f32.mrb[0].mxu0
        %v957 = vadd.f32 0.0, %v956
        %v958 = vpop.f32.mrb[0].mxu0
        %v959 = vpop.f32.mrb[0].mxu0
        %v960 = vadd.f32 0.0, %v959
        %v961 = vpop.f32.mrb[0].mxu0
        %962 = vmatprep.mubr.bf16.mxu0 0
        %963 = vmatmul.mubr.bf16.gmra.mrb[0].mxu0 %v869
        %v964 = vpop.f32.mrb[0].mxu0
        %v965 = vadd.f32 0.0, %v964
        %v966 = vpop.f32.mrb[0].mxu0
        %v967 = vpop.f32.mrb[0].mxu0
        %v968 = vadd.f32 0.0, %v967
        %v969 = vpop.f32.mrb[0].mxu0
        %970 = vmatprep.mubr.bf16.mxu0 0
        %971 = vmatmul.mubr.bf16.gmra.mrb[0].mxu0 %v872
        %v972 = vpop.f32.mrb[0].mxu0
        %v973 = vadd.f32 0.0, %v972
        %v974 = vpop.f32.mrb[0].mxu0
        %v975 = vpop.f32.mrb[0].mxu0
        %v976 = vadd.f32 0.0, %v975
        %v977 = vpop.f32.mrb[0].mxu0
        %978 = vmatprep.mubr.bf16.mxu0 0
        %979 = vmatmul.mubr.bf16.gmra.mrb[0].mxu0 %v875
        %v980 = vpop.f32.mrb[0].mxu0
        %v981 = vadd.f32 0.0, %v980
        %v982 = vpop.f32.mrb[0].mxu0
        %v983 = vpop.f32.mrb[0].mxu0
        %v984 = vadd.f32 0.0, %v983
        %v985 = vpop.f32.mrb[0].mxu0
        %986 = vmatprep.mubr.bf16.mxu0 0
        %987 = vmatmul.mubr.bf16.gmra.mrb[0].mxu0 %v878
        %v988 = vpop.f32.mrb[0].mxu0
        %v989 = vadd.f32 0.0, %v988
        %v990 = vpop.f32.mrb[0].mxu0
        %v991 = vpop.f32.mrb[0].mxu0
        %v992 = vadd.f32 0.0, %v991
        %v993 = vpop.f32.mrb[0].mxu0
        %994 = vmatprep.mubr.bf16.mxu0 0
        %995 = vmatmul.mubr.bf16.gmra.mrb[0].mxu0 %v881
        %v996 = vpop.f32.mrb[0].mxu0
        %v997 = vadd.f32 0.0, %v996
        %v998 = vpop.f32.mrb[0].mxu0
        %v999 = vpop.f32.mrb[0].mxu0
        %v1000 = vadd.f32 0.0, %v999
        %v1001 = vpop.f32.mrb[0].mxu0
        %1002 = vmatprep.mubr.bf16.mxu0 0
        %1003 = vmatmul.mubr.bf16.gmra.mrb[0].mxu0 %v884
        %v1004 = vpop.f32.mrb[0].mxu0
        %v1005 = vadd.f32 0.0, %v1004
        %v1006 = vpop.f32.mrb[0].mxu0
        %v1007 = vpop.f32.mrb[0].mxu0
        %v1008 = vadd.f32 0.0, %v1007
        %v1009 = vpop.f32.mrb[0].mxu0
        %1010 = vmatprep.mubr.bf16.mxu0 0
        %1011 = vmatmul.mubr.bf16.gmra.mrb[0].mxu0 %v887
        %v1012 = vpop.f32.mrb[0].mxu0
        %v1013 = vadd.f32 0.0, %v1012
        %v1014 = vpop.f32.mrb[0].mxu0
        %v1015 = vpop.f32.mrb[0].mxu0
        %v1016 = vadd.f32 0.0, %v1015
        %v1017 = vpop.f32.mrb[0].mxu0
        %1018 = vmatprep.mubr.bf16.mxu0 0
        %1019 = vmatmul.mubr.bf16.gmra.mrb[0].mxu0 %v890
        %v1020 = vpop.f32.mrb[0].mxu0
        %v1021 = vadd.f32 0.0, %v1020
        %v1022 = vpop.f32.mrb[0].mxu0
        %v1023 = vpop.f32.mrb[0].mxu0
        %v1024 = vadd.f32 0.0, %v1023
        %v1025 = vpop.f32.mrb[0].mxu0
        %1026 = vmatprep.mubr.bf16.mxu0 0
        %1027 = vmatmul.mubr.bf16.gmra.mrb[0].mxu0 %v893
        %v1028 = vpop.f32.mrb[0].mxu0
        %v1029 = vadd.f32 0.0, %v1028
        %v1030 = vpop.f32.mrb[0].mxu0
        %v1031 = vpop.f32.mrb[0].mxu0
        %v1032 = vadd.f32 0.0, %v1031
        %v1033 = vpop.f32.mrb[0].mxu0
        %1034 = vmatprep.mubr.bf16.mxu0 0
        %1035 = vmatmul.mubr.bf16.gmra.mrb[0].mxu0 %v896
        %v1036 = vpop.f32.mrb[0].mxu0
        %v1037 = vadd.f32 0.0, %v1036
        %v1038 = vpop.f32.mrb[0].mxu0
        %v1039 = vpop.f32.mrb[0].mxu0
        %v1040 = vadd.f32 0.0, %v1039
        %v1041 = vpop.f32.mrb[0].mxu0
        %1042 = vmatprep.mubr.bf16.mxu0 0
        %1043 = vmatmul.mubr.bf16.gmra.mrb[0].mxu0 %v899
        %v1044 = vpop.f32.mrb[0].mxu0
        %v1045 = vadd.f32 0.0, %v1044
        %v1046 = vpop.f32.mrb[0].mxu0
        %v1047 = vpop.f32.mrb[0].mxu0
        %v1048 = vadd.f32 0.0, %v1047
        %v1049 = vpop.f32.mrb[0].mxu0
        %1050 = vmatprep.mubr.bf16.mxu0 0
        %1051 = vmatmul.mubr.bf16.gmra.mrb[0].mxu0 %v902
        %v1052 = vpop.f32.mrb[0].mxu0
        %v1053 = vadd.f32 0.0, %v1052
        %v1054 = vpop.f32.mrb[0].mxu0
        %v1055 = vpop.f32.mrb[0].mxu0
        %v1056 = vadd.f32 0.0, %v1055
        %v1057 = vpop.f32.mrb[0].mxu0
        %1058 = vmatprep.mubr.bf16.mxu0 0
        %1059 = vmatmul.mubr.bf16.gmra.mrb[0].mxu0 %v905
        %v1060 = vpop.f32.mrb[0].mxu0
        %v1061 = vadd.f32 0.0, %v1060
        %v1062 = vpop.f32.mrb[0].mxu0
        %v1063 = vpop.f32.mrb[0].mxu0
        %v1064 = vadd.f32 0.0, %v1063
        %v1065 = vpop.f32.mrb[0].mxu0
        %1066 = vmatprep.mubr.bf16.mxu0 0
        %1067 = vmatmul.mubr.bf16.gmra.mrb[0].mxu0 %v908
        %v1068 = vpop.f32.mrb[0].mxu0
        %v1069 = vadd.f32 0.0, %v1068
        %v1070 = vpop.f32.mrb[0].mxu0
        %v1071 = vpop.f32.mrb[0].mxu0
        %v1072 = vadd.f32 0.0, %v1071
        %v1073 = vpop.f32.mrb[0].mxu0
        %1074 = vdwg.mxu0
        %v1075 = vsel %vm224, %v634, 0
        %v1077 = vsel %vm224, %v635, 0
        %v1079 = vsel %vm224, %v636, 0
        %v1081 = vsel %vm224, %v637, 0
        %v1083 = vsel %vm224, %v638, 0
        %v1085 = vsel %vm224, %v639, 0
        %v1087 = vsel %vm224, %v640, 0
        %v1089 = vsel %vm224, %v641, 0
        %v1091 = vsel %vm224, %v642, 0
        %v1093 = vsel %vm224, %v643, 0
        %v1095 = vsel %vm224, %v644, 0
        %v1097 = vsel %vm224, %v645, 0
        %v1099 = vsel %vm224, %v646, 0
        %v1101 = vsel %vm224, %v647, 0
        %v1103 = vsel %vm224, %v648, 0
        %v1105 = vsel %vm224, %v649, 0
        %v1108 = vsel %vm910, %v650, 0
        %1110 = vmatprep.subr.bf16.mxu0 0
        %1111 = vmatpush1.bf16.msra.mxu0 %v1108
        %1112 = vmatprep.subr.bf16.mxu0 0
        %1113 = vmatpush1.bf16.msra.mxu0 0
        %1114 = vmatprep.subr.bf16.mxu0 0
        %1115 = vmatpush1.bf16.msra.mxu0 0
        %1116 = vmatprep.subr.bf16.mxu0 0
        %1117 = vmatpush1.bf16.msra.mxu0 0
        %1118 = vmatprep.subr.bf16.mxu0 0
        %1119 = vmatpush1.bf16.msra.mxu0 0
        %1120 = vmatprep.subr.bf16.mxu0 0
        %1121 = vmatpush1.bf16.msra.mxu0 0
        %1122 = vmatprep.subr.bf16.mxu0 0
        %1123 = vmatpush1.bf16.msra.mxu0 0
        %1124 = vmatprep.subr.bf16.mxu0 0
        %1125 = vmatpush1.bf16.msra.mxu0 0
        %1126 = vmatprep.subr.bf16.mxu0 0
        %1127 = vmatpush1.bf16.msra.mxu0 0
        %1128 = vmatprep.subr.bf16.mxu0 0
        %1129 = vmatpush1.bf16.msra.mxu0 0
        %1130 = vmatprep.subr.bf16.mxu0 0
        %1131 = vmatpush1.bf16.msra.mxu0 0
        %1132 = vmatprep.subr.bf16.mxu0 0
        %1133 = vmatpush1.bf16.msra.mxu0 0
        %1134 = vmatprep.subr.bf16.mxu0 0
        %1135 = vmatpush1.bf16.msra.mxu0 0
        %1136 = vmatprep.subr.bf16.mxu0 0
        %1137 = vmatpush1.bf16.msra.mxu0 0
        %1138 = vmatprep.subr.bf16.mxu0 0
        %1139 = vmatpush1.bf16.msra.mxu0 0
        %1140 = vmatprep.subr.bf16.mxu0 0
        %1141 = vmatpush1.bf16.msra.mxu0 0
        %1142 = vmatprep.mubr.bf16.mxu0 0
        %1143 = vmatmul.mubr.bf16.gmra.mrb[0].mxu0 %v1075
        %v1144 = vpop.f32.mrb[0].mxu0
        %v1145 = vadd.f32 %v949, %v1144
        %v1146 = vpop.f32.mrb[0].mxu0
        %v1147 = vpop.f32.mrb[0].mxu0
        %v1148 = vadd.f32 %v952, %v1147
        %v1149 = vpop.f32.mrb[0].mxu0
        %1150 = vmatprep.mubr.bf16.mxu0 0
        %1151 = vmatmul.mubr.bf16.gmra.mrb[0].mxu0 %v1077
        %v1152 = vpop.f32.mrb[0].mxu0
        %v1153 = vadd.f32 %v957, %v1152
        %v1154 = vpop.f32.mrb[0].mxu0
        %v1155 = vpop.f32.mrb[0].mxu0
        %v1156 = vadd.f32 %v960, %v1155
        %v1157 = vpop.f32.mrb[0].mxu0
        %1158 = vmatprep.mubr.bf16.mxu0 0
        %1159 = vmatmul.mubr.bf16.gmra.mrb[0].mxu0 %v1079
        %v1160 = vpop.f32.mrb[0].mxu0
        %v1161 = vadd.f32 %v965, %v1160
        %v1162 = vpop.f32.mrb[0].mxu0
        %v1163 = vpop.f32.mrb[0].mxu0
        %v1164 = vadd.f32 %v968, %v1163
        %v1165 = vpop.f32.mrb[0].mxu0
        %1166 = vmatprep.mubr.bf16.mxu0 0
        %1167 = vmatmul.mubr.bf16.gmra.mrb[0].mxu0 %v1081
        %v1168 = vpop.f32.mrb[0].mxu0
        %v1169 = vadd.f32 %v973, %v1168
        %v1170 = vpop.f32.mrb[0].mxu0
        %v1171 = vpop.f32.mrb[0].mxu0
        %v1172 = vadd.f32 %v976, %v1171
        %v1173 = vpop.f32.mrb[0].mxu0
        %1174 = vmatprep.mubr.bf16.mxu0 0
        %1175 = vmatmul.mubr.bf16.gmra.mrb[0].mxu0 %v1083
        %v1176 = vpop.f32.mrb[0].mxu0
        %v1177 = vadd.f32 %v981, %v1176
        %v1178 = vpop.f32.mrb[0].mxu0
        %v1179 = vpop.f32.mrb[0].mxu0
        %v1180 = vadd.f32 %v984, %v1179
        %v1181 = vpop.f32.mrb[0].mxu0
        %1182 = vmatprep.mubr.bf16.mxu0 0
        %1183 = vmatmul.mubr.bf16.gmra.mrb[0].mxu0 %v1085
        %v1184 = vpop.f32.mrb[0].mxu0
        %v1185 = vadd.f32 %v989, %v1184
        %v1186 = vpop.f32.mrb[0].mxu0
        %v1187 = vpop.f32.mrb[0].mxu0
        %v1188 = vadd.f32 %v992, %v1187
        %v1189 = vpop.f32.mrb[0].mxu0
        %1190 = vmatprep.mubr.bf16.mxu0 0
        %1191 = vmatmul.mubr.bf16.gmra.mrb[0].mxu0 %v1087
        %v1192 = vpop.f32.mrb[0].mxu0
        %v1193 = vadd.f32 %v997, %v1192
        %v1194 = vpop.f32.mrb[0].mxu0
        %v1195 = vpop.f32.mrb[0].mxu0
        %v1196 = vadd.f32 %v1000, %v1195
        %v1197 = vpop.f32.mrb[0].mxu0
        %1198 = vmatprep.mubr.bf16.mxu0 0
        %1199 = vmatmul.mubr.bf16.gmra.mrb[0].mxu0 %v1089
        %v1200 = vpop.f32.mrb[0].mxu0
        %v1201 = vadd.f32 %v1005, %v1200
        %v1202 = vpop.f32.mrb[0].mxu0
        %v1203 = vpop.f32.mrb[0].mxu0
        %v1204 = vadd.f32 %v1008, %v1203
        %v1205 = vpop.f32.mrb[0].mxu0
        %1206 = vmatprep.mubr.bf16.mxu0 0
        %1207 = vmatmul.mubr.bf16.gmra.mrb[0].mxu0 %v1091
        %v1208 = vpop.f32.mrb[0].mxu0
        %v1209 = vadd.f32 %v1013, %v1208
        %v1210 = vpop.f32.mrb[0].mxu0
        %v1211 = vpop.f32.mrb[0].mxu0
        %v1212 = vadd.f32 %v1016, %v1211
        %v1213 = vpop.f32.mrb[0].mxu0
        %1214 = vmatprep.mubr.bf16.mxu0 0
        %1215 = vmatmul.mubr.bf16.gmra.mrb[0].mxu0 %v1093
        %v1216 = vpop.f32.mrb[0].mxu0
        %v1217 = vadd.f32 %v1021, %v1216
        %v1218 = vpop.f32.mrb[0].mxu0
        %v1219 = vpop.f32.mrb[0].mxu0
        %v1220 = vadd.f32 %v1024, %v1219
        %v1221 = vpop.f32.mrb[0].mxu0
        %1222 = vmatprep.mubr.bf16.mxu0 0
        %1223 = vmatmul.mubr.bf16.gmra.mrb[0].mxu0 %v1095
        %v1224 = vpop.f32.mrb[0].mxu0
        %v1225 = vadd.f32 %v1029, %v1224
        %v1226 = vpop.f32.mrb[0].mxu0
        %v1227 = vpop.f32.mrb[0].mxu0
        %v1228 = vadd.f32 %v1032, %v1227
        %v1229 = vpop.f32.mrb[0].mxu0
        %1230 = vmatprep.mubr.bf16.mxu0 0
        %1231 = vmatmul.mubr.bf16.gmra.mrb[0].mxu0 %v1097
        %v1232 = vpop.f32.mrb[0].mxu0
        %v1233 = vadd.f32 %v1037, %v1232
        %v1234 = vpop.f32.mrb[0].mxu0
        %v1235 = vpop.f32.mrb[0].mxu0
        %v1236 = vadd.f32 %v1040, %v1235
        %v1237 = vpop.f32.mrb[0].mxu0
        %1238 = vmatprep.mubr.bf16.mxu0 0
        %1239 = vmatmul.mubr.bf16.gmra.mrb[0].mxu0 %v1099
        %v1240 = vpop.f32.mrb[0].mxu0
        %v1241 = vadd.f32 %v1045, %v1240
        %v1242 = vpop.f32.mrb[0].mxu0
        %v1243 = vpop.f32.mrb[0].mxu0
        %v1244 = vadd.f32 %v1048, %v1243
        %v1245 = vpop.f32.mrb[0].mxu0
        %1246 = vmatprep.mubr.bf16.mxu0 0
        %1247 = vmatmul.mubr.bf16.gmra.mrb[0].mxu0 %v1101
        %v1248 = vpop.f32.mrb[0].mxu0
        %v1249 = vadd.f32 %v1053, %v1248
        %v1250 = vpop.f32.mrb[0].mxu0
        %v1251 = vpop.f32.mrb[0].mxu0
        %v1252 = vadd.f32 %v1056, %v1251
        %v1253 = vpop.f32.mrb[0].mxu0
        %1254 = vmatprep.mubr.bf16.mxu0 0
        %1255 = vmatmul.mubr.bf16.gmra.mrb[0].mxu0 %v1103
        %v1256 = vpop.f32.mrb[0].mxu0
        %v1257 = vadd.f32 %v1061, %v1256
        %v1258 = vpop.f32.mrb[0].mxu0
        %v1259 = vpop.f32.mrb[0].mxu0
        %v1260 = vadd.f32 %v1064, %v1259
        %v1261 = vpop.f32.mrb[0].mxu0
        %1262 = vmatprep.mubr.bf16.mxu0 0
        %1263 = vmatmul.mubr.bf16.gmra.mrb[0].mxu0 %v1105
        %v1264 = vpop.f32.mrb[0].mxu0
        %v1265 = vadd.f32 %v1069, %v1264
        %v1266 = vpop.f32.mrb[0].mxu0
        %v1267 = vpop.f32.mrb[0].mxu0
        %v1268 = vadd.f32 %v1072, %v1267
        %v1269 = vpop.f32.mrb[0].mxu0
        %1270 = vdwg.mxu0
        %v1271 = vld [vmem:[#allocation2] sm:$0xfe]
        %v1272 = vld [vmem:[#allocation2 + $0x10] sm:$0xfe]
        %v1273 = vld [vmem:[#allocation2 + $0x20] sm:$0xfe]
        %v1274 = vld [vmem:[#allocation2 + $0x30] sm:$0xfe]
        %v1275 = vld [vmem:[#allocation2 + $0x40] sm:$0xfe]
        %v1276 = vld [vmem:[#allocation2 + $0x50] sm:$0xfe]
        %v1277 = vld [vmem:[#allocation2 + $0x60] sm:$0xfe]
        %v1278 = vld [vmem:[#allocation2 + $0x70] sm:$0xfe]
        %v1279 = vld [vmem:[#allocation2 + $0x80] sm:$0xfe]
        %v1280 = vld [vmem:[#allocation2 + $0x90] sm:$0xfe]
        %v1281 = vld [vmem:[#allocation2 + $0xa0] sm:$0xfe]
        %v1282 = vld [vmem:[#allocation2 + $0xb0] sm:$0xfe]
        %v1283 = vld [vmem:[#allocation2 + $0xc0] sm:$0xfe]
        %v1284 = vld [vmem:[#allocation2 + $0xd0] sm:$0xfe]
        %v1285 = vld [vmem:[#allocation2 + $0xe0] sm:$0xfe]
        %v1286 = vld [vmem:[#allocation2 + $0xf0] sm:$0xfe]
        %vm1319 = vcmask 1046528
        %v1320 = vrot.slane %v1271, 1
        %v1321 = vrot.slane %v651, 1
        %v1322 = vsel %vm1319, %v1320, %v1321
        %v1323 = vrot.slane %v1272, 1
        %v1324 = vrot.slane %v652, 1
        %v1325 = vsel %vm1319, %v1323, %v1324
        %v1326 = vrot.slane %v1273, 1
        %v1327 = vrot.slane %v653, 1
        %v1328 = vsel %vm1319, %v1326, %v1327
        %v1329 = vrot.slane %v1274, 1
        %v1330 = vrot.slane %v654, 1
        %v1331 = vsel %vm1319, %v1329, %v1330
        %v1332 = vrot.slane %v1275, 1
        %v1333 = vrot.slane %v655, 1
        %v1334 = vsel %vm1319, %v1332, %v1333
        %v1335 = vrot.slane %v1276, 1
        %v1336 = vrot.slane %v656, 1
        %v1337 = vsel %vm1319, %v1335, %v1336
        %v1338 = vrot.slane %v1277, 1
        %v1339 = vrot.slane %v657, 1
        %v1340 = vsel %vm1319, %v1338, %v1339
        %v1341 = vrot.slane %v1278, 1
        %v1342 = vrot.slane %v658, 1
        %v1343 = vsel %vm1319, %v1341, %v1342
        %v1344 = vrot.slane %v1279, 1
        %v1345 = vrot.slane %v659, 1
        %v1346 = vsel %vm1319, %v1344, %v1345
        %v1347 = vrot.slane %v1280, 1
        %v1348 = vrot.slane %v660, 1
        %v1349 = vsel %vm1319, %v1347, %v1348
        %v1350 = vrot.slane %v1281, 1
        %v1351 = vrot.slane %v661, 1
        %v1352 = vsel %vm1319, %v1350, %v1351
        %v1353 = vrot.slane %v1282, 1
        %v1354 = vrot.slane %v662, 1
        %v1355 = vsel %vm1319, %v1353, %v1354
        %v1356 = vrot.slane %v1283, 1
        %v1357 = vrot.slane %v663, 1
        %v1358 = vsel %vm1319, %v1356, %v1357
        %v1359 = vrot.slane %v1284, 1
        %v1360 = vrot.slane %v664, 1
        %v1361 = vsel %vm1319, %v1359, %v1360
        %v1362 = vrot.slane %v1285, 1
        %v1363 = vrot.slane %v665, 1
        %v1364 = vsel %vm1319, %v1362, %v1363
        %v1365 = vrot.slane %v1286, 1
        %v1366 = vrot.slane %v666, 1
        %v1367 = vsel %vm1319, %v1365, %v1366
        %s1368 = scalar_lea.vmem %s1, 4
        %v1369 = vld [vmem:[%s1368] sm:$0x3]
        %v1371 = vsel %vm224, %v1322, 0
        %v1374 = vsel %vm224, %v1325, 0
        %v1377 = vsel %vm224, %v1328, 0
        %v1380 = vsel %vm224, %v1331, 0
        %v1383 = vsel %vm224, %v1334, 0
        %v1386 = vsel %vm224, %v1337, 0
        %v1389 = vsel %vm224, %v1340, 0
        %v1392 = vsel %vm224, %v1343, 0
        %v1395 = vsel %vm224, %v1346, 0
        %v1398 = vsel %vm224, %v1349, 0
        %v1401 = vsel %vm224, %v1352, 0
        %v1404 = vsel %vm224, %v1355, 0
        %v1407 = vsel %vm224, %v1358, 0
        %v1410 = vsel %vm224, %v1361, 0
        %v1413 = vsel %vm224, %v1364, 0
        %v1416 = vsel %vm224, %v1367, 0
        %v1419 = vsel %vm910, %v1369, 0
        %1421 = vmatprep.subr.bf16.mxu0 0
        %1422 = vmatpush1.bf16.msra.mxu0 %v1419
        %1423 = vmatprep.subr.bf16.mxu0 0
        %1424 = vmatpush1.bf16.msra.mxu0 0
        %1425 = vmatprep.subr.bf16.mxu0 0
        %1426 = vmatpush1.bf16.msra.mxu0 0
        %1427 = vmatprep.subr.bf16.mxu0 0
        %1428 = vmatpush1.bf16.msra.mxu0 0
        %1429 = vmatprep.subr.bf16.mxu0 0
        %1430 = vmatpush1.bf16.msra.mxu0 0
        %1431 = vmatprep.subr.bf16.mxu0 0
        %1432 = vmatpush1.bf16.msra.mxu0 0
        %1433 = vmatprep.subr.bf16.mxu0 0
        %1434 = vmatpush1.bf16.msra.mxu0 0
        %1435 = vmatprep.subr.bf16.mxu0 0
        %1436 = vmatpush1.bf16.msra.mxu0 0
        %1437 = vmatprep.subr.bf16.mxu0 0
        %1438 = vmatpush1.bf16.msra.mxu0 0
        %1439 = vmatprep.subr.bf16.mxu0 0
        %1440 = vmatpush1.bf16.msra.mxu0 0
        %1441 = vmatprep.subr.bf16.mxu0 0
        %1442 = vmatpush1.bf16.msra.mxu0 0
        %1443 = vmatprep.subr.bf16.mxu0 0
        %1444 = vmatpush1.bf16.msra.mxu0 0
        %1445 = vmatprep.subr.bf16.mxu0 0
        %1446 = vmatpush1.bf16.msra.mxu0 0
        %1447 = vmatprep.subr.bf16.mxu0 0
        %1448 = vmatpush1.bf16.msra.mxu0 0
        %1449 = vmatprep.subr.bf16.mxu0 0
        %1450 = vmatpush1.bf16.msra.mxu0 0
        %1451 = vmatprep.subr.bf16.mxu0 0
        %1452 = vmatpush1.bf16.msra.mxu0 0
        %1453 = vmatprep.mubr.bf16.mxu0 0
        %1454 = vmatmul.mubr.bf16.gmra.mrb[0].mxu0 %v1371
        %v1455 = vpop.f32.mrb[0].mxu0
        %v1456 = vadd.f32 0.0, %v1455
        %v1457 = vpop.f32.mrb[0].mxu0
        %v1458 = vpop.f32.mrb[0].mxu0
        %v1459 = vadd.f32 0.0, %v1458
        %v1460 = vpop.f32.mrb[0].mxu0
        %1461 = vmatprep.mubr.bf16.mxu0 0
        %1462 = vmatmul.mubr.bf16.gmra.mrb[0].mxu0 %v1374
        %v1463 = vpop.f32.mrb[0].mxu0
        %v1464 = vadd.f32 0.0, %v1463
        %v1465 = vpop.f32.mrb[0].mxu0
        %v1466 = vpop.f32.mrb[0].mxu0
        %v1467 = vadd.f32 0.0, %v1466
        %v1468 = vpop.f32.mrb[0].mxu0
        %1469 = vmatprep.mubr.bf16.mxu0 0
        %1470 = vmatmul.mubr.bf16.gmra.mrb[0].mxu0 %v1377
        %v1471 = vpop.f32.mrb[0].mxu0
        %v1472 = vadd.f32 0.0, %v1471
        %v1473 = vpop.f32.mrb[0].mxu0
        %v1474 = vpop.f32.mrb[0].mxu0
        %v1475 = vadd.f32 0.0, %v1474
        %v1476 = vpop.f32.mrb[0].mxu0
        %1477 = vmatprep.mubr.bf16.mxu0 0
        %1478 = vmatmul.mubr.bf16.gmra.mrb[0].mxu0 %v1380
        %v1479 = vpop.f32.mrb[0].mxu0
        %v1480 = vadd.f32 0.0, %v1479
        %v1481 = vpop.f32.mrb[0].mxu0
        %v1482 = vpop.f32.mrb[0].mxu0
        %v1483 = vadd.f32 0.0, %v1482
        %v1484 = vpop.f32.mrb[0].mxu0
        %1485 = vmatprep.mubr.bf16.mxu0 0
        %1486 = vmatmul.mubr.bf16.gmra.mrb[0].mxu0 %v1383
        %v1487 = vpop.f32.mrb[0].mxu0
        %v1488 = vadd.f32 0.0, %v1487
        %v1489 = vpop.f32.mrb[0].mxu0
        %v1490 = vpop.f32.mrb[0].mxu0
        %v1491 = vadd.f32 0.0, %v1490
        %v1492 = vpop.f32.mrb[0].mxu0
        %1493 = vmatprep.mubr.bf16.mxu0 0
        %1494 = vmatmul.mubr.bf16.gmra.mrb[0].mxu0 %v1386
        %v1495 = vpop.f32.mrb[0].mxu0
        %v1496 = vadd.f32 0.0, %v1495
        %v1497 = vpop.f32.mrb[0].mxu0
        %v1498 = vpop.f32.mrb[0].mxu0
        %v1499 = vadd.f32 0.0, %v1498
        %v1500 = vpop.f32.mrb[0].mxu0
        %1501 = vmatprep.mubr.bf16.mxu0 0
        %1502 = vmatmul.mubr.bf16.gmra.mrb[0].mxu0 %v1389
        %v1503 = vpop.f32.mrb[0].mxu0
        %v1504 = vadd.f32 0.0, %v1503
        %v1505 = vpop.f32.mrb[0].mxu0
        %v1506 = vpop.f32.mrb[0].mxu0
        %v1507 = vadd.f32 0.0, %v1506
        %v1508 = vpop.f32.mrb[0].mxu0
        %1509 = vmatprep.mubr.bf16.mxu0 0
        %1510 = vmatmul.mubr.bf16.gmra.mrb[0].mxu0 %v1392
        %v1511 = vpop.f32.mrb[0].mxu0
        %v1512 = vadd.f32 0.0, %v1511
        %v1513 = vpop.f32.mrb[0].mxu0
        %v1514 = vpop.f32.mrb[0].mxu0
        %v1515 = vadd.f32 0.0, %v1514
        %v1516 = vpop.f32.mrb[0].mxu0
        %1517 = vmatprep.mubr.bf16.mxu0 0
        %1518 = vmatmul.mubr.bf16.gmra.mrb[0].mxu0 %v1395
        %v1519 = vpop.f32.mrb[0].mxu0
        %v1520 = vadd.f32 0.0, %v1519
        %v1521 = vpop.f32.mrb[0].mxu0
        %v1522 = vpop.f32.mrb[0].mxu0
        %v1523 = vadd.f32 0.0, %v1522
        %v1524 = vpop.f32.mrb[0].mxu0
        %1525 = vmatprep.mubr.bf16.mxu0 0
        %1526 = vmatmul.mubr.bf16.gmra.mrb[0].mxu0 %v1398
        %v1527 = vpop.f32.mrb[0].mxu0
        %v1528 = vadd.f32 0.0, %v1527
        %v1529 = vpop.f32.mrb[0].mxu0
        %v1530 = vpop.f32.mrb[0].mxu0
        %v1531 = vadd.f32 0.0, %v1530
        %v1532 = vpop.f32.mrb[0].mxu0
        %1533 = vmatprep.mubr.bf16.mxu0 0
        %1534 = vmatmul.mubr.bf16.gmra.mrb[0].mxu0 %v1401
        %v1535 = vpop.f32.mrb[0].mxu0
        %v1536 = vadd.f32 0.0, %v1535
        %v1537 = vpop.f32.mrb[0].mxu0
        %v1538 = vpop.f32.mrb[0].mxu0
        %v1539 = vadd.f32 0.0, %v1538
        %v1540 = vpop.f32.mrb[0].mxu0
        %1541 = vmatprep.mubr.bf16.mxu0 0
        %1542 = vmatmul.mubr.bf16.gmra.mrb[0].mxu0 %v1404
        %v1543 = vpop.f32.mrb[0].mxu0
        %v1544 = vadd.f32 0.0, %v1543
        %v1545 = vpop.f32.mrb[0].mxu0
        %v1546 = vpop.f32.mrb[0].mxu0
        %v1547 = vadd.f32 0.0, %v1546
        %v1548 = vpop.f32.mrb[0].mxu0
        %1549 = vmatprep.mubr.bf16.mxu0 0
        %1550 = vmatmul.mubr.bf16.gmra.mrb[0].mxu0 %v1407
        %v1551 = vpop.f32.mrb[0].mxu0
        %v1552 = vadd.f32 0.0, %v1551
        %v1553 = vpop.f32.mrb[0].mxu0
        %v1554 = vpop.f32.mrb[0].mxu0
        %v1555 = vadd.f32 0.0, %v1554
        %v1556 = vpop.f32.mrb[0].mxu0
        %1557 = vmatprep.mubr.bf16.mxu0 0
        %1558 = vmatmul.mubr.bf16.gmra.mrb[0].mxu0 %v1410
        %v1559 = vpop.f32.mrb[0].mxu0
        %v1560 = vadd.f32 0.0, %v1559
        %v1561 = vpop.f32.mrb[0].mxu0
        %v1562 = vpop.f32.mrb[0].mxu0
        %v1563 = vadd.f32 0.0, %v1562
        %v1564 = vpop.f32.mrb[0].mxu0
        %1565 = vmatprep.mubr.bf16.mxu0 0
        %1566 = vmatmul.mubr.bf16.gmra.mrb[0].mxu0 %v1413
        %v1567 = vpop.f32.mrb[0].mxu0
        %v1568 = vadd.f32 0.0, %v1567
        %v1569 = vpop.f32.mrb[0].mxu0
        %v1570 = vpop.f32.mrb[0].mxu0
        %v1571 = vadd.f32 0.0, %v1570
        %v1572 = vpop.f32.mrb[0].mxu0
        %1573 = vmatprep.mubr.bf16.mxu0 0
        %1574 = vmatmul.mubr.bf16.gmra.mrb[0].mxu0 %v1416
        %v1575 = vpop.f32.mrb[0].mxu0
        %v1576 = vadd.f32 0.0, %v1575
        %v1577 = vpop.f32.mrb[0].mxu0
        %v1578 = vpop.f32.mrb[0].mxu0
        %v1579 = vadd.f32 0.0, %v1578
        %v1580 = vpop.f32.mrb[0].mxu0
        %1581 = vdwg.mxu0
        %v1582 = vadd.f32 %v1145, %v1456
        %v1583 = vadd.f32 %v1148, %v1459
        %v1584 = vadd.f32 %v1153, %v1464
        %v1585 = vadd.f32 %v1156, %v1467
        %v1586 = vadd.f32 %v1161, %v1472
        %v1587 = vadd.f32 %v1164, %v1475
        %v1588 = vadd.f32 %v1169, %v1480
        %v1589 = vadd.f32 %v1172, %v1483
        %v1590 = vadd.f32 %v1177, %v1488
        %v1591 = vadd.f32 %v1180, %v1491
        %v1592 = vadd.f32 %v1185, %v1496
        %v1593 = vadd.f32 %v1188, %v1499
        %v1594 = vadd.f32 %v1193, %v1504
        %v1595 = vadd.f32 %v1196, %v1507
        %v1596 = vadd.f32 %v1201, %v1512
        %v1597 = vadd.f32 %v1204, %v1515
        %v1598 = vadd.f32 %v1209, %v1520
        %v1599 = vadd.f32 %v1212, %v1523
        %v1600 = vadd.f32 %v1217, %v1528
        %v1601 = vadd.f32 %v1220, %v1531
        %v1602 = vadd.f32 %v1225, %v1536
        %v1603 = vadd.f32 %v1228, %v1539
        %v1604 = vadd.f32 %v1233, %v1544
        %v1605 = vadd.f32 %v1236, %v1547
        %v1606 = vadd.f32 %v1241, %v1552
        %v1607 = vadd.f32 %v1244, %v1555
        %v1608 = vadd.f32 %v1249, %v1560
        %v1609 = vadd.f32 %v1252, %v1563
        %v1610 = vadd.f32 %v1257, %v1568
        %v1611 = vadd.f32 %v1260, %v1571
        %v1612 = vadd.f32 %v1265, %v1576
        %v1613 = vadd.f32 %v1268, %v1579
        %v1614 = vld [vmem:[%s535] sm:$0xff]
        %v1615 = vld [vmem:[%s535 + $0x10] sm:$0xff]
        %v1616 = vld [vmem:[%s535 + $0x20] sm:$0xff]
        %v1617 = vld [vmem:[%s535 + $0x30] sm:$0xff]
        %v1618 = vld [vmem:[%s535 + $0x40] sm:$0xff]
        %v1619 = vld [vmem:[%s535 + $0x50] sm:$0xff]
        %v1620 = vld [vmem:[%s535 + $0x60] sm:$0xff]
        %v1621 = vld [vmem:[%s535 + $0x70] sm:$0xff]
        %v1622 = vld [vmem:[%s535 + $0x80] sm:$0xff]
        %v1623 = vld [vmem:[%s535 + $0x90] sm:$0xff]
        %v1624 = vld [vmem:[%s535 + $0xa0] sm:$0xff]
        %v1625 = vld [vmem:[%s535 + $0xb0] sm:$0xff]
        %v1626 = vld [vmem:[%s535 + $0xc0] sm:$0xff]
        %v1627 = vld [vmem:[%s535 + $0xd0] sm:$0xff]
        %v1628 = vld [vmem:[%s535 + $0xe0] sm:$0xff]
        %v1629 = vld [vmem:[%s535 + $0xf0] sm:$0xff]
        %s1630 = scalar_lea.vmem %s1, 6
        %v1631 = vld [vmem:[%s1630] sm:$0x3]
        %v1633 = vsel %vm224, %v1614, 0
        %v1636 = vsel %vm224, %v1615, 0
        %v1639 = vsel %vm224, %v1616, 0
        %v1642 = vsel %vm224, %v1617, 0
        %v1645 = vsel %vm224, %v1618, 0
        %v1648 = vsel %vm224, %v1619, 0
        %v1651 = vsel %vm224, %v1620, 0
        %v1654 = vsel %vm224, %v1621, 0
        %v1657 = vsel %vm224, %v1622, 0
        %v1660 = vsel %vm224, %v1623, 0
        %v1663 = vsel %vm224, %v1624, 0
        %v1666 = vsel %vm224, %v1625, 0
        %v1669 = vsel %vm224, %v1626, 0
        %v1672 = vsel %vm224, %v1627, 0
        %v1675 = vsel %vm224, %v1628, 0
        %v1678 = vsel %vm224, %v1629, 0
        %v1681 = vsel %vm910, %v1631, 0
        %1683 = vmatprep.subr.bf16.mxu0 0
        %1684 = vmatpush1.bf16.msra.mxu0 %v1681
        %1685 = vmatprep.subr.bf16.mxu0 0
        %1686 = vmatpush1.bf16.msra.mxu0 0
        %1687 = vmatprep.subr.bf16.mxu0 0
        %1688 = vmatpush1.bf16.msra.mxu0 0
        %1689 = vmatprep.subr.bf16.mxu0 0
        %1690 = vmatpush1.bf16.msra.mxu0 0
        %1691 = vmatprep.subr.bf16.mxu0 0
        %1692 = vmatpush1.bf16.msra.mxu0 0
        %1693 = vmatprep.subr.bf16.mxu0 0
        %1694 = vmatpush1.bf16.msra.mxu0 0
        %1695 = vmatprep.subr.bf16.mxu0 0
        %1696 = vmatpush1.bf16.msra.mxu0 0
        %1697 = vmatprep.subr.bf16.mxu0 0
        %1698 = vmatpush1.bf16.msra.mxu0 0
        %1699 = vmatprep.subr.bf16.mxu0 0
        %1700 = vmatpush1.bf16.msra.mxu0 0
        %1701 = vmatprep.subr.bf16.mxu0 0
        %1702 = vmatpush1.bf16.msra.mxu0 0
        %1703 = vmatprep.subr.bf16.mxu0 0
        %1704 = vmatpush1.bf16.msra.mxu0 0
        %1705 = vmatprep.subr.bf16.mxu0 0
        %1706 = vmatpush1.bf16.msra.mxu0 0
        %1707 = vmatprep.subr.bf16.mxu0 0
        %1708 = vmatpush1.bf16.msra.mxu0 0
        %1709 = vmatprep.subr.bf16.mxu0 0
        %1710 = vmatpush1.bf16.msra.mxu0 0
        %1711 = vmatprep.subr.bf16.mxu0 0
        %1712 = vmatpush1.bf16.msra.mxu0 0
        %1713 = vmatprep.subr.bf16.mxu0 0
        %1714 = vmatpush1.bf16.msra.mxu0 0
        %1715 = vmatprep.mubr.bf16.mxu0 0
        %1716 = vmatmul.mubr.bf16.gmra.mrb[0].mxu0 %v1633
        %v1717 = vpop.f32.mrb[0].mxu0
        %v1718 = vadd.f32 0.0, %v1717
        %v1719 = vpop.f32.mrb[0].mxu0
        %v1720 = vpop.f32.mrb[0].mxu0
        %v1721 = vadd.f32 0.0, %v1720
        %v1722 = vpop.f32.mrb[0].mxu0
        %1723 = vmatprep.mubr.bf16.mxu0 0
        %1724 = vmatmul.mubr.bf16.gmra.mrb[0].mxu0 %v1636
        %v1725 = vpop.f32.mrb[0].mxu0
        %v1726 = vadd.f32 0.0, %v1725
        %v1727 = vpop.f32.mrb[0].mxu0
        %v1728 = vpop.f32.mrb[0].mxu0
        %v1729 = vadd.f32 0.0, %v1728
        %v1730 = vpop.f32.mrb[0].mxu0
        %1731 = vmatprep.mubr.bf16.mxu0 0
        %1732 = vmatmul.mubr.bf16.gmra.mrb[0].mxu0 %v1639
        %v1733 = vpop.f32.mrb[0].mxu0
        %v1734 = vadd.f32 0.0, %v1733
        %v1735 = vpop.f32.mrb[0].mxu0
        %v1736 = vpop.f32.mrb[0].mxu0
        %v1737 = vadd.f32 0.0, %v1736
        %v1738 = vpop.f32.mrb[0].mxu0
        %1739 = vmatprep.mubr.bf16.mxu0 0
        %1740 = vmatmul.mubr.bf16.gmra.mrb[0].mxu0 %v1642
        %v1741 = vpop.f32.mrb[0].mxu0
        %v1742 = vadd.f32 0.0, %v1741
        %v1743 = vpop.f32.mrb[0].mxu0
        %v1744 = vpop.f32.mrb[0].mxu0
        %v1745 = vadd.f32 0.0, %v1744
        %v1746 = vpop.f32.mrb[0].mxu0
        %1747 = vmatprep.mubr.bf16.mxu0 0
        %1748 = vmatmul.mubr.bf16.gmra.mrb[0].mxu0 %v1645
        %v1749 = vpop.f32.mrb[0].mxu0
        %v1750 = vadd.f32 0.0, %v1749
        %v1751 = vpop.f32.mrb[0].mxu0
        %v1752 = vpop.f32.mrb[0].mxu0
        %v1753 = vadd.f32 0.0, %v1752
        %v1754 = vpop.f32.mrb[0].mxu0
        %1755 = vmatprep.mubr.bf16.mxu0 0
        %1756 = vmatmul.mubr.bf16.gmra.mrb[0].mxu0 %v1648
        %v1757 = vpop.f32.mrb[0].mxu0
        %v1758 = vadd.f32 0.0, %v1757
        %v1759 = vpop.f32.mrb[0].mxu0
        %v1760 = vpop.f32.mrb[0].mxu0
        %v1761 = vadd.f32 0.0, %v1760
        %v1762 = vpop.f32.mrb[0].mxu0
        %1763 = vmatprep.mubr.bf16.mxu0 0
        %1764 = vmatmul.mubr.bf16.gmra.mrb[0].mxu0 %v1651
        %v1765 = vpop.f32.mrb[0].mxu0
        %v1766 = vadd.f32 0.0, %v1765
        %v1767 = vpop.f32.mrb[0].mxu0
        %v1768 = vpop.f32.mrb[0].mxu0
        %v1769 = vadd.f32 0.0, %v1768
        %v1770 = vpop.f32.mrb[0].mxu0
        %1771 = vmatprep.mubr.bf16.mxu0 0
        %1772 = vmatmul.mubr.bf16.gmra.mrb[0].mxu0 %v1654
        %v1773 = vpop.f32.mrb[0].mxu0
        %v1774 = vadd.f32 0.0, %v1773
        %v1775 = vpop.f32.mrb[0].mxu0
        %v1776 = vpop.f32.mrb[0].mxu0
        %v1777 = vadd.f32 0.0, %v1776
        %v1778 = vpop.f32.mrb[0].mxu0
        %1779 = vmatprep.mubr.bf16.mxu0 0
        %1780 = vmatmul.mubr.bf16.gmra.mrb[0].mxu0 %v1657
        %v1781 = vpop.f32.mrb[0].mxu0
        %v1782 = vadd.f32 0.0, %v1781
        %v1783 = vpop.f32.mrb[0].mxu0
        %v1784 = vpop.f32.mrb[0].mxu0
        %v1785 = vadd.f32 0.0, %v1784
        %v1786 = vpop.f32.mrb[0].mxu0
        %1787 = vmatprep.mubr.bf16.mxu0 0
        %1788 = vmatmul.mubr.bf16.gmra.mrb[0].mxu0 %v1660
        %v1789 = vpop.f32.mrb[0].mxu0
        %v1790 = vadd.f32 0.0, %v1789
        %v1791 = vpop.f32.mrb[0].mxu0
        %v1792 = vpop.f32.mrb[0].mxu0
        %v1793 = vadd.f32 0.0, %v1792
        %v1794 = vpop.f32.mrb[0].mxu0
        %1795 = vmatprep.mubr.bf16.mxu0 0
        %1796 = vmatmul.mubr.bf16.gmra.mrb[0].mxu0 %v1663
        %v1797 = vpop.f32.mrb[0].mxu0
        %v1798 = vadd.f32 0.0, %v1797
        %v1799 = vpop.f32.mrb[0].mxu0
        %v1800 = vpop.f32.mrb[0].mxu0
        %v1801 = vadd.f32 0.0, %v1800
        %v1802 = vpop.f32.mrb[0].mxu0
        %1803 = vmatprep.mubr.bf16.mxu0 0
        %1804 = vmatmul.mubr.bf16.gmra.mrb[0].mxu0 %v1666
        %v1805 = vpop.f32.mrb[0].mxu0
        %v1806 = vadd.f32 0.0, %v1805
        %v1807 = vpop.f32.mrb[0].mxu0
        %v1808 = vpop.f32.mrb[0].mxu0
        %v1809 = vadd.f32 0.0, %v1808
        %v1810 = vpop.f32.mrb[0].mxu0
        %1811 = vmatprep.mubr.bf16.mxu0 0
        %1812 = vmatmul.mubr.bf16.gmra.mrb[0].mxu0 %v1669
        %v1813 = vpop.f32.mrb[0].mxu0
        %v1814 = vadd.f32 0.0, %v1813
        %v1815 = vpop.f32.mrb[0].mxu0
        %v1816 = vpop.f32.mrb[0].mxu0
        %v1817 = vadd.f32 0.0, %v1816
        %v1818 = vpop.f32.mrb[0].mxu0
        %1819 = vmatprep.mubr.bf16.mxu0 0
        %1820 = vmatmul.mubr.bf16.gmra.mrb[0].mxu0 %v1672
        %v1821 = vpop.f32.mrb[0].mxu0
        %v1822 = vadd.f32 0.0, %v1821
        %v1823 = vpop.f32.mrb[0].mxu0
        %v1824 = vpop.f32.mrb[0].mxu0
        %v1825 = vadd.f32 0.0, %v1824
        %v1826 = vpop.f32.mrb[0].mxu0
        %1827 = vmatprep.mubr.bf16.mxu0 0
        %1828 = vmatmul.mubr.bf16.gmra.mrb[0].mxu0 %v1675
        %v1829 = vpop.f32.mrb[0].mxu0
        %v1830 = vadd.f32 0.0, %v1829
        %v1831 = vpop.f32.mrb[0].mxu0
        %v1832 = vpop.f32.mrb[0].mxu0
        %v1833 = vadd.f32 0.0, %v1832
        %v1834 = vpop.f32.mrb[0].mxu0
        %1835 = vmatprep.mubr.bf16.mxu0 0
        %1836 = vmatmul.mubr.bf16.gmra.mrb[0].mxu0 %v1678
        %v1837 = vpop.f32.mrb[0].mxu0
        %v1838 = vadd.f32 0.0, %v1837
        %v1839 = vpop.f32.mrb[0].mxu0
        %v1840 = vpop.f32.mrb[0].mxu0
        %v1841 = vadd.f32 0.0, %v1840
        %v1842 = vpop.f32.mrb[0].mxu0
        %1843 = vdwg.mxu0
        %v1844 = vadd.f32 %v1582, %v1718
        %v1845 = vadd.f32 %v1583, %v1721
        %v1846 = vadd.f32 %v1584, %v1726
        %v1847 = vadd.f32 %v1585, %v1729
        %v1848 = vadd.f32 %v1586, %v1734
        %v1849 = vadd.f32 %v1587, %v1737
        %v1850 = vadd.f32 %v1588, %v1742
        %v1851 = vadd.f32 %v1589, %v1745
        %v1852 = vadd.f32 %v1590, %v1750
        %v1853 = vadd.f32 %v1591, %v1753
        %v1854 = vadd.f32 %v1592, %v1758
        %v1855 = vadd.f32 %v1593, %v1761
        %v1856 = vadd.f32 %v1594, %v1766
        %v1857 = vadd.f32 %v1595, %v1769
        %v1858 = vadd.f32 %v1596, %v1774
        %v1859 = vadd.f32 %v1597, %v1777
        %v1860 = vadd.f32 %v1598, %v1782
        %v1861 = vadd.f32 %v1599, %v1785
        %v1862 = vadd.f32 %v1600, %v1790
        %v1863 = vadd.f32 %v1601, %v1793
        %v1864 = vadd.f32 %v1602, %v1798
        %v1865 = vadd.f32 %v1603, %v1801
        %v1866 = vadd.f32 %v1604, %v1806
        %v1867 = vadd.f32 %v1605, %v1809
        %v1868 = vadd.f32 %v1606, %v1814
        %v1869 = vadd.f32 %v1607, %v1817
        %v1870 = vadd.f32 %v1608, %v1822
        %v1871 = vadd.f32 %v1609, %v1825
        %v1872 = vadd.f32 %v1610, %v1830
        %v1873 = vadd.f32 %v1611, %v1833
        %v1874 = vadd.f32 %v1612, %v1838
        %v1875 = vadd.f32 %v1613, %v1841
        %v1876 = vld [vmem:[%s535] sm:$0xff]
        %v1877 = vld [vmem:[%s535 + $0x8] sm:$0x1]
        %v1878 = vld [vmem:[%s535 + $0x10] sm:$0xff]
        %v1879 = vld [vmem:[%s535 + $0x18] sm:$0x1]
        %v1880 = vld [vmem:[%s535 + $0x20] sm:$0xff]
        %v1881 = vld [vmem:[%s535 + $0x28] sm:$0x1]
        %v1882 = vld [vmem:[%s535 + $0x30] sm:$0xff]
        %v1883 = vld [vmem:[%s535 + $0x38] sm:$0x1]
        %v1884 = vld [vmem:[%s535 + $0x40] sm:$0xff]
        %v1885 = vld [vmem:[%s535 + $0x48] sm:$0x1]
        %v1886 = vld [vmem:[%s535 + $0x50] sm:$0xff]
        %v1887 = vld [vmem:[%s535 + $0x58] sm:$0x1]
        %v1888 = vld [vmem:[%s535 + $0x60] sm:$0xff]
        %v1889 = vld [vmem:[%s535 + $0x68] sm:$0x1]
        %v1890 = vld [vmem:[%s535 + $0x70] sm:$0xff]
        %v1891 = vld [vmem:[%s535 + $0x78] sm:$0x1]
        %v1892 = vld [vmem:[%s535 + $0x80] sm:$0xff]
        %v1893 = vld [vmem:[%s535 + $0x88] sm:$0x1]
        %v1894 = vld [vmem:[%s535 + $0x90] sm:$0xff]
        %v1895 = vld [vmem:[%s535 + $0x98] sm:$0x1]
        %v1896 = vld [vmem:[%s535 + $0xa0] sm:$0xff]
        %v1897 = vld [vmem:[%s535 + $0xa8] sm:$0x1]
        %v1898 = vld [vmem:[%s535 + $0xb0] sm:$0xff]
        %v1899 = vld [vmem:[%s535 + $0xb8] sm:$0x1]
        %v1900 = vld [vmem:[%s535 + $0xc0] sm:$0xff]
        %v1901 = vld [vmem:[%s535 + $0xc8] sm:$0x1]
        %v1902 = vld [vmem:[%s535 + $0xd0] sm:$0xff]
        %v1903 = vld [vmem:[%s535 + $0xd8] sm:$0x1]
        %v1904 = vld [vmem:[%s535 + $0xe0] sm:$0xff]
        %v1905 = vld [vmem:[%s535 + $0xe8] sm:$0x1]
        %v1906 = vld [vmem:[%s535 + $0xf0] sm:$0xff]
        %v1907 = vld [vmem:[%s535 + $0xf8] sm:$0x1]
        %v1909 = vshrl.u32 %v1876, 16
        %v1911 = vshll.u32 %v1876, 16
        %v1913 = vrot.slane %v1911, 1
        %v1914 = vor.u32 %v1909, %v1913
        %v1916 = vshll.u32 %v1877, 16
        %v1918 = vrot.slane %v1916, 1
        %v1919 = vsel %vm667, %v1914, %v1918
        %v1921 = vshrl.u32 %v1878, 16
        %v1923 = vshll.u32 %v1878, 16
        %v1925 = vrot.slane %v1923, 1
        %v1926 = vor.u32 %v1921, %v1925
        %v1928 = vshll.u32 %v1879, 16
        %v1930 = vrot.slane %v1928, 1
        %v1931 = vsel %vm667, %v1926, %v1930
        %v1933 = vshrl.u32 %v1880, 16
        %v1935 = vshll.u32 %v1880, 16
        %v1937 = vrot.slane %v1935, 1
        %v1938 = vor.u32 %v1933, %v1937
        %v1940 = vshll.u32 %v1881, 16
        %v1942 = vrot.slane %v1940, 1
        %v1943 = vsel %vm667, %v1938, %v1942
        %v1945 = vshrl.u32 %v1882, 16
        %v1947 = vshll.u32 %v1882, 16
        %v1949 = vrot.slane %v1947, 1
        %v1950 = vor.u32 %v1945, %v1949
        %v1952 = vshll.u32 %v1883, 16
        %v1954 = vrot.slane %v1952, 1
        %v1955 = vsel %vm667, %v1950, %v1954
        %v1957 = vshrl.u32 %v1884, 16
        %v1959 = vshll.u32 %v1884, 16
        %v1961 = vrot.slane %v1959, 1
        %v1962 = vor.u32 %v1957, %v1961
        %v1964 = vshll.u32 %v1885, 16
        %v1966 = vrot.slane %v1964, 1
        %v1967 = vsel %vm667, %v1962, %v1966
        %v1969 = vshrl.u32 %v1886, 16
        %v1971 = vshll.u32 %v1886, 16
        %v1973 = vrot.slane %v1971, 1
        %v1974 = vor.u32 %v1969, %v1973
        %v1976 = vshll.u32 %v1887, 16
        %v1978 = vrot.slane %v1976, 1
        %v1979 = vsel %vm667, %v1974, %v1978
        %v1981 = vshrl.u32 %v1888, 16
        %v1983 = vshll.u32 %v1888, 16
        %v1985 = vrot.slane %v1983, 1
        %v1986 = vor.u32 %v1981, %v1985
        %v1988 = vshll.u32 %v1889, 16
        %v1990 = vrot.slane %v1988, 1
        %v1991 = vsel %vm667, %v1986, %v1990
        %v1993 = vshrl.u32 %v1890, 16
        %v1995 = vshll.u32 %v1890, 16
        %v1997 = vrot.slane %v1995, 1
        %v1998 = vor.u32 %v1993, %v1997
        %v2000 = vshll.u32 %v1891, 16
        %v2002 = vrot.slane %v2000, 1
        %v2003 = vsel %vm667, %v1998, %v2002
        %v2005 = vshrl.u32 %v1892, 16
        %v2007 = vshll.u32 %v1892, 16
        %v2009 = vrot.slane %v2007, 1
        %v2010 = vor.u32 %v2005, %v2009
        %v2012 = vshll.u32 %v1893, 16
        %v2014 = vrot.slane %v2012, 1
        %v2015 = vsel %vm667, %v2010, %v2014
        %v2017 = vshrl.u32 %v1894, 16
        %v2019 = vshll.u32 %v1894, 16
        %v2021 = vrot.slane %v2019, 1
        %v2022 = vor.u32 %v2017, %v2021
        %v2024 = vshll.u32 %v1895, 16
        %v2026 = vrot.slane %v2024, 1
        %v2027 = vsel %vm667, %v2022, %v2026
        %v2029 = vshrl.u32 %v1896, 16
        %v2031 = vshll.u32 %v1896, 16
        %v2033 = vrot.slane %v2031, 1
        %v2034 = vor.u32 %v2029, %v2033
        %v2036 = vshll.u32 %v1897, 16
        %v2038 = vrot.slane %v2036, 1
        %v2039 = vsel %vm667, %v2034, %v2038
        %v2041 = vshrl.u32 %v1898, 16
        %v2043 = vshll.u32 %v1898, 16
        %v2045 = vrot.slane %v2043, 1
        %v2046 = vor.u32 %v2041, %v2045
        %v2048 = vshll.u32 %v1899, 16
        %v2050 = vrot.slane %v2048, 1
        %v2051 = vsel %vm667, %v2046, %v2050
        %v2053 = vshrl.u32 %v1900, 16
        %v2055 = vshll.u32 %v1900, 16
        %v2057 = vrot.slane %v2055, 1
        %v2058 = vor.u32 %v2053, %v2057
        %v2060 = vshll.u32 %v1901, 16
        %v2062 = vrot.slane %v2060, 1
        %v2063 = vsel %vm667, %v2058, %v2062
        %v2065 = vshrl.u32 %v1902, 16
        %v2067 = vshll.u32 %v1902, 16
        %v2069 = vrot.slane %v2067, 1
        %v2070 = vor.u32 %v2065, %v2069
        %v2072 = vshll.u32 %v1903, 16
        %v2074 = vrot.slane %v2072, 1
        %v2075 = vsel %vm667, %v2070, %v2074
        %v2077 = vshrl.u32 %v1904, 16
        %v2079 = vshll.u32 %v1904, 16
        %v2081 = vrot.slane %v2079, 1
        %v2082 = vor.u32 %v2077, %v2081
        %v2084 = vshll.u32 %v1905, 16
        %v2086 = vrot.slane %v2084, 1
        %v2087 = vsel %vm667, %v2082, %v2086
        %v2089 = vshrl.u32 %v1906, 16
        %v2091 = vshll.u32 %v1906, 16
        %v2093 = vrot.slane %v2091, 1
        %v2094 = vor.u32 %v2089, %v2093
        %v2096 = vshll.u32 %v1907, 16
        %v2098 = vrot.slane %v2096, 1
        %v2099 = vsel %vm667, %v2094, %v2098
        %s2100 = scalar_lea.vmem %s1, 8
        %v2101 = vld [vmem:[%s2100] sm:$0x3]
        %v2103 = vsel %vm224, %v1919, 0
        %v2106 = vsel %vm224, %v1931, 0
        %v2109 = vsel %vm224, %v1943, 0
        %v2112 = vsel %vm224, %v1955, 0
        %v2115 = vsel %vm224, %v1967, 0
        %v2118 = vsel %vm224, %v1979, 0
        %v2121 = vsel %vm224, %v1991, 0
        %v2124 = vsel %vm224, %v2003, 0
        %v2127 = vsel %vm224, %v2015, 0
        %v2130 = vsel %vm224, %v2027, 0
        %v2133 = vsel %vm224, %v2039, 0
        %v2136 = vsel %vm224, %v2051, 0
        %v2139 = vsel %vm224, %v2063, 0
        %v2142 = vsel %vm224, %v2075, 0
        %v2145 = vsel %vm224, %v2087, 0
        %v2148 = vsel %vm224, %v2099, 0
        %v2151 = vsel %vm910, %v2101, 0
        %2153 = vmatprep.subr.bf16.mxu0 0
        %2154 = vmatpush1.bf16.msra.mxu0 %v2151
        %2155 = vmatprep.subr.bf16.mxu0 0
        %2156 = vmatpush1.bf16.msra.mxu0 0
        %2157 = vmatprep.subr.bf16.mxu0 0
        %2158 = vmatpush1.bf16.msra.mxu0 0
        %2159 = vmatprep.subr.bf16.mxu0 0
        %2160 = vmatpush1.bf16.msra.mxu0 0
        %2161 = vmatprep.subr.bf16.mxu0 0
        %2162 = vmatpush1.bf16.msra.mxu0 0
        %2163 = vmatprep.subr.bf16.mxu0 0
        %2164 = vmatpush1.bf16.msra.mxu0 0
        %2165 = vmatprep.subr.bf16.mxu0 0
        %2166 = vmatpush1.bf16.msra.mxu0 0
        %2167 = vmatprep.subr.bf16.mxu0 0
        %2168 = vmatpush1.bf16.msra.mxu0 0
        %2169 = vmatprep.subr.bf16.mxu0 0
        %2170 = vmatpush1.bf16.msra.mxu0 0
        %2171 = vmatprep.subr.bf16.mxu0 0
        %2172 = vmatpush1.bf16.msra.mxu0 0
        %2173 = vmatprep.subr.bf16.mxu0 0
        %2174 = vmatpush1.bf16.msra.mxu0 0
        %2175 = vmatprep.subr.bf16.mxu0 0
        %2176 = vmatpush1.bf16.msra.mxu0 0
        %2177 = vmatprep.subr.bf16.mxu0 0
        %2178 = vmatpush1.bf16.msra.mxu0 0
        %2179 = vmatprep.subr.bf16.mxu0 0
        %2180 = vmatpush1.bf16.msra.mxu0 0
        %2181 = vmatprep.subr.bf16.mxu0 0
        %2182 = vmatpush1.bf16.msra.mxu0 0
        %2183 = vmatprep.subr.bf16.mxu0 0
        %2184 = vmatpush1.bf16.msra.mxu0 0
        %2185 = vmatprep.mubr.bf16.mxu0 0
        %2186 = vmatmul.mubr.bf16.gmra.mrb[0].mxu0 %v2103
        %v2187 = vpop.f32.mrb[0].mxu0
        %v2188 = vadd.f32 0.0, %v2187
        %v2189 = vpop.f32.mrb[0].mxu0
        %v2190 = vpop.f32.mrb[0].mxu0
        %v2191 = vadd.f32 0.0, %v2190
        %v2192 = vpop.f32.mrb[0].mxu0
        %2193 = vmatprep.mubr.bf16.mxu0 0
        %2194 = vmatmul.mubr.bf16.gmra.mrb[0].mxu0 %v2106
        %v2195 = vpop.f32.mrb[0].mxu0
        %v2196 = vadd.f32 0.0, %v2195
        %v2197 = vpop.f32.mrb[0].mxu0
        %v2198 = vpop.f32.mrb[0].mxu0
        %v2199 = vadd.f32 0.0, %v2198
        %v2200 = vpop.f32.mrb[0].mxu0
        %2201 = vmatprep.mubr.bf16.mxu0 0
        %2202 = vmatmul.mubr.bf16.gmra.mrb[0].mxu0 %v2109
        %v2203 = vpop.f32.mrb[0].mxu0
        %v2204 = vadd.f32 0.0, %v2203
        %v2205 = vpop.f32.mrb[0].mxu0
        %v2206 = vpop.f32.mrb[0].mxu0
        %v2207 = vadd.f32 0.0, %v2206
        %v2208 = vpop.f32.mrb[0].mxu0
        %2209 = vmatprep.mubr.bf16.mxu0 0
        %2210 = vmatmul.mubr.bf16.gmra.mrb[0].mxu0 %v2112
        %v2211 = vpop.f32.mrb[0].mxu0
        %v2212 = vadd.f32 0.0, %v2211
        %v2213 = vpop.f32.mrb[0].mxu0
        %v2214 = vpop.f32.mrb[0].mxu0
        %v2215 = vadd.f32 0.0, %v2214
        %v2216 = vpop.f32.mrb[0].mxu0
        %2217 = vmatprep.mubr.bf16.mxu0 0
        %2218 = vmatmul.mubr.bf16.gmra.mrb[0].mxu0 %v2115
        %v2219 = vpop.f32.mrb[0].mxu0
        %v2220 = vadd.f32 0.0, %v2219
        %v2221 = vpop.f32.mrb[0].mxu0
        %v2222 = vpop.f32.mrb[0].mxu0
        %v2223 = vadd.f32 0.0, %v2222
        %v2224 = vpop.f32.mrb[0].mxu0
        %2225 = vmatprep.mubr.bf16.mxu0 0
        %2226 = vmatmul.mubr.bf16.gmra.mrb[0].mxu0 %v2118
        %v2227 = vpop.f32.mrb[0].mxu0
        %v2228 = vadd.f32 0.0, %v2227
        %v2229 = vpop.f32.mrb[0].mxu0
        %v2230 = vpop.f32.mrb[0].mxu0
        %v2231 = vadd.f32 0.0, %v2230
        %v2232 = vpop.f32.mrb[0].mxu0
        %2233 = vmatprep.mubr.bf16.mxu0 0
        %2234 = vmatmul.mubr.bf16.gmra.mrb[0].mxu0 %v2121
        %v2235 = vpop.f32.mrb[0].mxu0
        %v2236 = vadd.f32 0.0, %v2235
        %v2237 = vpop.f32.mrb[0].mxu0
        %v2238 = vpop.f32.mrb[0].mxu0
        %v2239 = vadd.f32 0.0, %v2238
        %v2240 = vpop.f32.mrb[0].mxu0
        %2241 = vmatprep.mubr.bf16.mxu0 0
        %2242 = vmatmul.mubr.bf16.gmra.mrb[0].mxu0 %v2124
        %v2243 = vpop.f32.mrb[0].mxu0
        %v2244 = vadd.f32 0.0, %v2243
        %v2245 = vpop.f32.mrb[0].mxu0
        %v2246 = vpop.f32.mrb[0].mxu0
        %v2247 = vadd.f32 0.0, %v2246
        %v2248 = vpop.f32.mrb[0].mxu0
        %2249 = vmatprep.mubr.bf16.mxu0 0
        %2250 = vmatmul.mubr.bf16.gmra.mrb[0].mxu0 %v2127
        %v2251 = vpop.f32.mrb[0].mxu0
        %v2252 = vadd.f32 0.0, %v2251
        %v2253 = vpop.f32.mrb[0].mxu0
        %v2254 = vpop.f32.mrb[0].mxu0
        %v2255 = vadd.f32 0.0, %v2254
        %v2256 = vpop.f32.mrb[0].mxu0
        %2257 = vmatprep.mubr.bf16.mxu0 0
        %2258 = vmatmul.mubr.bf16.gmra.mrb[0].mxu0 %v2130
        %v2259 = vpop.f32.mrb[0].mxu0
        %v2260 = vadd.f32 0.0, %v2259
        %v2261 = vpop.f32.mrb[0].mxu0
        %v2262 = vpop.f32.mrb[0].mxu0
        %v2263 = vadd.f32 0.0, %v2262
        %v2264 = vpop.f32.mrb[0].mxu0
        %2265 = vmatprep.mubr.bf16.mxu0 0
        %2266 = vmatmul.mubr.bf16.gmra.mrb[0].mxu0 %v2133
        %v2267 = vpop.f32.mrb[0].mxu0
        %v2268 = vadd.f32 0.0, %v2267
        %v2269 = vpop.f32.mrb[0].mxu0
        %v2270 = vpop.f32.mrb[0].mxu0
        %v2271 = vadd.f32 0.0, %v2270
        %v2272 = vpop.f32.mrb[0].mxu0
        %2273 = vmatprep.mubr.bf16.mxu0 0
        %2274 = vmatmul.mubr.bf16.gmra.mrb[0].mxu0 %v2136
        %v2275 = vpop.f32.mrb[0].mxu0
        %v2276 = vadd.f32 0.0, %v2275
        %v2277 = vpop.f32.mrb[0].mxu0
        %v2278 = vpop.f32.mrb[0].mxu0
        %v2279 = vadd.f32 0.0, %v2278
        %v2280 = vpop.f32.mrb[0].mxu0
        %2281 = vmatprep.mubr.bf16.mxu0 0
        %2282 = vmatmul.mubr.bf16.gmra.mrb[0].mxu0 %v2139
        %v2283 = vpop.f32.mrb[0].mxu0
        %v2284 = vadd.f32 0.0, %v2283
        %v2285 = vpop.f32.mrb[0].mxu0
        %v2286 = vpop.f32.mrb[0].mxu0
        %v2287 = vadd.f32 0.0, %v2286
        %v2288 = vpop.f32.mrb[0].mxu0
        %2289 = vmatprep.mubr.bf16.mxu0 0
        %2290 = vmatmul.mubr.bf16.gmra.mrb[0].mxu0 %v2142
        %v2291 = vpop.f32.mrb[0].mxu0
        %v2292 = vadd.f32 0.0, %v2291
        %v2293 = vpop.f32.mrb[0].mxu0
        %v2294 = vpop.f32.mrb[0].mxu0
        %v2295 = vadd.f32 0.0, %v2294
        %v2296 = vpop.f32.mrb[0].mxu0
        %2297 = vmatprep.mubr.bf16.mxu0 0
        %2298 = vmatmul.mubr.bf16.gmra.mrb[0].mxu0 %v2145
        %v2299 = vpop.f32.mrb[0].mxu0
        %v2300 = vadd.f32 0.0, %v2299
        %v2301 = vpop.f32.mrb[0].mxu0
        %v2302 = vpop.f32.mrb[0].mxu0
        %v2303 = vadd.f32 0.0, %v2302
        %v2304 = vpop.f32.mrb[0].mxu0
        %2305 = vmatprep.mubr.bf16.mxu0 0
        %2306 = vmatmul.mubr.bf16.gmra.mrb[0].mxu0 %v2148
        %v2307 = vpop.f32.mrb[0].mxu0
        %v2308 = vadd.f32 0.0, %v2307
        %v2309 = vpop.f32.mrb[0].mxu0
        %v2310 = vpop.f32.mrb[0].mxu0
        %v2311 = vadd.f32 0.0, %v2310
        %v2312 = vpop.f32.mrb[0].mxu0
        %2313 = vdwg.mxu0
        %v2314 = vadd.f32 %v1844, %v2188
        %v2315 = vadd.f32 %v1845, %v2191
        %v2316 = vadd.f32 %v1846, %v2196
        %v2317 = vadd.f32 %v1847, %v2199
        %v2318 = vadd.f32 %v1848, %v2204
        %v2319 = vadd.f32 %v1849, %v2207
        %v2320 = vadd.f32 %v1850, %v2212
        %v2321 = vadd.f32 %v1851, %v2215
        %v2322 = vadd.f32 %v1852, %v2220
        %v2323 = vadd.f32 %v1853, %v2223
        %v2324 = vadd.f32 %v1854, %v2228
        %v2325 = vadd.f32 %v1855, %v2231
        %v2326 = vadd.f32 %v1856, %v2236
        %v2327 = vadd.f32 %v1857, %v2239
        %v2328 = vadd.f32 %v1858, %v2244
        %v2329 = vadd.f32 %v1859, %v2247
        %v2330 = vadd.f32 %v1860, %v2252
        %v2331 = vadd.f32 %v1861, %v2255
        %v2332 = vadd.f32 %v1862, %v2260
        %v2333 = vadd.f32 %v1863, %v2263
        %v2334 = vadd.f32 %v1864, %v2268
        %v2335 = vadd.f32 %v1865, %v2271
        %v2336 = vadd.f32 %v1866, %v2276
        %v2337 = vadd.f32 %v1867, %v2279
        %v2338 = vadd.f32 %v1868, %v2284
        %v2339 = vadd.f32 %v1869, %v2287
        %v2340 = vadd.f32 %v1870, %v2292
        %v2341 = vadd.f32 %v1871, %v2295
        %v2342 = vadd.f32 %v1872, %v2300
        %v2343 = vadd.f32 %v1873, %v2303
        %v2344 = vadd.f32 %v1874, %v2308
        %v2345 = vadd.f32 %v1875, %v2311
        %v2346 = vld [vmem:[%s535] sm:$0xfe]
        %v2347 = vld [vmem:[%s535 + $0x10] sm:$0xfe]
        %v2348 = vld [vmem:[%s535 + $0x20] sm:$0xfe]
        %v2349 = vld [vmem:[%s535 + $0x30] sm:$0xfe]
        %v2350 = vld [vmem:[%s535 + $0x40] sm:$0xfe]
        %v2351 = vld [vmem:[%s535 + $0x50] sm:$0xfe]
        %v2352 = vld [vmem:[%s535 + $0x60] sm:$0xfe]
        %v2353 = vld [vmem:[%s535 + $0x70] sm:$0xfe]
        %v2354 = vld [vmem:[%s535 + $0x80] sm:$0xfe]
        %v2355 = vld [vmem:[%s535 + $0x90] sm:$0xfe]
        %v2356 = vld [vmem:[%s535 + $0xa0] sm:$0xfe]
        %v2357 = vld [vmem:[%s535 + $0xb0] sm:$0xfe]
        %v2358 = vld [vmem:[%s535 + $0xc0] sm:$0xfe]
        %v2359 = vld [vmem:[%s535 + $0xd0] sm:$0xfe]
        %v2360 = vld [vmem:[%s535 + $0xe0] sm:$0xfe]
        %v2361 = vld [vmem:[%s535 + $0xf0] sm:$0xfe]
        %v2394 = vrot.slane %v2346, 1
        %v2395 = vrot.slane %v1877, 1
        %v2396 = vsel %vm1319, %v2394, %v2395
        %v2397 = vrot.slane %v2347, 1
        %v2398 = vrot.slane %v1879, 1
        %v2399 = vsel %vm1319, %v2397, %v2398
        %v2400 = vrot.slane %v2348, 1
        %v2401 = vrot.slane %v1881, 1
        %v2402 = vsel %vm1319, %v2400, %v2401
        %v2403 = vrot.slane %v2349, 1
        %v2404 = vrot.slane %v1883, 1
        %v2405 = vsel %vm1319, %v2403, %v2404
        %v2406 = vrot.slane %v2350, 1
        %v2407 = vrot.slane %v1885, 1
        %v2408 = vsel %vm1319, %v2406, %v2407
        %v2409 = vrot.slane %v2351, 1
        %v2410 = vrot.slane %v1887, 1
        %v2411 = vsel %vm1319, %v2409, %v2410
        %v2412 = vrot.slane %v2352, 1
        %v2413 = vrot.slane %v1889, 1
        %v2414 = vsel %vm1319, %v2412, %v2413
        %v2415 = vrot.slane %v2353, 1
        %v2416 = vrot.slane %v1891, 1
        %v2417 = vsel %vm1319, %v2415, %v2416
        %v2418 = vrot.slane %v2354, 1
        %v2419 = vrot.slane %v1893, 1
        %v2420 = vsel %vm1319, %v2418, %v2419
        %v2421 = vrot.slane %v2355, 1
        %v2422 = vrot.slane %v1895, 1
        %v2423 = vsel %vm1319, %v2421, %v2422
        %v2424 = vrot.slane %v2356, 1
        %v2425 = vrot.slane %v1897, 1
        %v2426 = vsel %vm1319, %v2424, %v2425
        %v2427 = vrot.slane %v2357, 1
        %v2428 = vrot.slane %v1899, 1
        %v2429 = vsel %vm1319, %v2427, %v2428
        %v2430 = vrot.slane %v2358, 1
        %v2431 = vrot.slane %v1901, 1
        %v2432 = vsel %vm1319, %v2430, %v2431
        %v2433 = vrot.slane %v2359, 1
        %v2434 = vrot.slane %v1903, 1
        %v2435 = vsel %vm1319, %v2433, %v2434
        %v2436 = vrot.slane %v2360, 1
        %v2437 = vrot.slane %v1905, 1
        %v2438 = vsel %vm1319, %v2436, %v2437
        %v2439 = vrot.slane %v2361, 1
        %v2440 = vrot.slane %v1907, 1
        %v2441 = vsel %vm1319, %v2439, %v2440
        %s2442 = scalar_lea.vmem %s1, 10
        %v2443 = vld [vmem:[%s2442] sm:$0x3]
        %v2445 = vsel %vm224, %v2396, 0
        %v2448 = vsel %vm224, %v2399, 0
        %v2451 = vsel %vm224, %v2402, 0
        %v2454 = vsel %vm224, %v2405, 0
        %v2457 = vsel %vm224, %v2408, 0
        %v2460 = vsel %vm224, %v2411, 0
        %v2463 = vsel %vm224, %v2414, 0
        %v2466 = vsel %vm224, %v2417, 0
        %v2469 = vsel %vm224, %v2420, 0
        %v2472 = vsel %vm224, %v2423, 0
        %v2475 = vsel %vm224, %v2426, 0
        %v2478 = vsel %vm224, %v2429, 0
        %v2481 = vsel %vm224, %v2432, 0
        %v2484 = vsel %vm224, %v2435, 0
        %v2487 = vsel %vm224, %v2438, 0
        %v2490 = vsel %vm224, %v2441, 0
        %v2493 = vsel %vm910, %v2443, 0
        %2495 = vmatprep.subr.bf16.mxu0 0
        %2496 = vmatpush1.bf16.msra.mxu0 %v2493
        %2497 = vmatprep.subr.bf16.mxu0 0
        %2498 = vmatpush1.bf16.msra.mxu0 0
        %2499 = vmatprep.subr.bf16.mxu0 0
        %2500 = vmatpush1.bf16.msra.mxu0 0
        %2501 = vmatprep.subr.bf16.mxu0 0
        %2502 = vmatpush1.bf16.msra.mxu0 0
        %2503 = vmatprep.subr.bf16.mxu0 0
        %2504 = vmatpush1.bf16.msra.mxu0 0
        %2505 = vmatprep.subr.bf16.mxu0 0
        %2506 = vmatpush1.bf16.msra.mxu0 0
        %2507 = vmatprep.subr.bf16.mxu0 0
        %2508 = vmatpush1.bf16.msra.mxu0 0
        %2509 = vmatprep.subr.bf16.mxu0 0
        %2510 = vmatpush1.bf16.msra.mxu0 0
        %2511 = vmatprep.subr.bf16.mxu0 0
        %2512 = vmatpush1.bf16.msra.mxu0 0
        %2513 = vmatprep.subr.bf16.mxu0 0
        %2514 = vmatpush1.bf16.msra.mxu0 0
        %2515 = vmatprep.subr.bf16.mxu0 0
        %2516 = vmatpush1.bf16.msra.mxu0 0
        %2517 = vmatprep.subr.bf16.mxu0 0
        %2518 = vmatpush1.bf16.msra.mxu0 0
        %2519 = vmatprep.subr.bf16.mxu0 0
        %2520 = vmatpush1.bf16.msra.mxu0 0
        %2521 = vmatprep.subr.bf16.mxu0 0
        %2522 = vmatpush1.bf16.msra.mxu0 0
        %2523 = vmatprep.subr.bf16.mxu0 0
        %2524 = vmatpush1.bf16.msra.mxu0 0
        %2525 = vmatprep.subr.bf16.mxu0 0
        %2526 = vmatpush1.bf16.msra.mxu0 0
        %2527 = vmatprep.mubr.bf16.mxu0 0
        %2528 = vmatmul.mubr.bf16.gmra.mrb[0].mxu0 %v2445
        %v2529 = vpop.f32.mrb[0].mxu0
        %v2530 = vadd.f32 0.0, %v2529
        %v2531 = vpop.f32.mrb[0].mxu0
        %v2532 = vpop.f32.mrb[0].mxu0
        %v2533 = vadd.f32 0.0, %v2532
        %v2534 = vpop.f32.mrb[0].mxu0
        %2535 = vmatprep.mubr.bf16.mxu0 0
        %2536 = vmatmul.mubr.bf16.gmra.mrb[0].mxu0 %v2448
        %v2537 = vpop.f32.mrb[0].mxu0
        %v2538 = vadd.f32 0.0, %v2537
        %v2539 = vpop.f32.mrb[0].mxu0
        %v2540 = vpop.f32.mrb[0].mxu0
        %v2541 = vadd.f32 0.0, %v2540
        %v2542 = vpop.f32.mrb[0].mxu0
        %2543 = vmatprep.mubr.bf16.mxu0 0
        %2544 = vmatmul.mubr.bf16.gmra.mrb[0].mxu0 %v2451
        %v2545 = vpop.f32.mrb[0].mxu0
        %v2546 = vadd.f32 0.0, %v2545
        %v2547 = vpop.f32.mrb[0].mxu0
        %v2548 = vpop.f32.mrb[0].mxu0
        %v2549 = vadd.f32 0.0, %v2548
        %v2550 = vpop.f32.mrb[0].mxu0
        %2551 = vmatprep.mubr.bf16.mxu0 0
        %2552 = vmatmul.mubr.bf16.gmra.mrb[0].mxu0 %v2454
        %v2553 = vpop.f32.mrb[0].mxu0
        %v2554 = vadd.f32 0.0, %v2553
        %v2555 = vpop.f32.mrb[0].mxu0
        %v2556 = vpop.f32.mrb[0].mxu0
        %v2557 = vadd.f32 0.0, %v2556
        %v2558 = vpop.f32.mrb[0].mxu0
        %2559 = vmatprep.mubr.bf16.mxu0 0
        %2560 = vmatmul.mubr.bf16.gmra.mrb[0].mxu0 %v2457
        %v2561 = vpop.f32.mrb[0].mxu0
        %v2562 = vadd.f32 0.0, %v2561
        %v2563 = vpop.f32.mrb[0].mxu0
        %v2564 = vpop.f32.mrb[0].mxu0
        %v2565 = vadd.f32 0.0, %v2564
        %v2566 = vpop.f32.mrb[0].mxu0
        %2567 = vmatprep.mubr.bf16.mxu0 0
        %2568 = vmatmul.mubr.bf16.gmra.mrb[0].mxu0 %v2460
        %v2569 = vpop.f32.mrb[0].mxu0
        %v2570 = vadd.f32 0.0, %v2569
        %v2571 = vpop.f32.mrb[0].mxu0
        %v2572 = vpop.f32.mrb[0].mxu0
        %v2573 = vadd.f32 0.0, %v2572
        %v2574 = vpop.f32.mrb[0].mxu0
        %2575 = vmatprep.mubr.bf16.mxu0 0
        %2576 = vmatmul.mubr.bf16.gmra.mrb[0].mxu0 %v2463
        %v2577 = vpop.f32.mrb[0].mxu0
        %v2578 = vadd.f32 0.0, %v2577
        %v2579 = vpop.f32.mrb[0].mxu0
        %v2580 = vpop.f32.mrb[0].mxu0
        %v2581 = vadd.f32 0.0, %v2580
        %v2582 = vpop.f32.mrb[0].mxu0
        %2583 = vmatprep.mubr.bf16.mxu0 0
        %2584 = vmatmul.mubr.bf16.gmra.mrb[0].mxu0 %v2466
        %v2585 = vpop.f32.mrb[0].mxu0
        %v2586 = vadd.f32 0.0, %v2585
        %v2587 = vpop.f32.mrb[0].mxu0
        %v2588 = vpop.f32.mrb[0].mxu0
        %v2589 = vadd.f32 0.0, %v2588
        %v2590 = vpop.f32.mrb[0].mxu0
        %2591 = vmatprep.mubr.bf16.mxu0 0
        %2592 = vmatmul.mubr.bf16.gmra.mrb[0].mxu0 %v2469
        %v2593 = vpop.f32.mrb[0].mxu0
        %v2594 = vadd.f32 0.0, %v2593
        %v2595 = vpop.f32.mrb[0].mxu0
        %v2596 = vpop.f32.mrb[0].mxu0
        %v2597 = vadd.f32 0.0, %v2596
        %v2598 = vpop.f32.mrb[0].mxu0
        %2599 = vmatprep.mubr.bf16.mxu0 0
        %2600 = vmatmul.mubr.bf16.gmra.mrb[0].mxu0 %v2472
        %v2601 = vpop.f32.mrb[0].mxu0
        %v2602 = vadd.f32 0.0, %v2601
        %v2603 = vpop.f32.mrb[0].mxu0
        %v2604 = vpop.f32.mrb[0].mxu0
        %v2605 = vadd.f32 0.0, %v2604
        %v2606 = vpop.f32.mrb[0].mxu0
        %2607 = vmatprep.mubr.bf16.mxu0 0
        %2608 = vmatmul.mubr.bf16.gmra.mrb[0].mxu0 %v2475
        %v2609 = vpop.f32.mrb[0].mxu0
        %v2610 = vadd.f32 0.0, %v2609
        %v2611 = vpop.f32.mrb[0].mxu0
        %v2612 = vpop.f32.mrb[0].mxu0
        %v2613 = vadd.f32 0.0, %v2612
        %v2614 = vpop.f32.mrb[0].mxu0
        %2615 = vmatprep.mubr.bf16.mxu0 0
        %2616 = vmatmul.mubr.bf16.gmra.mrb[0].mxu0 %v2478
        %v2617 = vpop.f32.mrb[0].mxu0
        %v2618 = vadd.f32 0.0, %v2617
        %v2619 = vpop.f32.mrb[0].mxu0
        %v2620 = vpop.f32.mrb[0].mxu0
        %v2621 = vadd.f32 0.0, %v2620
        %v2622 = vpop.f32.mrb[0].mxu0
        %2623 = vmatprep.mubr.bf16.mxu0 0
        %2624 = vmatmul.mubr.bf16.gmra.mrb[0].mxu0 %v2481
        %v2625 = vpop.f32.mrb[0].mxu0
        %v2626 = vadd.f32 0.0, %v2625
        %v2627 = vpop.f32.mrb[0].mxu0
        %v2628 = vpop.f32.mrb[0].mxu0
        %v2629 = vadd.f32 0.0, %v2628
        %v2630 = vpop.f32.mrb[0].mxu0
        %2631 = vmatprep.mubr.bf16.mxu0 0
        %2632 = vmatmul.mubr.bf16.gmra.mrb[0].mxu0 %v2484
        %v2633 = vpop.f32.mrb[0].mxu0
        %v2634 = vadd.f32 0.0, %v2633
        %v2635 = vpop.f32.mrb[0].mxu0
        %v2636 = vpop.f32.mrb[0].mxu0
        %v2637 = vadd.f32 0.0, %v2636
        %v2638 = vpop.f32.mrb[0].mxu0
        %2639 = vmatprep.mubr.bf16.mxu0 0
        %2640 = vmatmul.mubr.bf16.gmra.mrb[0].mxu0 %v2487
        %v2641 = vpop.f32.mrb[0].mxu0
        %v2642 = vadd.f32 0.0, %v2641
        %v2643 = vpop.f32.mrb[0].mxu0
        %v2644 = vpop.f32.mrb[0].mxu0
        %v2645 = vadd.f32 0.0, %v2644
        %v2646 = vpop.f32.mrb[0].mxu0
        %2647 = vmatprep.mubr.bf16.mxu0 0
        %2648 = vmatmul.mubr.bf16.gmra.mrb[0].mxu0 %v2490
        %v2649 = vpop.f32.mrb[0].mxu0
        %v2650 = vadd.f32 0.0, %v2649
        %v2651 = vpop.f32.mrb[0].mxu0
        %v2652 = vpop.f32.mrb[0].mxu0
        %v2653 = vadd.f32 0.0, %v2652
        %v2654 = vpop.f32.mrb[0].mxu0
        %2655 = vdwg.mxu0
        %v2656 = vadd.f32 %v2314, %v2530
        %v2657 = vadd.f32 %v2315, %v2533
        %v2658 = vadd.f32 %v2316, %v2538
        %v2659 = vadd.f32 %v2317, %v2541
        %v2660 = vadd.f32 %v2318, %v2546
        %v2661 = vadd.f32 %v2319, %v2549
        %v2662 = vadd.f32 %v2320, %v2554
        %v2663 = vadd.f32 %v2321, %v2557
        %v2664 = vadd.f32 %v2322, %v2562
        %v2665 = vadd.f32 %v2323, %v2565
        %v2666 = vadd.f32 %v2324, %v2570
        %v2667 = vadd.f32 %v2325, %v2573
        %v2668 = vadd.f32 %v2326, %v2578
        %v2669 = vadd.f32 %v2327, %v2581
        %v2670 = vadd.f32 %v2328, %v2586
        %v2671 = vadd.f32 %v2329, %v2589
        %v2672 = vadd.f32 %v2330, %v2594
        %v2673 = vadd.f32 %v2331, %v2597
        %v2674 = vadd.f32 %v2332, %v2602
        %v2675 = vadd.f32 %v2333, %v2605
        %v2676 = vadd.f32 %v2334, %v2610
        %v2677 = vadd.f32 %v2335, %v2613
        %v2678 = vadd.f32 %v2336, %v2618
        %v2679 = vadd.f32 %v2337, %v2621
        %v2680 = vadd.f32 %v2338, %v2626
        %v2681 = vadd.f32 %v2339, %v2629
        %v2682 = vadd.f32 %v2340, %v2634
        %v2683 = vadd.f32 %v2341, %v2637
        %v2684 = vadd.f32 %v2342, %v2642
        %v2685 = vadd.f32 %v2343, %v2645
        %v2686 = vadd.f32 %v2344, %v2650
        %v2687 = vadd.f32 %v2345, %v2653
        %s2688 = scalar_lea.vmem [#allocation2], 32
        %v2689 = vld [vmem:[%s2688] sm:$0xff]
        %v2690 = vld [vmem:[%s2688 + $0x10] sm:$0xff]
        %v2691 = vld [vmem:[%s2688 + $0x20] sm:$0xff]
        %v2692 = vld [vmem:[%s2688 + $0x30] sm:$0xff]
        %v2693 = vld [vmem:[%s2688 + $0x40] sm:$0xff]
        %v2694 = vld [vmem:[%s2688 + $0x50] sm:$0xff]
        %v2695 = vld [vmem:[%s2688 + $0x60] sm:$0xff]
        %v2696 = vld [vmem:[%s2688 + $0x70] sm:$0xff]
        %v2697 = vld [vmem:[%s2688 + $0x80] sm:$0xff]
        %v2698 = vld [vmem:[%s2688 + $0x90] sm:$0xff]
        %v2699 = vld [vmem:[%s2688 + $0xa0] sm:$0xff]
        %v2700 = vld [vmem:[%s2688 + $0xb0] sm:$0xff]
        %v2701 = vld [vmem:[%s2688 + $0xc0] sm:$0xff]
        %v2702 = vld [vmem:[%s2688 + $0xd0] sm:$0xff]
        %v2703 = vld [vmem:[%s2688 + $0xe0] sm:$0xff]
        %v2704 = vld [vmem:[%s2688 + $0xf0] sm:$0xff]
        %s2705 = scalar_lea.vmem %s1, 12
        %v2706 = vld [vmem:[%s2705] sm:$0x3]
        %v2708 = vsel %vm224, %v2689, 0
        %v2711 = vsel %vm224, %v2690, 0
        %v2714 = vsel %vm224, %v2691, 0
        %v2717 = vsel %vm224, %v2692, 0
        %v2720 = vsel %vm224, %v2693, 0
        %v2723 = vsel %vm224, %v2694, 0
        %v2726 = vsel %vm224, %v2695, 0
        %v2729 = vsel %vm224, %v2696, 0
        %v2732 = vsel %vm224, %v2697, 0
        %v2735 = vsel %vm224, %v2698, 0
        %v2738 = vsel %vm224, %v2699, 0
        %v2741 = vsel %vm224, %v2700, 0
        %v2744 = vsel %vm224, %v2701, 0
        %v2747 = vsel %vm224, %v2702, 0
        %v2750 = vsel %vm224, %v2703, 0
        %v2753 = vsel %vm224, %v2704, 0
        %v2756 = vsel %vm910, %v2706, 0
        %2758 = vmatprep.subr.bf16.mxu0 0
        %2759 = vmatpush1.bf16.msra.mxu0 %v2756
        %2760 = vmatprep.subr.bf16.mxu0 0
        %2761 = vmatpush1.bf16.msra.mxu0 0
        %2762 = vmatprep.subr.bf16.mxu0 0
        %2763 = vmatpush1.bf16.msra.mxu0 0
        %2764 = vmatprep.subr.bf16.mxu0 0
        %2765 = vmatpush1.bf16.msra.mxu0 0
        %2766 = vmatprep.subr.bf16.mxu0 0
        %2767 = vmatpush1.bf16.msra.mxu0 0
        %2768 = vmatprep.subr.bf16.mxu0 0
        %2769 = vmatpush1.bf16.msra.mxu0 0
        %2770 = vmatprep.subr.bf16.mxu0 0
        %2771 = vmatpush1.bf16.msra.mxu0 0
        %2772 = vmatprep.subr.bf16.mxu0 0
        %2773 = vmatpush1.bf16.msra.mxu0 0
        %2774 = vmatprep.subr.bf16.mxu0 0
        %2775 = vmatpush1.bf16.msra.mxu0 0
        %2776 = vmatprep.subr.bf16.mxu0 0
        %2777 = vmatpush1.bf16.msra.mxu0 0
        %2778 = vmatprep.subr.bf16.mxu0 0
        %2779 = vmatpush1.bf16.msra.mxu0 0
        %2780 = vmatprep.subr.bf16.mxu0 0
        %2781 = vmatpush1.bf16.msra.mxu0 0
        %2782 = vmatprep.subr.bf16.mxu0 0
        %2783 = vmatpush1.bf16.msra.mxu0 0
        %2784 = vmatprep.subr.bf16.mxu0 0
        %2785 = vmatpush1.bf16.msra.mxu0 0
        %2786 = vmatprep.subr.bf16.mxu0 0
        %2787 = vmatpush1.bf16.msra.mxu0 0
        %2788 = vmatprep.subr.bf16.mxu0 0
        %2789 = vmatpush1.bf16.msra.mxu0 0
        %2790 = vmatprep.mubr.bf16.mxu0 0
        %2791 = vmatmul.mubr.bf16.gmra.mrb[0].mxu0 %v2708
        %v2792 = vpop.f32.mrb[0].mxu0
        %v2793 = vadd.f32 0.0, %v2792
        %v2794 = vpop.f32.mrb[0].mxu0
        %v2795 = vpop.f32.mrb[0].mxu0
        %v2796 = vadd.f32 0.0, %v2795
        %v2797 = vpop.f32.mrb[0].mxu0
        %2798 = vmatprep.mubr.bf16.mxu0 0
        %2799 = vmatmul.mubr.bf16.gmra.mrb[0].mxu0 %v2711
        %v2800 = vpop.f32.mrb[0].mxu0
        %v2801 = vadd.f32 0.0, %v2800
        %v2802 = vpop.f32.mrb[0].mxu0
        %v2803 = vpop.f32.mrb[0].mxu0
        %v2804 = vadd.f32 0.0, %v2803
        %v2805 = vpop.f32.mrb[0].mxu0
        %2806 = vmatprep.mubr.bf16.mxu0 0
        %2807 = vmatmul.mubr.bf16.gmra.mrb[0].mxu0 %v2714
        %v2808 = vpop.f32.mrb[0].mxu0
        %v2809 = vadd.f32 0.0, %v2808
        %v2810 = vpop.f32.mrb[0].mxu0
        %v2811 = vpop.f32.mrb[0].mxu0
        %v2812 = vadd.f32 0.0, %v2811
        %v2813 = vpop.f32.mrb[0].mxu0
        %2814 = vmatprep.mubr.bf16.mxu0 0
        %2815 = vmatmul.mubr.bf16.gmra.mrb[0].mxu0 %v2717
        %v2816 = vpop.f32.mrb[0].mxu0
        %v2817 = vadd.f32 0.0, %v2816
        %v2818 = vpop.f32.mrb[0].mxu0
        %v2819 = vpop.f32.mrb[0].mxu0
        %v2820 = vadd.f32 0.0, %v2819
        %v2821 = vpop.f32.mrb[0].mxu0
        %2822 = vmatprep.mubr.bf16.mxu0 0
        %2823 = vmatmul.mubr.bf16.gmra.mrb[0].mxu0 %v2720
        %v2824 = vpop.f32.mrb[0].mxu0
        %v2825 = vadd.f32 0.0, %v2824
        %v2826 = vpop.f32.mrb[0].mxu0
        %v2827 = vpop.f32.mrb[0].mxu0
        %v2828 = vadd.f32 0.0, %v2827
        %v2829 = vpop.f32.mrb[0].mxu0
        %2830 = vmatprep.mubr.bf16.mxu0 0
        %2831 = vmatmul.mubr.bf16.gmra.mrb[0].mxu0 %v2723
        %v2832 = vpop.f32.mrb[0].mxu0
        %v2833 = vadd.f32 0.0, %v2832
        %v2834 = vpop.f32.mrb[0].mxu0
        %v2835 = vpop.f32.mrb[0].mxu0
        %v2836 = vadd.f32 0.0, %v2835
        %v2837 = vpop.f32.mrb[0].mxu0
        %2838 = vmatprep.mubr.bf16.mxu0 0
        %2839 = vmatmul.mubr.bf16.gmra.mrb[0].mxu0 %v2726
        %v2840 = vpop.f32.mrb[0].mxu0
        %v2841 = vadd.f32 0.0, %v2840
        %v2842 = vpop.f32.mrb[0].mxu0
        %v2843 = vpop.f32.mrb[0].mxu0
        %v2844 = vadd.f32 0.0, %v2843
        %v2845 = vpop.f32.mrb[0].mxu0
        %2846 = vmatprep.mubr.bf16.mxu0 0
        %2847 = vmatmul.mubr.bf16.gmra.mrb[0].mxu0 %v2729
        %v2848 = vpop.f32.mrb[0].mxu0
        %v2849 = vadd.f32 0.0, %v2848
        %v2850 = vpop.f32.mrb[0].mxu0
        %v2851 = vpop.f32.mrb[0].mxu0
        %v2852 = vadd.f32 0.0, %v2851
        %v2853 = vpop.f32.mrb[0].mxu0
        %2854 = vmatprep.mubr.bf16.mxu0 0
        %2855 = vmatmul.mubr.bf16.gmra.mrb[0].mxu0 %v2732
        %v2856 = vpop.f32.mrb[0].mxu0
        %v2857 = vadd.f32 0.0, %v2856
        %v2858 = vpop.f32.mrb[0].mxu0
        %v2859 = vpop.f32.mrb[0].mxu0
        %v2860 = vadd.f32 0.0, %v2859
        %v2861 = vpop.f32.mrb[0].mxu0
        %2862 = vmatprep.mubr.bf16.mxu0 0
        %2863 = vmatmul.mubr.bf16.gmra.mrb[0].mxu0 %v2735
        %v2864 = vpop.f32.mrb[0].mxu0
        %v2865 = vadd.f32 0.0, %v2864
        %v2866 = vpop.f32.mrb[0].mxu0
        %v2867 = vpop.f32.mrb[0].mxu0
        %v2868 = vadd.f32 0.0, %v2867
        %v2869 = vpop.f32.mrb[0].mxu0
        %2870 = vmatprep.mubr.bf16.mxu0 0
        %2871 = vmatmul.mubr.bf16.gmra.mrb[0].mxu0 %v2738
        %v2872 = vpop.f32.mrb[0].mxu0
        %v2873 = vadd.f32 0.0, %v2872
        %v2874 = vpop.f32.mrb[0].mxu0
        %v2875 = vpop.f32.mrb[0].mxu0
        %v2876 = vadd.f32 0.0, %v2875
        %v2877 = vpop.f32.mrb[0].mxu0
        %2878 = vmatprep.mubr.bf16.mxu0 0
        %2879 = vmatmul.mubr.bf16.gmra.mrb[0].mxu0 %v2741
        %v2880 = vpop.f32.mrb[0].mxu0
        %v2881 = vadd.f32 0.0, %v2880
        %v2882 = vpop.f32.mrb[0].mxu0
        %v2883 = vpop.f32.mrb[0].mxu0
        %v2884 = vadd.f32 0.0, %v2883
        %v2885 = vpop.f32.mrb[0].mxu0
        %2886 = vmatprep.mubr.bf16.mxu0 0
        %2887 = vmatmul.mubr.bf16.gmra.mrb[0].mxu0 %v2744
        %v2888 = vpop.f32.mrb[0].mxu0
        %v2889 = vadd.f32 0.0, %v2888
        %v2890 = vpop.f32.mrb[0].mxu0
        %v2891 = vpop.f32.mrb[0].mxu0
        %v2892 = vadd.f32 0.0, %v2891
        %v2893 = vpop.f32.mrb[0].mxu0
        %2894 = vmatprep.mubr.bf16.mxu0 0
        %2895 = vmatmul.mubr.bf16.gmra.mrb[0].mxu0 %v2747
        %v2896 = vpop.f32.mrb[0].mxu0
        %v2897 = vadd.f32 0.0, %v2896
        %v2898 = vpop.f32.mrb[0].mxu0
        %v2899 = vpop.f32.mrb[0].mxu0
        %v2900 = vadd.f32 0.0, %v2899
        %v2901 = vpop.f32.mrb[0].mxu0
        %2902 = vmatprep.mubr.bf16.mxu0 0
        %2903 = vmatmul.mubr.bf16.gmra.mrb[0].mxu0 %v2750
        %v2904 = vpop.f32.mrb[0].mxu0
        %v2905 = vadd.f32 0.0, %v2904
        %v2906 = vpop.f32.mrb[0].mxu0
        %v2907 = vpop.f32.mrb[0].mxu0
        %v2908 = vadd.f32 0.0, %v2907
        %v2909 = vpop.f32.mrb[0].mxu0
        %2910 = vmatprep.mubr.bf16.mxu0 0
        %2911 = vmatmul.mubr.bf16.gmra.mrb[0].mxu0 %v2753
        %v2912 = vpop.f32.mrb[0].mxu0
        %v2913 = vadd.f32 0.0, %v2912
        %v2914 = vpop.f32.mrb[0].mxu0
        %v2915 = vpop.f32.mrb[0].mxu0
        %v2916 = vadd.f32 0.0, %v2915
        %v2917 = vpop.f32.mrb[0].mxu0
        %2918 = vdwg.mxu0
        %v2919 = vadd.f32 %v2656, %v2793
        %v2920 = vadd.f32 %v2657, %v2796
        %v2921 = vadd.f32 %v2658, %v2801
        %v2922 = vadd.f32 %v2659, %v2804
        %v2923 = vadd.f32 %v2660, %v2809
        %v2924 = vadd.f32 %v2661, %v2812
        %v2925 = vadd.f32 %v2662, %v2817
        %v2926 = vadd.f32 %v2663, %v2820
        %v2927 = vadd.f32 %v2664, %v2825
        %v2928 = vadd.f32 %v2665, %v2828
        %v2929 = vadd.f32 %v2666, %v2833
        %v2930 = vadd.f32 %v2667, %v2836
        %v2931 = vadd.f32 %v2668, %v2841
        %v2932 = vadd.f32 %v2669, %v2844
        %v2933 = vadd.f32 %v2670, %v2849
        %v2934 = vadd.f32 %v2671, %v2852
        %v2935 = vadd.f32 %v2672, %v2857
        %v2936 = vadd.f32 %v2673, %v2860
        %v2937 = vadd.f32 %v2674, %v2865
        %v2938 = vadd.f32 %v2675, %v2868
        %v2939 = vadd.f32 %v2676, %v2873
        %v2940 = vadd.f32 %v2677, %v2876
        %v2941 = vadd.f32 %v2678, %v2881
        %v2942 = vadd.f32 %v2679, %v2884
        %v2943 = vadd.f32 %v2680, %v2889
        %v2944 = vadd.f32 %v2681, %v2892
        %v2945 = vadd.f32 %v2682, %v2897
        %v2946 = vadd.f32 %v2683, %v2900
        %v2947 = vadd.f32 %v2684, %v2905
        %v2948 = vadd.f32 %v2685, %v2908
        %v2949 = vadd.f32 %v2686, %v2913
        %v2950 = vadd.f32 %v2687, %v2916
        %v2951 = vld [vmem:[%s2688] sm:$0xff]
        %v2952 = vld [vmem:[%s2688 + $0x8] sm:$0x1]
        %v2953 = vld [vmem:[%s2688 + $0x10] sm:$0xff]
        %v2954 = vld [vmem:[%s2688 + $0x18] sm:$0x1]
        %v2955 = vld [vmem:[%s2688 + $0x20] sm:$0xff]
        %v2956 = vld [vmem:[%s2688 + $0x28] sm:$0x1]
        %v2957 = vld [vmem:[%s2688 + $0x30] sm:$0xff]
        %v2958 = vld [vmem:[%s2688 + $0x38] sm:$0x1]
        %v2959 = vld [vmem:[%s2688 + $0x40] sm:$0xff]
        %v2960 = vld [vmem:[%s2688 + $0x48] sm:$0x1]
        %v2961 = vld [vmem:[%s2688 + $0x50] sm:$0xff]
        %v2962 = vld [vmem:[%s2688 + $0x58] sm:$0x1]
        %v2963 = vld [vmem:[%s2688 + $0x60] sm:$0xff]
        %v2964 = vld [vmem:[%s2688 + $0x68] sm:$0x1]
        %v2965 = vld [vmem:[%s2688 + $0x70] sm:$0xff]
        %v2966 = vld [vmem:[%s2688 + $0x78] sm:$0x1]
        %v2967 = vld [vmem:[%s2688 + $0x80] sm:$0xff]
        %v2968 = vld [vmem:[%s2688 + $0x88] sm:$0x1]
        %v2969 = vld [vmem:[%s2688 + $0x90] sm:$0xff]
        %v2970 = vld [vmem:[%s2688 + $0x98] sm:$0x1]
        %v2971 = vld [vmem:[%s2688 + $0xa0] sm:$0xff]
        %v2972 = vld [vmem:[%s2688 + $0xa8] sm:$0x1]
        %v2973 = vld [vmem:[%s2688 + $0xb0] sm:$0xff]
        %v2974 = vld [vmem:[%s2688 + $0xb8] sm:$0x1]
        %v2975 = vld [vmem:[%s2688 + $0xc0] sm:$0xff]
        %v2976 = vld [vmem:[%s2688 + $0xc8] sm:$0x1]
        %v2977 = vld [vmem:[%s2688 + $0xd0] sm:$0xff]
        %v2978 = vld [vmem:[%s2688 + $0xd8] sm:$0x1]
        %v2979 = vld [vmem:[%s2688 + $0xe0] sm:$0xff]
        %v2980 = vld [vmem:[%s2688 + $0xe8] sm:$0x1]
        %v2981 = vld [vmem:[%s2688 + $0xf0] sm:$0xff]
        %v2982 = vld [vmem:[%s2688 + $0xf8] sm:$0x1]
        %v2984 = vshrl.u32 %v2951, 16
        %v2986 = vshll.u32 %v2951, 16
        %v2988 = vrot.slane %v2986, 1
        %v2989 = vor.u32 %v2984, %v2988
        %v2991 = vshll.u32 %v2952, 16
        %v2993 = vrot.slane %v2991, 1
        %v2994 = vsel %vm667, %v2989, %v2993
        %v2996 = vshrl.u32 %v2953, 16
        %v2998 = vshll.u32 %v2953, 16
        %v3000 = vrot.slane %v2998, 1
        %v3001 = vor.u32 %v2996, %v3000
        %v3003 = vshll.u32 %v2954, 16
        %v3005 = vrot.slane %v3003, 1
        %v3006 = vsel %vm667, %v3001, %v3005
        %v3008 = vshrl.u32 %v2955, 16
        %v3010 = vshll.u32 %v2955, 16
        %v3012 = vrot.slane %v3010, 1
        %v3013 = vor.u32 %v3008, %v3012
        %v3015 = vshll.u32 %v2956, 16
        %v3017 = vrot.slane %v3015, 1
        %v3018 = vsel %vm667, %v3013, %v3017
        %v3020 = vshrl.u32 %v2957, 16
        %v3022 = vshll.u32 %v2957, 16
        %v3024 = vrot.slane %v3022, 1
        %v3025 = vor.u32 %v3020, %v3024
        %v3027 = vshll.u32 %v2958, 16
        %v3029 = vrot.slane %v3027, 1
        %v3030 = vsel %vm667, %v3025, %v3029
        %v3032 = vshrl.u32 %v2959, 16
        %v3034 = vshll.u32 %v2959, 16
        %v3036 = vrot.slane %v3034, 1
        %v3037 = vor.u32 %v3032, %v3036
        %v3039 = vshll.u32 %v2960, 16
        %v3041 = vrot.slane %v3039, 1
        %v3042 = vsel %vm667, %v3037, %v3041
        %v3044 = vshrl.u32 %v2961, 16
        %v3046 = vshll.u32 %v2961, 16
        %v3048 = vrot.slane %v3046, 1
        %v3049 = vor.u32 %v3044, %v3048
        %v3051 = vshll.u32 %v2962, 16
        %v3053 = vrot.slane %v3051, 1
        %v3054 = vsel %vm667, %v3049, %v3053
        %v3056 = vshrl.u32 %v2963, 16
        %v3058 = vshll.u32 %v2963, 16
        %v3060 = vrot.slane %v3058, 1
        %v3061 = vor.u32 %v3056, %v3060
        %v3063 = vshll.u32 %v2964, 16
        %v3065 = vrot.slane %v3063, 1
        %v3066 = vsel %vm667, %v3061, %v3065
        %v3068 = vshrl.u32 %v2965, 16
        %v3070 = vshll.u32 %v2965, 16
        %v3072 = vrot.slane %v3070, 1
        %v3073 = vor.u32 %v3068, %v3072
        %v3075 = vshll.u32 %v2966, 16
        %v3077 = vrot.slane %v3075, 1
        %v3078 = vsel %vm667, %v3073, %v3077
        %v3080 = vshrl.u32 %v2967, 16
        %v3082 = vshll.u32 %v2967, 16
        %v3084 = vrot.slane %v3082, 1
        %v3085 = vor.u32 %v3080, %v3084
        %v3087 = vshll.u32 %v2968, 16
        %v3089 = vrot.slane %v3087, 1
        %v3090 = vsel %vm667, %v3085, %v3089
        %v3092 = vshrl.u32 %v2969, 16
        %v3094 = vshll.u32 %v2969, 16
        %v3096 = vrot.slane %v3094, 1
        %v3097 = vor.u32 %v3092, %v3096
        %v3099 = vshll.u32 %v2970, 16
        %v3101 = vrot.slane %v3099, 1
        %v3102 = vsel %vm667, %v3097, %v3101
        %v3104 = vshrl.u32 %v2971, 16
        %v3106 = vshll.u32 %v2971, 16
        %v3108 = vrot.slane %v3106, 1
        %v3109 = vor.u32 %v3104, %v3108
        %v3111 = vshll.u32 %v2972, 16
        %v3113 = vrot.slane %v3111, 1
        %v3114 = vsel %vm667, %v3109, %v3113
        %v3116 = vshrl.u32 %v2973, 16
        %v3118 = vshll.u32 %v2973, 16
        %v3120 = vrot.slane %v3118, 1
        %v3121 = vor.u32 %v3116, %v3120
        %v3123 = vshll.u32 %v2974, 16
        %v3125 = vrot.slane %v3123, 1
        %v3126 = vsel %vm667, %v3121, %v3125
        %v3128 = vshrl.u32 %v2975, 16
        %v3130 = vshll.u32 %v2975, 16
        %v3132 = vrot.slane %v3130, 1
        %v3133 = vor.u32 %v3128, %v3132
        %v3135 = vshll.u32 %v2976, 16
        %v3137 = vrot.slane %v3135, 1
        %v3138 = vsel %vm667, %v3133, %v3137
        %v3140 = vshrl.u32 %v2977, 16
        %v3142 = vshll.u32 %v2977, 16
        %v3144 = vrot.slane %v3142, 1
        %v3145 = vor.u32 %v3140, %v3144
        %v3147 = vshll.u32 %v2978, 16
        %v3149 = vrot.slane %v3147, 1
        %v3150 = vsel %vm667, %v3145, %v3149
        %v3152 = vshrl.u32 %v2979, 16
        %v3154 = vshll.u32 %v2979, 16
        %v3156 = vrot.slane %v3154, 1
        %v3157 = vor.u32 %v3152, %v3156
        %v3159 = vshll.u32 %v2980, 16
        %v3161 = vrot.slane %v3159, 1
        %v3162 = vsel %vm667, %v3157, %v3161
        %v3164 = vshrl.u32 %v2981, 16
        %v3166 = vshll.u32 %v2981, 16
        %v3168 = vrot.slane %v3166, 1
        %v3169 = vor.u32 %v3164, %v3168
        %v3171 = vshll.u32 %v2982, 16
        %v3173 = vrot.slane %v3171, 1
        %v3174 = vsel %vm667, %v3169, %v3173
        %s3175 = scalar_lea.vmem %s1, 14
        %v3176 = vld [vmem:[%s3175] sm:$0x3]
        %v3178 = vsel %vm224, %v2994, 0
        %v3181 = vsel %vm224, %v3006, 0
        %v3184 = vsel %vm224, %v3018, 0
        %v3187 = vsel %vm224, %v3030, 0
        %v3190 = vsel %vm224, %v3042, 0
        %v3193 = vsel %vm224, %v3054, 0
        %v3196 = vsel %vm224, %v3066, 0
        %v3199 = vsel %vm224, %v3078, 0
        %v3202 = vsel %vm224, %v3090, 0
        %v3205 = vsel %vm224, %v3102, 0
        %v3208 = vsel %vm224, %v3114, 0
        %v3211 = vsel %vm224, %v3126, 0
        %v3214 = vsel %vm224, %v3138, 0
        %v3217 = vsel %vm224, %v3150, 0
        %v3220 = vsel %vm224, %v3162, 0
        %v3223 = vsel %vm224, %v3174, 0
        %v3226 = vsel %vm910, %v3176, 0
        %3228 = vmatprep.subr.bf16.mxu0 0
        %3229 = vmatpush1.bf16.msra.mxu0 %v3226
        %3230 = vmatprep.subr.bf16.mxu0 0
        %3231 = vmatpush1.bf16.msra.mxu0 0
        %3232 = vmatprep.subr.bf16.mxu0 0
        %3233 = vmatpush1.bf16.msra.mxu0 0
        %3234 = vmatprep.subr.bf16.mxu0 0
        %3235 = vmatpush1.bf16.msra.mxu0 0
        %3236 = vmatprep.subr.bf16.mxu0 0
        %3237 = vmatpush1.bf16.msra.mxu0 0
        %3238 = vmatprep.subr.bf16.mxu0 0
        %3239 = vmatpush1.bf16.msra.mxu0 0
        %3240 = vmatprep.subr.bf16.mxu0 0
        %3241 = vmatpush1.bf16.msra.mxu0 0
        %3242 = vmatprep.subr.bf16.mxu0 0
        %3243 = vmatpush1.bf16.msra.mxu0 0
        %3244 = vmatprep.subr.bf16.mxu0 0
        %3245 = vmatpush1.bf16.msra.mxu0 0
        %3246 = vmatprep.subr.bf16.mxu0 0
        %3247 = vmatpush1.bf16.msra.mxu0 0
        %3248 = vmatprep.subr.bf16.mxu0 0
        %3249 = vmatpush1.bf16.msra.mxu0 0
        %3250 = vmatprep.subr.bf16.mxu0 0
        %3251 = vmatpush1.bf16.msra.mxu0 0
        %3252 = vmatprep.subr.bf16.mxu0 0
        %3253 = vmatpush1.bf16.msra.mxu0 0
        %3254 = vmatprep.subr.bf16.mxu0 0
        %3255 = vmatpush1.bf16.msra.mxu0 0
        %3256 = vmatprep.subr.bf16.mxu0 0
        %3257 = vmatpush1.bf16.msra.mxu0 0
        %3258 = vmatprep.subr.bf16.mxu0 0
        %3259 = vmatpush1.bf16.msra.mxu0 0
        %3260 = vmatprep.mubr.bf16.mxu0 0
        %3261 = vmatmul.mubr.bf16.gmra.mrb[0].mxu0 %v3178
        %v3262 = vpop.f32.mrb[0].mxu0
        %v3263 = vadd.f32 0.0, %v3262
        %v3264 = vpop.f32.mrb[0].mxu0
        %v3265 = vpop.f32.mrb[0].mxu0
        %v3266 = vadd.f32 0.0, %v3265
        %v3267 = vpop.f32.mrb[0].mxu0
        %3268 = vmatprep.mubr.bf16.mxu0 0
        %3269 = vmatmul.mubr.bf16.gmra.mrb[0].mxu0 %v3181
        %v3270 = vpop.f32.mrb[0].mxu0
        %v3271 = vadd.f32 0.0, %v3270
        %v3272 = vpop.f32.mrb[0].mxu0
        %v3273 = vpop.f32.mrb[0].mxu0
        %v3274 = vadd.f32 0.0, %v3273
        %v3275 = vpop.f32.mrb[0].mxu0
        %3276 = vmatprep.mubr.bf16.mxu0 0
        %3277 = vmatmul.mubr.bf16.gmra.mrb[0].mxu0 %v3184
        %v3278 = vpop.f32.mrb[0].mxu0
        %v3279 = vadd.f32 0.0, %v3278
        %v3280 = vpop.f32.mrb[0].mxu0
        %v3281 = vpop.f32.mrb[0].mxu0
        %v3282 = vadd.f32 0.0, %v3281
        %v3283 = vpop.f32.mrb[0].mxu0
        %3284 = vmatprep.mubr.bf16.mxu0 0
        %3285 = vmatmul.mubr.bf16.gmra.mrb[0].mxu0 %v3187
        %v3286 = vpop.f32.mrb[0].mxu0
        %v3287 = vadd.f32 0.0, %v3286
        %v3288 = vpop.f32.mrb[0].mxu0
        %v3289 = vpop.f32.mrb[0].mxu0
        %v3290 = vadd.f32 0.0, %v3289
        %v3291 = vpop.f32.mrb[0].mxu0
        %3292 = vmatprep.mubr.bf16.mxu0 0
        %3293 = vmatmul.mubr.bf16.gmra.mrb[0].mxu0 %v3190
        %v3294 = vpop.f32.mrb[0].mxu0
        %v3295 = vadd.f32 0.0, %v3294
        %v3296 = vpop.f32.mrb[0].mxu0
        %v3297 = vpop.f32.mrb[0].mxu0
        %v3298 = vadd.f32 0.0, %v3297
        %v3299 = vpop.f32.mrb[0].mxu0
        %3300 = vmatprep.mubr.bf16.mxu0 0
        %3301 = vmatmul.mubr.bf16.gmra.mrb[0].mxu0 %v3193
        %v3302 = vpop.f32.mrb[0].mxu0
        %v3303 = vadd.f32 0.0, %v3302
        %v3304 = vpop.f32.mrb[0].mxu0
        %v3305 = vpop.f32.mrb[0].mxu0
        %v3306 = vadd.f32 0.0, %v3305
        %v3307 = vpop.f32.mrb[0].mxu0
        %3308 = vmatprep.mubr.bf16.mxu0 0
        %3309 = vmatmul.mubr.bf16.gmra.mrb[0].mxu0 %v3196
        %v3310 = vpop.f32.mrb[0].mxu0
        %v3311 = vadd.f32 0.0, %v3310
        %v3312 = vpop.f32.mrb[0].mxu0
        %v3313 = vpop.f32.mrb[0].mxu0
        %v3314 = vadd.f32 0.0, %v3313
        %v3315 = vpop.f32.mrb[0].mxu0
        %3316 = vmatprep.mubr.bf16.mxu0 0
        %3317 = vmatmul.mubr.bf16.gmra.mrb[0].mxu0 %v3199
        %v3318 = vpop.f32.mrb[0].mxu0
        %v3319 = vadd.f32 0.0, %v3318
        %v3320 = vpop.f32.mrb[0].mxu0
        %v3321 = vpop.f32.mrb[0].mxu0
        %v3322 = vadd.f32 0.0, %v3321
        %v3323 = vpop.f32.mrb[0].mxu0
        %3324 = vmatprep.mubr.bf16.mxu0 0
        %3325 = vmatmul.mubr.bf16.gmra.mrb[0].mxu0 %v3202
        %v3326 = vpop.f32.mrb[0].mxu0
        %v3327 = vadd.f32 0.0, %v3326
        %v3328 = vpop.f32.mrb[0].mxu0
        %v3329 = vpop.f32.mrb[0].mxu0
        %v3330 = vadd.f32 0.0, %v3329
        %v3331 = vpop.f32.mrb[0].mxu0
        %3332 = vmatprep.mubr.bf16.mxu0 0
        %3333 = vmatmul.mubr.bf16.gmra.mrb[0].mxu0 %v3205
        %v3334 = vpop.f32.mrb[0].mxu0
        %v3335 = vadd.f32 0.0, %v3334
        %v3336 = vpop.f32.mrb[0].mxu0
        %v3337 = vpop.f32.mrb[0].mxu0
        %v3338 = vadd.f32 0.0, %v3337
        %v3339 = vpop.f32.mrb[0].mxu0
        %3340 = vmatprep.mubr.bf16.mxu0 0
        %3341 = vmatmul.mubr.bf16.gmra.mrb[0].mxu0 %v3208
        %v3342 = vpop.f32.mrb[0].mxu0
        %v3343 = vadd.f32 0.0, %v3342
        %v3344 = vpop.f32.mrb[0].mxu0
        %v3345 = vpop.f32.mrb[0].mxu0
        %v3346 = vadd.f32 0.0, %v3345
        %v3347 = vpop.f32.mrb[0].mxu0
        %3348 = vmatprep.mubr.bf16.mxu0 0
        %3349 = vmatmul.mubr.bf16.gmra.mrb[0].mxu0 %v3211
        %v3350 = vpop.f32.mrb[0].mxu0
        %v3351 = vadd.f32 0.0, %v3350
        %v3352 = vpop.f32.mrb[0].mxu0
        %v3353 = vpop.f32.mrb[0].mxu0
        %v3354 = vadd.f32 0.0, %v3353
        %v3355 = vpop.f32.mrb[0].mxu0
        %3356 = vmatprep.mubr.bf16.mxu0 0
        %3357 = vmatmul.mubr.bf16.gmra.mrb[0].mxu0 %v3214
        %v3358 = vpop.f32.mrb[0].mxu0
        %v3359 = vadd.f32 0.0, %v3358
        %v3360 = vpop.f32.mrb[0].mxu0
        %v3361 = vpop.f32.mrb[0].mxu0
        %v3362 = vadd.f32 0.0, %v3361
        %v3363 = vpop.f32.mrb[0].mxu0
        %3364 = vmatprep.mubr.bf16.mxu0 0
        %3365 = vmatmul.mubr.bf16.gmra.mrb[0].mxu0 %v3217
        %v3366 = vpop.f32.mrb[0].mxu0
        %v3367 = vadd.f32 0.0, %v3366
        %v3368 = vpop.f32.mrb[0].mxu0
        %v3369 = vpop.f32.mrb[0].mxu0
        %v3370 = vadd.f32 0.0, %v3369
        %v3371 = vpop.f32.mrb[0].mxu0
        %3372 = vmatprep.mubr.bf16.mxu0 0
        %3373 = vmatmul.mubr.bf16.gmra.mrb[0].mxu0 %v3220
        %v3374 = vpop.f32.mrb[0].mxu0
        %v3375 = vadd.f32 0.0, %v3374
        %v3376 = vpop.f32.mrb[0].mxu0
        %v3377 = vpop.f32.mrb[0].mxu0
        %v3378 = vadd.f32 0.0, %v3377
        %v3379 = vpop.f32.mrb[0].mxu0
        %3380 = vmatprep.mubr.bf16.mxu0 0
        %3381 = vmatmul.mubr.bf16.gmra.mrb[0].mxu0 %v3223
        %v3382 = vpop.f32.mrb[0].mxu0
        %v3383 = vadd.f32 0.0, %v3382
        %v3384 = vpop.f32.mrb[0].mxu0
        %v3385 = vpop.f32.mrb[0].mxu0
        %v3386 = vadd.f32 0.0, %v3385
        %v3387 = vpop.f32.mrb[0].mxu0
        %3388 = vdwg.mxu0
        %v3389 = vadd.f32 %v2919, %v3263
        %v3390 = vadd.f32 %v2920, %v3266
        %v3391 = vadd.f32 %v2921, %v3271
        %v3392 = vadd.f32 %v2922, %v3274
        %v3393 = vadd.f32 %v2923, %v3279
        %v3394 = vadd.f32 %v2924, %v3282
        %v3395 = vadd.f32 %v2925, %v3287
        %v3396 = vadd.f32 %v2926, %v3290
        %v3397 = vadd.f32 %v2927, %v3295
        %v3398 = vadd.f32 %v2928, %v3298
        %v3399 = vadd.f32 %v2929, %v3303
        %v3400 = vadd.f32 %v2930, %v3306
        %v3401 = vadd.f32 %v2931, %v3311
        %v3402 = vadd.f32 %v2932, %v3314
        %v3403 = vadd.f32 %v2933, %v3319
        %v3404 = vadd.f32 %v2934, %v3322
        %v3405 = vadd.f32 %v2935, %v3327
        %v3406 = vadd.f32 %v2936, %v3330
        %v3407 = vadd.f32 %v2937, %v3335
        %v3408 = vadd.f32 %v2938, %v3338
        %v3409 = vadd.f32 %v2939, %v3343
        %v3410 = vadd.f32 %v2940, %v3346
        %v3411 = vadd.f32 %v2941, %v3351
        %v3412 = vadd.f32 %v2942, %v3354
        %v3413 = vadd.f32 %v2943, %v3359
        %v3414 = vadd.f32 %v2944, %v3362
        %v3415 = vadd.f32 %v2945, %v3367
        %v3416 = vadd.f32 %v2946, %v3370
        %v3417 = vadd.f32 %v2947, %v3375
        %v3418 = vadd.f32 %v2948, %v3378
        %v3419 = vadd.f32 %v2949, %v3383
        %v3420 = vadd.f32 %v2950, %v3386
        %v3421 = vld [vmem:[%s2688] sm:$0xfe]
        %v3422 = vld [vmem:[%s2688 + $0x10] sm:$0xfe]
        %v3423 = vld [vmem:[%s2688 + $0x20] sm:$0xfe]
        %v3424 = vld [vmem:[%s2688 + $0x30] sm:$0xfe]
        %v3425 = vld [vmem:[%s2688 + $0x40] sm:$0xfe]
        %v3426 = vld [vmem:[%s2688 + $0x50] sm:$0xfe]
        %v3427 = vld [vmem:[%s2688 + $0x60] sm:$0xfe]
        %v3428 = vld [vmem:[%s2688 + $0x70] sm:$0xfe]
        %v3429 = vld [vmem:[%s2688 + $0x80] sm:$0xfe]
        %v3430 = vld [vmem:[%s2688 + $0x90] sm:$0xfe]
        %v3431 = vld [vmem:[%s2688 + $0xa0] sm:$0xfe]
        %v3432 = vld [vmem:[%s2688 + $0xb0] sm:$0xfe]
        %v3433 = vld [vmem:[%s2688 + $0xc0] sm:$0xfe]
        %v3434 = vld [vmem:[%s2688 + $0xd0] sm:$0xfe]
        %v3435 = vld [vmem:[%s2688 + $0xe0] sm:$0xfe]
        %v3436 = vld [vmem:[%s2688 + $0xf0] sm:$0xfe]
        %v3469 = vrot.slane %v3421, 1
        %v3470 = vrot.slane %v2952, 1
        %v3471 = vsel %vm1319, %v3469, %v3470
        %v3472 = vrot.slane %v3422, 1
        %v3473 = vrot.slane %v2954, 1
        %v3474 = vsel %vm1319, %v3472, %v3473
        %v3475 = vrot.slane %v3423, 1
        %v3476 = vrot.slane %v2956, 1
        %v3477 = vsel %vm1319, %v3475, %v3476
        %v3478 = vrot.slane %v3424, 1
        %v3479 = vrot.slane %v2958, 1
        %v3480 = vsel %vm1319, %v3478, %v3479
        %v3481 = vrot.slane %v3425, 1
        %v3482 = vrot.slane %v2960, 1
        %v3483 = vsel %vm1319, %v3481, %v3482
        %v3484 = vrot.slane %v3426, 1
        %v3485 = vrot.slane %v2962, 1
        %v3486 = vsel %vm1319, %v3484, %v3485
        %v3487 = vrot.slane %v3427, 1
        %v3488 = vrot.slane %v2964, 1
        %v3489 = vsel %vm1319, %v3487, %v3488
        %v3490 = vrot.slane %v3428, 1
        %v3491 = vrot.slane %v2966, 1
        %v3492 = vsel %vm1319, %v3490, %v3491
        %v3493 = vrot.slane %v3429, 1
        %v3494 = vrot.slane %v2968, 1
        %v3495 = vsel %vm1319, %v3493, %v3494
        %v3496 = vrot.slane %v3430, 1
        %v3497 = vrot.slane %v2970, 1
        %v3498 = vsel %vm1319, %v3496, %v3497
        %v3499 = vrot.slane %v3431, 1
        %v3500 = vrot.slane %v2972, 1
        %v3501 = vsel %vm1319, %v3499, %v3500
        %v3502 = vrot.slane %v3432, 1
        %v3503 = vrot.slane %v2974, 1
        %v3504 = vsel %vm1319, %v3502, %v3503
        %v3505 = vrot.slane %v3433, 1
        %v3506 = vrot.slane %v2976, 1
        %v3507 = vsel %vm1319, %v3505, %v3506
        %v3508 = vrot.slane %v3434, 1
        %v3509 = vrot.slane %v2978, 1
        %v3510 = vsel %vm1319, %v3508, %v3509
        %v3511 = vrot.slane %v3435, 1
        %v3512 = vrot.slane %v2980, 1
        %v3513 = vsel %vm1319, %v3511, %v3512
        %v3514 = vrot.slane %v3436, 1
        %v3515 = vrot.slane %v2982, 1
        %v3516 = vsel %vm1319, %v3514, %v3515
        %s3517 = scalar_lea.vmem %s1, 16
        %v3518 = vld [vmem:[%s3517] sm:$0x3]
        %v3520 = vsel %vm224, %v3471, 0
        %v3523 = vsel %vm224, %v3474, 0
        %v3526 = vsel %vm224, %v3477, 0
        %v3529 = vsel %vm224, %v3480, 0
        %v3532 = vsel %vm224, %v3483, 0
        %v3535 = vsel %vm224, %v3486, 0
        %v3538 = vsel %vm224, %v3489, 0
        %v3541 = vsel %vm224, %v3492, 0
        %v3544 = vsel %vm224, %v3495, 0
        %v3547 = vsel %vm224, %v3498, 0
        %v3550 = vsel %vm224, %v3501, 0
        %v3553 = vsel %vm224, %v3504, 0
        %v3556 = vsel %vm224, %v3507, 0
        %v3559 = vsel %vm224, %v3510, 0
        %v3562 = vsel %vm224, %v3513, 0
        %v3565 = vsel %vm224, %v3516, 0
        %v3568 = vsel %vm910, %v3518, 0
        %3570 = vmatprep.subr.bf16.mxu0 0
        %3571 = vmatpush1.bf16.msra.mxu0 %v3568
        %3572 = vmatprep.subr.bf16.mxu0 0
        %3573 = vmatpush1.bf16.msra.mxu0 0
        %3574 = vmatprep.subr.bf16.mxu0 0
        %3575 = vmatpush1.bf16.msra.mxu0 0
        %3576 = vmatprep.subr.bf16.mxu0 0
        %3577 = vmatpush1.bf16.msra.mxu0 0
        %3578 = vmatprep.subr.bf16.mxu0 0
        %3579 = vmatpush1.bf16.msra.mxu0 0
        %3580 = vmatprep.subr.bf16.mxu0 0
        %3581 = vmatpush1.bf16.msra.mxu0 0
        %3582 = vmatprep.subr.bf16.mxu0 0
        %3583 = vmatpush1.bf16.msra.mxu0 0
        %3584 = vmatprep.subr.bf16.mxu0 0
        %3585 = vmatpush1.bf16.msra.mxu0 0
        %3586 = vmatprep.subr.bf16.mxu0 0
        %3587 = vmatpush1.bf16.msra.mxu0 0
        %3588 = vmatprep.subr.bf16.mxu0 0
        %3589 = vmatpush1.bf16.msra.mxu0 0
        %3590 = vmatprep.subr.bf16.mxu0 0
        %3591 = vmatpush1.bf16.msra.mxu0 0
        %3592 = vmatprep.subr.bf16.mxu0 0
        %3593 = vmatpush1.bf16.msra.mxu0 0
        %3594 = vmatprep.subr.bf16.mxu0 0
        %3595 = vmatpush1.bf16.msra.mxu0 0
        %3596 = vmatprep.subr.bf16.mxu0 0
        %3597 = vmatpush1.bf16.msra.mxu0 0
        %3598 = vmatprep.subr.bf16.mxu0 0
        %3599 = vmatpush1.bf16.msra.mxu0 0
        %3600 = vmatprep.subr.bf16.mxu0 0
        %3601 = vmatpush1.bf16.msra.mxu0 0
        %3602 = vmatprep.mubr.bf16.mxu0 0
        %3603 = vmatmul.mubr.bf16.gmra.mrb[0].mxu0 %v3520
        %v3604 = vpop.f32.mrb[0].mxu0
        %v3605 = vadd.f32 0.0, %v3604
        %v3606 = vpop.f32.mrb[0].mxu0
        %v3607 = vpop.f32.mrb[0].mxu0
        %v3608 = vadd.f32 0.0, %v3607
        %v3609 = vpop.f32.mrb[0].mxu0
        %3610 = vmatprep.mubr.bf16.mxu0 0
        %3611 = vmatmul.mubr.bf16.gmra.mrb[0].mxu0 %v3523
        %v3612 = vpop.f32.mrb[0].mxu0
        %v3613 = vadd.f32 0.0, %v3612
        %v3614 = vpop.f32.mrb[0].mxu0
        %v3615 = vpop.f32.mrb[0].mxu0
        %v3616 = vadd.f32 0.0, %v3615
        %v3617 = vpop.f32.mrb[0].mxu0
        %3618 = vmatprep.mubr.bf16.mxu0 0
        %3619 = vmatmul.mubr.bf16.gmra.mrb[0].mxu0 %v3526
        %v3620 = vpop.f32.mrb[0].mxu0
        %v3621 = vadd.f32 0.0, %v3620
        %v3622 = vpop.f32.mrb[0].mxu0
        %v3623 = vpop.f32.mrb[0].mxu0
        %v3624 = vadd.f32 0.0, %v3623
        %v3625 = vpop.f32.mrb[0].mxu0
        %3626 = vmatprep.mubr.bf16.mxu0 0
        %3627 = vmatmul.mubr.bf16.gmra.mrb[0].mxu0 %v3529
        %v3628 = vpop.f32.mrb[0].mxu0
        %v3629 = vadd.f32 0.0, %v3628
        %v3630 = vpop.f32.mrb[0].mxu0
        %v3631 = vpop.f32.mrb[0].mxu0
        %v3632 = vadd.f32 0.0, %v3631
        %v3633 = vpop.f32.mrb[0].mxu0
        %3634 = vmatprep.mubr.bf16.mxu0 0
        %3635 = vmatmul.mubr.bf16.gmra.mrb[0].mxu0 %v3532
        %v3636 = vpop.f32.mrb[0].mxu0
        %v3637 = vadd.f32 0.0, %v3636
        %v3638 = vpop.f32.mrb[0].mxu0
        %v3639 = vpop.f32.mrb[0].mxu0
        %v3640 = vadd.f32 0.0, %v3639
        %v3641 = vpop.f32.mrb[0].mxu0
        %3642 = vmatprep.mubr.bf16.mxu0 0
        %3643 = vmatmul.mubr.bf16.gmra.mrb[0].mxu0 %v3535
        %v3644 = vpop.f32.mrb[0].mxu0
        %v3645 = vadd.f32 0.0, %v3644
        %v3646 = vpop.f32.mrb[0].mxu0
        %v3647 = vpop.f32.mrb[0].mxu0
        %v3648 = vadd.f32 0.0, %v3647
        %v3649 = vpop.f32.mrb[0].mxu0
        %3650 = vmatprep.mubr.bf16.mxu0 0
        %3651 = vmatmul.mubr.bf16.gmra.mrb[0].mxu0 %v3538
        %v3652 = vpop.f32.mrb[0].mxu0
        %v3653 = vadd.f32 0.0, %v3652
        %v3654 = vpop.f32.mrb[0].mxu0
        %v3655 = vpop.f32.mrb[0].mxu0
        %v3656 = vadd.f32 0.0, %v3655
        %v3657 = vpop.f32.mrb[0].mxu0
        %3658 = vmatprep.mubr.bf16.mxu0 0
        %3659 = vmatmul.mubr.bf16.gmra.mrb[0].mxu0 %v3541
        %v3660 = vpop.f32.mrb[0].mxu0
        %v3661 = vadd.f32 0.0, %v3660
        %v3662 = vpop.f32.mrb[0].mxu0
        %v3663 = vpop.f32.mrb[0].mxu0
        %v3664 = vadd.f32 0.0, %v3663
        %v3665 = vpop.f32.mrb[0].mxu0
        %3666 = vmatprep.mubr.bf16.mxu0 0
        %3667 = vmatmul.mubr.bf16.gmra.mrb[0].mxu0 %v3544
        %v3668 = vpop.f32.mrb[0].mxu0
        %v3669 = vadd.f32 0.0, %v3668
        %v3670 = vpop.f32.mrb[0].mxu0
        %v3671 = vpop.f32.mrb[0].mxu0
        %v3672 = vadd.f32 0.0, %v3671
        %v3673 = vpop.f32.mrb[0].mxu0
        %3674 = vmatprep.mubr.bf16.mxu0 0
        %3675 = vmatmul.mubr.bf16.gmra.mrb[0].mxu0 %v3547
        %v3676 = vpop.f32.mrb[0].mxu0
        %v3677 = vadd.f32 0.0, %v3676
        %v3678 = vpop.f32.mrb[0].mxu0
        %v3679 = vpop.f32.mrb[0].mxu0
        %v3680 = vadd.f32 0.0, %v3679
        %v3681 = vpop.f32.mrb[0].mxu0
        %3682 = vmatprep.mubr.bf16.mxu0 0
        %3683 = vmatmul.mubr.bf16.gmra.mrb[0].mxu0 %v3550
        %v3684 = vpop.f32.mrb[0].mxu0
        %v3685 = vadd.f32 0.0, %v3684
        %v3686 = vpop.f32.mrb[0].mxu0
        %v3687 = vpop.f32.mrb[0].mxu0
        %v3688 = vadd.f32 0.0, %v3687
        %v3689 = vpop.f32.mrb[0].mxu0
        %3690 = vmatprep.mubr.bf16.mxu0 0
        %3691 = vmatmul.mubr.bf16.gmra.mrb[0].mxu0 %v3553
        %v3692 = vpop.f32.mrb[0].mxu0
        %v3693 = vadd.f32 0.0, %v3692
        %v3694 = vpop.f32.mrb[0].mxu0
        %v3695 = vpop.f32.mrb[0].mxu0
        %v3696 = vadd.f32 0.0, %v3695
        %v3697 = vpop.f32.mrb[0].mxu0
        %3698 = vmatprep.mubr.bf16.mxu0 0
        %3699 = vmatmul.mubr.bf16.gmra.mrb[0].mxu0 %v3556
        %v3700 = vpop.f32.mrb[0].mxu0
        %v3701 = vadd.f32 0.0, %v3700
        %v3702 = vpop.f32.mrb[0].mxu0
        %v3703 = vpop.f32.mrb[0].mxu0
        %v3704 = vadd.f32 0.0, %v3703
        %v3705 = vpop.f32.mrb[0].mxu0
        %3706 = vmatprep.mubr.bf16.mxu0 0
        %3707 = vmatmul.mubr.bf16.gmra.mrb[0].mxu0 %v3559
        %v3708 = vpop.f32.mrb[0].mxu0
        %v3709 = vadd.f32 0.0, %v3708
        %v3710 = vpop.f32.mrb[0].mxu0
        %v3711 = vpop.f32.mrb[0].mxu0
        %v3712 = vadd.f32 0.0, %v3711
        %v3713 = vpop.f32.mrb[0].mxu0
        %3714 = vmatprep.mubr.bf16.mxu0 0
        %3715 = vmatmul.mubr.bf16.gmra.mrb[0].mxu0 %v3562
        %v3716 = vpop.f32.mrb[0].mxu0
        %v3717 = vadd.f32 0.0, %v3716
        %v3718 = vpop.f32.mrb[0].mxu0
        %v3719 = vpop.f32.mrb[0].mxu0
        %v3720 = vadd.f32 0.0, %v3719
        %v3721 = vpop.f32.mrb[0].mxu0
        %3722 = vmatprep.mubr.bf16.mxu0 0
        %3723 = vmatmul.mubr.bf16.gmra.mrb[0].mxu0 %v3565
        %v3724 = vpop.f32.mrb[0].mxu0
        %v3725 = vadd.f32 0.0, %v3724
        %v3726 = vpop.f32.mrb[0].mxu0
        %v3727 = vpop.f32.mrb[0].mxu0
        %v3728 = vadd.f32 0.0, %v3727
        %v3729 = vpop.f32.mrb[0].mxu0
        %3730 = vdwg.mxu0
        %v3731 = vadd.f32 %v3389, %v3605
        %v3732 = vadd.f32 %v3390, %v3608
        %v3733 = vadd.f32 %v3391, %v3613
        %v3734 = vadd.f32 %v3392, %v3616
        %v3735 = vadd.f32 %v3393, %v3621
        %v3736 = vadd.f32 %v3394, %v3624
        %v3737 = vadd.f32 %v3395, %v3629
        %v3738 = vadd.f32 %v3396, %v3632
        %v3739 = vadd.f32 %v3397, %v3637
        %v3740 = vadd.f32 %v3398, %v3640
        %v3741 = vadd.f32 %v3399, %v3645
        %v3742 = vadd.f32 %v3400, %v3648
        %v3743 = vadd.f32 %v3401, %v3653
        %v3744 = vadd.f32 %v3402, %v3656
        %v3745 = vadd.f32 %v3403, %v3661
        %v3746 = vadd.f32 %v3404, %v3664
        %v3747 = vadd.f32 %v3405, %v3669
        %v3748 = vadd.f32 %v3406, %v3672
        %v3749 = vadd.f32 %v3407, %v3677
        %v3750 = vadd.f32 %v3408, %v3680
        %v3751 = vadd.f32 %v3409, %v3685
        %v3752 = vadd.f32 %v3410, %v3688
        %v3753 = vadd.f32 %v3411, %v3693
        %v3754 = vadd.f32 %v3412, %v3696
        %v3755 = vadd.f32 %v3413, %v3701
        %v3756 = vadd.f32 %v3414, %v3704
        %v3757 = vadd.f32 %v3415, %v3709
        %v3758 = vadd.f32 %v3416, %v3712
        %v3759 = vadd.f32 %v3417, %v3717
        %v3760 = vadd.f32 %v3418, %v3720
        %v3761 = vadd.f32 %v3419, %v3725
        %v3762 = vadd.f32 %v3420, %v3728
        %v3763 = vld [vmem:[%s2] sm:$0x1]
        %v3765 = vlaneseq
        %v3766 = vshrl.u32 %v3765, 7
        %v3767 = vsub.s32 0, %v3766
        %v3768 = vrot.slane %v3763, %v3767
        %v3770 = vadd.f32 %v3731, %v3768
        %v3771 = vadd.f32 %v3732, %v3768
        %v3772 = vadd.f32 %v3733, %v3768
        %v3773 = vadd.f32 %v3734, %v3768
        %v3774 = vadd.f32 %v3735, %v3768
        %v3775 = vadd.f32 %v3736, %v3768
        %v3776 = vadd.f32 %v3737, %v3768
        %v3777 = vadd.f32 %v3738, %v3768
        %v3778 = vadd.f32 %v3739, %v3768
        %v3779 = vadd.f32 %v3740, %v3768
        %v3780 = vadd.f32 %v3741, %v3768
        %v3781 = vadd.f32 %v3742, %v3768
        %v3782 = vadd.f32 %v3743, %v3768
        %v3783 = vadd.f32 %v3744, %v3768
        %v3784 = vadd.f32 %v3745, %v3768
        %v3785 = vadd.f32 %v3746, %v3768
        %v3786 = vadd.f32 %v3747, %v3768
        %v3787 = vadd.f32 %v3748, %v3768
        %v3788 = vadd.f32 %v3749, %v3768
        %v3789 = vadd.f32 %v3750, %v3768
        %v3790 = vadd.f32 %v3751, %v3768
        %v3791 = vadd.f32 %v3752, %v3768
        %v3792 = vadd.f32 %v3753, %v3768
        %v3793 = vadd.f32 %v3754, %v3768
        %v3794 = vadd.f32 %v3755, %v3768
        %v3795 = vadd.f32 %v3756, %v3768
        %v3796 = vadd.f32 %v3757, %v3768
        %v3797 = vadd.f32 %v3758, %v3768
        %v3798 = vadd.f32 %v3759, %v3768
        %v3799 = vadd.f32 %v3760, %v3768
        %v3800 = vadd.f32 %v3761, %v3768
        %v3801 = vadd.f32 %v3762, %v3768
        %v3802 = vmax.f32 %v3770, 0.0
        %v3803 = vmax.f32 %v3771, 0.0
        %v3804 = vmax.f32 %v3772, 0.0
        %v3805 = vmax.f32 %v3773, 0.0
        %v3806 = vmax.f32 %v3774, 0.0
        %v3807 = vmax.f32 %v3775, 0.0
        %v3808 = vmax.f32 %v3776, 0.0
        %v3809 = vmax.f32 %v3777, 0.0
        %v3810 = vmax.f32 %v3778, 0.0
        %v3811 = vmax.f32 %v3779, 0.0
        %v3812 = vmax.f32 %v3780, 0.0
        %v3813 = vmax.f32 %v3781, 0.0
        %v3814 = vmax.f32 %v3782, 0.0
        %v3815 = vmax.f32 %v3783, 0.0
        %v3816 = vmax.f32 %v3784, 0.0
        %v3817 = vmax.f32 %v3785, 0.0
        %v3818 = vmax.f32 %v3786, 0.0
        %v3819 = vmax.f32 %v3787, 0.0
        %v3820 = vmax.f32 %v3788, 0.0
        %v3821 = vmax.f32 %v3789, 0.0
        %v3822 = vmax.f32 %v3790, 0.0
        %v3823 = vmax.f32 %v3791, 0.0
        %v3824 = vmax.f32 %v3792, 0.0
        %v3825 = vmax.f32 %v3793, 0.0
        %v3826 = vmax.f32 %v3794, 0.0
        %v3827 = vmax.f32 %v3795, 0.0
        %v3828 = vmax.f32 %v3796, 0.0
        %v3829 = vmax.f32 %v3797, 0.0
        %v3830 = vmax.f32 %v3798, 0.0
        %v3831 = vmax.f32 %v3799, 0.0
        %v3832 = vmax.f32 %v3800, 0.0
        %v3833 = vmax.f32 %v3801, 0.0
        %vm3834 = vcmask 64512
        %3835 = vst.msk [vmem:[#allocation3] sm:$0xff] %vm3834, 0
        %3836 = vst.msk [vmem:[#allocation3 + $0x8] sm:$0xff] %vm3834, 0
        %s3837 = scalar_lea.vmem [#allocation3], 272
        %3838 = vst.msk [vmem:[%s3837] sm:$0xff] %vm3834, 0
        %3839 = vst.msk [vmem:[%s3837 + $0x8] sm:$0xff] %vm3834, 0
        %vm3840 = vcmask 57344
        %vm3841 = vmand %vm3840, %vm231
        %v3842 = vld [vmem:[#allocation3] sm:$0x1]
        %v3843 = vsel %vm3841, 0, %v3842
        %3844 = vst [vmem:[#allocation3] sm:$0x1] %v3843
        %v3845 = vld [vmem:[#allocation3 + $0x10] sm:$0x1]
        %v3846 = vsel %vm3841, 0, %v3845
        %3847 = vst [vmem:[#allocation3 + $0x10] sm:$0x1] %v3846
        %v3848 = vld [vmem:[#allocation3 + $0x20] sm:$0x1]
        %v3849 = vsel %vm3841, 0, %v3848
        %3850 = vst [vmem:[#allocation3 + $0x20] sm:$0x1] %v3849
        %v3851 = vld [vmem:[#allocation3 + $0x30] sm:$0x1]
        %v3852 = vsel %vm3841, 0, %v3851
        %3853 = vst [vmem:[#allocation3 + $0x30] sm:$0x1] %v3852
        %v3854 = vld [vmem:[#allocation3 + $0x40] sm:$0x1]
        %v3855 = vsel %vm3841, 0, %v3854
        %3856 = vst [vmem:[#allocation3 + $0x40] sm:$0x1] %v3855
        %v3857 = vld [vmem:[#allocation3 + $0x50] sm:$0x1]
        %v3858 = vsel %vm3841, 0, %v3857
        %3859 = vst [vmem:[#allocation3 + $0x50] sm:$0x1] %v3858
        %v3860 = vld [vmem:[#allocation3 + $0x60] sm:$0x1]
        %v3861 = vsel %vm3841, 0, %v3860
        %3862 = vst [vmem:[#allocation3 + $0x60] sm:$0x1] %v3861
        %v3863 = vld [vmem:[#allocation3 + $0x70] sm:$0x1]
        %v3864 = vsel %vm3841, 0, %v3863
        %3865 = vst [vmem:[#allocation3 + $0x70] sm:$0x1] %v3864
        %v3866 = vld [vmem:[#allocation3 + $0x80] sm:$0x1]
        %v3867 = vsel %vm3841, 0, %v3866
        %3868 = vst [vmem:[#allocation3 + $0x80] sm:$0x1] %v3867
        %v3869 = vld [vmem:[#allocation3 + $0x90] sm:$0x1]
        %v3870 = vsel %vm3841, 0, %v3869
        %3871 = vst [vmem:[#allocation3 + $0x90] sm:$0x1] %v3870
        %v3872 = vld [vmem:[#allocation3 + $0xa0] sm:$0x1]
        %v3873 = vsel %vm3841, 0, %v3872
        %3874 = vst [vmem:[#allocation3 + $0xa0] sm:$0x1] %v3873
        %v3875 = vld [vmem:[#allocation3 + $0xb0] sm:$0x1]
        %v3876 = vsel %vm3841, 0, %v3875
        %3877 = vst [vmem:[#allocation3 + $0xb0] sm:$0x1] %v3876
        %v3878 = vld [vmem:[#allocation3 + $0xc0] sm:$0x1]
        %v3879 = vsel %vm3841, 0, %v3878
        %3880 = vst [vmem:[#allocation3 + $0xc0] sm:$0x1] %v3879
        %v3881 = vld [vmem:[#allocation3 + $0xd0] sm:$0x1]
        %v3882 = vsel %vm3841, 0, %v3881
        %3883 = vst [vmem:[#allocation3 + $0xd0] sm:$0x1] %v3882
        %v3884 = vld [vmem:[#allocation3 + $0xe0] sm:$0x1]
        %v3885 = vsel %vm3841, 0, %v3884
        %3886 = vst [vmem:[#allocation3 + $0xe0] sm:$0x1] %v3885
        %v3887 = vld [vmem:[#allocation3 + $0xf0] sm:$0x1]
        %v3888 = vsel %vm3841, 0, %v3887
        %3889 = vst [vmem:[#allocation3 + $0xf0] sm:$0x1] %v3888
        %v3890 = vld [vmem:[#allocation3 + $0x100] sm:$0x1]
        %v3891 = vsel %vm3841, 0, %v3890
        %3892 = vst [vmem:[#allocation3 + $0x100] sm:$0x1] %v3891
        %v3893 = vld [vmem:[#allocation3 + $0x110] sm:$0x1]
        %v3894 = vsel %vm3841, 0, %v3893
        %3895 = vst [vmem:[#allocation3 + $0x110] sm:$0x1] %v3894
        %vm3896 = vmand %vm3840, %vm287
        %v3897 = vld [vmem:[#allocation3 + $0x8] sm:$0x1]
        %v3898 = vsel %vm3896, 0, %v3897
        %3899 = vst [vmem:[#allocation3 + $0x8] sm:$0x1] %v3898
        %v3900 = vld [vmem:[#allocation3 + $0x18] sm:$0x1]
        %v3901 = vsel %vm3896, 0, %v3900
        %3902 = vst [vmem:[#allocation3 + $0x18] sm:$0x1] %v3901
        %v3903 = vld [vmem:[#allocation3 + $0x28] sm:$0x1]
        %v3904 = vsel %vm3896, 0, %v3903
        %3905 = vst [vmem:[#allocation3 + $0x28] sm:$0x1] %v3904
        %v3906 = vld [vmem:[#allocation3 + $0x38] sm:$0x1]
        %v3907 = vsel %vm3896, 0, %v3906
        %3908 = vst [vmem:[#allocation3 + $0x38] sm:$0x1] %v3907
        %v3909 = vld [vmem:[#allocation3 + $0x48] sm:$0x1]
        %v3910 = vsel %vm3896, 0, %v3909
        %3911 = vst [vmem:[#allocation3 + $0x48] sm:$0x1] %v3910
        %v3912 = vld [vmem:[#allocation3 + $0x58] sm:$0x1]
        %v3913 = vsel %vm3896, 0, %v3912
        %3914 = vst [vmem:[#allocation3 + $0x58] sm:$0x1] %v3913
        %v3915 = vld [vmem:[#allocation3 + $0x68] sm:$0x1]
        %v3916 = vsel %vm3896, 0, %v3915
        %3917 = vst [vmem:[#allocation3 + $0x68] sm:$0x1] %v3916
        %v3918 = vld [vmem:[#allocation3 + $0x78] sm:$0x1]
        %v3919 = vsel %vm3896, 0, %v3918
        %3920 = vst [vmem:[#allocation3 + $0x78] sm:$0x1] %v3919
        %v3921 = vld [vmem:[#allocation3 + $0x88] sm:$0x1]
        %v3922 = vsel %vm3896, 0, %v3921
        %3923 = vst [vmem:[#allocation3 + $0x88] sm:$0x1] %v3922
        %v3924 = vld [vmem:[#allocation3 + $0x98] sm:$0x1]
        %v3925 = vsel %vm3896, 0, %v3924
        %3926 = vst [vmem:[#allocation3 + $0x98] sm:$0x1] %v3925
        %v3927 = vld [vmem:[#allocation3 + $0xa8] sm:$0x1]
        %v3928 = vsel %vm3896, 0, %v3927
        %3929 = vst [vmem:[#allocation3 + $0xa8] sm:$0x1] %v3928
        %v3930 = vld [vmem:[#allocation3 + $0xb8] sm:$0x1]
        %v3931 = vsel %vm3896, 0, %v3930
        %3932 = vst [vmem:[#allocation3 + $0xb8] sm:$0x1] %v3931
        %v3933 = vld [vmem:[#allocation3 + $0xc8] sm:$0x1]
        %v3934 = vsel %vm3896, 0, %v3933
        %3935 = vst [vmem:[#allocation3 + $0xc8] sm:$0x1] %v3934
        %v3936 = vld [vmem:[#allocation3 + $0xd8] sm:$0x1]
        %v3937 = vsel %vm3896, 0, %v3936
        %3938 = vst [vmem:[#allocation3 + $0xd8] sm:$0x1] %v3937
        %v3939 = vld [vmem:[#allocation3 + $0xe8] sm:$0x1]
        %v3940 = vsel %vm3896, 0, %v3939
        %3941 = vst [vmem:[#allocation3 + $0xe8] sm:$0x1] %v3940
        %v3942 = vld [vmem:[#allocation3 + $0xf8] sm:$0x1]
        %v3943 = vsel %vm3896, 0, %v3942
        %3944 = vst [vmem:[#allocation3 + $0xf8] sm:$0x1] %v3943
        %v3945 = vld [vmem:[#allocation3 + $0x108] sm:$0x1]
        %v3946 = vsel %vm3896, 0, %v3945
        %3947 = vst [vmem:[#allocation3 + $0x108] sm:$0x1] %v3946
        %v3948 = vld [vmem:[#allocation3 + $0x118] sm:$0x1]
        %v3949 = vsel %vm3896, 0, %v3948
        %3950 = vst [vmem:[#allocation3 + $0x118] sm:$0x1] %v3949
        %v3951 = vpack.c.bf16 %v3803, %v3802
        %v3952 = vpack.c.bf16 %v3805, %v3804
        %v3953 = vpack.c.bf16 %v3807, %v3806
        %v3954 = vpack.c.bf16 %v3809, %v3808
        %v3955 = vpack.c.bf16 %v3811, %v3810
        %v3956 = vpack.c.bf16 %v3813, %v3812
        %v3957 = vpack.c.bf16 %v3815, %v3814
        %v3958 = vpack.c.bf16 %v3817, %v3816
        %v3959 = vpack.c.bf16 %v3819, %v3818
        %v3960 = vpack.c.bf16 %v3821, %v3820
        %v3961 = vpack.c.bf16 %v3823, %v3822
        %v3962 = vpack.c.bf16 %v3825, %v3824
        %v3963 = vpack.c.bf16 %v3827, %v3826
        %v3964 = vpack.c.bf16 %v3829, %v3828
        %v3965 = vpack.c.bf16 %v3831, %v3830
        %v3966 = vpack.c.bf16 %v3833, %v3832
        %v3968 = vshrl.u32 %v3951, 16
        %v3970 = vrot.slane %v3968, 7
        %v3971 = vshll.u32 %v3951, 16
        %v3973 = vor.u32 %v3970, %v3971
        %v3975 = vshrl.u32 %v3952, 16
        %v3977 = vrot.slane %v3975, 7
        %v3978 = vshll.u32 %v3952, 16
        %v3980 = vor.u32 %v3977, %v3978
        %v3982 = vshrl.u32 %v3953, 16
        %v3984 = vrot.slane %v3982, 7
        %v3985 = vshll.u32 %v3953, 16
        %v3987 = vor.u32 %v3984, %v3985
        %v3989 = vshrl.u32 %v3954, 16
        %v3991 = vrot.slane %v3989, 7
        %v3992 = vshll.u32 %v3954, 16
        %v3994 = vor.u32 %v3991, %v3992
        %v3996 = vshrl.u32 %v3955, 16
        %v3998 = vrot.slane %v3996, 7
        %v3999 = vshll.u32 %v3955, 16
        %v4001 = vor.u32 %v3998, %v3999
        %v4003 = vshrl.u32 %v3956, 16
        %v4005 = vrot.slane %v4003, 7
        %v4006 = vshll.u32 %v3956, 16
        %v4008 = vor.u32 %v4005, %v4006
        %v4010 = vshrl.u32 %v3957, 16
        %v4012 = vrot.slane %v4010, 7
        %v4013 = vshll.u32 %v3957, 16
        %v4015 = vor.u32 %v4012, %v4013
        %v4017 = vshrl.u32 %v3958, 16
        %v4019 = vrot.slane %v4017, 7
        %v4020 = vshll.u32 %v3958, 16
        %v4022 = vor.u32 %v4019, %v4020
        %v4024 = vshrl.u32 %v3959, 16
        %v4026 = vrot.slane %v4024, 7
        %v4027 = vshll.u32 %v3959, 16
        %v4029 = vor.u32 %v4026, %v4027
        %v4031 = vshrl.u32 %v3960, 16
        %v4033 = vrot.slane %v4031, 7
        %v4034 = vshll.u32 %v3960, 16
        %v4036 = vor.u32 %v4033, %v4034
        %v4038 = vshrl.u32 %v3961, 16
        %v4040 = vrot.slane %v4038, 7
        %v4041 = vshll.u32 %v3961, 16
        %v4043 = vor.u32 %v4040, %v4041
        %v4045 = vshrl.u32 %v3962, 16
        %v4047 = vrot.slane %v4045, 7
        %v4048 = vshll.u32 %v3962, 16
        %v4050 = vor.u32 %v4047, %v4048
        %v4052 = vshrl.u32 %v3963, 16
        %v4054 = vrot.slane %v4052, 7
        %v4055 = vshll.u32 %v3963, 16
        %v4057 = vor.u32 %v4054, %v4055
        %v4059 = vshrl.u32 %v3964, 16
        %v4061 = vrot.slane %v4059, 7
        %v4062 = vshll.u32 %v3964, 16
        %v4064 = vor.u32 %v4061, %v4062
        %v4066 = vshrl.u32 %v3965, 16
        %v4068 = vrot.slane %v4066, 7
        %v4069 = vshll.u32 %v3965, 16
        %v4071 = vor.u32 %v4068, %v4069
        %v4073 = vshrl.u32 %v3966, 16
        %v4075 = vrot.slane %v4073, 7
        %v4076 = vshll.u32 %v3966, 16
        %v4078 = vor.u32 %v4075, %v4076
        %s4111 = scalar_lea.vmem [#allocation3], 16
        %vm4112 = vcmask 64512
        %vm4113 = vmand %vm4112, %vm287
        %v4114 = vld [vmem:[%s4111] sm:$0xff]
        %v4115 = vsel %vm4113, %v3973, %v4114
        %4116 = vst [vmem:[%s4111] sm:$0xff] %v4115
        %v4117 = vld [vmem:[%s4111 + $0x8] sm:$0x1]
        %v4118 = vsel %vm3841, %v3970, %v4117
        %4119 = vst [vmem:[%s4111 + $0x8] sm:$0x1] %v4118
        %v4120 = vld [vmem:[%s4111 + $0x10] sm:$0xff]
        %v4121 = vsel %vm4113, %v3980, %v4120
        %4122 = vst [vmem:[%s4111 + $0x10] sm:$0xff] %v4121
        %v4123 = vld [vmem:[%s4111 + $0x18] sm:$0x1]
        %v4124 = vsel %vm3841, %v3977, %v4123
        %4125 = vst [vmem:[%s4111 + $0x18] sm:$0x1] %v4124
        %v4126 = vld [vmem:[%s4111 + $0x20] sm:$0xff]
        %v4127 = vsel %vm4113, %v3987, %v4126
        %4128 = vst [vmem:[%s4111 + $0x20] sm:$0xff] %v4127
        %v4129 = vld [vmem:[%s4111 + $0x28] sm:$0x1]
        %v4130 = vsel %vm3841, %v3984, %v4129
        %4131 = vst [vmem:[%s4111 + $0x28] sm:$0x1] %v4130
        %v4132 = vld [vmem:[%s4111 + $0x30] sm:$0xff]
        %v4133 = vsel %vm4113, %v3994, %v4132
        %4134 = vst [vmem:[%s4111 + $0x30] sm:$0xff] %v4133
        %v4135 = vld [vmem:[%s4111 + $0x38] sm:$0x1]
        %v4136 = vsel %vm3841, %v3991, %v4135
        %4137 = vst [vmem:[%s4111 + $0x38] sm:$0x1] %v4136
        %v4138 = vld [vmem:[%s4111 + $0x40] sm:$0xff]
        %v4139 = vsel %vm4113, %v4001, %v4138
        %4140 = vst [vmem:[%s4111 + $0x40] sm:$0xff] %v4139
        %v4141 = vld [vmem:[%s4111 + $0x48] sm:$0x1]
        %v4142 = vsel %vm3841, %v3998, %v4141
        %4143 = vst [vmem:[%s4111 + $0x48] sm:$0x1] %v4142
        %v4144 = vld [vmem:[%s4111 + $0x50] sm:$0xff]
        %v4145 = vsel %vm4113, %v4008, %v4144
        %4146 = vst [vmem:[%s4111 + $0x50] sm:$0xff] %v4145
        %v4147 = vld [vmem:[%s4111 + $0x58] sm:$0x1]
        %v4148 = vsel %vm3841, %v4005, %v4147
        %4149 = vst [vmem:[%s4111 + $0x58] sm:$0x1] %v4148
        %v4150 = vld [vmem:[%s4111 + $0x60] sm:$0xff]
        %v4151 = vsel %vm4113, %v4015, %v4150
        %4152 = vst [vmem:[%s4111 + $0x60] sm:$0xff] %v4151
        %v4153 = vld [vmem:[%s4111 + $0x68] sm:$0x1]
        %v4154 = vsel %vm3841, %v4012, %v4153
        %4155 = vst [vmem:[%s4111 + $0x68] sm:$0x1] %v4154
        %v4156 = vld [vmem:[%s4111 + $0x70] sm:$0xff]
        %v4157 = vsel %vm4113, %v4022, %v4156
        %4158 = vst [vmem:[%s4111 + $0x70] sm:$0xff] %v4157
        %v4159 = vld [vmem:[%s4111 + $0x78] sm:$0x1]
        %v4160 = vsel %vm3841, %v4019, %v4159
        %4161 = vst [vmem:[%s4111 + $0x78] sm:$0x1] %v4160
        %v4162 = vld [vmem:[%s4111 + $0x80] sm:$0xff]
        %v4163 = vsel %vm4113, %v4029, %v4162
        %4164 = vst [vmem:[%s4111 + $0x80] sm:$0xff] %v4163
        %v4165 = vld [vmem:[%s4111 + $0x88] sm:$0x1]
        %v4166 = vsel %vm3841, %v4026, %v4165
        %4167 = vst [vmem:[%s4111 + $0x88] sm:$0x1] %v4166
        %v4168 = vld [vmem:[%s4111 + $0x90] sm:$0xff]
        %v4169 = vsel %vm4113, %v4036, %v4168
        %4170 = vst [vmem:[%s4111 + $0x90] sm:$0xff] %v4169
        %v4171 = vld [vmem:[%s4111 + $0x98] sm:$0x1]
        %v4172 = vsel %vm3841, %v4033, %v4171
        %4173 = vst [vmem:[%s4111 + $0x98] sm:$0x1] %v4172
        %v4174 = vld [vmem:[%s4111 + $0xa0] sm:$0xff]
        %v4175 = vsel %vm4113, %v4043, %v4174
        %4176 = vst [vmem:[%s4111 + $0xa0] sm:$0xff] %v4175
        %v4177 = vld [vmem:[%s4111 + $0xa8] sm:$0x1]
        %v4178 = vsel %vm3841, %v4040, %v4177
        %4179 = vst [vmem:[%s4111 + $0xa8] sm:$0x1] %v4178
        %v4180 = vld [vmem:[%s4111 + $0xb0] sm:$0xff]
        %v4181 = vsel %vm4113, %v4050, %v4180
        %4182 = vst [vmem:[%s4111 + $0xb0] sm:$0xff] %v4181
        %v4183 = vld [vmem:[%s4111 + $0xb8] sm:$0x1]
        %v4184 = vsel %vm3841, %v4047, %v4183
        %4185 = vst [vmem:[%s4111 + $0xb8] sm:$0x1] %v4184
        %v4186 = vld [vmem:[%s4111 + $0xc0] sm:$0xff]
        %v4187 = vsel %vm4113, %v4057, %v4186
        %4188 = vst [vmem:[%s4111 + $0xc0] sm:$0xff] %v4187
        %v4189 = vld [vmem:[%s4111 + $0xc8] sm:$0x1]
        %v4190 = vsel %vm3841, %v4054, %v4189
        %4191 = vst [vmem:[%s4111 + $0xc8] sm:$0x1] %v4190
        %v4192 = vld [vmem:[%s4111 + $0xd0] sm:$0xff]
        %v4193 = vsel %vm4113, %v4064, %v4192
        %4194 = vst [vmem:[%s4111 + $0xd0] sm:$0xff] %v4193
        %v4195 = vld [vmem:[%s4111 + $0xd8] sm:$0x1]
        %v4196 = vsel %vm3841, %v4061, %v4195
        %4197 = vst [vmem:[%s4111 + $0xd8] sm:$0x1] %v4196
        %v4198 = vld [vmem:[%s4111 + $0xe0] sm:$0xff]
        %v4199 = vsel %vm4113, %v4071, %v4198
        %4200 = vst [vmem:[%s4111 + $0xe0] sm:$0xff] %v4199
        %v4201 = vld [vmem:[%s4111 + $0xe8] sm:$0x1]
        %v4202 = vsel %vm3841, %v4068, %v4201
        %4203 = vst [vmem:[%s4111 + $0xe8] sm:$0x1] %v4202
        %v4204 = vld [vmem:[%s4111 + $0xf0] sm:$0xff]
        %v4205 = vsel %vm4113, %v4078, %v4204
        %4206 = vst [vmem:[%s4111 + $0xf0] sm:$0xff] %v4205
        %v4207 = vld [vmem:[%s4111 + $0xf8] sm:$0x1]
        %v4208 = vsel %vm3841, %v4075, %v4207
        %4209 = vst [vmem:[%s4111 + $0xf8] sm:$0x1] %v4208
        %v4210 = vld [vmem:[#allocation3] sm:$0xff]
        %v4211 = vld [vmem:[#allocation3 + $0x10] sm:$0xff]
        %v4212 = vld [vmem:[#allocation3 + $0x20] sm:$0xff]
        %v4213 = vld [vmem:[#allocation3 + $0x30] sm:$0xff]
        %v4214 = vld [vmem:[#allocation3 + $0x40] sm:$0xff]
        %v4215 = vld [vmem:[#allocation3 + $0x50] sm:$0xff]
        %v4216 = vld [vmem:[#allocation3 + $0x60] sm:$0xff]
        %v4217 = vld [vmem:[#allocation3 + $0x70] sm:$0xff]
        %v4218 = vld [vmem:[#allocation3 + $0x80] sm:$0xff]
        %v4219 = vld [vmem:[#allocation3 + $0x90] sm:$0xff]
        %v4220 = vld [vmem:[#allocation3 + $0xa0] sm:$0xff]
        %v4221 = vld [vmem:[#allocation3 + $0xb0] sm:$0xff]
        %v4222 = vld [vmem:[#allocation3 + $0xc0] sm:$0xff]
        %v4223 = vld [vmem:[#allocation3 + $0xd0] sm:$0xff]
        %v4224 = vld [vmem:[#allocation3 + $0xe0] sm:$0xff]
        %v4225 = vld [vmem:[#allocation3 + $0xf0] sm:$0xff]
        %v4226 = vld [vmem:[%s3] sm:$0xf]
        %v4227 = vld [vmem:[#allocation3 + $0x8] sm:$0x1]
        %v4228 = vld [vmem:[#allocation3 + $0x18] sm:$0x1]
        %v4229 = vld [vmem:[#allocation3 + $0x28] sm:$0x1]
        %v4230 = vld [vmem:[#allocation3 + $0x38] sm:$0x1]
        %v4231 = vld [vmem:[#allocation3 + $0x48] sm:$0x1]
        %v4232 = vld [vmem:[#allocation3 + $0x58] sm:$0x1]
        %v4233 = vld [vmem:[#allocation3 + $0x68] sm:$0x1]
        %v4234 = vld [vmem:[#allocation3 + $0x78] sm:$0x1]
        %v4235 = vld [vmem:[#allocation3 + $0x88] sm:$0x1]
        %v4236 = vld [vmem:[#allocation3 + $0x98] sm:$0x1]
        %v4237 = vld [vmem:[#allocation3 + $0xa8] sm:$0x1]
        %v4238 = vld [vmem:[#allocation3 + $0xb8] sm:$0x1]
        %v4239 = vld [vmem:[#allocation3 + $0xc8] sm:$0x1]
        %v4240 = vld [vmem:[#allocation3 + $0xd8] sm:$0x1]
        %v4241 = vld [vmem:[#allocation3 + $0xe8] sm:$0x1]
        %v4242 = vld [vmem:[#allocation3 + $0xf8] sm:$0x1]
        %v4244 = vshrl.u32 %v4210, 16
        %v4246 = vshll.u32 %v4210, 16
        %v4248 = vrot.slane %v4246, 1
        %v4249 = vor.u32 %v4244, %v4248
        %v4251 = vshll.u32 %v4227, 16
        %v4253 = vrot.slane %v4251, 1
        %v4254 = vsel %vm667, %v4249, %v4253
        %v4256 = vshrl.u32 %v4211, 16
        %v4258 = vshll.u32 %v4211, 16
        %v4260 = vrot.slane %v4258, 1
        %v4261 = vor.u32 %v4256, %v4260
        %v4263 = vshll.u32 %v4228, 16
        %v4265 = vrot.slane %v4263, 1
        %v4266 = vsel %vm667, %v4261, %v4265
        %v4268 = vshrl.u32 %v4212, 16
        %v4270 = vshll.u32 %v4212, 16
        %v4272 = vrot.slane %v4270, 1
        %v4273 = vor.u32 %v4268, %v4272
        %v4275 = vshll.u32 %v4229, 16
        %v4277 = vrot.slane %v4275, 1
        %v4278 = vsel %vm667, %v4273, %v4277
        %v4280 = vshrl.u32 %v4213, 16
        %v4282 = vshll.u32 %v4213, 16
        %v4284 = vrot.slane %v4282, 1
        %v4285 = vor.u32 %v4280, %v4284
        %v4287 = vshll.u32 %v4230, 16
        %v4289 = vrot.slane %v4287, 1
        %v4290 = vsel %vm667, %v4285, %v4289
        %v4292 = vshrl.u32 %v4214, 16
        %v4294 = vshll.u32 %v4214, 16
        %v4296 = vrot.slane %v4294, 1
        %v4297 = vor.u32 %v4292, %v4296
        %v4299 = vshll.u32 %v4231, 16
        %v4301 = vrot.slane %v4299, 1
        %v4302 = vsel %vm667, %v4297, %v4301
        %v4304 = vshrl.u32 %v4215, 16
        %v4306 = vshll.u32 %v4215, 16
        %v4308 = vrot.slane %v4306, 1
        %v4309 = vor.u32 %v4304, %v4308
        %v4311 = vshll.u32 %v4232, 16
        %v4313 = vrot.slane %v4311, 1
        %v4314 = vsel %vm667, %v4309, %v4313
        %v4316 = vshrl.u32 %v4216, 16
        %v4318 = vshll.u32 %v4216, 16
        %v4320 = vrot.slane %v4318, 1
        %v4321 = vor.u32 %v4316, %v4320
        %v4323 = vshll.u32 %v4233, 16
        %v4325 = vrot.slane %v4323, 1
        %v4326 = vsel %vm667, %v4321, %v4325
        %v4328 = vshrl.u32 %v4217, 16
        %v4330 = vshll.u32 %v4217, 16
        %v4332 = vrot.slane %v4330, 1
        %v4333 = vor.u32 %v4328, %v4332
        %v4335 = vshll.u32 %v4234, 16
        %v4337 = vrot.slane %v4335, 1
        %v4338 = vsel %vm667, %v4333, %v4337
        %v4340 = vshrl.u32 %v4218, 16
        %v4342 = vshll.u32 %v4218, 16
        %v4344 = vrot.slane %v4342, 1
        %v4345 = vor.u32 %v4340, %v4344
        %v4347 = vshll.u32 %v4235, 16
        %v4349 = vrot.slane %v4347, 1
        %v4350 = vsel %vm667, %v4345, %v4349
        %v4352 = vshrl.u32 %v4219, 16
        %v4354 = vshll.u32 %v4219, 16
        %v4356 = vrot.slane %v4354, 1
        %v4357 = vor.u32 %v4352, %v4356
        %v4359 = vshll.u32 %v4236, 16
        %v4361 = vrot.slane %v4359, 1
        %v4362 = vsel %vm667, %v4357, %v4361
        %v4364 = vshrl.u32 %v4220, 16
        %v4366 = vshll.u32 %v4220, 16
        %v4368 = vrot.slane %v4366, 1
        %v4369 = vor.u32 %v4364, %v4368
        %v4371 = vshll.u32 %v4237, 16
        %v4373 = vrot.slane %v4371, 1
        %v4374 = vsel %vm667, %v4369, %v4373
        %v4376 = vshrl.u32 %v4221, 16
        %v4378 = vshll.u32 %v4221, 16
        %v4380 = vrot.slane %v4378, 1
        %v4381 = vor.u32 %v4376, %v4380
        %v4383 = vshll.u32 %v4238, 16
        %v4385 = vrot.slane %v4383, 1
        %v4386 = vsel %vm667, %v4381, %v4385
        %v4388 = vshrl.u32 %v4222, 16
        %v4390 = vshll.u32 %v4222, 16
        %v4392 = vrot.slane %v4390, 1
        %v4393 = vor.u32 %v4388, %v4392
        %v4395 = vshll.u32 %v4239, 16
        %v4397 = vrot.slane %v4395, 1
        %v4398 = vsel %vm667, %v4393, %v4397
        %v4400 = vshrl.u32 %v4223, 16
        %v4402 = vshll.u32 %v4223, 16
        %v4404 = vrot.slane %v4402, 1
        %v4405 = vor.u32 %v4400, %v4404
        %v4407 = vshll.u32 %v4240, 16
        %v4409 = vrot.slane %v4407, 1
        %v4410 = vsel %vm667, %v4405, %v4409
        %v4412 = vshrl.u32 %v4224, 16
        %v4414 = vshll.u32 %v4224, 16
        %v4416 = vrot.slane %v4414, 1
        %v4417 = vor.u32 %v4412, %v4416
        %v4419 = vshll.u32 %v4241, 16
        %v4421 = vrot.slane %v4419, 1
        %v4422 = vsel %vm667, %v4417, %v4421
        %v4424 = vshrl.u32 %v4225, 16
        %v4426 = vshll.u32 %v4225, 16
        %v4428 = vrot.slane %v4426, 1
        %v4429 = vor.u32 %v4424, %v4428
        %v4431 = vshll.u32 %v4242, 16
        %v4433 = vrot.slane %v4431, 1
        %v4434 = vsel %vm667, %v4429, %v4433
        %s4435 = scalar_lea.vmem %s3, 4
        %v4436 = vld [vmem:[%s4435] sm:$0xf]
        %v4438 = vsel %vm3834, %v4254, 0
        %v4441 = vsel %vm3834, %v4266, 0
        %v4444 = vsel %vm3834, %v4278, 0
        %v4447 = vsel %vm3834, %v4290, 0
        %v4450 = vsel %vm3834, %v4302, 0
        %v4453 = vsel %vm3834, %v4314, 0
        %v4456 = vsel %vm3834, %v4326, 0
        %v4459 = vsel %vm3834, %v4338, 0
        %v4462 = vsel %vm3834, %v4350, 0
        %v4465 = vsel %vm3834, %v4362, 0
        %v4468 = vsel %vm3834, %v4374, 0
        %v4471 = vsel %vm3834, %v4386, 0
        %v4474 = vsel %vm3834, %v4398, 0
        %v4477 = vsel %vm3834, %v4410, 0
        %v4480 = vsel %vm3834, %v4422, 0
        %v4483 = vsel %vm3834, %v4434, 0
        %vm4485 = vcmask 1043456
        %v4487 = vsel %vm4485, %v4436, 0
        %4489 = vmatprep.subr.bf16.mxu0 0
        %4490 = vmatpush1.bf16.msra.mxu0 %v4487
        %4491 = vmatprep.subr.bf16.mxu0 0
        %4492 = vmatpush1.bf16.msra.mxu0 0
        %4493 = vmatprep.subr.bf16.mxu0 0
        %4494 = vmatpush1.bf16.msra.mxu0 0
        %4495 = vmatprep.subr.bf16.mxu0 0
        %4496 = vmatpush1.bf16.msra.mxu0 0
        %4497 = vmatprep.subr.bf16.mxu0 0
        %4498 = vmatpush1.bf16.msra.mxu0 0
        %4499 = vmatprep.subr.bf16.mxu0 0
        %4500 = vmatpush1.bf16.msra.mxu0 0
        %4501 = vmatprep.subr.bf16.mxu0 0
        %4502 = vmatpush1.bf16.msra.mxu0 0
        %4503 = vmatprep.subr.bf16.mxu0 0
        %4504 = vmatpush1.bf16.msra.mxu0 0
        %4505 = vmatprep.subr.bf16.mxu0 0
        %4506 = vmatpush1.bf16.msra.mxu0 0
        %4507 = vmatprep.subr.bf16.mxu0 0
        %4508 = vmatpush1.bf16.msra.mxu0 0
        %4509 = vmatprep.subr.bf16.mxu0 0
        %4510 = vmatpush1.bf16.msra.mxu0 0
        %4511 = vmatprep.subr.bf16.mxu0 0
        %4512 = vmatpush1.bf16.msra.mxu0 0
        %4513 = vmatprep.subr.bf16.mxu0 0
        %4514 = vmatpush1.bf16.msra.mxu0 0
        %4515 = vmatprep.subr.bf16.mxu0 0
        %4516 = vmatpush1.bf16.msra.mxu0 0
        %4517 = vmatprep.subr.bf16.mxu0 0
        %4518 = vmatpush1.bf16.msra.mxu0 0
        %4519 = vmatprep.subr.bf16.mxu0 0
        %4520 = vmatpush1.bf16.msra.mxu0 0
        %4521 = vmatprep.mubr.bf16.mxu0 0
        %4522 = vmatmul.mubr.bf16.gmra.mrb[0].mxu0 %v4438
        %v4523 = vpop.f32.mrb[0].mxu0
        %v4524 = vadd.f32 0.0, %v4523
        %v4525 = vpop.f32.mrb[0].mxu0
        %v4526 = vpop.f32.mrb[0].mxu0
        %v4527 = vadd.f32 0.0, %v4526
        %v4528 = vpop.f32.mrb[0].mxu0
        %4529 = vmatprep.mubr.bf16.mxu0 0
        %4530 = vmatmul.mubr.bf16.gmra.mrb[0].mxu0 %v4441
        %v4531 = vpop.f32.mrb[0].mxu0
        %v4532 = vadd.f32 0.0, %v4531
        %v4533 = vpop.f32.mrb[0].mxu0
        %v4534 = vpop.f32.mrb[0].mxu0
        %v4535 = vadd.f32 0.0, %v4534
        %v4536 = vpop.f32.mrb[0].mxu0
        %4537 = vmatprep.mubr.bf16.mxu0 0
        %4538 = vmatmul.mubr.bf16.gmra.mrb[0].mxu0 %v4444
        %v4539 = vpop.f32.mrb[0].mxu0
        %v4540 = vadd.f32 0.0, %v4539
        %v4541 = vpop.f32.mrb[0].mxu0
        %v4542 = vpop.f32.mrb[0].mxu0
        %v4543 = vadd.f32 0.0, %v4542
        %v4544 = vpop.f32.mrb[0].mxu0
        %4545 = vmatprep.mubr.bf16.mxu0 0
        %4546 = vmatmul.mubr.bf16.gmra.mrb[0].mxu0 %v4447
        %v4547 = vpop.f32.mrb[0].mxu0
        %v4548 = vadd.f32 0.0, %v4547
        %v4549 = vpop.f32.mrb[0].mxu0
        %v4550 = vpop.f32.mrb[0].mxu0
        %v4551 = vadd.f32 0.0, %v4550
        %v4552 = vpop.f32.mrb[0].mxu0
        %4553 = vmatprep.mubr.bf16.mxu0 0
        %4554 = vmatmul.mubr.bf16.gmra.mrb[0].mxu0 %v4450
        %v4555 = vpop.f32.mrb[0].mxu0
        %v4556 = vadd.f32 0.0, %v4555
        %v4557 = vpop.f32.mrb[0].mxu0
        %v4558 = vpop.f32.mrb[0].mxu0
        %v4559 = vadd.f32 0.0, %v4558
        %v4560 = vpop.f32.mrb[0].mxu0
        %4561 = vmatprep.mubr.bf16.mxu0 0
        %4562 = vmatmul.mubr.bf16.gmra.mrb[0].mxu0 %v4453
        %v4563 = vpop.f32.mrb[0].mxu0
        %v4564 = vadd.f32 0.0, %v4563
        %v4565 = vpop.f32.mrb[0].mxu0
        %v4566 = vpop.f32.mrb[0].mxu0
        %v4567 = vadd.f32 0.0, %v4566
        %v4568 = vpop.f32.mrb[0].mxu0
        %4569 = vmatprep.mubr.bf16.mxu0 0
        %4570 = vmatmul.mubr.bf16.gmra.mrb[0].mxu0 %v4456
        %v4571 = vpop.f32.mrb[0].mxu0
        %v4572 = vadd.f32 0.0, %v4571
        %v4573 = vpop.f32.mrb[0].mxu0
        %v4574 = vpop.f32.mrb[0].mxu0
        %v4575 = vadd.f32 0.0, %v4574
        %v4576 = vpop.f32.mrb[0].mxu0
        %4577 = vmatprep.mubr.bf16.mxu0 0
        %4578 = vmatmul.mubr.bf16.gmra.mrb[0].mxu0 %v4459
        %v4579 = vpop.f32.mrb[0].mxu0
        %v4580 = vadd.f32 0.0, %v4579
        %v4581 = vpop.f32.mrb[0].mxu0
        %v4582 = vpop.f32.mrb[0].mxu0
        %v4583 = vadd.f32 0.0, %v4582
        %v4584 = vpop.f32.mrb[0].mxu0
        %4585 = vmatprep.mubr.bf16.mxu0 0
        %4586 = vmatmul.mubr.bf16.gmra.mrb[0].mxu0 %v4462
        %v4587 = vpop.f32.mrb[0].mxu0
        %v4588 = vadd.f32 0.0, %v4587
        %v4589 = vpop.f32.mrb[0].mxu0
        %v4590 = vpop.f32.mrb[0].mxu0
        %v4591 = vadd.f32 0.0, %v4590
        %v4592 = vpop.f32.mrb[0].mxu0
        %4593 = vmatprep.mubr.bf16.mxu0 0
        %4594 = vmatmul.mubr.bf16.gmra.mrb[0].mxu0 %v4465
        %v4595 = vpop.f32.mrb[0].mxu0
        %v4596 = vadd.f32 0.0, %v4595
        %v4597 = vpop.f32.mrb[0].mxu0
        %v4598 = vpop.f32.mrb[0].mxu0
        %v4599 = vadd.f32 0.0, %v4598
        %v4600 = vpop.f32.mrb[0].mxu0
        %4601 = vmatprep.mubr.bf16.mxu0 0
        %4602 = vmatmul.mubr.bf16.gmra.mrb[0].mxu0 %v4468
        %v4603 = vpop.f32.mrb[0].mxu0
        %v4604 = vadd.f32 0.0, %v4603
        %v4605 = vpop.f32.mrb[0].mxu0
        %v4606 = vpop.f32.mrb[0].mxu0
        %v4607 = vadd.f32 0.0, %v4606
        %v4608 = vpop.f32.mrb[0].mxu0
        %4609 = vmatprep.mubr.bf16.mxu0 0
        %4610 = vmatmul.mubr.bf16.gmra.mrb[0].mxu0 %v4471
        %v4611 = vpop.f32.mrb[0].mxu0
        %v4612 = vadd.f32 0.0, %v4611
        %v4613 = vpop.f32.mrb[0].mxu0
        %v4614 = vpop.f32.mrb[0].mxu0
        %v4615 = vadd.f32 0.0, %v4614
        %v4616 = vpop.f32.mrb[0].mxu0
        %4617 = vmatprep.mubr.bf16.mxu0 0
        %4618 = vmatmul.mubr.bf16.gmra.mrb[0].mxu0 %v4474
        %v4619 = vpop.f32.mrb[0].mxu0
        %v4620 = vadd.f32 0.0, %v4619
        %v4621 = vpop.f32.mrb[0].mxu0
        %v4622 = vpop.f32.mrb[0].mxu0
        %v4623 = vadd.f32 0.0, %v4622
        %v4624 = vpop.f32.mrb[0].mxu0
        %4625 = vmatprep.mubr.bf16.mxu0 0
        %4626 = vmatmul.mubr.bf16.gmra.mrb[0].mxu0 %v4477
        %v4627 = vpop.f32.mrb[0].mxu0
        %v4628 = vadd.f32 0.0, %v4627
        %v4629 = vpop.f32.mrb[0].mxu0
        %v4630 = vpop.f32.mrb[0].mxu0
        %v4631 = vadd.f32 0.0, %v4630
        %v4632 = vpop.f32.mrb[0].mxu0
        %4633 = vmatprep.mubr.bf16.mxu0 0
        %4634 = vmatmul.mubr.bf16.gmra.mrb[0].mxu0 %v4480
        %v4635 = vpop.f32.mrb[0].mxu0
        %v4636 = vadd.f32 0.0, %v4635
        %v4637 = vpop.f32.mrb[0].mxu0
        %v4638 = vpop.f32.mrb[0].mxu0
        %v4639 = vadd.f32 0.0, %v4638
        %v4640 = vpop.f32.mrb[0].mxu0
        %4641 = vmatprep.mubr.bf16.mxu0 0
        %4642 = vmatmul.mubr.bf16.gmra.mrb[0].mxu0 %v4483
        %v4643 = vpop.f32.mrb[0].mxu0
        %v4644 = vadd.f32 0.0, %v4643
        %v4645 = vpop.f32.mrb[0].mxu0
        %v4646 = vpop.f32.mrb[0].mxu0
        %v4647 = vadd.f32 0.0, %v4646
        %v4648 = vpop.f32.mrb[0].mxu0
        %4649 = vdwg.mxu0
        %v4650 = vsel %vm3834, %v4210, 0
        %v4652 = vsel %vm3834, %v4211, 0
        %v4654 = vsel %vm3834, %v4212, 0
        %v4656 = vsel %vm3834, %v4213, 0
        %v4658 = vsel %vm3834, %v4214, 0
        %v4660 = vsel %vm3834, %v4215, 0
        %v4662 = vsel %vm3834, %v4216, 0
        %v4664 = vsel %vm3834, %v4217, 0
        %v4666 = vsel %vm3834, %v4218, 0
        %v4668 = vsel %vm3834, %v4219, 0
        %v4670 = vsel %vm3834, %v4220, 0
        %v4672 = vsel %vm3834, %v4221, 0
        %v4674 = vsel %vm3834, %v4222, 0
        %v4676 = vsel %vm3834, %v4223, 0
        %v4678 = vsel %vm3834, %v4224, 0
        %v4680 = vsel %vm3834, %v4225, 0
        %v4683 = vsel %vm4485, %v4226, 0
        %4685 = vmatprep.subr.bf16.mxu0 0
        %4686 = vmatpush1.bf16.msra.mxu0 %v4683
        %4687 = vmatprep.subr.bf16.mxu0 0
        %4688 = vmatpush1.bf16.msra.mxu0 0
        %4689 = vmatprep.subr.bf16.mxu0 0
        %4690 = vmatpush1.bf16.msra.mxu0 0
        %4691 = vmatprep.subr.bf16.mxu0 0
        %4692 = vmatpush1.bf16.msra.mxu0 0
        %4693 = vmatprep.subr.bf16.mxu0 0
        %4694 = vmatpush1.bf16.msra.mxu0 0
        %4695 = vmatprep.subr.bf16.mxu0 0
        %4696 = vmatpush1.bf16.msra.mxu0 0
        %4697 = vmatprep.subr.bf16.mxu0 0
        %4698 = vmatpush1.bf16.msra.mxu0 0
        %4699 = vmatprep.subr.bf16.mxu0 0
        %4700 = vmatpush1.bf16.msra.mxu0 0
        %4701 = vmatprep.subr.bf16.mxu0 0
        %4702 = vmatpush1.bf16.msra.mxu0 0
        %4703 = vmatprep.subr.bf16.mxu0 0
        %4704 = vmatpush1.bf16.msra.mxu0 0
        %4705 = vmatprep.subr.bf16.mxu0 0
        %4706 = vmatpush1.bf16.msra.mxu0 0
        %4707 = vmatprep.subr.bf16.mxu0 0
        %4708 = vmatpush1.bf16.msra.mxu0 0
        %4709 = vmatprep.subr.bf16.mxu0 0
        %4710 = vmatpush1.bf16.msra.mxu0 0
        %4711 = vmatprep.subr.bf16.mxu0 0
        %4712 = vmatpush1.bf16.msra.mxu0 0
        %4713 = vmatprep.subr.bf16.mxu0 0
        %4714 = vmatpush1.bf16.msra.mxu0 0
        %4715 = vmatprep.subr.bf16.mxu0 0
        %4716 = vmatpush1.bf16.msra.mxu0 0
        %4717 = vmatprep.mubr.bf16.mxu0 0
        %4718 = vmatmul.mubr.bf16.gmra.mrb[0].mxu0 %v4650
        %v4719 = vpop.f32.mrb[0].mxu0
        %v4720 = vadd.f32 %v4524, %v4719
        %v4721 = vpop.f32.mrb[0].mxu0
        %v4722 = vpop.f32.mrb[0].mxu0
        %v4723 = vadd.f32 %v4527, %v4722
        %v4724 = vpop.f32.mrb[0].mxu0
        %4725 = vmatprep.mubr.bf16.mxu0 0
        %4726 = vmatmul.mubr.bf16.gmra.mrb[0].mxu0 %v4652
        %v4727 = vpop.f32.mrb[0].mxu0
        %v4728 = vadd.f32 %v4532, %v4727
        %v4729 = vpop.f32.mrb[0].mxu0
        %v4730 = vpop.f32.mrb[0].mxu0
        %v4731 = vadd.f32 %v4535, %v4730
        %v4732 = vpop.f32.mrb[0].mxu0
        %4733 = vmatprep.mubr.bf16.mxu0 0
        %4734 = vmatmul.mubr.bf16.gmra.mrb[0].mxu0 %v4654
        %v4735 = vpop.f32.mrb[0].mxu0
        %v4736 = vadd.f32 %v4540, %v4735
        %v4737 = vpop.f32.mrb[0].mxu0
        %v4738 = vpop.f32.mrb[0].mxu0
        %v4739 = vadd.f32 %v4543, %v4738
        %v4740 = vpop.f32.mrb[0].mxu0
        %4741 = vmatprep.mubr.bf16.mxu0 0
        %4742 = vmatmul.mubr.bf16.gmra.mrb[0].mxu0 %v4656
        %v4743 = vpop.f32.mrb[0].mxu0
        %v4744 = vadd.f32 %v4548, %v4743
        %v4745 = vpop.f32.mrb[0].mxu0
        %v4746 = vpop.f32.mrb[0].mxu0
        %v4747 = vadd.f32 %v4551, %v4746
        %v4748 = vpop.f32.mrb[0].mxu0
        %4749 = vmatprep.mubr.bf16.mxu0 0
        %4750 = vmatmul.mubr.bf16.gmra.mrb[0].mxu0 %v4658
        %v4751 = vpop.f32.mrb[0].mxu0
        %v4752 = vadd.f32 %v4556, %v4751
        %v4753 = vpop.f32.mrb[0].mxu0
        %v4754 = vpop.f32.mrb[0].mxu0
        %v4755 = vadd.f32 %v4559, %v4754
        %v4756 = vpop.f32.mrb[0].mxu0
        %4757 = vmatprep.mubr.bf16.mxu0 0
        %4758 = vmatmul.mubr.bf16.gmra.mrb[0].mxu0 %v4660
        %v4759 = vpop.f32.mrb[0].mxu0
        %v4760 = vadd.f32 %v4564, %v4759
        %v4761 = vpop.f32.mrb[0].mxu0
        %v4762 = vpop.f32.mrb[0].mxu0
        %v4763 = vadd.f32 %v4567, %v4762
        %v4764 = vpop.f32.mrb[0].mxu0
        %4765 = vmatprep.mubr.bf16.mxu0 0
        %4766 = vmatmul.mubr.bf16.gmra.mrb[0].mxu0 %v4662
        %v4767 = vpop.f32.mrb[0].mxu0
        %v4768 = vadd.f32 %v4572, %v4767
        %v4769 = vpop.f32.mrb[0].mxu0
        %v4770 = vpop.f32.mrb[0].mxu0
        %v4771 = vadd.f32 %v4575, %v4770
        %v4772 = vpop.f32.mrb[0].mxu0
        %4773 = vmatprep.mubr.bf16.mxu0 0
        %4774 = vmatmul.mubr.bf16.gmra.mrb[0].mxu0 %v4664
        %v4775 = vpop.f32.mrb[0].mxu0
        %v4776 = vadd.f32 %v4580, %v4775
        %v4777 = vpop.f32.mrb[0].mxu0
        %v4778 = vpop.f32.mrb[0].mxu0
        %v4779 = vadd.f32 %v4583, %v4778
        %v4780 = vpop.f32.mrb[0].mxu0
        %4781 = vmatprep.mubr.bf16.mxu0 0
        %4782 = vmatmul.mubr.bf16.gmra.mrb[0].mxu0 %v4666
        %v4783 = vpop.f32.mrb[0].mxu0
        %v4784 = vadd.f32 %v4588, %v4783
        %v4785 = vpop.f32.mrb[0].mxu0
        %v4786 = vpop.f32.mrb[0].mxu0
        %v4787 = vadd.f32 %v4591, %v4786
        %v4788 = vpop.f32.mrb[0].mxu0
        %4789 = vmatprep.mubr.bf16.mxu0 0
        %4790 = vmatmul.mubr.bf16.gmra.mrb[0].mxu0 %v4668
        %v4791 = vpop.f32.mrb[0].mxu0
        %v4792 = vadd.f32 %v4596, %v4791
        %v4793 = vpop.f32.mrb[0].mxu0
        %v4794 = vpop.f32.mrb[0].mxu0
        %v4795 = vadd.f32 %v4599, %v4794
        %v4796 = vpop.f32.mrb[0].mxu0
        %4797 = vmatprep.mubr.bf16.mxu0 0
        %4798 = vmatmul.mubr.bf16.gmra.mrb[0].mxu0 %v4670
        %v4799 = vpop.f32.mrb[0].mxu0
        %v4800 = vadd.f32 %v4604, %v4799
        %v4801 = vpop.f32.mrb[0].mxu0
        %v4802 = vpop.f32.mrb[0].mxu0
        %v4803 = vadd.f32 %v4607, %v4802
        %v4804 = vpop.f32.mrb[0].mxu0
        %4805 = vmatprep.mubr.bf16.mxu0 0
        %4806 = vmatmul.mubr.bf16.gmra.mrb[0].mxu0 %v4672
        %v4807 = vpop.f32.mrb[0].mxu0
        %v4808 = vadd.f32 %v4612, %v4807
        %v4809 = vpop.f32.mrb[0].mxu0
        %v4810 = vpop.f32.mrb[0].mxu0
        %v4811 = vadd.f32 %v4615, %v4810
        %v4812 = vpop.f32.mrb[0].mxu0
        %4813 = vmatprep.mubr.bf16.mxu0 0
        %4814 = vmatmul.mubr.bf16.gmra.mrb[0].mxu0 %v4674
        %v4815 = vpop.f32.mrb[0].mxu0
        %v4816 = vadd.f32 %v4620, %v4815
        %v4817 = vpop.f32.mrb[0].mxu0
        %v4818 = vpop.f32.mrb[0].mxu0
        %v4819 = vadd.f32 %v4623, %v4818
        %v4820 = vpop.f32.mrb[0].mxu0
        %4821 = vmatprep.mubr.bf16.mxu0 0
        %4822 = vmatmul.mubr.bf16.gmra.mrb[0].mxu0 %v4676
        %v4823 = vpop.f32.mrb[0].mxu0
        %v4824 = vadd.f32 %v4628, %v4823
        %v4825 = vpop.f32.mrb[0].mxu0
        %v4826 = vpop.f32.mrb[0].mxu0
        %v4827 = vadd.f32 %v4631, %v4826
        %v4828 = vpop.f32.mrb[0].mxu0
        %4829 = vmatprep.mubr.bf16.mxu0 0
        %4830 = vmatmul.mubr.bf16.gmra.mrb[0].mxu0 %v4678
        %v4831 = vpop.f32.mrb[0].mxu0
        %v4832 = vadd.f32 %v4636, %v4831
        %v4833 = vpop.f32.mrb[0].mxu0
        %v4834 = vpop.f32.mrb[0].mxu0
        %v4835 = vadd.f32 %v4639, %v4834
        %v4836 = vpop.f32.mrb[0].mxu0
        %4837 = vmatprep.mubr.bf16.mxu0 0
        %4838 = vmatmul.mubr.bf16.gmra.mrb[0].mxu0 %v4680
        %v4839 = vpop.f32.mrb[0].mxu0
        %v4840 = vadd.f32 %v4644, %v4839
        %v4841 = vpop.f32.mrb[0].mxu0
        %v4842 = vpop.f32.mrb[0].mxu0
        %v4843 = vadd.f32 %v4647, %v4842
        %v4844 = vpop.f32.mrb[0].mxu0
        %4845 = vdwg.mxu0
        %v4846 = vld [vmem:[#allocation3] sm:$0xfe]
        %v4847 = vld [vmem:[#allocation3 + $0x10] sm:$0xfe]
        %v4848 = vld [vmem:[#allocation3 + $0x20] sm:$0xfe]
        %v4849 = vld [vmem:[#allocation3 + $0x30] sm:$0xfe]
        %v4850 = vld [vmem:[#allocation3 + $0x40] sm:$0xfe]
        %v4851 = vld [vmem:[#allocation3 + $0x50] sm:$0xfe]
        %v4852 = vld [vmem:[#allocation3 + $0x60] sm:$0xfe]
        %v4853 = vld [vmem:[#allocation3 + $0x70] sm:$0xfe]
        %v4854 = vld [vmem:[#allocation3 + $0x80] sm:$0xfe]
        %v4855 = vld [vmem:[#allocation3 + $0x90] sm:$0xfe]
        %v4856 = vld [vmem:[#allocation3 + $0xa0] sm:$0xfe]
        %v4857 = vld [vmem:[#allocation3 + $0xb0] sm:$0xfe]
        %v4858 = vld [vmem:[#allocation3 + $0xc0] sm:$0xfe]
        %v4859 = vld [vmem:[#allocation3 + $0xd0] sm:$0xfe]
        %v4860 = vld [vmem:[#allocation3 + $0xe0] sm:$0xfe]
        %v4861 = vld [vmem:[#allocation3 + $0xf0] sm:$0xfe]
        %v4894 = vrot.slane %v4846, 1
        %v4895 = vrot.slane %v4227, 1
        %v4896 = vsel %vm1319, %v4894, %v4895
        %v4897 = vrot.slane %v4847, 1
        %v4898 = vrot.slane %v4228, 1
        %v4899 = vsel %vm1319, %v4897, %v4898
        %v4900 = vrot.slane %v4848, 1
        %v4901 = vrot.slane %v4229, 1
        %v4902 = vsel %vm1319, %v4900, %v4901
        %v4903 = vrot.slane %v4849, 1
        %v4904 = vrot.slane %v4230, 1
        %v4905 = vsel %vm1319, %v4903, %v4904
        %v4906 = vrot.slane %v4850, 1
        %v4907 = vrot.slane %v4231, 1
        %v4908 = vsel %vm1319, %v4906, %v4907
        %v4909 = vrot.slane %v4851, 1
        %v4910 = vrot.slane %v4232, 1
        %v4911 = vsel %vm1319, %v4909, %v4910
        %v4912 = vrot.slane %v4852, 1
        %v4913 = vrot.slane %v4233, 1
        %v4914 = vsel %vm1319, %v4912, %v4913
        %v4915 = vrot.slane %v4853, 1
        %v4916 = vrot.slane %v4234, 1
        %v4917 = vsel %vm1319, %v4915, %v4916
        %v4918 = vrot.slane %v4854, 1
        %v4919 = vrot.slane %v4235, 1
        %v4920 = vsel %vm1319, %v4918, %v4919
        %v4921 = vrot.slane %v4855, 1
        %v4922 = vrot.slane %v4236, 1
        %v4923 = vsel %vm1319, %v4921, %v4922
        %v4924 = vrot.slane %v4856, 1
        %v4925 = vrot.slane %v4237, 1
        %v4926 = vsel %vm1319, %v4924, %v4925
        %v4927 = vrot.slane %v4857, 1
        %v4928 = vrot.slane %v4238, 1
        %v4929 = vsel %vm1319, %v4927, %v4928
        %v4930 = vrot.slane %v4858, 1
        %v4931 = vrot.slane %v4239, 1
        %v4932 = vsel %vm1319, %v4930, %v4931
        %v4933 = vrot.slane %v4859, 1
        %v4934 = vrot.slane %v4240, 1
        %v4935 = vsel %vm1319, %v4933, %v4934
        %v4936 = vrot.slane %v4860, 1
        %v4937 = vrot.slane %v4241, 1
        %v4938 = vsel %vm1319, %v4936, %v4937
        %v4939 = vrot.slane %v4861, 1
        %v4940 = vrot.slane %v4242, 1
        %v4941 = vsel %vm1319, %v4939, %v4940
        %s4942 = scalar_lea.vmem %s3, 8
        %v4943 = vld [vmem:[%s4942] sm:$0xf]
        %v4945 = vsel %vm3834, %v4896, 0
        %v4948 = vsel %vm3834, %v4899, 0
        %v4951 = vsel %vm3834, %v4902, 0
        %v4954 = vsel %vm3834, %v4905, 0
        %v4957 = vsel %vm3834, %v4908, 0
        %v4960 = vsel %vm3834, %v4911, 0
        %v4963 = vsel %vm3834, %v4914, 0
        %v4966 = vsel %vm3834, %v4917, 0
        %v4969 = vsel %vm3834, %v4920, 0
        %v4972 = vsel %vm3834, %v4923, 0
        %v4975 = vsel %vm3834, %v4926, 0
        %v4978 = vsel %vm3834, %v4929, 0
        %v4981 = vsel %vm3834, %v4932, 0
        %v4984 = vsel %vm3834, %v4935, 0
        %v4987 = vsel %vm3834, %v4938, 0
        %v4990 = vsel %vm3834, %v4941, 0
        %v4993 = vsel %vm4485, %v4943, 0
        %4995 = vmatprep.subr.bf16.mxu0 0
        %4996 = vmatpush1.bf16.msra.mxu0 %v4993
        %4997 = vmatprep.subr.bf16.mxu0 0
        %4998 = vmatpush1.bf16.msra.mxu0 0
        %4999 = vmatprep.subr.bf16.mxu0 0
        %5000 = vmatpush1.bf16.msra.mxu0 0
        %5001 = vmatprep.subr.bf16.mxu0 0
        %5002 = vmatpush1.bf16.msra.mxu0 0
        %5003 = vmatprep.subr.bf16.mxu0 0
        %5004 = vmatpush1.bf16.msra.mxu0 0
        %5005 = vmatprep.subr.bf16.mxu0 0
        %5006 = vmatpush1.bf16.msra.mxu0 0
        %5007 = vmatprep.subr.bf16.mxu0 0
        %5008 = vmatpush1.bf16.msra.mxu0 0
        %5009 = vmatprep.subr.bf16.mxu0 0
        %5010 = vmatpush1.bf16.msra.mxu0 0
        %5011 = vmatprep.subr.bf16.mxu0 0
        %5012 = vmatpush1.bf16.msra.mxu0 0
        %5013 = vmatprep.subr.bf16.mxu0 0
        %5014 = vmatpush1.bf16.msra.mxu0 0
        %5015 = vmatprep.subr.bf16.mxu0 0
        %5016 = vmatpush1.bf16.msra.mxu0 0
        %5017 = vmatprep.subr.bf16.mxu0 0
        %5018 = vmatpush1.bf16.msra.mxu0 0
        %5019 = vmatprep.subr.bf16.mxu0 0
        %5020 = vmatpush1.bf16.msra.mxu0 0
        %5021 = vmatprep.subr.bf16.mxu0 0
        %5022 = vmatpush1.bf16.msra.mxu0 0
        %5023 = vmatprep.subr.bf16.mxu0 0
        %5024 = vmatpush1.bf16.msra.mxu0 0
        %5025 = vmatprep.subr.bf16.mxu0 0
        %5026 = vmatpush1.bf16.msra.mxu0 0
        %5027 = vmatprep.mubr.bf16.mxu0 0
        %5028 = vmatmul.mubr.bf16.gmra.mrb[0].mxu0 %v4945
        %v5029 = vpop.f32.mrb[0].mxu0
        %v5030 = vadd.f32 0.0, %v5029
        %v5031 = vpop.f32.mrb[0].mxu0
        %v5032 = vpop.f32.mrb[0].mxu0
        %v5033 = vadd.f32 0.0, %v5032
        %v5034 = vpop.f32.mrb[0].mxu0
        %5035 = vmatprep.mubr.bf16.mxu0 0
        %5036 = vmatmul.mubr.bf16.gmra.mrb[0].mxu0 %v4948
        %v5037 = vpop.f32.mrb[0].mxu0
        %v5038 = vadd.f32 0.0, %v5037
        %v5039 = vpop.f32.mrb[0].mxu0
        %v5040 = vpop.f32.mrb[0].mxu0
        %v5041 = vadd.f32 0.0, %v5040
        %v5042 = vpop.f32.mrb[0].mxu0
        %5043 = vmatprep.mubr.bf16.mxu0 0
        %5044 = vmatmul.mubr.bf16.gmra.mrb[0].mxu0 %v4951
        %v5045 = vpop.f32.mrb[0].mxu0
        %v5046 = vadd.f32 0.0, %v5045
        %v5047 = vpop.f32.mrb[0].mxu0
        %v5048 = vpop.f32.mrb[0].mxu0
        %v5049 = vadd.f32 0.0, %v5048
        %v5050 = vpop.f32.mrb[0].mxu0
        %5051 = vmatprep.mubr.bf16.mxu0 0
        %5052 = vmatmul.mubr.bf16.gmra.mrb[0].mxu0 %v4954
        %v5053 = vpop.f32.mrb[0].mxu0
        %v5054 = vadd.f32 0.0, %v5053
        %v5055 = vpop.f32.mrb[0].mxu0
        %v5056 = vpop.f32.mrb[0].mxu0
        %v5057 = vadd.f32 0.0, %v5056
        %v5058 = vpop.f32.mrb[0].mxu0
        %5059 = vmatprep.mubr.bf16.mxu0 0
        %5060 = vmatmul.mubr.bf16.gmra.mrb[0].mxu0 %v4957
        %v5061 = vpop.f32.mrb[0].mxu0
        %v5062 = vadd.f32 0.0, %v5061
        %v5063 = vpop.f32.mrb[0].mxu0
        %v5064 = vpop.f32.mrb[0].mxu0
        %v5065 = vadd.f32 0.0, %v5064
        %v5066 = vpop.f32.mrb[0].mxu0
        %5067 = vmatprep.mubr.bf16.mxu0 0
        %5068 = vmatmul.mubr.bf16.gmra.mrb[0].mxu0 %v4960
        %v5069 = vpop.f32.mrb[0].mxu0
        %v5070 = vadd.f32 0.0, %v5069
        %v5071 = vpop.f32.mrb[0].mxu0
        %v5072 = vpop.f32.mrb[0].mxu0
        %v5073 = vadd.f32 0.0, %v5072
        %v5074 = vpop.f32.mrb[0].mxu0
        %5075 = vmatprep.mubr.bf16.mxu0 0
        %5076 = vmatmul.mubr.bf16.gmra.mrb[0].mxu0 %v4963
        %v5077 = vpop.f32.mrb[0].mxu0
        %v5078 = vadd.f32 0.0, %v5077
        %v5079 = vpop.f32.mrb[0].mxu0
        %v5080 = vpop.f32.mrb[0].mxu0
        %v5081 = vadd.f32 0.0, %v5080
        %v5082 = vpop.f32.mrb[0].mxu0
        %5083 = vmatprep.mubr.bf16.mxu0 0
        %5084 = vmatmul.mubr.bf16.gmra.mrb[0].mxu0 %v4966
        %v5085 = vpop.f32.mrb[0].mxu0
        %v5086 = vadd.f32 0.0, %v5085
        %v5087 = vpop.f32.mrb[0].mxu0
        %v5088 = vpop.f32.mrb[0].mxu0
        %v5089 = vadd.f32 0.0, %v5088
        %v5090 = vpop.f32.mrb[0].mxu0
        %5091 = vmatprep.mubr.bf16.mxu0 0
        %5092 = vmatmul.mubr.bf16.gmra.mrb[0].mxu0 %v4969
        %v5093 = vpop.f32.mrb[0].mxu0
        %v5094 = vadd.f32 0.0, %v5093
        %v5095 = vpop.f32.mrb[0].mxu0
        %v5096 = vpop.f32.mrb[0].mxu0
        %v5097 = vadd.f32 0.0, %v5096
        %v5098 = vpop.f32.mrb[0].mxu0
        %5099 = vmatprep.mubr.bf16.mxu0 0
        %5100 = vmatmul.mubr.bf16.gmra.mrb[0].mxu0 %v4972
        %v5101 = vpop.f32.mrb[0].mxu0
        %v5102 = vadd.f32 0.0, %v5101
        %v5103 = vpop.f32.mrb[0].mxu0
        %v5104 = vpop.f32.mrb[0].mxu0
        %v5105 = vadd.f32 0.0, %v5104
        %v5106 = vpop.f32.mrb[0].mxu0
        %5107 = vmatprep.mubr.bf16.mxu0 0
        %5108 = vmatmul.mubr.bf16.gmra.mrb[0].mxu0 %v4975
        %v5109 = vpop.f32.mrb[0].mxu0
        %v5110 = vadd.f32 0.0, %v5109
        %v5111 = vpop.f32.mrb[0].mxu0
        %v5112 = vpop.f32.mrb[0].mxu0
        %v5113 = vadd.f32 0.0, %v5112
        %v5114 = vpop.f32.mrb[0].mxu0
        %5115 = vmatprep.mubr.bf16.mxu0 0
        %5116 = vmatmul.mubr.bf16.gmra.mrb[0].mxu0 %v4978
        %v5117 = vpop.f32.mrb[0].mxu0
        %v5118 = vadd.f32 0.0, %v5117
        %v5119 = vpop.f32.mrb[0].mxu0
        %v5120 = vpop.f32.mrb[0].mxu0
        %v5121 = vadd.f32 0.0, %v5120
        %v5122 = vpop.f32.mrb[0].mxu0
        %5123 = vmatprep.mubr.bf16.mxu0 0
        %5124 = vmatmul.mubr.bf16.gmra.mrb[0].mxu0 %v4981
        %v5125 = vpop.f32.mrb[0].mxu0
        %v5126 = vadd.f32 0.0, %v5125
        %v5127 = vpop.f32.mrb[0].mxu0
        %v5128 = vpop.f32.mrb[0].mxu0
        %v5129 = vadd.f32 0.0, %v5128
        %v5130 = vpop.f32.mrb[0].mxu0
        %5131 = vmatprep.mubr.bf16.mxu0 0
        %5132 = vmatmul.mubr.bf16.gmra.mrb[0].mxu0 %v4984
        %v5133 = vpop.f32.mrb[0].mxu0
        %v5134 = vadd.f32 0.0, %v5133
        %v5135 = vpop.f32.mrb[0].mxu0
        %v5136 = vpop.f32.mrb[0].mxu0
        %v5137 = vadd.f32 0.0, %v5136
        %v5138 = vpop.f32.mrb[0].mxu0
        %5139 = vmatprep.mubr.bf16.mxu0 0
        %5140 = vmatmul.mubr.bf16.gmra.mrb[0].mxu0 %v4987
        %v5141 = vpop.f32.mrb[0].mxu0
        %v5142 = vadd.f32 0.0, %v5141
        %v5143 = vpop.f32.mrb[0].mxu0
        %v5144 = vpop.f32.mrb[0].mxu0
        %v5145 = vadd.f32 0.0, %v5144
        %v5146 = vpop.f32.mrb[0].mxu0
        %5147 = vmatprep.mubr.bf16.mxu0 0
        %5148 = vmatmul.mubr.bf16.gmra.mrb[0].mxu0 %v4990
        %v5149 = vpop.f32.mrb[0].mxu0
        %v5150 = vadd.f32 0.0, %v5149
        %v5151 = vpop.f32.mrb[0].mxu0
        %v5152 = vpop.f32.mrb[0].mxu0
        %v5153 = vadd.f32 0.0, %v5152
        %v5154 = vpop.f32.mrb[0].mxu0
        %5155 = vdwg.mxu0
        %v5156 = vadd.f32 %v4720, %v5030
        %v5157 = vadd.f32 %v4723, %v5033
        %v5158 = vadd.f32 %v4728, %v5038
        %v5159 = vadd.f32 %v4731, %v5041
        %v5160 = vadd.f32 %v4736, %v5046
        %v5161 = vadd.f32 %v4739, %v5049
        %v5162 = vadd.f32 %v4744, %v5054
        %v5163 = vadd.f32 %v4747, %v5057
        %v5164 = vadd.f32 %v4752, %v5062
        %v5165 = vadd.f32 %v4755, %v5065
        %v5166 = vadd.f32 %v4760, %v5070
        %v5167 = vadd.f32 %v4763, %v5073
        %v5168 = vadd.f32 %v4768, %v5078
        %v5169 = vadd.f32 %v4771, %v5081
        %v5170 = vadd.f32 %v4776, %v5086
        %v5171 = vadd.f32 %v4779, %v5089
        %v5172 = vadd.f32 %v4784, %v5094
        %v5173 = vadd.f32 %v4787, %v5097
        %v5174 = vadd.f32 %v4792, %v5102
        %v5175 = vadd.f32 %v4795, %v5105
        %v5176 = vadd.f32 %v4800, %v5110
        %v5177 = vadd.f32 %v4803, %v5113
        %v5178 = vadd.f32 %v4808, %v5118
        %v5179 = vadd.f32 %v4811, %v5121
        %v5180 = vadd.f32 %v4816, %v5126
        %v5181 = vadd.f32 %v4819, %v5129
        %v5182 = vadd.f32 %v4824, %v5134
        %v5183 = vadd.f32 %v4827, %v5137
        %v5184 = vadd.f32 %v4832, %v5142
        %v5185 = vadd.f32 %v4835, %v5145
        %v5186 = vadd.f32 %v4840, %v5150
        %v5187 = vadd.f32 %v4843, %v5153
        %v5188 = vld [vmem:[%s4111] sm:$0xff]
        %v5189 = vld [vmem:[%s4111 + $0x10] sm:$0xff]
        %v5190 = vld [vmem:[%s4111 + $0x20] sm:$0xff]
        %v5191 = vld [vmem:[%s4111 + $0x30] sm:$0xff]
        %v5192 = vld [vmem:[%s4111 + $0x40] sm:$0xff]
        %v5193 = vld [vmem:[%s4111 + $0x50] sm:$0xff]
        %v5194 = vld [vmem:[%s4111 + $0x60] sm:$0xff]
        %v5195 = vld [vmem:[%s4111 + $0x70] sm:$0xff]
        %v5196 = vld [vmem:[%s4111 + $0x80] sm:$0xff]
        %v5197 = vld [vmem:[%s4111 + $0x90] sm:$0xff]
        %v5198 = vld [vmem:[%s4111 + $0xa0] sm:$0xff]
        %v5199 = vld [vmem:[%s4111 + $0xb0] sm:$0xff]
        %v5200 = vld [vmem:[%s4111 + $0xc0] sm:$0xff]
        %v5201 = vld [vmem:[%s4111 + $0xd0] sm:$0xff]
        %v5202 = vld [vmem:[%s4111 + $0xe0] sm:$0xff]
        %v5203 = vld [vmem:[%s4111 + $0xf0] sm:$0xff]
        %s5204 = scalar_lea.vmem %s3, 12
        %v5205 = vld [vmem:[%s5204] sm:$0xf]
        %v5207 = vsel %vm3834, %v5188, 0
        %v5210 = vsel %vm3834, %v5189, 0
        %v5213 = vsel %vm3834, %v5190, 0
        %v5216 = vsel %vm3834, %v5191, 0
        %v5219 = vsel %vm3834, %v5192, 0
        %v5222 = vsel %vm3834, %v5193, 0
        %v5225 = vsel %vm3834, %v5194, 0
        %v5228 = vsel %vm3834, %v5195, 0
        %v5231 = vsel %vm3834, %v5196, 0
        %v5234 = vsel %vm3834, %v5197, 0
        %v5237 = vsel %vm3834, %v5198, 0
        %v5240 = vsel %vm3834, %v5199, 0
        %v5243 = vsel %vm3834, %v5200, 0
        %v5246 = vsel %vm3834, %v5201, 0
        %v5249 = vsel %vm3834, %v5202, 0
        %v5252 = vsel %vm3834, %v5203, 0
        %v5255 = vsel %vm4485, %v5205, 0
        %5257 = vmatprep.subr.bf16.mxu0 0
        %5258 = vmatpush1.bf16.msra.mxu0 %v5255
        %5259 = vmatprep.subr.bf16.mxu0 0
        %5260 = vmatpush1.bf16.msra.mxu0 0
        %5261 = vmatprep.subr.bf16.mxu0 0
        %5262 = vmatpush1.bf16.msra.mxu0 0
        %5263 = vmatprep.subr.bf16.mxu0 0
        %5264 = vmatpush1.bf16.msra.mxu0 0
        %5265 = vmatprep.subr.bf16.mxu0 0
        %5266 = vmatpush1.bf16.msra.mxu0 0
        %5267 = vmatprep.subr.bf16.mxu0 0
        %5268 = vmatpush1.bf16.msra.mxu0 0
        %5269 = vmatprep.subr.bf16.mxu0 0
        %5270 = vmatpush1.bf16.msra.mxu0 0
        %5271 = vmatprep.subr.bf16.mxu0 0
        %5272 = vmatpush1.bf16.msra.mxu0 0
        %5273 = vmatprep.subr.bf16.mxu0 0
        %5274 = vmatpush1.bf16.msra.mxu0 0
        %5275 = vmatprep.subr.bf16.mxu0 0
        %5276 = vmatpush1.bf16.msra.mxu0 0
        %5277 = vmatprep.subr.bf16.mxu0 0
        %5278 = vmatpush1.bf16.msra.mxu0 0
        %5279 = vmatprep.subr.bf16.mxu0 0
        %5280 = vmatpush1.bf16.msra.mxu0 0
        %5281 = vmatprep.subr.bf16.mxu0 0
        %5282 = vmatpush1.bf16.msra.mxu0 0
        %5283 = vmatprep.subr.bf16.mxu0 0
        %5284 = vmatpush1.bf16.msra.mxu0 0
        %5285 = vmatprep.subr.bf16.mxu0 0
        %5286 = vmatpush1.bf16.msra.mxu0 0
        %5287 = vmatprep.subr.bf16.mxu0 0
        %5288 = vmatpush1.bf16.msra.mxu0 0
        %5289 = vmatprep.mubr.bf16.mxu0 0
        %5290 = vmatmul.mubr.bf16.gmra.mrb[0].mxu0 %v5207
        %v5291 = vpop.f32.mrb[0].mxu0
        %v5292 = vadd.f32 0.0, %v5291
        %v5293 = vpop.f32.mrb[0].mxu0
        %v5294 = vpop.f32.mrb[0].mxu0
        %v5295 = vadd.f32 0.0, %v5294
        %v5296 = vpop.f32.mrb[0].mxu0
        %5297 = vmatprep.mubr.bf16.mxu0 0
        %5298 = vmatmul.mubr.bf16.gmra.mrb[0].mxu0 %v5210
        %v5299 = vpop.f32.mrb[0].mxu0
        %v5300 = vadd.f32 0.0, %v5299
        %v5301 = vpop.f32.mrb[0].mxu0
        %v5302 = vpop.f32.mrb[0].mxu0
        %v5303 = vadd.f32 0.0, %v5302
        %v5304 = vpop.f32.mrb[0].mxu0
        %5305 = vmatprep.mubr.bf16.mxu0 0
        %5306 = vmatmul.mubr.bf16.gmra.mrb[0].mxu0 %v5213
        %v5307 = vpop.f32.mrb[0].mxu0
        %v5308 = vadd.f32 0.0, %v5307
        %v5309 = vpop.f32.mrb[0].mxu0
        %v5310 = vpop.f32.mrb[0].mxu0
        %v5311 = vadd.f32 0.0, %v5310
        %v5312 = vpop.f32.mrb[0].mxu0
        %5313 = vmatprep.mubr.bf16.mxu0 0
        %5314 = vmatmul.mubr.bf16.gmra.mrb[0].mxu0 %v5216
        %v5315 = vpop.f32.mrb[0].mxu0
        %v5316 = vadd.f32 0.0, %v5315
        %v5317 = vpop.f32.mrb[0].mxu0
        %v5318 = vpop.f32.mrb[0].mxu0
        %v5319 = vadd.f32 0.0, %v5318
        %v5320 = vpop.f32.mrb[0].mxu0
        %5321 = vmatprep.mubr.bf16.mxu0 0
        %5322 = vmatmul.mubr.bf16.gmra.mrb[0].mxu0 %v5219
        %v5323 = vpop.f32.mrb[0].mxu0
        %v5324 = vadd.f32 0.0, %v5323
        %v5325 = vpop.f32.mrb[0].mxu0
        %v5326 = vpop.f32.mrb[0].mxu0
        %v5327 = vadd.f32 0.0, %v5326
        %v5328 = vpop.f32.mrb[0].mxu0
        %5329 = vmatprep.mubr.bf16.mxu0 0
        %5330 = vmatmul.mubr.bf16.gmra.mrb[0].mxu0 %v5222
        %v5331 = vpop.f32.mrb[0].mxu0
        %v5332 = vadd.f32 0.0, %v5331
        %v5333 = vpop.f32.mrb[0].mxu0
        %v5334 = vpop.f32.mrb[0].mxu0
        %v5335 = vadd.f32 0.0, %v5334
        %v5336 = vpop.f32.mrb[0].mxu0
        %5337 = vmatprep.mubr.bf16.mxu0 0
        %5338 = vmatmul.mubr.bf16.gmra.mrb[0].mxu0 %v5225
        %v5339 = vpop.f32.mrb[0].mxu0
        %v5340 = vadd.f32 0.0, %v5339
        %v5341 = vpop.f32.mrb[0].mxu0
        %v5342 = vpop.f32.mrb[0].mxu0
        %v5343 = vadd.f32 0.0, %v5342
        %v5344 = vpop.f32.mrb[0].mxu0
        %5345 = vmatprep.mubr.bf16.mxu0 0
        %5346 = vmatmul.mubr.bf16.gmra.mrb[0].mxu0 %v5228
        %v5347 = vpop.f32.mrb[0].mxu0
        %v5348 = vadd.f32 0.0, %v5347
        %v5349 = vpop.f32.mrb[0].mxu0
        %v5350 = vpop.f32.mrb[0].mxu0
        %v5351 = vadd.f32 0.0, %v5350
        %v5352 = vpop.f32.mrb[0].mxu0
        %5353 = vmatprep.mubr.bf16.mxu0 0
        %5354 = vmatmul.mubr.bf16.gmra.mrb[0].mxu0 %v5231
        %v5355 = vpop.f32.mrb[0].mxu0
        %v5356 = vadd.f32 0.0, %v5355
        %v5357 = vpop.f32.mrb[0].mxu0
        %v5358 = vpop.f32.mrb[0].mxu0
        %v5359 = vadd.f32 0.0, %v5358
        %v5360 = vpop.f32.mrb[0].mxu0
        %5361 = vmatprep.mubr.bf16.mxu0 0
        %5362 = vmatmul.mubr.bf16.gmra.mrb[0].mxu0 %v5234
        %v5363 = vpop.f32.mrb[0].mxu0
        %v5364 = vadd.f32 0.0, %v5363
        %v5365 = vpop.f32.mrb[0].mxu0
        %v5366 = vpop.f32.mrb[0].mxu0
        %v5367 = vadd.f32 0.0, %v5366
        %v5368 = vpop.f32.mrb[0].mxu0
        %5369 = vmatprep.mubr.bf16.mxu0 0
        %5370 = vmatmul.mubr.bf16.gmra.mrb[0].mxu0 %v5237
        %v5371 = vpop.f32.mrb[0].mxu0
        %v5372 = vadd.f32 0.0, %v5371
        %v5373 = vpop.f32.mrb[0].mxu0
        %v5374 = vpop.f32.mrb[0].mxu0
        %v5375 = vadd.f32 0.0, %v5374
        %v5376 = vpop.f32.mrb[0].mxu0
        %5377 = vmatprep.mubr.bf16.mxu0 0
        %5378 = vmatmul.mubr.bf16.gmra.mrb[0].mxu0 %v5240
        %v5379 = vpop.f32.mrb[0].mxu0
        %v5380 = vadd.f32 0.0, %v5379
        %v5381 = vpop.f32.mrb[0].mxu0
        %v5382 = vpop.f32.mrb[0].mxu0
        %v5383 = vadd.f32 0.0, %v5382
        %v5384 = vpop.f32.mrb[0].mxu0
        %5385 = vmatprep.mubr.bf16.mxu0 0
        %5386 = vmatmul.mubr.bf16.gmra.mrb[0].mxu0 %v5243
        %v5387 = vpop.f32.mrb[0].mxu0
        %v5388 = vadd.f32 0.0, %v5387
        %v5389 = vpop.f32.mrb[0].mxu0
        %v5390 = vpop.f32.mrb[0].mxu0
        %v5391 = vadd.f32 0.0, %v5390
        %v5392 = vpop.f32.mrb[0].mxu0
        %5393 = vmatprep.mubr.bf16.mxu0 0
        %5394 = vmatmul.mubr.bf16.gmra.mrb[0].mxu0 %v5246
        %v5395 = vpop.f32.mrb[0].mxu0
        %v5396 = vadd.f32 0.0, %v5395
        %v5397 = vpop.f32.mrb[0].mxu0
        %v5398 = vpop.f32.mrb[0].mxu0
        %v5399 = vadd.f32 0.0, %v5398
        %v5400 = vpop.f32.mrb[0].mxu0
        %5401 = vmatprep.mubr.bf16.mxu0 0
        %5402 = vmatmul.mubr.bf16.gmra.mrb[0].mxu0 %v5249
        %v5403 = vpop.f32.mrb[0].mxu0
        %v5404 = vadd.f32 0.0, %v5403
        %v5405 = vpop.f32.mrb[0].mxu0
        %v5406 = vpop.f32.mrb[0].mxu0
        %v5407 = vadd.f32 0.0, %v5406
        %v5408 = vpop.f32.mrb[0].mxu0
        %5409 = vmatprep.mubr.bf16.mxu0 0
        %5410 = vmatmul.mubr.bf16.gmra.mrb[0].mxu0 %v5252
        %v5411 = vpop.f32.mrb[0].mxu0
        %v5412 = vadd.f32 0.0, %v5411
        %v5413 = vpop.f32.mrb[0].mxu0
        %v5414 = vpop.f32.mrb[0].mxu0
        %v5415 = vadd.f32 0.0, %v5414
        %v5416 = vpop.f32.mrb[0].mxu0
        %5417 = vdwg.mxu0
        %v5418 = vadd.f32 %v5156, %v5292
        %v5419 = vadd.f32 %v5157, %v5295
        %v5420 = vadd.f32 %v5158, %v5300
        %v5421 = vadd.f32 %v5159, %v5303
        %v5422 = vadd.f32 %v5160, %v5308
        %v5423 = vadd.f32 %v5161, %v5311
        %v5424 = vadd.f32 %v5162, %v5316
        %v5425 = vadd.f32 %v5163, %v5319
        %v5426 = vadd.f32 %v5164, %v5324
        %v5427 = vadd.f32 %v5165, %v5327
        %v5428 = vadd.f32 %v5166, %v5332
        %v5429 = vadd.f32 %v5167, %v5335
        %v5430 = vadd.f32 %v5168, %v5340
        %v5431 = vadd.f32 %v5169, %v5343
        %v5432 = vadd.f32 %v5170, %v5348
        %v5433 = vadd.f32 %v5171, %v5351
        %v5434 = vadd.f32 %v5172, %v5356
        %v5435 = vadd.f32 %v5173, %v5359
        %v5436 = vadd.f32 %v5174, %v5364
        %v5437 = vadd.f32 %v5175, %v5367
        %v5438 = vadd.f32 %v5176, %v5372
        %v5439 = vadd.f32 %v5177, %v5375
        %v5440 = vadd.f32 %v5178, %v5380
        %v5441 = vadd.f32 %v5179, %v5383
        %v5442 = vadd.f32 %v5180, %v5388
        %v5443 = vadd.f32 %v5181, %v5391
        %v5444 = vadd.f32 %v5182, %v5396
        %v5445 = vadd.f32 %v5183, %v5399
        %v5446 = vadd.f32 %v5184, %v5404
        %v5447 = vadd.f32 %v5185, %v5407
        %v5448 = vadd.f32 %v5186, %v5412
        %v5449 = vadd.f32 %v5187, %v5415
        %v5450 = vld [vmem:[%s4111] sm:$0xff]
        %v5451 = vld [vmem:[%s4111 + $0x8] sm:$0x1]
        %v5452 = vld [vmem:[%s4111 + $0x10] sm:$0xff]
        %v5453 = vld [vmem:[%s4111 + $0x18] sm:$0x1]
        %v5454 = vld [vmem:[%s4111 + $0x20] sm:$0xff]
        %v5455 = vld [vmem:[%s4111 + $0x28] sm:$0x1]
        %v5456 = vld [vmem:[%s4111 + $0x30] sm:$0xff]
        %v5457 = vld [vmem:[%s4111 + $0x38] sm:$0x1]
        %v5458 = vld [vmem:[%s4111 + $0x40] sm:$0xff]
        %v5459 = vld [vmem:[%s4111 + $0x48] sm:$0x1]
        %v5460 = vld [vmem:[%s4111 + $0x50] sm:$0xff]
        %v5461 = vld [vmem:[%s4111 + $0x58] sm:$0x1]
        %v5462 = vld [vmem:[%s4111 + $0x60] sm:$0xff]
        %v5463 = vld [vmem:[%s4111 + $0x68] sm:$0x1]
        %v5464 = vld [vmem:[%s4111 + $0x70] sm:$0xff]
        %v5465 = vld [vmem:[%s4111 + $0x78] sm:$0x1]
        %v5466 = vld [vmem:[%s4111 + $0x80] sm:$0xff]
        %v5467 = vld [vmem:[%s4111 + $0x88] sm:$0x1]
        %v5468 = vld [vmem:[%s4111 + $0x90] sm:$0xff]
        %v5469 = vld [vmem:[%s4111 + $0x98] sm:$0x1]
        %v5470 = vld [vmem:[%s4111 + $0xa0] sm:$0xff]
        %v5471 = vld [vmem:[%s4111 + $0xa8] sm:$0x1]
        %v5472 = vld [vmem:[%s4111 + $0xb0] sm:$0xff]
        %v5473 = vld [vmem:[%s4111 + $0xb8] sm:$0x1]
        %v5474 = vld [vmem:[%s4111 + $0xc0] sm:$0xff]
        %v5475 = vld [vmem:[%s4111 + $0xc8] sm:$0x1]
        %v5476 = vld [vmem:[%s4111 + $0xd0] sm:$0xff]
        %v5477 = vld [vmem:[%s4111 + $0xd8] sm:$0x1]
        %v5478 = vld [vmem:[%s4111 + $0xe0] sm:$0xff]
        %v5479 = vld [vmem:[%s4111 + $0xe8] sm:$0x1]
        %v5480 = vld [vmem:[%s4111 + $0xf0] sm:$0xff]
        %v5481 = vld [vmem:[%s4111 + $0xf8] sm:$0x1]
        %v5483 = vshrl.u32 %v5450, 16
        %v5485 = vshll.u32 %v5450, 16
        %v5487 = vrot.slane %v5485, 1
        %v5488 = vor.u32 %v5483, %v5487
        %v5490 = vshll.u32 %v5451, 16
        %v5492 = vrot.slane %v5490, 1
        %v5493 = vsel %vm667, %v5488, %v5492
        %v5495 = vshrl.u32 %v5452, 16
        %v5497 = vshll.u32 %v5452, 16
        %v5499 = vrot.slane %v5497, 1
        %v5500 = vor.u32 %v5495, %v5499
        %v5502 = vshll.u32 %v5453, 16
        %v5504 = vrot.slane %v5502, 1
        %v5505 = vsel %vm667, %v5500, %v5504
        %v5507 = vshrl.u32 %v5454, 16
        %v5509 = vshll.u32 %v5454, 16
        %v5511 = vrot.slane %v5509, 1
        %v5512 = vor.u32 %v5507, %v5511
        %v5514 = vshll.u32 %v5455, 16
        %v5516 = vrot.slane %v5514, 1
        %v5517 = vsel %vm667, %v5512, %v5516
        %v5519 = vshrl.u32 %v5456, 16
        %v5521 = vshll.u32 %v5456, 16
        %v5523 = vrot.slane %v5521, 1
        %v5524 = vor.u32 %v5519, %v5523
        %v5526 = vshll.u32 %v5457, 16
        %v5528 = vrot.slane %v5526, 1
        %v5529 = vsel %vm667, %v5524, %v5528
        %v5531 = vshrl.u32 %v5458, 16
        %v5533 = vshll.u32 %v5458, 16
        %v5535 = vrot.slane %v5533, 1
        %v5536 = vor.u32 %v5531, %v5535
        %v5538 = vshll.u32 %v5459, 16
        %v5540 = vrot.slane %v5538, 1
        %v5541 = vsel %vm667, %v5536, %v5540
        %v5543 = vshrl.u32 %v5460, 16
        %v5545 = vshll.u32 %v5460, 16
        %v5547 = vrot.slane %v5545, 1
        %v5548 = vor.u32 %v5543, %v5547
        %v5550 = vshll.u32 %v5461, 16
        %v5552 = vrot.slane %v5550, 1
        %v5553 = vsel %vm667, %v5548, %v5552
        %v5555 = vshrl.u32 %v5462, 16
        %v5557 = vshll.u32 %v5462, 16
        %v5559 = vrot.slane %v5557, 1
        %v5560 = vor.u32 %v5555, %v5559
        %v5562 = vshll.u32 %v5463, 16
        %v5564 = vrot.slane %v5562, 1
        %v5565 = vsel %vm667, %v5560, %v5564
        %v5567 = vshrl.u32 %v5464, 16
        %v5569 = vshll.u32 %v5464, 16
        %v5571 = vrot.slane %v5569, 1
        %v5572 = vor.u32 %v5567, %v5571
        %v5574 = vshll.u32 %v5465, 16
        %v5576 = vrot.slane %v5574, 1
        %v5577 = vsel %vm667, %v5572, %v5576
        %v5579 = vshrl.u32 %v5466, 16
        %v5581 = vshll.u32 %v5466, 16
        %v5583 = vrot.slane %v5581, 1
        %v5584 = vor.u32 %v5579, %v5583
        %v5586 = vshll.u32 %v5467, 16
        %v5588 = vrot.slane %v5586, 1
        %v5589 = vsel %vm667, %v5584, %v5588
        %v5591 = vshrl.u32 %v5468, 16
        %v5593 = vshll.u32 %v5468, 16
        %v5595 = vrot.slane %v5593, 1
        %v5596 = vor.u32 %v5591, %v5595
        %v5598 = vshll.u32 %v5469, 16
        %v5600 = vrot.slane %v5598, 1
        %v5601 = vsel %vm667, %v5596, %v5600
        %v5603 = vshrl.u32 %v5470, 16
        %v5605 = vshll.u32 %v5470, 16
        %v5607 = vrot.slane %v5605, 1
        %v5608 = vor.u32 %v5603, %v5607
        %v5610 = vshll.u32 %v5471, 16
        %v5612 = vrot.slane %v5610, 1
        %v5613 = vsel %vm667, %v5608, %v5612
        %v5615 = vshrl.u32 %v5472, 16
        %v5617 = vshll.u32 %v5472, 16
        %v5619 = vrot.slane %v5617, 1
        %v5620 = vor.u32 %v5615, %v5619
        %v5622 = vshll.u32 %v5473, 16
        %v5624 = vrot.slane %v5622, 1
        %v5625 = vsel %vm667, %v5620, %v5624
        %v5627 = vshrl.u32 %v5474, 16
        %v5629 = vshll.u32 %v5474, 16
        %v5631 = vrot.slane %v5629, 1
        %v5632 = vor.u32 %v5627, %v5631
        %v5634 = vshll.u32 %v5475, 16
        %v5636 = vrot.slane %v5634, 1
        %v5637 = vsel %vm667, %v5632, %v5636
        %v5639 = vshrl.u32 %v5476, 16
        %v5641 = vshll.u32 %v5476, 16
        %v5643 = vrot.slane %v5641, 1
        %v5644 = vor.u32 %v5639, %v5643
        %v5646 = vshll.u32 %v5477, 16
        %v5648 = vrot.slane %v5646, 1
        %v5649 = vsel %vm667, %v5644, %v5648
        %v5651 = vshrl.u32 %v5478, 16
        %v5653 = vshll.u32 %v5478, 16
        %v5655 = vrot.slane %v5653, 1
        %v5656 = vor.u32 %v5651, %v5655
        %v5658 = vshll.u32 %v5479, 16
        %v5660 = vrot.slane %v5658, 1
        %v5661 = vsel %vm667, %v5656, %v5660
        %v5663 = vshrl.u32 %v5480, 16
        %v5665 = vshll.u32 %v5480, 16
        %v5667 = vrot.slane %v5665, 1
        %v5668 = vor.u32 %v5663, %v5667
        %v5670 = vshll.u32 %v5481, 16
        %v5672 = vrot.slane %v5670, 1
        %v5673 = vsel %vm667, %v5668, %v5672
        %s5674 = scalar_lea.vmem %s3, 16
        %v5675 = vld [vmem:[%s5674] sm:$0xf]
        %v5677 = vsel %vm3834, %v5493, 0
        %v5680 = vsel %vm3834, %v5505, 0
        %v5683 = vsel %vm3834, %v5517, 0
        %v5686 = vsel %vm3834, %v5529, 0
        %v5689 = vsel %vm3834, %v5541, 0
        %v5692 = vsel %vm3834, %v5553, 0
        %v5695 = vsel %vm3834, %v5565, 0
        %v5698 = vsel %vm3834, %v5577, 0
        %v5701 = vsel %vm3834, %v5589, 0
        %v5704 = vsel %vm3834, %v5601, 0
        %v5707 = vsel %vm3834, %v5613, 0
        %v5710 = vsel %vm3834, %v5625, 0
        %v5713 = vsel %vm3834, %v5637, 0
        %v5716 = vsel %vm3834, %v5649, 0
        %v5719 = vsel %vm3834, %v5661, 0
        %v5722 = vsel %vm3834, %v5673, 0
        %v5725 = vsel %vm4485, %v5675, 0
        %5727 = vmatprep.subr.bf16.mxu0 0
        %5728 = vmatpush1.bf16.msra.mxu0 %v5725
        %5729 = vmatprep.subr.bf16.mxu0 0
        %5730 = vmatpush1.bf16.msra.mxu0 0
        %5731 = vmatprep.subr.bf16.mxu0 0
        %5732 = vmatpush1.bf16.msra.mxu0 0
        %5733 = vmatprep.subr.bf16.mxu0 0
        %5734 = vmatpush1.bf16.msra.mxu0 0
        %5735 = vmatprep.subr.bf16.mxu0 0
        %5736 = vmatpush1.bf16.msra.mxu0 0
        %5737 = vmatprep.subr.bf16.mxu0 0
        %5738 = vmatpush1.bf16.msra.mxu0 0
        %5739 = vmatprep.subr.bf16.mxu0 0
        %5740 = vmatpush1.bf16.msra.mxu0 0
        %5741 = vmatprep.subr.bf16.mxu0 0
        %5742 = vmatpush1.bf16.msra.mxu0 0
        %5743 = vmatprep.subr.bf16.mxu0 0
        %5744 = vmatpush1.bf16.msra.mxu0 0
        %5745 = vmatprep.subr.bf16.mxu0 0
        %5746 = vmatpush1.bf16.msra.mxu0 0
        %5747 = vmatprep.subr.bf16.mxu0 0
        %5748 = vmatpush1.bf16.msra.mxu0 0
        %5749 = vmatprep.subr.bf16.mxu0 0
        %5750 = vmatpush1.bf16.msra.mxu0 0
        %5751 = vmatprep.subr.bf16.mxu0 0
        %5752 = vmatpush1.bf16.msra.mxu0 0
        %5753 = vmatprep.subr.bf16.mxu0 0
        %5754 = vmatpush1.bf16.msra.mxu0 0
        %5755 = vmatprep.subr.bf16.mxu0 0
        %5756 = vmatpush1.bf16.msra.mxu0 0
        %5757 = vmatprep.subr.bf16.mxu0 0
        %5758 = vmatpush1.bf16.msra.mxu0 0
        %5759 = vmatprep.mubr.bf16.mxu0 0
        %5760 = vmatmul.mubr.bf16.gmra.mrb[0].mxu0 %v5677
        %v5761 = vpop.f32.mrb[0].mxu0
        %v5762 = vadd.f32 0.0, %v5761
        %v5763 = vpop.f32.mrb[0].mxu0
        %v5764 = vpop.f32.mrb[0].mxu0
        %v5765 = vadd.f32 0.0, %v5764
        %v5766 = vpop.f32.mrb[0].mxu0
        %5767 = vmatprep.mubr.bf16.mxu0 0
        %5768 = vmatmul.mubr.bf16.gmra.mrb[0].mxu0 %v5680
        %v5769 = vpop.f32.mrb[0].mxu0
        %v5770 = vadd.f32 0.0, %v5769
        %v5771 = vpop.f32.mrb[0].mxu0
        %v5772 = vpop.f32.mrb[0].mxu0
        %v5773 = vadd.f32 0.0, %v5772
        %v5774 = vpop.f32.mrb[0].mxu0
        %5775 = vmatprep.mubr.bf16.mxu0 0
        %5776 = vmatmul.mubr.bf16.gmra.mrb[0].mxu0 %v5683
        %v5777 = vpop.f32.mrb[0].mxu0
        %v5778 = vadd.f32 0.0, %v5777
        %v5779 = vpop.f32.mrb[0].mxu0
        %v5780 = vpop.f32.mrb[0].mxu0
        %v5781 = vadd.f32 0.0, %v5780
        %v5782 = vpop.f32.mrb[0].mxu0
        %5783 = vmatprep.mubr.bf16.mxu0 0
        %5784 = vmatmul.mubr.bf16.gmra.mrb[0].mxu0 %v5686
        %v5785 = vpop.f32.mrb[0].mxu0
        %v5786 = vadd.f32 0.0, %v5785
        %v5787 = vpop.f32.mrb[0].mxu0
        %v5788 = vpop.f32.mrb[0].mxu0
        %v5789 = vadd.f32 0.0, %v5788
        %v5790 = vpop.f32.mrb[0].mxu0
        %5791 = vmatprep.mubr.bf16.mxu0 0
        %5792 = vmatmul.mubr.bf16.gmra.mrb[0].mxu0 %v5689
        %v5793 = vpop.f32.mrb[0].mxu0
        %v5794 = vadd.f32 0.0, %v5793
        %v5795 = vpop.f32.mrb[0].mxu0
        %v5796 = vpop.f32.mrb[0].mxu0
        %v5797 = vadd.f32 0.0, %v5796
        %v5798 = vpop.f32.mrb[0].mxu0
        %5799 = vmatprep.mubr.bf16.mxu0 0
        %5800 = vmatmul.mubr.bf16.gmra.mrb[0].mxu0 %v5692
        %v5801 = vpop.f32.mrb[0].mxu0
        %v5802 = vadd.f32 0.0, %v5801
        %v5803 = vpop.f32.mrb[0].mxu0
        %v5804 = vpop.f32.mrb[0].mxu0
        %v5805 = vadd.f32 0.0, %v5804
        %v5806 = vpop.f32.mrb[0].mxu0
        %5807 = vmatprep.mubr.bf16.mxu0 0
        %5808 = vmatmul.mubr.bf16.gmra.mrb[0].mxu0 %v5695
        %v5809 = vpop.f32.mrb[0].mxu0
        %v5810 = vadd.f32 0.0, %v5809
        %v5811 = vpop.f32.mrb[0].mxu0
        %v5812 = vpop.f32.mrb[0].mxu0
        %v5813 = vadd.f32 0.0, %v5812
        %v5814 = vpop.f32.mrb[0].mxu0
        %5815 = vmatprep.mubr.bf16.mxu0 0
        %5816 = vmatmul.mubr.bf16.gmra.mrb[0].mxu0 %v5698
        %v5817 = vpop.f32.mrb[0].mxu0
        %v5818 = vadd.f32 0.0, %v5817
        %v5819 = vpop.f32.mrb[0].mxu0
        %v5820 = vpop.f32.mrb[0].mxu0
        %v5821 = vadd.f32 0.0, %v5820
        %v5822 = vpop.f32.mrb[0].mxu0
        %5823 = vmatprep.mubr.bf16.mxu0 0
        %5824 = vmatmul.mubr.bf16.gmra.mrb[0].mxu0 %v5701
        %v5825 = vpop.f32.mrb[0].mxu0
        %v5826 = vadd.f32 0.0, %v5825
        %v5827 = vpop.f32.mrb[0].mxu0
        %v5828 = vpop.f32.mrb[0].mxu0
        %v5829 = vadd.f32 0.0, %v5828
        %v5830 = vpop.f32.mrb[0].mxu0
        %5831 = vmatprep.mubr.bf16.mxu0 0
        %5832 = vmatmul.mubr.bf16.gmra.mrb[0].mxu0 %v5704
        %v5833 = vpop.f32.mrb[0].mxu0
        %v5834 = vadd.f32 0.0, %v5833
        %v5835 = vpop.f32.mrb[0].mxu0
        %v5836 = vpop.f32.mrb[0].mxu0
        %v5837 = vadd.f32 0.0, %v5836
        %v5838 = vpop.f32.mrb[0].mxu0
        %5839 = vmatprep.mubr.bf16.mxu0 0
        %5840 = vmatmul.mubr.bf16.gmra.mrb[0].mxu0 %v5707
        %v5841 = vpop.f32.mrb[0].mxu0
        %v5842 = vadd.f32 0.0, %v5841
        %v5843 = vpop.f32.mrb[0].mxu0
        %v5844 = vpop.f32.mrb[0].mxu0
        %v5845 = vadd.f32 0.0, %v5844
        %v5846 = vpop.f32.mrb[0].mxu0
        %5847 = vmatprep.mubr.bf16.mxu0 0
        %5848 = vmatmul.mubr.bf16.gmra.mrb[0].mxu0 %v5710
        %v5849 = vpop.f32.mrb[0].mxu0
        %v5850 = vadd.f32 0.0, %v5849
        %v5851 = vpop.f32.mrb[0].mxu0
        %v5852 = vpop.f32.mrb[0].mxu0
        %v5853 = vadd.f32 0.0, %v5852
        %v5854 = vpop.f32.mrb[0].mxu0
        %5855 = vmatprep.mubr.bf16.mxu0 0
        %5856 = vmatmul.mubr.bf16.gmra.mrb[0].mxu0 %v5713
        %v5857 = vpop.f32.mrb[0].mxu0
        %v5858 = vadd.f32 0.0, %v5857
        %v5859 = vpop.f32.mrb[0].mxu0
        %v5860 = vpop.f32.mrb[0].mxu0
        %v5861 = vadd.f32 0.0, %v5860
        %v5862 = vpop.f32.mrb[0].mxu0
        %5863 = vmatprep.mubr.bf16.mxu0 0
        %5864 = vmatmul.mubr.bf16.gmra.mrb[0].mxu0 %v5716
        %v5865 = vpop.f32.mrb[0].mxu0
        %v5866 = vadd.f32 0.0, %v5865
        %v5867 = vpop.f32.mrb[0].mxu0
        %v5868 = vpop.f32.mrb[0].mxu0
        %v5869 = vadd.f32 0.0, %v5868
        %v5870 = vpop.f32.mrb[0].mxu0
        %5871 = vmatprep.mubr.bf16.mxu0 0
        %5872 = vmatmul.mubr.bf16.gmra.mrb[0].mxu0 %v5719
        %v5873 = vpop.f32.mrb[0].mxu0
        %v5874 = vadd.f32 0.0, %v5873
        %v5875 = vpop.f32.mrb[0].mxu0
        %v5876 = vpop.f32.mrb[0].mxu0
        %v5877 = vadd.f32 0.0, %v5876
        %v5878 = vpop.f32.mrb[0].mxu0
        %5879 = vmatprep.mubr.bf16.mxu0 0
        %5880 = vmatmul.mubr.bf16.gmra.mrb[0].mxu0 %v5722
        %v5881 = vpop.f32.mrb[0].mxu0
        %v5882 = vadd.f32 0.0, %v5881
        %v5883 = vpop.f32.mrb[0].mxu0
        %v5884 = vpop.f32.mrb[0].mxu0
        %v5885 = vadd.f32 0.0, %v5884
        %v5886 = vpop.f32.mrb[0].mxu0
        %5887 = vdwg.mxu0
        %v5888 = vadd.f32 %v5418, %v5762
        %v5889 = vadd.f32 %v5419, %v5765
        %v5890 = vadd.f32 %v5420, %v5770
        %v5891 = vadd.f32 %v5421, %v5773
        %v5892 = vadd.f32 %v5422, %v5778
        %v5893 = vadd.f32 %v5423, %v5781
        %v5894 = vadd.f32 %v5424, %v5786
        %v5895 = vadd.f32 %v5425, %v5789
        %v5896 = vadd.f32 %v5426, %v5794
        %v5897 = vadd.f32 %v5427, %v5797
        %v5898 = vadd.f32 %v5428, %v5802
        %v5899 = vadd.f32 %v5429, %v5805
        %v5900 = vadd.f32 %v5430, %v5810
        %v5901 = vadd.f32 %v5431, %v5813
        %v5902 = vadd.f32 %v5432, %v5818
        %v5903 = vadd.f32 %v5433, %v5821
        %v5904 = vadd.f32 %v5434, %v5826
        %v5905 = vadd.f32 %v5435, %v5829
        %v5906 = vadd.f32 %v5436, %v5834
        %v5907 = vadd.f32 %v5437, %v5837
        %v5908 = vadd.f32 %v5438, %v5842
        %v5909 = vadd.f32 %v5439, %v5845
        %v5910 = vadd.f32 %v5440, %v5850
        %v5911 = vadd.f32 %v5441, %v5853
        %v5912 = vadd.f32 %v5442, %v5858
        %v5913 = vadd.f32 %v5443, %v5861
        %v5914 = vadd.f32 %v5444, %v5866
        %v5915 = vadd.f32 %v5445, %v5869
        %v5916 = vadd.f32 %v5446, %v5874
        %v5917 = vadd.f32 %v5447, %v5877
        %v5918 = vadd.f32 %v5448, %v5882
        %v5919 = vadd.f32 %v5449, %v5885
        %v5920 = vld [vmem:[%s4111] sm:$0xfe]
        %v5921 = vld [vmem:[%s4111 + $0x10] sm:$0xfe]
        %v5922 = vld [vmem:[%s4111 + $0x20] sm:$0xfe]
        %v5923 = vld [vmem:[%s4111 + $0x30] sm:$0xfe]
        %v5924 = vld [vmem:[%s4111 + $0x40] sm:$0xfe]
        %v5925 = vld [vmem:[%s4111 + $0x50] sm:$0xfe]
        %v5926 = vld [vmem:[%s4111 + $0x60] sm:$0xfe]
        %v5927 = vld [vmem:[%s4111 + $0x70] sm:$0xfe]
        %v5928 = vld [vmem:[%s4111 + $0x80] sm:$0xfe]
        %v5929 = vld [vmem:[%s4111 + $0x90] sm:$0xfe]
        %v5930 = vld [vmem:[%s4111 + $0xa0] sm:$0xfe]
        %v5931 = vld [vmem:[%s4111 + $0xb0] sm:$0xfe]
        %v5932 = vld [vmem:[%s4111 + $0xc0] sm:$0xfe]
        %v5933 = vld [vmem:[%s4111 + $0xd0] sm:$0xfe]
        %v5934 = vld [vmem:[%s4111 + $0xe0] sm:$0xfe]
        %v5935 = vld [vmem:[%s4111 + $0xf0] sm:$0xfe]
        %v5968 = vrot.slane %v5920, 1
        %v5969 = vrot.slane %v5451, 1
        %v5970 = vsel %vm1319, %v5968, %v5969
        %v5971 = vrot.slane %v5921, 1
        %v5972 = vrot.slane %v5453, 1
        %v5973 = vsel %vm1319, %v5971, %v5972
        %v5974 = vrot.slane %v5922, 1
        %v5975 = vrot.slane %v5455, 1
        %v5976 = vsel %vm1319, %v5974, %v5975
        %v5977 = vrot.slane %v5923, 1
        %v5978 = vrot.slane %v5457, 1
        %v5979 = vsel %vm1319, %v5977, %v5978
        %v5980 = vrot.slane %v5924, 1
        %v5981 = vrot.slane %v5459, 1
        %v5982 = vsel %vm1319, %v5980, %v5981
        %v5983 = vrot.slane %v5925, 1
        %v5984 = vrot.slane %v5461, 1
        %v5985 = vsel %vm1319, %v5983, %v5984
        %v5986 = vrot.slane %v5926, 1
        %v5987 = vrot.slane %v5463, 1
        %v5988 = vsel %vm1319, %v5986, %v5987
        %v5989 = vrot.slane %v5927, 1
        %v5990 = vrot.slane %v5465, 1
        %v5991 = vsel %vm1319, %v5989, %v5990
        %v5992 = vrot.slane %v5928, 1
        %v5993 = vrot.slane %v5467, 1
        %v5994 = vsel %vm1319, %v5992, %v5993
        %v5995 = vrot.slane %v5929, 1
        %v5996 = vrot.slane %v5469, 1
        %v5997 = vsel %vm1319, %v5995, %v5996
        %v5998 = vrot.slane %v5930, 1
        %v5999 = vrot.slane %v5471, 1
        %v6000 = vsel %vm1319, %v5998, %v5999
        %v6001 = vrot.slane %v5931, 1
        %v6002 = vrot.slane %v5473, 1
        %v6003 = vsel %vm1319, %v6001, %v6002
        %v6004 = vrot.slane %v5932, 1
        %v6005 = vrot.slane %v5475, 1
        %v6006 = vsel %vm1319, %v6004, %v6005
        %v6007 = vrot.slane %v5933, 1
        %v6008 = vrot.slane %v5477, 1
        %v6009 = vsel %vm1319, %v6007, %v6008
        %v6010 = vrot.slane %v5934, 1
        %v6011 = vrot.slane %v5479, 1
        %v6012 = vsel %vm1319, %v6010, %v6011
        %v6013 = vrot.slane %v5935, 1
        %v6014 = vrot.slane %v5481, 1
        %v6015 = vsel %vm1319, %v6013, %v6014
        %s6016 = scalar_lea.vmem %s3, 20
        %v6017 = vld [vmem:[%s6016] sm:$0xf]
        %v6019 = vsel %vm3834, %v5970, 0
        %v6022 = vsel %vm3834, %v5973, 0
        %v6025 = vsel %vm3834, %v5976, 0
        %v6028 = vsel %vm3834, %v5979, 0
        %v6031 = vsel %vm3834, %v5982, 0
        %v6034 = vsel %vm3834, %v5985, 0
        %v6037 = vsel %vm3834, %v5988, 0
        %v6040 = vsel %vm3834, %v5991, 0
        %v6043 = vsel %vm3834, %v5994, 0
        %v6046 = vsel %vm3834, %v5997, 0
        %v6049 = vsel %vm3834, %v6000, 0
        %v6052 = vsel %vm3834, %v6003, 0
        %v6055 = vsel %vm3834, %v6006, 0
        %v6058 = vsel %vm3834, %v6009, 0
        %v6061 = vsel %vm3834, %v6012, 0
        %v6064 = vsel %vm3834, %v6015, 0
        %v6067 = vsel %vm4485, %v6017, 0
        %6069 = vmatprep.subr.bf16.mxu0 0
        %6070 = vmatpush1.bf16.msra.mxu0 %v6067
        %6071 = vmatprep.subr.bf16.mxu0 0
        %6072 = vmatpush1.bf16.msra.mxu0 0
        %6073 = vmatprep.subr.bf16.mxu0 0
        %6074 = vmatpush1.bf16.msra.mxu0 0
        %6075 = vmatprep.subr.bf16.mxu0 0
        %6076 = vmatpush1.bf16.msra.mxu0 0
        %6077 = vmatprep.subr.bf16.mxu0 0
        %6078 = vmatpush1.bf16.msra.mxu0 0
        %6079 = vmatprep.subr.bf16.mxu0 0
        %6080 = vmatpush1.bf16.msra.mxu0 0
        %6081 = vmatprep.subr.bf16.mxu0 0
        %6082 = vmatpush1.bf16.msra.mxu0 0
        %6083 = vmatprep.subr.bf16.mxu0 0
        %6084 = vmatpush1.bf16.msra.mxu0 0
        %6085 = vmatprep.subr.bf16.mxu0 0
        %6086 = vmatpush1.bf16.msra.mxu0 0
        %6087 = vmatprep.subr.bf16.mxu0 0
        %6088 = vmatpush1.bf16.msra.mxu0 0
        %6089 = vmatprep.subr.bf16.mxu0 0
        %6090 = vmatpush1.bf16.msra.mxu0 0
        %6091 = vmatprep.subr.bf16.mxu0 0
        %6092 = vmatpush1.bf16.msra.mxu0 0
        %6093 = vmatprep.subr.bf16.mxu0 0
        %6094 = vmatpush1.bf16.msra.mxu0 0
        %6095 = vmatprep.subr.bf16.mxu0 0
        %6096 = vmatpush1.bf16.msra.mxu0 0
        %6097 = vmatprep.subr.bf16.mxu0 0
        %6098 = vmatpush1.bf16.msra.mxu0 0
        %6099 = vmatprep.subr.bf16.mxu0 0
        %6100 = vmatpush1.bf16.msra.mxu0 0
        %6101 = vmatprep.mubr.bf16.mxu0 0
        %6102 = vmatmul.mubr.bf16.gmra.mrb[0].mxu0 %v6019
        %v6103 = vpop.f32.mrb[0].mxu0
        %v6104 = vadd.f32 0.0, %v6103
        %v6105 = vpop.f32.mrb[0].mxu0
        %v6106 = vpop.f32.mrb[0].mxu0
        %v6107 = vadd.f32 0.0, %v6106
        %v6108 = vpop.f32.mrb[0].mxu0
        %6109 = vmatprep.mubr.bf16.mxu0 0
        %6110 = vmatmul.mubr.bf16.gmra.mrb[0].mxu0 %v6022
        %v6111 = vpop.f32.mrb[0].mxu0
        %v6112 = vadd.f32 0.0, %v6111
        %v6113 = vpop.f32.mrb[0].mxu0
        %v6114 = vpop.f32.mrb[0].mxu0
        %v6115 = vadd.f32 0.0, %v6114
        %v6116 = vpop.f32.mrb[0].mxu0
        %6117 = vmatprep.mubr.bf16.mxu0 0
        %6118 = vmatmul.mubr.bf16.gmra.mrb[0].mxu0 %v6025
        %v6119 = vpop.f32.mrb[0].mxu0
        %v6120 = vadd.f32 0.0, %v6119
        %v6121 = vpop.f32.mrb[0].mxu0
        %v6122 = vpop.f32.mrb[0].mxu0
        %v6123 = vadd.f32 0.0, %v6122
        %v6124 = vpop.f32.mrb[0].mxu0
        %6125 = vmatprep.mubr.bf16.mxu0 0
        %6126 = vmatmul.mubr.bf16.gmra.mrb[0].mxu0 %v6028
        %v6127 = vpop.f32.mrb[0].mxu0
        %v6128 = vadd.f32 0.0, %v6127
        %v6129 = vpop.f32.mrb[0].mxu0
        %v6130 = vpop.f32.mrb[0].mxu0
        %v6131 = vadd.f32 0.0, %v6130
        %v6132 = vpop.f32.mrb[0].mxu0
        %6133 = vmatprep.mubr.bf16.mxu0 0
        %6134 = vmatmul.mubr.bf16.gmra.mrb[0].mxu0 %v6031
        %v6135 = vpop.f32.mrb[0].mxu0
        %v6136 = vadd.f32 0.0, %v6135
        %v6137 = vpop.f32.mrb[0].mxu0
        %v6138 = vpop.f32.mrb[0].mxu0
        %v6139 = vadd.f32 0.0, %v6138
        %v6140 = vpop.f32.mrb[0].mxu0
        %6141 = vmatprep.mubr.bf16.mxu0 0
        %6142 = vmatmul.mubr.bf16.gmra.mrb[0].mxu0 %v6034
        %v6143 = vpop.f32.mrb[0].mxu0
        %v6144 = vadd.f32 0.0, %v6143
        %v6145 = vpop.f32.mrb[0].mxu0
        %v6146 = vpop.f32.mrb[0].mxu0
        %v6147 = vadd.f32 0.0, %v6146
        %v6148 = vpop.f32.mrb[0].mxu0
        %6149 = vmatprep.mubr.bf16.mxu0 0
        %6150 = vmatmul.mubr.bf16.gmra.mrb[0].mxu0 %v6037
        %v6151 = vpop.f32.mrb[0].mxu0
        %v6152 = vadd.f32 0.0, %v6151
        %v6153 = vpop.f32.mrb[0].mxu0
        %v6154 = vpop.f32.mrb[0].mxu0
        %v6155 = vadd.f32 0.0, %v6154
        %v6156 = vpop.f32.mrb[0].mxu0
        %6157 = vmatprep.mubr.bf16.mxu0 0
        %6158 = vmatmul.mubr.bf16.gmra.mrb[0].mxu0 %v6040
        %v6159 = vpop.f32.mrb[0].mxu0
        %v6160 = vadd.f32 0.0, %v6159
        %v6161 = vpop.f32.mrb[0].mxu0
        %v6162 = vpop.f32.mrb[0].mxu0
        %v6163 = vadd.f32 0.0, %v6162
        %v6164 = vpop.f32.mrb[0].mxu0
        %6165 = vmatprep.mubr.bf16.mxu0 0
        %6166 = vmatmul.mubr.bf16.gmra.mrb[0].mxu0 %v6043
        %v6167 = vpop.f32.mrb[0].mxu0
        %v6168 = vadd.f32 0.0, %v6167
        %v6169 = vpop.f32.mrb[0].mxu0
        %v6170 = vpop.f32.mrb[0].mxu0
        %v6171 = vadd.f32 0.0, %v6170
        %v6172 = vpop.f32.mrb[0].mxu0
        %6173 = vmatprep.mubr.bf16.mxu0 0
        %6174 = vmatmul.mubr.bf16.gmra.mrb[0].mxu0 %v6046
        %v6175 = vpop.f32.mrb[0].mxu0
        %v6176 = vadd.f32 0.0, %v6175
        %v6177 = vpop.f32.mrb[0].mxu0
        %v6178 = vpop.f32.mrb[0].mxu0
        %v6179 = vadd.f32 0.0, %v6178
        %v6180 = vpop.f32.mrb[0].mxu0
        %6181 = vmatprep.mubr.bf16.mxu0 0
        %6182 = vmatmul.mubr.bf16.gmra.mrb[0].mxu0 %v6049
        %v6183 = vpop.f32.mrb[0].mxu0
        %v6184 = vadd.f32 0.0, %v6183
        %v6185 = vpop.f32.mrb[0].mxu0
        %v6186 = vpop.f32.mrb[0].mxu0
        %v6187 = vadd.f32 0.0, %v6186
        %v6188 = vpop.f32.mrb[0].mxu0
        %6189 = vmatprep.mubr.bf16.mxu0 0
        %6190 = vmatmul.mubr.bf16.gmra.mrb[0].mxu0 %v6052
        %v6191 = vpop.f32.mrb[0].mxu0
        %v6192 = vadd.f32 0.0, %v6191
        %v6193 = vpop.f32.mrb[0].mxu0
        %v6194 = vpop.f32.mrb[0].mxu0
        %v6195 = vadd.f32 0.0, %v6194
        %v6196 = vpop.f32.mrb[0].mxu0
        %6197 = vmatprep.mubr.bf16.mxu0 0
        %6198 = vmatmul.mubr.bf16.gmra.mrb[0].mxu0 %v6055
        %v6199 = vpop.f32.mrb[0].mxu0
        %v6200 = vadd.f32 0.0, %v6199
        %v6201 = vpop.f32.mrb[0].mxu0
        %v6202 = vpop.f32.mrb[0].mxu0
        %v6203 = vadd.f32 0.0, %v6202
        %v6204 = vpop.f32.mrb[0].mxu0
        %6205 = vmatprep.mubr.bf16.mxu0 0
        %6206 = vmatmul.mubr.bf16.gmra.mrb[0].mxu0 %v6058
        %v6207 = vpop.f32.mrb[0].mxu0
        %v6208 = vadd.f32 0.0, %v6207
        %v6209 = vpop.f32.mrb[0].mxu0
        %v6210 = vpop.f32.mrb[0].mxu0
        %v6211 = vadd.f32 0.0, %v6210
        %v6212 = vpop.f32.mrb[0].mxu0
        %6213 = vmatprep.mubr.bf16.mxu0 0
        %6214 = vmatmul.mubr.bf16.gmra.mrb[0].mxu0 %v6061
        %v6215 = vpop.f32.mrb[0].mxu0
        %v6216 = vadd.f32 0.0, %v6215
        %v6217 = vpop.f32.mrb[0].mxu0
        %v6218 = vpop.f32.mrb[0].mxu0
        %v6219 = vadd.f32 0.0, %v6218
        %v6220 = vpop.f32.mrb[0].mxu0
        %6221 = vmatprep.mubr.bf16.mxu0 0
        %6222 = vmatmul.mubr.bf16.gmra.mrb[0].mxu0 %v6064
        %v6223 = vpop.f32.mrb[0].mxu0
        %v6224 = vadd.f32 0.0, %v6223
        %v6225 = vpop.f32.mrb[0].mxu0
        %v6226 = vpop.f32.mrb[0].mxu0
        %v6227 = vadd.f32 0.0, %v6226
        %v6228 = vpop.f32.mrb[0].mxu0
        %6229 = vdwg.mxu0
        %v6230 = vadd.f32 %v5888, %v6104
        %v6231 = vadd.f32 %v5889, %v6107
        %v6232 = vadd.f32 %v5890, %v6112
        %v6233 = vadd.f32 %v5891, %v6115
        %v6234 = vadd.f32 %v5892, %v6120
        %v6235 = vadd.f32 %v5893, %v6123
        %v6236 = vadd.f32 %v5894, %v6128
        %v6237 = vadd.f32 %v5895, %v6131
        %v6238 = vadd.f32 %v5896, %v6136
        %v6239 = vadd.f32 %v5897, %v6139
        %v6240 = vadd.f32 %v5898, %v6144
        %v6241 = vadd.f32 %v5899, %v6147
        %v6242 = vadd.f32 %v5900, %v6152
        %v6243 = vadd.f32 %v5901, %v6155
        %v6244 = vadd.f32 %v5902, %v6160
        %v6245 = vadd.f32 %v5903, %v6163
        %v6246 = vadd.f32 %v5904, %v6168
        %v6247 = vadd.f32 %v5905, %v6171
        %v6248 = vadd.f32 %v5906, %v6176
        %v6249 = vadd.f32 %v5907, %v6179
        %v6250 = vadd.f32 %v5908, %v6184
        %v6251 = vadd.f32 %v5909, %v6187
        %v6252 = vadd.f32 %v5910, %v6192
        %v6253 = vadd.f32 %v5911, %v6195
        %v6254 = vadd.f32 %v5912, %v6200
        %v6255 = vadd.f32 %v5913, %v6203
        %v6256 = vadd.f32 %v5914, %v6208
        %v6257 = vadd.f32 %v5915, %v6211
        %v6258 = vadd.f32 %v5916, %v6216
        %v6259 = vadd.f32 %v5917, %v6219
        %v6260 = vadd.f32 %v5918, %v6224
        %v6261 = vadd.f32 %v5919, %v6227
        %s6262 = scalar_lea.vmem [#allocation3], 32
        %v6263 = vld [vmem:[%s6262] sm:$0xff]
        %v6264 = vld [vmem:[%s6262 + $0x10] sm:$0xff]
        %v6265 = vld [vmem:[%s6262 + $0x20] sm:$0xff]
        %v6266 = vld [vmem:[%s6262 + $0x30] sm:$0xff]
        %v6267 = vld [vmem:[%s6262 + $0x40] sm:$0xff]
        %v6268 = vld [vmem:[%s6262 + $0x50] sm:$0xff]
        %v6269 = vld [vmem:[%s6262 + $0x60] sm:$0xff]
        %v6270 = vld [vmem:[%s6262 + $0x70] sm:$0xff]
        %v6271 = vld [vmem:[%s6262 + $0x80] sm:$0xff]
        %v6272 = vld [vmem:[%s6262 + $0x90] sm:$0xff]
        %v6273 = vld [vmem:[%s6262 + $0xa0] sm:$0xff]
        %v6274 = vld [vmem:[%s6262 + $0xb0] sm:$0xff]
        %v6275 = vld [vmem:[%s6262 + $0xc0] sm:$0xff]
        %v6276 = vld [vmem:[%s6262 + $0xd0] sm:$0xff]
        %v6277 = vld [vmem:[%s6262 + $0xe0] sm:$0xff]
        %v6278 = vld [vmem:[%s6262 + $0xf0] sm:$0xff]
        %s6279 = scalar_lea.vmem %s3, 24
        %v6280 = vld [vmem:[%s6279] sm:$0xf]
        %v6282 = vsel %vm3834, %v6263, 0
        %v6285 = vsel %vm3834, %v6264, 0
        %v6288 = vsel %vm3834, %v6265, 0
        %v6291 = vsel %vm3834, %v6266, 0
        %v6294 = vsel %vm3834, %v6267, 0
        %v6297 = vsel %vm3834, %v6268, 0
        %v6300 = vsel %vm3834, %v6269, 0
        %v6303 = vsel %vm3834, %v6270, 0
        %v6306 = vsel %vm3834, %v6271, 0
        %v6309 = vsel %vm3834, %v6272, 0
        %v6312 = vsel %vm3834, %v6273, 0
        %v6315 = vsel %vm3834, %v6274, 0
        %v6318 = vsel %vm3834, %v6275, 0
        %v6321 = vsel %vm3834, %v6276, 0
        %v6324 = vsel %vm3834, %v6277, 0
        %v6327 = vsel %vm3834, %v6278, 0
        %v6330 = vsel %vm4485, %v6280, 0
        %6332 = vmatprep.subr.bf16.mxu0 0
        %6333 = vmatpush1.bf16.msra.mxu0 %v6330
        %6334 = vmatprep.subr.bf16.mxu0 0
        %6335 = vmatpush1.bf16.msra.mxu0 0
        %6336 = vmatprep.subr.bf16.mxu0 0
        %6337 = vmatpush1.bf16.msra.mxu0 0
        %6338 = vmatprep.subr.bf16.mxu0 0
        %6339 = vmatpush1.bf16.msra.mxu0 0
        %6340 = vmatprep.subr.bf16.mxu0 0
        %6341 = vmatpush1.bf16.msra.mxu0 0
        %6342 = vmatprep.subr.bf16.mxu0 0
        %6343 = vmatpush1.bf16.msra.mxu0 0
        %6344 = vmatprep.subr.bf16.mxu0 0
        %6345 = vmatpush1.bf16.msra.mxu0 0
        %6346 = vmatprep.subr.bf16.mxu0 0
        %6347 = vmatpush1.bf16.msra.mxu0 0
        %6348 = vmatprep.subr.bf16.mxu0 0
        %6349 = vmatpush1.bf16.msra.mxu0 0
        %6350 = vmatprep.subr.bf16.mxu0 0
        %6351 = vmatpush1.bf16.msra.mxu0 0
        %6352 = vmatprep.subr.bf16.mxu0 0
        %6353 = vmatpush1.bf16.msra.mxu0 0
        %6354 = vmatprep.subr.bf16.mxu0 0
        %6355 = vmatpush1.bf16.msra.mxu0 0
        %6356 = vmatprep.subr.bf16.mxu0 0
        %6357 = vmatpush1.bf16.msra.mxu0 0
        %6358 = vmatprep.subr.bf16.mxu0 0
        %6359 = vmatpush1.bf16.msra.mxu0 0
        %6360 = vmatprep.subr.bf16.mxu0 0
        %6361 = vmatpush1.bf16.msra.mxu0 0
        %6362 = vmatprep.subr.bf16.mxu0 0
        %6363 = vmatpush1.bf16.msra.mxu0 0
        %6364 = vmatprep.mubr.bf16.mxu0 0
        %6365 = vmatmul.mubr.bf16.gmra.mrb[0].mxu0 %v6282
        %v6366 = vpop.f32.mrb[0].mxu0
        %v6367 = vadd.f32 0.0, %v6366
        %v6368 = vpop.f32.mrb[0].mxu0
        %v6369 = vpop.f32.mrb[0].mxu0
        %v6370 = vadd.f32 0.0, %v6369
        %v6371 = vpop.f32.mrb[0].mxu0
        %6372 = vmatprep.mubr.bf16.mxu0 0
        %6373 = vmatmul.mubr.bf16.gmra.mrb[0].mxu0 %v6285
        %v6374 = vpop.f32.mrb[0].mxu0
        %v6375 = vadd.f32 0.0, %v6374
        %v6376 = vpop.f32.mrb[0].mxu0
        %v6377 = vpop.f32.mrb[0].mxu0
        %v6378 = vadd.f32 0.0, %v6377
        %v6379 = vpop.f32.mrb[0].mxu0
        %6380 = vmatprep.mubr.bf16.mxu0 0
        %6381 = vmatmul.mubr.bf16.gmra.mrb[0].mxu0 %v6288
        %v6382 = vpop.f32.mrb[0].mxu0
        %v6383 = vadd.f32 0.0, %v6382
        %v6384 = vpop.f32.mrb[0].mxu0
        %v6385 = vpop.f32.mrb[0].mxu0
        %v6386 = vadd.f32 0.0, %v6385
        %v6387 = vpop.f32.mrb[0].mxu0
        %6388 = vmatprep.mubr.bf16.mxu0 0
        %6389 = vmatmul.mubr.bf16.gmra.mrb[0].mxu0 %v6291
        %v6390 = vpop.f32.mrb[0].mxu0
        %v6391 = vadd.f32 0.0, %v6390
        %v6392 = vpop.f32.mrb[0].mxu0
        %v6393 = vpop.f32.mrb[0].mxu0
        %v6394 = vadd.f32 0.0, %v6393
        %v6395 = vpop.f32.mrb[0].mxu0
        %6396 = vmatprep.mubr.bf16.mxu0 0
        %6397 = vmatmul.mubr.bf16.gmra.mrb[0].mxu0 %v6294
        %v6398 = vpop.f32.mrb[0].mxu0
        %v6399 = vadd.f32 0.0, %v6398
        %v6400 = vpop.f32.mrb[0].mxu0
        %v6401 = vpop.f32.mrb[0].mxu0
        %v6402 = vadd.f32 0.0, %v6401
        %v6403 = vpop.f32.mrb[0].mxu0
        %6404 = vmatprep.mubr.bf16.mxu0 0
        %6405 = vmatmul.mubr.bf16.gmra.mrb[0].mxu0 %v6297
        %v6406 = vpop.f32.mrb[0].mxu0
        %v6407 = vadd.f32 0.0, %v6406
        %v6408 = vpop.f32.mrb[0].mxu0
        %v6409 = vpop.f32.mrb[0].mxu0
        %v6410 = vadd.f32 0.0, %v6409
        %v6411 = vpop.f32.mrb[0].mxu0
        %6412 = vmatprep.mubr.bf16.mxu0 0
        %6413 = vmatmul.mubr.bf16.gmra.mrb[0].mxu0 %v6300
        %v6414 = vpop.f32.mrb[0].mxu0
        %v6415 = vadd.f32 0.0, %v6414
        %v6416 = vpop.f32.mrb[0].mxu0
        %v6417 = vpop.f32.mrb[0].mxu0
        %v6418 = vadd.f32 0.0, %v6417
        %v6419 = vpop.f32.mrb[0].mxu0
        %6420 = vmatprep.mubr.bf16.mxu0 0
        %6421 = vmatmul.mubr.bf16.gmra.mrb[0].mxu0 %v6303
        %v6422 = vpop.f32.mrb[0].mxu0
        %v6423 = vadd.f32 0.0, %v6422
        %v6424 = vpop.f32.mrb[0].mxu0
        %v6425 = vpop.f32.mrb[0].mxu0
        %v6426 = vadd.f32 0.0, %v6425
        %v6427 = vpop.f32.mrb[0].mxu0
        %6428 = vmatprep.mubr.bf16.mxu0 0
        %6429 = vmatmul.mubr.bf16.gmra.mrb[0].mxu0 %v6306
        %v6430 = vpop.f32.mrb[0].mxu0
        %v6431 = vadd.f32 0.0, %v6430
        %v6432 = vpop.f32.mrb[0].mxu0
        %v6433 = vpop.f32.mrb[0].mxu0
        %v6434 = vadd.f32 0.0, %v6433
        %v6435 = vpop.f32.mrb[0].mxu0
        %6436 = vmatprep.mubr.bf16.mxu0 0
        %6437 = vmatmul.mubr.bf16.gmra.mrb[0].mxu0 %v6309
        %v6438 = vpop.f32.mrb[0].mxu0
        %v6439 = vadd.f32 0.0, %v6438
        %v6440 = vpop.f32.mrb[0].mxu0
        %v6441 = vpop.f32.mrb[0].mxu0
        %v6442 = vadd.f32 0.0, %v6441
        %v6443 = vpop.f32.mrb[0].mxu0
        %6444 = vmatprep.mubr.bf16.mxu0 0
        %6445 = vmatmul.mubr.bf16.gmra.mrb[0].mxu0 %v6312
        %v6446 = vpop.f32.mrb[0].mxu0
        %v6447 = vadd.f32 0.0, %v6446
        %v6448 = vpop.f32.mrb[0].mxu0
        %v6449 = vpop.f32.mrb[0].mxu0
        %v6450 = vadd.f32 0.0, %v6449
        %v6451 = vpop.f32.mrb[0].mxu0
        %6452 = vmatprep.mubr.bf16.mxu0 0
        %6453 = vmatmul.mubr.bf16.gmra.mrb[0].mxu0 %v6315
        %v6454 = vpop.f32.mrb[0].mxu0
        %v6455 = vadd.f32 0.0, %v6454
        %v6456 = vpop.f32.mrb[0].mxu0
        %v6457 = vpop.f32.mrb[0].mxu0
        %v6458 = vadd.f32 0.0, %v6457
        %v6459 = vpop.f32.mrb[0].mxu0
        %6460 = vmatprep.mubr.bf16.mxu0 0
        %6461 = vmatmul.mubr.bf16.gmra.mrb[0].mxu0 %v6318
        %v6462 = vpop.f32.mrb[0].mxu0
        %v6463 = vadd.f32 0.0, %v6462
        %v6464 = vpop.f32.mrb[0].mxu0
        %v6465 = vpop.f32.mrb[0].mxu0
        %v6466 = vadd.f32 0.0, %v6465
        %v6467 = vpop.f32.mrb[0].mxu0
        %6468 = vmatprep.mubr.bf16.mxu0 0
        %6469 = vmatmul.mubr.bf16.gmra.mrb[0].mxu0 %v6321
        %v6470 = vpop.f32.mrb[0].mxu0
        %v6471 = vadd.f32 0.0, %v6470
        %v6472 = vpop.f32.mrb[0].mxu0
        %v6473 = vpop.f32.mrb[0].mxu0
        %v6474 = vadd.f32 0.0, %v6473
        %v6475 = vpop.f32.mrb[0].mxu0
        %6476 = vmatprep.mubr.bf16.mxu0 0
        %6477 = vmatmul.mubr.bf16.gmra.mrb[0].mxu0 %v6324
        %v6478 = vpop.f32.mrb[0].mxu0
        %v6479 = vadd.f32 0.0, %v6478
        %v6480 = vpop.f32.mrb[0].mxu0
        %v6481 = vpop.f32.mrb[0].mxu0
        %v6482 = vadd.f32 0.0, %v6481
        %v6483 = vpop.f32.mrb[0].mxu0
        %6484 = vmatprep.mubr.bf16.mxu0 0
        %6485 = vmatmul.mubr.bf16.gmra.mrb[0].mxu0 %v6327
        %v6486 = vpop.f32.mrb[0].mxu0
        %v6487 = vadd.f32 0.0, %v6486
        %v6488 = vpop.f32.mrb[0].mxu0
        %v6489 = vpop.f32.mrb[0].mxu0
        %v6490 = vadd.f32 0.0, %v6489
        %v6491 = vpop.f32.mrb[0].mxu0
        %6492 = vdwg.mxu0
        %v6493 = vadd.f32 %v6230, %v6367
        %v6494 = vadd.f32 %v6231, %v6370
        %v6495 = vadd.f32 %v6232, %v6375
        %v6496 = vadd.f32 %v6233, %v6378
        %v6497 = vadd.f32 %v6234, %v6383
        %v6498 = vadd.f32 %v6235, %v6386
        %v6499 = vadd.f32 %v6236, %v6391
        %v6500 = vadd.f32 %v6237, %v6394
        %v6501 = vadd.f32 %v6238, %v6399
        %v6502 = vadd.f32 %v6239, %v6402
        %v6503 = vadd.f32 %v6240, %v6407
        %v6504 = vadd.f32 %v6241, %v6410
        %v6505 = vadd.f32 %v6242, %v6415
        %v6506 = vadd.f32 %v6243, %v6418
        %v6507 = vadd.f32 %v6244, %v6423
        %v6508 = vadd.f32 %v6245, %v6426
        %v6509 = vadd.f32 %v6246, %v6431
        %v6510 = vadd.f32 %v6247, %v6434
        %v6511 = vadd.f32 %v6248, %v6439
        %v6512 = vadd.f32 %v6249, %v6442
        %v6513 = vadd.f32 %v6250, %v6447
        %v6514 = vadd.f32 %v6251, %v6450
        %v6515 = vadd.f32 %v6252, %v6455
        %v6516 = vadd.f32 %v6253, %v6458
        %v6517 = vadd.f32 %v6254, %v6463
        %v6518 = vadd.f32 %v6255, %v6466
        %v6519 = vadd.f32 %v6256, %v6471
        %v6520 = vadd.f32 %v6257, %v6474
        %v6521 = vadd.f32 %v6258, %v6479
        %v6522 = vadd.f32 %v6259, %v6482
        %v6523 = vadd.f32 %v6260, %v6487
        %v6524 = vadd.f32 %v6261, %v6490
        %v6525 = vld [vmem:[%s6262] sm:$0xff]
        %v6526 = vld [vmem:[%s6262 + $0x8] sm:$0x1]
        %v6527 = vld [vmem:[%s6262 + $0x10] sm:$0xff]
        %v6528 = vld [vmem:[%s6262 + $0x18] sm:$0x1]
        %v6529 = vld [vmem:[%s6262 + $0x20] sm:$0xff]
        %v6530 = vld [vmem:[%s6262 + $0x28] sm:$0x1]
        %v6531 = vld [vmem:[%s6262 + $0x30] sm:$0xff]
        %v6532 = vld [vmem:[%s6262 + $0x38] sm:$0x1]
        %v6533 = vld [vmem:[%s6262 + $0x40] sm:$0xff]
        %v6534 = vld [vmem:[%s6262 + $0x48] sm:$0x1]
        %v6535 = vld [vmem:[%s6262 + $0x50] sm:$0xff]
        %v6536 = vld [vmem:[%s6262 + $0x58] sm:$0x1]
        %v6537 = vld [vmem:[%s6262 + $0x60] sm:$0xff]
        %v6538 = vld [vmem:[%s6262 + $0x68] sm:$0x1]
        %v6539 = vld [vmem:[%s6262 + $0x70] sm:$0xff]
        %v6540 = vld [vmem:[%s6262 + $0x78] sm:$0x1]
        %v6541 = vld [vmem:[%s6262 + $0x80] sm:$0xff]
        %v6542 = vld [vmem:[%s6262 + $0x88] sm:$0x1]
        %v6543 = vld [vmem:[%s6262 + $0x90] sm:$0xff]
        %v6544 = vld [vmem:[%s6262 + $0x98] sm:$0x1]
        %v6545 = vld [vmem:[%s6262 + $0xa0] sm:$0xff]
        %v6546 = vld [vmem:[%s6262 + $0xa8] sm:$0x1]
        %v6547 = vld [vmem:[%s6262 + $0xb0] sm:$0xff]
        %v6548 = vld [vmem:[%s6262 + $0xb8] sm:$0x1]
        %v6549 = vld [vmem:[%s6262 + $0xc0] sm:$0xff]
        %v6550 = vld [vmem:[%s6262 + $0xc8] sm:$0x1]
        %v6551 = vld [vmem:[%s6262 + $0xd0] sm:$0xff]
        %v6552 = vld [vmem:[%s6262 + $0xd8] sm:$0x1]
        %v6553 = vld [vmem:[%s6262 + $0xe0] sm:$0xff]
        %v6554 = vld [vmem:[%s6262 + $0xe8] sm:$0x1]
        %v6555 = vld [vmem:[%s6262 + $0xf0] sm:$0xff]
        %v6556 = vld [vmem:[%s6262 + $0xf8] sm:$0x1]
        %v6558 = vshrl.u32 %v6525, 16
        %v6560 = vshll.u32 %v6525, 16
        %v6562 = vrot.slane %v6560, 1
        %v6563 = vor.u32 %v6558, %v6562
        %v6565 = vshll.u32 %v6526, 16
        %v6567 = vrot.slane %v6565, 1
        %v6568 = vsel %vm667, %v6563, %v6567
        %v6570 = vshrl.u32 %v6527, 16
        %v6572 = vshll.u32 %v6527, 16
        %v6574 = vrot.slane %v6572, 1
        %v6575 = vor.u32 %v6570, %v6574
        %v6577 = vshll.u32 %v6528, 16
        %v6579 = vrot.slane %v6577, 1
        %v6580 = vsel %vm667, %v6575, %v6579
        %v6582 = vshrl.u32 %v6529, 16
        %v6584 = vshll.u32 %v6529, 16
        %v6586 = vrot.slane %v6584, 1
        %v6587 = vor.u32 %v6582, %v6586
        %v6589 = vshll.u32 %v6530, 16
        %v6591 = vrot.slane %v6589, 1
        %v6592 = vsel %vm667, %v6587, %v6591
        %v6594 = vshrl.u32 %v6531, 16
        %v6596 = vshll.u32 %v6531, 16
        %v6598 = vrot.slane %v6596, 1
        %v6599 = vor.u32 %v6594, %v6598
        %v6601 = vshll.u32 %v6532, 16
        %v6603 = vrot.slane %v6601, 1
        %v6604 = vsel %vm667, %v6599, %v6603
        %v6606 = vshrl.u32 %v6533, 16
        %v6608 = vshll.u32 %v6533, 16
        %v6610 = vrot.slane %v6608, 1
        %v6611 = vor.u32 %v6606, %v6610
        %v6613 = vshll.u32 %v6534, 16
        %v6615 = vrot.slane %v6613, 1
        %v6616 = vsel %vm667, %v6611, %v6615
        %v6618 = vshrl.u32 %v6535, 16
        %v6620 = vshll.u32 %v6535, 16
        %v6622 = vrot.slane %v6620, 1
        %v6623 = vor.u32 %v6618, %v6622
        %v6625 = vshll.u32 %v6536, 16
        %v6627 = vrot.slane %v6625, 1
        %v6628 = vsel %vm667, %v6623, %v6627
        %v6630 = vshrl.u32 %v6537, 16
        %v6632 = vshll.u32 %v6537, 16
        %v6634 = vrot.slane %v6632, 1
        %v6635 = vor.u32 %v6630, %v6634
        %v6637 = vshll.u32 %v6538, 16
        %v6639 = vrot.slane %v6637, 1
        %v6640 = vsel %vm667, %v6635, %v6639
        %v6642 = vshrl.u32 %v6539, 16
        %v6644 = vshll.u32 %v6539, 16
        %v6646 = vrot.slane %v6644, 1
        %v6647 = vor.u32 %v6642, %v6646
        %v6649 = vshll.u32 %v6540, 16
        %v6651 = vrot.slane %v6649, 1
        %v6652 = vsel %vm667, %v6647, %v6651
        %v6654 = vshrl.u32 %v6541, 16
        %v6656 = vshll.u32 %v6541, 16
        %v6658 = vrot.slane %v6656, 1
        %v6659 = vor.u32 %v6654, %v6658
        %v6661 = vshll.u32 %v6542, 16
        %v6663 = vrot.slane %v6661, 1
        %v6664 = vsel %vm667, %v6659, %v6663
        %v6666 = vshrl.u32 %v6543, 16
        %v6668 = vshll.u32 %v6543, 16
        %v6670 = vrot.slane %v6668, 1
        %v6671 = vor.u32 %v6666, %v6670
        %v6673 = vshll.u32 %v6544, 16
        %v6675 = vrot.slane %v6673, 1
        %v6676 = vsel %vm667, %v6671, %v6675
        %v6678 = vshrl.u32 %v6545, 16
        %v6680 = vshll.u32 %v6545, 16
        %v6682 = vrot.slane %v6680, 1
        %v6683 = vor.u32 %v6678, %v6682
        %v6685 = vshll.u32 %v6546, 16
        %v6687 = vrot.slane %v6685, 1
        %v6688 = vsel %vm667, %v6683, %v6687
        %v6690 = vshrl.u32 %v6547, 16
        %v6692 = vshll.u32 %v6547, 16
        %v6694 = vrot.slane %v6692, 1
        %v6695 = vor.u32 %v6690, %v6694
        %v6697 = vshll.u32 %v6548, 16
        %v6699 = vrot.slane %v6697, 1
        %v6700 = vsel %vm667, %v6695, %v6699
        %v6702 = vshrl.u32 %v6549, 16
        %v6704 = vshll.u32 %v6549, 16
        %v6706 = vrot.slane %v6704, 1
        %v6707 = vor.u32 %v6702, %v6706
        %v6709 = vshll.u32 %v6550, 16
        %v6711 = vrot.slane %v6709, 1
        %v6712 = vsel %vm667, %v6707, %v6711
        %v6714 = vshrl.u32 %v6551, 16
        %v6716 = vshll.u32 %v6551, 16
        %v6718 = vrot.slane %v6716, 1
        %v6719 = vor.u32 %v6714, %v6718
        %v6721 = vshll.u32 %v6552, 16
        %v6723 = vrot.slane %v6721, 1
        %v6724 = vsel %vm667, %v6719, %v6723
        %v6726 = vshrl.u32 %v6553, 16
        %v6728 = vshll.u32 %v6553, 16
        %v6730 = vrot.slane %v6728, 1
        %v6731 = vor.u32 %v6726, %v6730
        %v6733 = vshll.u32 %v6554, 16
        %v6735 = vrot.slane %v6733, 1
        %v6736 = vsel %vm667, %v6731, %v6735
        %v6738 = vshrl.u32 %v6555, 16
        %v6740 = vshll.u32 %v6555, 16
        %v6742 = vrot.slane %v6740, 1
        %v6743 = vor.u32 %v6738, %v6742
        %v6745 = vshll.u32 %v6556, 16
        %v6747 = vrot.slane %v6745, 1
        %v6748 = vsel %vm667, %v6743, %v6747
        %s6749 = scalar_lea.vmem %s3, 28
        %v6750 = vld [vmem:[%s6749] sm:$0xf]
        %v6752 = vsel %vm3834, %v6568, 0
        %v6755 = vsel %vm3834, %v6580, 0
        %v6758 = vsel %vm3834, %v6592, 0
        %v6761 = vsel %vm3834, %v6604, 0
        %v6764 = vsel %vm3834, %v6616, 0
        %v6767 = vsel %vm3834, %v6628, 0
        %v6770 = vsel %vm3834, %v6640, 0
        %v6773 = vsel %vm3834, %v6652, 0
        %v6776 = vsel %vm3834, %v6664, 0
        %v6779 = vsel %vm3834, %v6676, 0
        %v6782 = vsel %vm3834, %v6688, 0
        %v6785 = vsel %vm3834, %v6700, 0
        %v6788 = vsel %vm3834, %v6712, 0
        %v6791 = vsel %vm3834, %v6724, 0
        %v6794 = vsel %vm3834, %v6736, 0
        %v6797 = vsel %vm3834, %v6748, 0
        %v6800 = vsel %vm4485, %v6750, 0
        %6802 = vmatprep.subr.bf16.mxu0 0
        %6803 = vmatpush1.bf16.msra.mxu0 %v6800
        %6804 = vmatprep.subr.bf16.mxu0 0
        %6805 = vmatpush1.bf16.msra.mxu0 0
        %6806 = vmatprep.subr.bf16.mxu0 0
        %6807 = vmatpush1.bf16.msra.mxu0 0
        %6808 = vmatprep.subr.bf16.mxu0 0
        %6809 = vmatpush1.bf16.msra.mxu0 0
        %6810 = vmatprep.subr.bf16.mxu0 0
        %6811 = vmatpush1.bf16.msra.mxu0 0
        %6812 = vmatprep.subr.bf16.mxu0 0
        %6813 = vmatpush1.bf16.msra.mxu0 0
        %6814 = vmatprep.subr.bf16.mxu0 0
        %6815 = vmatpush1.bf16.msra.mxu0 0
        %6816 = vmatprep.subr.bf16.mxu0 0
        %6817 = vmatpush1.bf16.msra.mxu0 0
        %6818 = vmatprep.subr.bf16.mxu0 0
        %6819 = vmatpush1.bf16.msra.mxu0 0
        %6820 = vmatprep.subr.bf16.mxu0 0
        %6821 = vmatpush1.bf16.msra.mxu0 0
        %6822 = vmatprep.subr.bf16.mxu0 0
        %6823 = vmatpush1.bf16.msra.mxu0 0
        %6824 = vmatprep.subr.bf16.mxu0 0
        %6825 = vmatpush1.bf16.msra.mxu0 0
        %6826 = vmatprep.subr.bf16.mxu0 0
        %6827 = vmatpush1.bf16.msra.mxu0 0
        %6828 = vmatprep.subr.bf16.mxu0 0
        %6829 = vmatpush1.bf16.msra.mxu0 0
        %6830 = vmatprep.subr.bf16.mxu0 0
        %6831 = vmatpush1.bf16.msra.mxu0 0
        %6832 = vmatprep.subr.bf16.mxu0 0
        %6833 = vmatpush1.bf16.msra.mxu0 0
        %6834 = vmatprep.mubr.bf16.mxu0 0
        %6835 = vmatmul.mubr.bf16.gmra.mrb[0].mxu0 %v6752
        %v6836 = vpop.f32.mrb[0].mxu0
        %v6837 = vadd.f32 0.0, %v6836
        %v6838 = vpop.f32.mrb[0].mxu0
        %v6839 = vpop.f32.mrb[0].mxu0
        %v6840 = vadd.f32 0.0, %v6839
        %v6841 = vpop.f32.mrb[0].mxu0
        %6842 = vmatprep.mubr.bf16.mxu0 0
        %6843 = vmatmul.mubr.bf16.gmra.mrb[0].mxu0 %v6755
        %v6844 = vpop.f32.mrb[0].mxu0
        %v6845 = vadd.f32 0.0, %v6844
        %v6846 = vpop.f32.mrb[0].mxu0
        %v6847 = vpop.f32.mrb[0].mxu0
        %v6848 = vadd.f32 0.0, %v6847
        %v6849 = vpop.f32.mrb[0].mxu0
        %6850 = vmatprep.mubr.bf16.mxu0 0
        %6851 = vmatmul.mubr.bf16.gmra.mrb[0].mxu0 %v6758
        %v6852 = vpop.f32.mrb[0].mxu0
        %v6853 = vadd.f32 0.0, %v6852
        %v6854 = vpop.f32.mrb[0].mxu0
        %v6855 = vpop.f32.mrb[0].mxu0
        %v6856 = vadd.f32 0.0, %v6855
        %v6857 = vpop.f32.mrb[0].mxu0
        %6858 = vmatprep.mubr.bf16.mxu0 0
        %6859 = vmatmul.mubr.bf16.gmra.mrb[0].mxu0 %v6761
        %v6860 = vpop.f32.mrb[0].mxu0
        %v6861 = vadd.f32 0.0, %v6860
        %v6862 = vpop.f32.mrb[0].mxu0
        %v6863 = vpop.f32.mrb[0].mxu0
        %v6864 = vadd.f32 0.0, %v6863
        %v6865 = vpop.f32.mrb[0].mxu0
        %6866 = vmatprep.mubr.bf16.mxu0 0
        %6867 = vmatmul.mubr.bf16.gmra.mrb[0].mxu0 %v6764
        %v6868 = vpop.f32.mrb[0].mxu0
        %v6869 = vadd.f32 0.0, %v6868
        %v6870 = vpop.f32.mrb[0].mxu0
        %v6871 = vpop.f32.mrb[0].mxu0
        %v6872 = vadd.f32 0.0, %v6871
        %v6873 = vpop.f32.mrb[0].mxu0
        %6874 = vmatprep.mubr.bf16.mxu0 0
        %6875 = vmatmul.mubr.bf16.gmra.mrb[0].mxu0 %v6767
        %v6876 = vpop.f32.mrb[0].mxu0
        %v6877 = vadd.f32 0.0, %v6876
        %v6878 = vpop.f32.mrb[0].mxu0
        %v6879 = vpop.f32.mrb[0].mxu0
        %v6880 = vadd.f32 0.0, %v6879
        %v6881 = vpop.f32.mrb[0].mxu0
        %6882 = vmatprep.mubr.bf16.mxu0 0
        %6883 = vmatmul.mubr.bf16.gmra.mrb[0].mxu0 %v6770
        %v6884 = vpop.f32.mrb[0].mxu0
        %v6885 = vadd.f32 0.0, %v6884
        %v6886 = vpop.f32.mrb[0].mxu0
        %v6887 = vpop.f32.mrb[0].mxu0
        %v6888 = vadd.f32 0.0, %v6887
        %v6889 = vpop.f32.mrb[0].mxu0
        %6890 = vmatprep.mubr.bf16.mxu0 0
        %6891 = vmatmul.mubr.bf16.gmra.mrb[0].mxu0 %v6773
        %v6892 = vpop.f32.mrb[0].mxu0
        %v6893 = vadd.f32 0.0, %v6892
        %v6894 = vpop.f32.mrb[0].mxu0
        %v6895 = vpop.f32.mrb[0].mxu0
        %v6896 = vadd.f32 0.0, %v6895
        %v6897 = vpop.f32.mrb[0].mxu0
        %6898 = vmatprep.mubr.bf16.mxu0 0
        %6899 = vmatmul.mubr.bf16.gmra.mrb[0].mxu0 %v6776
        %v6900 = vpop.f32.mrb[0].mxu0
        %v6901 = vadd.f32 0.0, %v6900
        %v6902 = vpop.f32.mrb[0].mxu0
        %v6903 = vpop.f32.mrb[0].mxu0
        %v6904 = vadd.f32 0.0, %v6903
        %v6905 = vpop.f32.mrb[0].mxu0
        %6906 = vmatprep.mubr.bf16.mxu0 0
        %6907 = vmatmul.mubr.bf16.gmra.mrb[0].mxu0 %v6779
        %v6908 = vpop.f32.mrb[0].mxu0
        %v6909 = vadd.f32 0.0, %v6908
        %v6910 = vpop.f32.mrb[0].mxu0
        %v6911 = vpop.f32.mrb[0].mxu0
        %v6912 = vadd.f32 0.0, %v6911
        %v6913 = vpop.f32.mrb[0].mxu0
        %6914 = vmatprep.mubr.bf16.mxu0 0
        %6915 = vmatmul.mubr.bf16.gmra.mrb[0].mxu0 %v6782
        %v6916 = vpop.f32.mrb[0].mxu0
        %v6917 = vadd.f32 0.0, %v6916
        %v6918 = vpop.f32.mrb[0].mxu0
        %v6919 = vpop.f32.mrb[0].mxu0
        %v6920 = vadd.f32 0.0, %v6919
        %v6921 = vpop.f32.mrb[0].mxu0
        %6922 = vmatprep.mubr.bf16.mxu0 0
        %6923 = vmatmul.mubr.bf16.gmra.mrb[0].mxu0 %v6785
        %v6924 = vpop.f32.mrb[0].mxu0
        %v6925 = vadd.f32 0.0, %v6924
        %v6926 = vpop.f32.mrb[0].mxu0
        %v6927 = vpop.f32.mrb[0].mxu0
        %v6928 = vadd.f32 0.0, %v6927
        %v6929 = vpop.f32.mrb[0].mxu0
        %6930 = vmatprep.mubr.bf16.mxu0 0
        %6931 = vmatmul.mubr.bf16.gmra.mrb[0].mxu0 %v6788
        %v6932 = vpop.f32.mrb[0].mxu0
        %v6933 = vadd.f32 0.0, %v6932
        %v6934 = vpop.f32.mrb[0].mxu0
        %v6935 = vpop.f32.mrb[0].mxu0
        %v6936 = vadd.f32 0.0, %v6935
        %v6937 = vpop.f32.mrb[0].mxu0
        %6938 = vmatprep.mubr.bf16.mxu0 0
        %6939 = vmatmul.mubr.bf16.gmra.mrb[0].mxu0 %v6791
        %v6940 = vpop.f32.mrb[0].mxu0
        %v6941 = vadd.f32 0.0, %v6940
        %v6942 = vpop.f32.mrb[0].mxu0
        %v6943 = vpop.f32.mrb[0].mxu0
        %v6944 = vadd.f32 0.0, %v6943
        %v6945 = vpop.f32.mrb[0].mxu0
        %6946 = vmatprep.mubr.bf16.mxu0 0
        %6947 = vmatmul.mubr.bf16.gmra.mrb[0].mxu0 %v6794
        %v6948 = vpop.f32.mrb[0].mxu0
        %v6949 = vadd.f32 0.0, %v6948
        %v6950 = vpop.f32.mrb[0].mxu0
        %v6951 = vpop.f32.mrb[0].mxu0
        %v6952 = vadd.f32 0.0, %v6951
        %v6953 = vpop.f32.mrb[0].mxu0
        %6954 = vmatprep.mubr.bf16.mxu0 0
        %6955 = vmatmul.mubr.bf16.gmra.mrb[0].mxu0 %v6797
        %v6956 = vpop.f32.mrb[0].mxu0
        %v6957 = vadd.f32 0.0, %v6956
        %v6958 = vpop.f32.mrb[0].mxu0
        %v6959 = vpop.f32.mrb[0].mxu0
        %v6960 = vadd.f32 0.0, %v6959
        %v6961 = vpop.f32.mrb[0].mxu0
        %6962 = vdwg.mxu0
        %v6963 = vadd.f32 %v6493, %v6837
        %v6964 = vadd.f32 %v6494, %v6840
        %v6965 = vadd.f32 %v6495, %v6845
        %v6966 = vadd.f32 %v6496, %v6848
        %v6967 = vadd.f32 %v6497, %v6853
        %v6968 = vadd.f32 %v6498, %v6856
        %v6969 = vadd.f32 %v6499, %v6861
        %v6970 = vadd.f32 %v6500, %v6864
        %v6971 = vadd.f32 %v6501, %v6869
        %v6972 = vadd.f32 %v6502, %v6872
        %v6973 = vadd.f32 %v6503, %v6877
        %v6974 = vadd.f32 %v6504, %v6880
        %v6975 = vadd.f32 %v6505, %v6885
        %v6976 = vadd.f32 %v6506, %v6888
        %v6977 = vadd.f32 %v6507, %v6893
        %v6978 = vadd.f32 %v6508, %v6896
        %v6979 = vadd.f32 %v6509, %v6901
        %v6980 = vadd.f32 %v6510, %v6904
        %v6981 = vadd.f32 %v6511, %v6909
        %v6982 = vadd.f32 %v6512, %v6912
        %v6983 = vadd.f32 %v6513, %v6917
        %v6984 = vadd.f32 %v6514, %v6920
        %v6985 = vadd.f32 %v6515, %v6925
        %v6986 = vadd.f32 %v6516, %v6928
        %v6987 = vadd.f32 %v6517, %v6933
        %v6988 = vadd.f32 %v6518, %v6936
        %v6989 = vadd.f32 %v6519, %v6941
        %v6990 = vadd.f32 %v6520, %v6944
        %v6991 = vadd.f32 %v6521, %v6949
        %v6992 = vadd.f32 %v6522, %v6952
        %v6993 = vadd.f32 %v6523, %v6957
        %v6994 = vadd.f32 %v6524, %v6960
        %v6995 = vld [vmem:[%s6262] sm:$0xfe]
        %v6996 = vld [vmem:[%s6262 + $0x10] sm:$0xfe]
        %v6997 = vld [vmem:[%s6262 + $0x20] sm:$0xfe]
        %v6998 = vld [vmem:[%s6262 + $0x30] sm:$0xfe]
        %v6999 = vld [vmem:[%s6262 + $0x40] sm:$0xfe]
        %v7000 = vld [vmem:[%s6262 + $0x50] sm:$0xfe]
        %v7001 = vld [vmem:[%s6262 + $0x60] sm:$0xfe]
        %v7002 = vld [vmem:[%s6262 + $0x70] sm:$0xfe]
        %v7003 = vld [vmem:[%s6262 + $0x80] sm:$0xfe]
        %v7004 = vld [vmem:[%s6262 + $0x90] sm:$0xfe]
        %v7005 = vld [vmem:[%s6262 + $0xa0] sm:$0xfe]
        %v7006 = vld [vmem:[%s6262 + $0xb0] sm:$0xfe]
        %v7007 = vld [vmem:[%s6262 + $0xc0] sm:$0xfe]
        %v7008 = vld [vmem:[%s6262 + $0xd0] sm:$0xfe]
        %v7009 = vld [vmem:[%s6262 + $0xe0] sm:$0xfe]
        %v7010 = vld [vmem:[%s6262 + $0xf0] sm:$0xfe]
        %v7043 = vrot.slane %v6995, 1
        %v7044 = vrot.slane %v6526, 1
        %v7045 = vsel %vm1319, %v7043, %v7044
        %v7046 = vrot.slane %v6996, 1
        %v7047 = vrot.slane %v6528, 1
        %v7048 = vsel %vm1319, %v7046, %v7047
        %v7049 = vrot.slane %v6997, 1
        %v7050 = vrot.slane %v6530, 1
        %v7051 = vsel %vm1319, %v7049, %v7050
        %v7052 = vrot.slane %v6998, 1
        %v7053 = vrot.slane %v6532, 1
        %v7054 = vsel %vm1319, %v7052, %v7053
        %v7055 = vrot.slane %v6999, 1
        %v7056 = vrot.slane %v6534, 1
        %v7057 = vsel %vm1319, %v7055, %v7056
        %v7058 = vrot.slane %v7000, 1
        %v7059 = vrot.slane %v6536, 1
        %v7060 = vsel %vm1319, %v7058, %v7059
        %v7061 = vrot.slane %v7001, 1
        %v7062 = vrot.slane %v6538, 1
        %v7063 = vsel %vm1319, %v7061, %v7062
        %v7064 = vrot.slane %v7002, 1
        %v7065 = vrot.slane %v6540, 1
        %v7066 = vsel %vm1319, %v7064, %v7065
        %v7067 = vrot.slane %v7003, 1
        %v7068 = vrot.slane %v6542, 1
        %v7069 = vsel %vm1319, %v7067, %v7068
        %v7070 = vrot.slane %v7004, 1
        %v7071 = vrot.slane %v6544, 1
        %v7072 = vsel %vm1319, %v7070, %v7071
        %v7073 = vrot.slane %v7005, 1
        %v7074 = vrot.slane %v6546, 1
        %v7075 = vsel %vm1319, %v7073, %v7074
        %v7076 = vrot.slane %v7006, 1
        %v7077 = vrot.slane %v6548, 1
        %v7078 = vsel %vm1319, %v7076, %v7077
        %v7079 = vrot.slane %v7007, 1
        %v7080 = vrot.slane %v6550, 1
        %v7081 = vsel %vm1319, %v7079, %v7080
        %v7082 = vrot.slane %v7008, 1
        %v7083 = vrot.slane %v6552, 1
        %v7084 = vsel %vm1319, %v7082, %v7083
        %v7085 = vrot.slane %v7009, 1
        %v7086 = vrot.slane %v6554, 1
        %v7087 = vsel %vm1319, %v7085, %v7086
        %v7088 = vrot.slane %v7010, 1
        %v7089 = vrot.slane %v6556, 1
        %v7090 = vsel %vm1319, %v7088, %v7089
        %s7091 = scalar_lea.vmem %s3, 32
        %v7092 = vld [vmem:[%s7091] sm:$0xf]
        %v7094 = vsel %vm3834, %v7045, 0
        %v7097 = vsel %vm3834, %v7048, 0
        %v7100 = vsel %vm3834, %v7051, 0
        %v7103 = vsel %vm3834, %v7054, 0
        %v7106 = vsel %vm3834, %v7057, 0
        %v7109 = vsel %vm3834, %v7060, 0
        %v7112 = vsel %vm3834, %v7063, 0
        %v7115 = vsel %vm3834, %v7066, 0
        %v7118 = vsel %vm3834, %v7069, 0
        %v7121 = vsel %vm3834, %v7072, 0
        %v7124 = vsel %vm3834, %v7075, 0
        %v7127 = vsel %vm3834, %v7078, 0
        %v7130 = vsel %vm3834, %v7081, 0
        %v7133 = vsel %vm3834, %v7084, 0
        %v7136 = vsel %vm3834, %v7087, 0
        %v7139 = vsel %vm3834, %v7090, 0
        %v7142 = vsel %vm4485, %v7092, 0
        %7144 = vmatprep.subr.bf16.mxu0 0
        %7145 = vmatpush1.bf16.msra.mxu0 %v7142
        %7146 = vmatprep.subr.bf16.mxu0 0
        %7147 = vmatpush1.bf16.msra.mxu0 0
        %7148 = vmatprep.subr.bf16.mxu0 0
        %7149 = vmatpush1.bf16.msra.mxu0 0
        %7150 = vmatprep.subr.bf16.mxu0 0
        %7151 = vmatpush1.bf16.msra.mxu0 0
        %7152 = vmatprep.subr.bf16.mxu0 0
        %7153 = vmatpush1.bf16.msra.mxu0 0
        %7154 = vmatprep.subr.bf16.mxu0 0
        %7155 = vmatpush1.bf16.msra.mxu0 0
        %7156 = vmatprep.subr.bf16.mxu0 0
        %7157 = vmatpush1.bf16.msra.mxu0 0
        %7158 = vmatprep.subr.bf16.mxu0 0
        %7159 = vmatpush1.bf16.msra.mxu0 0
        %7160 = vmatprep.subr.bf16.mxu0 0
        %7161 = vmatpush1.bf16.msra.mxu0 0
        %7162 = vmatprep.subr.bf16.mxu0 0
        %7163 = vmatpush1.bf16.msra.mxu0 0
        %7164 = vmatprep.subr.bf16.mxu0 0
        %7165 = vmatpush1.bf16.msra.mxu0 0
        %7166 = vmatprep.subr.bf16.mxu0 0
        %7167 = vmatpush1.bf16.msra.mxu0 0
        %7168 = vmatprep.subr.bf16.mxu0 0
        %7169 = vmatpush1.bf16.msra.mxu0 0
        %7170 = vmatprep.subr.bf16.mxu0 0
        %7171 = vmatpush1.bf16.msra.mxu0 0
        %7172 = vmatprep.subr.bf16.mxu0 0
        %7173 = vmatpush1.bf16.msra.mxu0 0
        %7174 = vmatprep.subr.bf16.mxu0 0
        %7175 = vmatpush1.bf16.msra.mxu0 0
        %7176 = vmatprep.mubr.bf16.mxu0 0
        %7177 = vmatmul.mubr.bf16.gmra.mrb[0].mxu0 %v7094
        %v7178 = vpop.f32.mrb[0].mxu0
        %v7179 = vadd.f32 0.0, %v7178
        %v7180 = vpop.f32.mrb[0].mxu0
        %v7181 = vpop.f32.mrb[0].mxu0
        %v7182 = vadd.f32 0.0, %v7181
        %v7183 = vpop.f32.mrb[0].mxu0
        %7184 = vmatprep.mubr.bf16.mxu0 0
        %7185 = vmatmul.mubr.bf16.gmra.mrb[0].mxu0 %v7097
        %v7186 = vpop.f32.mrb[0].mxu0
        %v7187 = vadd.f32 0.0, %v7186
        %v7188 = vpop.f32.mrb[0].mxu0
        %v7189 = vpop.f32.mrb[0].mxu0
        %v7190 = vadd.f32 0.0, %v7189
        %v7191 = vpop.f32.mrb[0].mxu0
        %7192 = vmatprep.mubr.bf16.mxu0 0
        %7193 = vmatmul.mubr.bf16.gmra.mrb[0].mxu0 %v7100
        %v7194 = vpop.f32.mrb[0].mxu0
        %v7195 = vadd.f32 0.0, %v7194
        %v7196 = vpop.f32.mrb[0].mxu0
        %v7197 = vpop.f32.mrb[0].mxu0
        %v7198 = vadd.f32 0.0, %v7197
        %v7199 = vpop.f32.mrb[0].mxu0
        %7200 = vmatprep.mubr.bf16.mxu0 0
        %7201 = vmatmul.mubr.bf16.gmra.mrb[0].mxu0 %v7103
        %v7202 = vpop.f32.mrb[0].mxu0
        %v7203 = vadd.f32 0.0, %v7202
        %v7204 = vpop.f32.mrb[0].mxu0
        %v7205 = vpop.f32.mrb[0].mxu0
        %v7206 = vadd.f32 0.0, %v7205
        %v7207 = vpop.f32.mrb[0].mxu0
        %7208 = vmatprep.mubr.bf16.mxu0 0
        %7209 = vmatmul.mubr.bf16.gmra.mrb[0].mxu0 %v7106
        %v7210 = vpop.f32.mrb[0].mxu0
        %v7211 = vadd.f32 0.0, %v7210
        %v7212 = vpop.f32.mrb[0].mxu0
        %v7213 = vpop.f32.mrb[0].mxu0
        %v7214 = vadd.f32 0.0, %v7213
        %v7215 = vpop.f32.mrb[0].mxu0
        %7216 = vmatprep.mubr.bf16.mxu0 0
        %7217 = vmatmul.mubr.bf16.gmra.mrb[0].mxu0 %v7109
        %v7218 = vpop.f32.mrb[0].mxu0
        %v7219 = vadd.f32 0.0, %v7218
        %v7220 = vpop.f32.mrb[0].mxu0
        %v7221 = vpop.f32.mrb[0].mxu0
        %v7222 = vadd.f32 0.0, %v7221
        %v7223 = vpop.f32.mrb[0].mxu0
        %7224 = vmatprep.mubr.bf16.mxu0 0
        %7225 = vmatmul.mubr.bf16.gmra.mrb[0].mxu0 %v7112
        %v7226 = vpop.f32.mrb[0].mxu0
        %v7227 = vadd.f32 0.0, %v7226
        %v7228 = vpop.f32.mrb[0].mxu0
        %v7229 = vpop.f32.mrb[0].mxu0
        %v7230 = vadd.f32 0.0, %v7229
        %v7231 = vpop.f32.mrb[0].mxu0
        %7232 = vmatprep.mubr.bf16.mxu0 0
        %7233 = vmatmul.mubr.bf16.gmra.mrb[0].mxu0 %v7115
        %v7234 = vpop.f32.mrb[0].mxu0
        %v7235 = vadd.f32 0.0, %v7234
        %v7236 = vpop.f32.mrb[0].mxu0
        %v7237 = vpop.f32.mrb[0].mxu0
        %v7238 = vadd.f32 0.0, %v7237
        %v7239 = vpop.f32.mrb[0].mxu0
        %7240 = vmatprep.mubr.bf16.mxu0 0
        %7241 = vmatmul.mubr.bf16.gmra.mrb[0].mxu0 %v7118
        %v7242 = vpop.f32.mrb[0].mxu0
        %v7243 = vadd.f32 0.0, %v7242
        %v7244 = vpop.f32.mrb[0].mxu0
        %v7245 = vpop.f32.mrb[0].mxu0
        %v7246 = vadd.f32 0.0, %v7245
        %v7247 = vpop.f32.mrb[0].mxu0
        %7248 = vmatprep.mubr.bf16.mxu0 0
        %7249 = vmatmul.mubr.bf16.gmra.mrb[0].mxu0 %v7121
        %v7250 = vpop.f32.mrb[0].mxu0
        %v7251 = vadd.f32 0.0, %v7250
        %v7252 = vpop.f32.mrb[0].mxu0
        %v7253 = vpop.f32.mrb[0].mxu0
        %v7254 = vadd.f32 0.0, %v7253
        %v7255 = vpop.f32.mrb[0].mxu0
        %7256 = vmatprep.mubr.bf16.mxu0 0
        %7257 = vmatmul.mubr.bf16.gmra.mrb[0].mxu0 %v7124
        %v7258 = vpop.f32.mrb[0].mxu0
        %v7259 = vadd.f32 0.0, %v7258
        %v7260 = vpop.f32.mrb[0].mxu0
        %v7261 = vpop.f32.mrb[0].mxu0
        %v7262 = vadd.f32 0.0, %v7261
        %v7263 = vpop.f32.mrb[0].mxu0
        %7264 = vmatprep.mubr.bf16.mxu0 0
        %7265 = vmatmul.mubr.bf16.gmra.mrb[0].mxu0 %v7127
        %v7266 = vpop.f32.mrb[0].mxu0
        %v7267 = vadd.f32 0.0, %v7266
        %v7268 = vpop.f32.mrb[0].mxu0
        %v7269 = vpop.f32.mrb[0].mxu0
        %v7270 = vadd.f32 0.0, %v7269
        %v7271 = vpop.f32.mrb[0].mxu0
        %7272 = vmatprep.mubr.bf16.mxu0 0
        %7273 = vmatmul.mubr.bf16.gmra.mrb[0].mxu0 %v7130
        %v7274 = vpop.f32.mrb[0].mxu0
        %v7275 = vadd.f32 0.0, %v7274
        %v7276 = vpop.f32.mrb[0].mxu0
        %v7277 = vpop.f32.mrb[0].mxu0
        %v7278 = vadd.f32 0.0, %v7277
        %v7279 = vpop.f32.mrb[0].mxu0
        %7280 = vmatprep.mubr.bf16.mxu0 0
        %7281 = vmatmul.mubr.bf16.gmra.mrb[0].mxu0 %v7133
        %v7282 = vpop.f32.mrb[0].mxu0
        %v7283 = vadd.f32 0.0, %v7282
        %v7284 = vpop.f32.mrb[0].mxu0
        %v7285 = vpop.f32.mrb[0].mxu0
        %v7286 = vadd.f32 0.0, %v7285
        %v7287 = vpop.f32.mrb[0].mxu0
        %7288 = vmatprep.mubr.bf16.mxu0 0
        %7289 = vmatmul.mubr.bf16.gmra.mrb[0].mxu0 %v7136
        %v7290 = vpop.f32.mrb[0].mxu0
        %v7291 = vadd.f32 0.0, %v7290
        %v7292 = vpop.f32.mrb[0].mxu0
        %v7293 = vpop.f32.mrb[0].mxu0
        %v7294 = vadd.f32 0.0, %v7293
        %v7295 = vpop.f32.mrb[0].mxu0
        %7296 = vmatprep.mubr.bf16.mxu0 0
        %7297 = vmatmul.mubr.bf16.gmra.mrb[0].mxu0 %v7139
        %v7298 = vpop.f32.mrb[0].mxu0
        %v7299 = vadd.f32 0.0, %v7298
        %v7300 = vpop.f32.mrb[0].mxu0
        %v7301 = vpop.f32.mrb[0].mxu0
        %v7302 = vadd.f32 0.0, %v7301
        %v7303 = vpop.f32.mrb[0].mxu0
        %7304 = vdwg.mxu0
        %v7305 = vadd.f32 %v6963, %v7179
        %v7306 = vadd.f32 %v6964, %v7182
        %v7307 = vadd.f32 %v6965, %v7187
        %v7308 = vadd.f32 %v6966, %v7190
        %v7309 = vadd.f32 %v6967, %v7195
        %v7310 = vadd.f32 %v6968, %v7198
        %v7311 = vadd.f32 %v6969, %v7203
        %v7312 = vadd.f32 %v6970, %v7206
        %v7313 = vadd.f32 %v6971, %v7211
        %v7314 = vadd.f32 %v6972, %v7214
        %v7315 = vadd.f32 %v6973, %v7219
        %v7316 = vadd.f32 %v6974, %v7222
        %v7317 = vadd.f32 %v6975, %v7227
        %v7318 = vadd.f32 %v6976, %v7230
        %v7319 = vadd.f32 %v6977, %v7235
        %v7320 = vadd.f32 %v6978, %v7238
        %v7321 = vadd.f32 %v6979, %v7243
        %v7322 = vadd.f32 %v6980, %v7246
        %v7323 = vadd.f32 %v6981, %v7251
        %v7324 = vadd.f32 %v6982, %v7254
        %v7325 = vadd.f32 %v6983, %v7259
        %v7326 = vadd.f32 %v6984, %v7262
        %v7327 = vadd.f32 %v6985, %v7267
        %v7328 = vadd.f32 %v6986, %v7270
        %v7329 = vadd.f32 %v6987, %v7275
        %v7330 = vadd.f32 %v6988, %v7278
        %v7331 = vadd.f32 %v6989, %v7283
        %v7332 = vadd.f32 %v6990, %v7286
        %v7333 = vadd.f32 %v6991, %v7291
        %v7334 = vadd.f32 %v6992, %v7294
        %v7335 = vadd.f32 %v6993, %v7299
        %v7336 = vadd.f32 %v6994, %v7302
        %v7337 = vld [vmem:[%s4] sm:$0x1]
        %v7339 = vlaneseq
        %v7340 = vshrl.u32 %v7339, 7
        %v7341 = vsub.s32 0, %v7340
        %v7342 = vrot.slane %v7337, %v7341
        %v7344 = vadd.f32 %v7305, %v7342
        %v7345 = vadd.f32 %v7306, %v7342
        %v7346 = vadd.f32 %v7307, %v7342
        %v7347 = vadd.f32 %v7308, %v7342
        %v7348 = vadd.f32 %v7309, %v7342
        %v7349 = vadd.f32 %v7310, %v7342
        %v7350 = vadd.f32 %v7311, %v7342
        %v7351 = vadd.f32 %v7312, %v7342
        %v7352 = vadd.f32 %v7313, %v7342
        %v7353 = vadd.f32 %v7314, %v7342
        %v7354 = vadd.f32 %v7315, %v7342
        %v7355 = vadd.f32 %v7316, %v7342
        %v7356 = vadd.f32 %v7317, %v7342
        %v7357 = vadd.f32 %v7318, %v7342
        %v7358 = vadd.f32 %v7319, %v7342
        %v7359 = vadd.f32 %v7320, %v7342
        %v7360 = vadd.f32 %v7321, %v7342
        %v7361 = vadd.f32 %v7322, %v7342
        %v7362 = vadd.f32 %v7323, %v7342
        %v7363 = vadd.f32 %v7324, %v7342
        %v7364 = vadd.f32 %v7325, %v7342
        %v7365 = vadd.f32 %v7326, %v7342
        %v7366 = vadd.f32 %v7327, %v7342
        %v7367 = vadd.f32 %v7328, %v7342
        %v7368 = vadd.f32 %v7329, %v7342
        %v7369 = vadd.f32 %v7330, %v7342
        %v7370 = vadd.f32 %v7331, %v7342
        %v7371 = vadd.f32 %v7332, %v7342
        %v7372 = vadd.f32 %v7333, %v7342
        %v7373 = vadd.f32 %v7334, %v7342
        %v7374 = vadd.f32 %v7335, %v7342
        %v7375 = vadd.f32 %v7336, %v7342
        %v7376 = vmax.f32 %v7344, 0.0
        %v7377 = vmax.f32 %v7345, 0.0
        %v7378 = vmax.f32 %v7346, 0.0
        %v7379 = vmax.f32 %v7347, 0.0
        %v7380 = vmax.f32 %v7348, 0.0
        %v7381 = vmax.f32 %v7349, 0.0
        %v7382 = vmax.f32 %v7350, 0.0
        %v7383 = vmax.f32 %v7351, 0.0
        %v7384 = vmax.f32 %v7352, 0.0
        %v7385 = vmax.f32 %v7353, 0.0
        %v7386 = vmax.f32 %v7354, 0.0
        %v7387 = vmax.f32 %v7355, 0.0
        %v7388 = vmax.f32 %v7356, 0.0
        %v7389 = vmax.f32 %v7357, 0.0
        %v7390 = vmax.f32 %v7358, 0.0
        %v7391 = vmax.f32 %v7359, 0.0
        %v7392 = vmax.f32 %v7360, 0.0
        %v7393 = vmax.f32 %v7361, 0.0
        %v7394 = vmax.f32 %v7362, 0.0
        %v7395 = vmax.f32 %v7363, 0.0
        %v7396 = vmax.f32 %v7364, 0.0
        %v7397 = vmax.f32 %v7365, 0.0
        %v7398 = vmax.f32 %v7366, 0.0
        %v7399 = vmax.f32 %v7367, 0.0
        %v7400 = vmax.f32 %v7368, 0.0
        %v7401 = vmax.f32 %v7369, 0.0
        %v7402 = vmax.f32 %v7370, 0.0
        %v7403 = vmax.f32 %v7371, 0.0
        %v7404 = vmax.f32 %v7372, 0.0
        %v7405 = vmax.f32 %v7373, 0.0
        %v7406 = vmax.f32 %v7374, 0.0
        %v7407 = vmax.f32 %v7375, 0.0
        %v7408 = vpack.c.bf16 %v7377, %v7376
        %v7409 = vpack.c.bf16 %v7379, %v7378
        %v7410 = vpack.c.bf16 %v7381, %v7380
        %v7411 = vpack.c.bf16 %v7383, %v7382
        %v7412 = vpack.c.bf16 %v7385, %v7384
        %v7413 = vpack.c.bf16 %v7387, %v7386
        %v7414 = vpack.c.bf16 %v7389, %v7388
        %v7415 = vpack.c.bf16 %v7391, %v7390
        %v7416 = vpack.c.bf16 %v7393, %v7392
        %v7417 = vpack.c.bf16 %v7395, %v7394
        %v7418 = vpack.c.bf16 %v7397, %v7396
        %v7419 = vpack.c.bf16 %v7399, %v7398
        %v7420 = vpack.c.bf16 %v7401, %v7400
        %v7421 = vpack.c.bf16 %v7403, %v7402
        %v7422 = vpack.c.bf16 %v7405, %v7404
        %v7423 = vpack.c.bf16 %v7407, %v7406
        %v7440 = vunpack.c.l.b16 %v7408
        %v7441 = vunpack.c.h.b16 %v7408
        %v7442 = vunpack.c.l.b16 %v7409
        %v7443 = vunpack.c.h.b16 %v7409
        %v7444 = vunpack.c.l.b16 %v7410
        %v7445 = vunpack.c.h.b16 %v7410
        %v7446 = vunpack.c.l.b16 %v7411
        %v7447 = vunpack.c.h.b16 %v7411
        %v7448 = vunpack.c.l.b16 %v7412
        %v7449 = vunpack.c.h.b16 %v7412
        %v7450 = vunpack.c.l.b16 %v7413
        %v7451 = vunpack.c.h.b16 %v7413
        %v7452 = vunpack.c.l.b16 %v7414
        %v7453 = vunpack.c.h.b16 %v7414
        %v7454 = vunpack.c.l.b16 %v7415
        %v7455 = vunpack.c.h.b16 %v7415
        %v7456 = vunpack.c.l.b16 %v7416
        %v7457 = vunpack.c.h.b16 %v7416
        %v7458 = vunpack.c.l.b16 %v7417
        %v7459 = vunpack.c.h.b16 %v7417
        %v7460 = vunpack.c.l.b16 %v7418
        %v7461 = vunpack.c.h.b16 %v7418
        %v7462 = vunpack.c.l.b16 %v7419
        %v7463 = vunpack.c.h.b16 %v7419
        %v7464 = vunpack.c.l.b16 %v7420
        %v7465 = vunpack.c.h.b16 %v7420
        %v7466 = vunpack.c.l.b16 %v7421
        %v7467 = vunpack.c.h.b16 %v7421
        %v7468 = vunpack.c.l.b16 %v7422
        %v7469 = vunpack.c.h.b16 %v7422
        %v7470 = vunpack.c.l.b16 %v7423
        %v7471 = vunpack.c.h.b16 %v7423
        %v7472 = vpack.c.b16 %v7440, %v7440
        %v7473 = vpack.c.b16 %v7441, %v7441
        %v7474 = vpack.c.b16 %v7442, %v7442
        %v7475 = vpack.c.b16 %v7443, %v7443
        %v7476 = vpack.c.b16 %v7444, %v7444
        %v7477 = vpack.c.b16 %v7445, %v7445
        %v7478 = vpack.c.b16 %v7446, %v7446
        %v7479 = vpack.c.b16 %v7447, %v7447
        %v7480 = vpack.c.b16 %v7448, %v7448
        %v7481 = vpack.c.b16 %v7449, %v7449
        %v7482 = vpack.c.b16 %v7450, %v7450
        %v7483 = vpack.c.b16 %v7451, %v7451
        %v7484 = vpack.c.b16 %v7452, %v7452
        %v7485 = vpack.c.b16 %v7453, %v7453
        %v7486 = vpack.c.b16 %v7454, %v7454
        %v7487 = vpack.c.b16 %v7455, %v7455
        %v7488 = vpack.c.b16 %v7456, %v7456
        %v7489 = vpack.c.b16 %v7457, %v7457
        %v7490 = vpack.c.b16 %v7458, %v7458
        %v7491 = vpack.c.b16 %v7459, %v7459
        %v7492 = vpack.c.b16 %v7460, %v7460
        %v7493 = vpack.c.b16 %v7461, %v7461
        %v7494 = vpack.c.b16 %v7462, %v7462
        %v7495 = vpack.c.b16 %v7463, %v7463
        %v7496 = vpack.c.b16 %v7464, %v7464
        %v7497 = vpack.c.b16 %v7465, %v7465
        %v7498 = vpack.c.b16 %v7466, %v7466
        %v7499 = vpack.c.b16 %v7467, %v7467
        %v7500 = vpack.c.b16 %v7468, %v7468
        %v7501 = vpack.c.b16 %v7469, %v7469
        %v7502 = vpack.c.b16 %v7470, %v7470
        %v7503 = vpack.c.b16 %v7471, %v7471
        %7536 = vst [vmem:[%s217] sm:$0xf] %v7472
        %7537 = vst [vmem:[%s217 + $0x4] sm:$0xf] %v7473
        %7538 = vst [vmem:[%s217 + $0x8] sm:$0xf] %v7474
        %7539 = vst [vmem:[%s217 + $0xc] sm:$0xf] %v7475
        %7540 = vst [vmem:[%s217 + $0x10] sm:$0xf] %v7476
        %7541 = vst [vmem:[%s217 + $0x14] sm:$0xf] %v7477
        %7542 = vst [vmem:[%s217 + $0x18] sm:$0xf] %v7478
        %7543 = vst [vmem:[%s217 + $0x1c] sm:$0xf] %v7479
        %7544 = vst [vmem:[%s217 + $0x20] sm:$0xf] %v7480
        %7545 = vst [vmem:[%s217 + $0x24] sm:$0xf] %v7481
        %7546 = vst [vmem:[%s217 + $0x28] sm:$0xf] %v7482
        %7547 = vst [vmem:[%s217 + $0x2c] sm:$0xf] %v7483
        %7548 = vst [vmem:[%s217 + $0x30] sm:$0xf] %v7484
        %7549 = vst [vmem:[%s217 + $0x34] sm:$0xf] %v7485
        %7550 = vst [vmem:[%s217 + $0x38] sm:$0xf] %v7486
        %7551 = vst [vmem:[%s217 + $0x3c] sm:$0xf] %v7487
        %7552 = vst [vmem:[%s217 + $0x40] sm:$0xf] %v7488
        %7553 = vst [vmem:[%s217 + $0x44] sm:$0xf] %v7489
        %7554 = vst [vmem:[%s217 + $0x48] sm:$0xf] %v7490
        %7555 = vst [vmem:[%s217 + $0x4c] sm:$0xf] %v7491
        %7556 = vst [vmem:[%s217 + $0x50] sm:$0xf] %v7492
        %7557 = vst [vmem:[%s217 + $0x54] sm:$0xf] %v7493
        %7558 = vst [vmem:[%s217 + $0x58] sm:$0xf] %v7494
        %7559 = vst [vmem:[%s217 + $0x5c] sm:$0xf] %v7495
        %7560 = vst [vmem:[%s217 + $0x60] sm:$0xf] %v7496
        %7561 = vst [vmem:[%s217 + $0x64] sm:$0xf] %v7497
        %7562 = vst [vmem:[%s217 + $0x68] sm:$0xf] %v7498
        %7563 = vst [vmem:[%s217 + $0x6c] sm:$0xf] %v7499
        %7564 = vst [vmem:[%s217 + $0x70] sm:$0xf] %v7500
        %7565 = vst [vmem:[%s217 + $0x74] sm:$0xf] %v7501
        %7566 = vst [vmem:[%s217 + $0x78] sm:$0xf] %v7502
        %7567 = vst [vmem:[%s217 + $0x7c] sm:$0xf] %v7503
        %s7568 = sand.u32 %s137, 1
        %s7569 = scalar_lea.sflag [#allocation5], %s7568
        %s7570 = sand.u32 %s137, 1
        %s7571 = smul.addr %s7570, 128
        %s7572 = scalar_lea.vmem [#allocation4], %s7571
        // Predicated region
        $region41: #{tpu_custom_call.1} parent=39 // pred_check
          %p7573 = pneg %p147
        $region42: #{tpu_custom_call.1} parent=39 // pred_check_branch
          %7575 = sbr.rel (%p7573) target = $region44
        $region43: #{tpu_custom_call.1} parent=39 // pred_region
          %s7577 = ssub.s32 2048, 2048
          %7578 = vsyncadd %s7569, %s7577
          %s7579 = smul.addr %s19, 32
          %s7580 = smul.addr %s7579, 64
          %s7581 = scalar_lea.hbm %s5, %s7580
          %s7582 = sshll.u32 %s7572, 4
          %s7583 = int_to_ptr.vmem [resolvable:$true] %s7582
          %7588 = dma.vmem_to_hbm [thread:$0]  %s7583, 2048, %s7581, %s7569, 64, 64, 4
        $region44: #{tpu_custom_call.1} parent=39 // pred_fallthru
          _
      $region40: #{tpu_custom_call.1} parent=5 // pred_fallthru
        _
      %p7589 = scmp.le.s32.totalorder 2, %s14
      // Predicated region
      $region45: #{tpu_custom_call.1} parent=5 // pred_check
        %p7590 = pneg %p7589
      $region46: #{tpu_custom_call.1} parent=5 // pred_check_branch
        %7592 = sbr.rel (%p7590) target = $region48
      $region47: #{tpu_custom_call.1} parent=5 // pred_region
        %s7593 = ssub.s32 %s14, 2
        // Predicated region
        $region49: #{tpu_custom_call.1} parent=47 // pred_check
          %p7594 = pneg %p153
        $region50: #{tpu_custom_call.1} parent=47 // pred_check_branch
          %7596 = sbr.rel (%p7594) target = $region52
        $region51: #{tpu_custom_call.1} parent=47 // pred_region
          %s7597 = sand.u32 %s138, 1
          %s7598 = scalar_lea.sflag [#allocation5], %s7597
          %s7599 = sand.u32 %s138, 1
          %s7600 = smul.addr %s7599, 128
          %s7601 = scalar_lea.vmem [#allocation4], %s7600
          %7602 = dma.done %s7598, 2048
        $region52: #{tpu_custom_call.1} parent=47 // pred_fallthru
          _
      $region48: #{tpu_custom_call.1} parent=5 // pred_fallthru
        _
    $region6: #{tpu_custom_call.1} parent=1 // loop_footer
      %s18 = sadd.s32 1, %s14
    $region7: #{tpu_custom_call.1} parent=1 // loop_footer_branch
      %13 = sbr.rel target = $region3
    $region8: #{tpu_custom_call.1} parent=1 // loop_exit
      _
    %7603 = vsyncpa [#allocation5], 1
    %s7604 = scalar_lea.sflag [#allocation5], 1
    %7605 = vsyncpa %s7604, 1

</llo_original>
